<compile_context>
chip_gen: v5e
topology: v5e:2x2
jax: 0.10.0
libtpu: 0.0.40
codegen_flags: <defaults>
</compile_context>

<pallas_src>
import functools

import jax
import jax.numpy as jnp
from jax.experimental import pallas as pl
from jax.experimental.pallas import tpu as pltpu


# ----------------------------------------------------------------------------
# Pallas kernels
# ----------------------------------------------------------------------------
def _conv_bn_kernel(x_ref, w_ref, b_ref, g_ref, be_ref,
                    y_ref, sc_ref, sh_ref, *, inv_m, eps):
    """Conv-as-matmul (single full block) + bias + BatchNorm-stat epilogue.

    Because the whole (M, C) conv output lives in this one invocation, the
    batch mean/variance (two-pass, numerically stable) and the affine
    scale/shift are computed right here on the VPU/EUP -- no XLA glue ops.

    x_ref: (M, K)   w_ref: (K, C)   b/g/be_ref: (1, C)
    y_ref: (M, C)   sc_ref/sh_ref: (1, C)   with  bn(y) == y*scale + shift
    """
    y = jnp.dot(x_ref[...], w_ref[...], preferred_element_type=jnp.float32)
    y = y + b_ref[...]
    y_ref[...] = y
    mean = jnp.sum(y, axis=0, keepdims=True) * inv_m
    d = y - mean
    var = jnp.sum(d * d, axis=0, keepdims=True) * inv_m      # biased (train-mode norm)
    scale = g_ref[...] * jax.lax.rsqrt(var + eps)             # EUP rsqrt
    sc_ref[...] = scale
    sh_ref[...] = be_ref[...] - mean * scale


def _bn_relu_pool_kernel(a_ref, b_ref, c_ref, d_ref, sc_ref, sh_ref, o_ref):
    """Fused BatchNorm-affine + ReLU + 2x2 max-pool (layer 1).

    a..d are the four pooling-window taps, lane-dense packed (last dim 128).
    relu(max_i(x_i*scale + shift)) == maxpool(relu(bn(x))) (ReLU monotone).
    """
    sc = sc_ref[...]
    sh = sh_ref[...]
    m = jnp.maximum(jnp.maximum(a_ref[...] * sc + sh, b_ref[...] * sc + sh),
                    jnp.maximum(c_ref[...] * sc + sh, d_ref[...] * sc + sh))
    o_ref[...] = jnp.maximum(m, 0.0)


def _pool_fc_kernel(a_ref, b_ref, c_ref, d_ref, sc_ref, sh_ref,
                    w1_ref, b1_ref, w2_ref, b2_ref, o_ref):
    """Fused BN-affine + ReLU + 2x2/s2 max-pool + FC1 + ReLU + FC2 + sigmoid.

    Taps a..d arrive already flattened in NHWC order (N, Ho*Wo*C) so the
    pooled activation feeds FC1 directly -- the PyTorch NCHW flatten is folded
    into the FC1 weight row permutation done once in prepare_params.
    w1 is bf16 (halves the dominant HBM transfer); accumulation stays f32.
    """
    sc = sc_ref[...]
    sh = sh_ref[...]
    m = jnp.maximum(jnp.maximum(a_ref[...] * sc + sh, b_ref[...] * sc + sh),
                    jnp.maximum(c_ref[...] * sc + sh, d_ref[...] * sc + sh))
    x = jnp.maximum(m, 0.0)
    h = jnp.dot(x.astype(jnp.bfloat16), w1_ref[...],
                preferred_element_type=jnp.float32) + b1_ref[...]
    h = jnp.maximum(h, 0.0)
    y = jnp.dot(h, w2_ref[...], preferred_element_type=jnp.float32) + b2_ref[...]
    o_ref[...] = 0.5 * (jnp.tanh(0.5 * y) + 1.0)     # numerically-stable sigmoid


# ----------------------------------------------------------------------------
# Pallas wrappers
# ----------------------------------------------------------------------------
def pallas_conv_bn(patches, w, b, gamma, beta, eps=1e-5):
    """y = patches @ w + b plus per-channel BN scale/shift from batch stats.

    Single full-block, grid-less pallas_call: at this size (M<=3528, K<=288,
    C<=64) every operand fits VMEM trivially, so there is no M grid (removes
    extra pipeline steps and the host-side moment reduction of the previous
    tiled version)."""
    M, K = patches.shape
    C = w.shape[1]
    kern = functools.partial(_conv_bn_kernel, inv_m=1.0 / M, eps=eps)
    return pl.pallas_call(
        kern,
        out_shape=(jax.ShapeDtypeStruct((M, C), jnp.float32),
                   jax.ShapeDtypeStruct((1, C), jnp.float32),
                   jax.ShapeDtypeStruct((1, C), jnp.float32)),
    )(patches, w, b, gamma, beta)


def pallas_bn_relu_pool(y2d, N, H, W, C, scale, shift, pool_stride):
    """BN-affine + ReLU + MaxPool2d(kernel_size=2, stride=pool_stride), fused,
    with lane-dense (last dim 128) inputs/outputs for unmasked stores."""
    Ho = (H - 2) // pool_stride + 1
    Wo = (W - 2) // pool_stride + 1
    Mo = N * Ho * Wo
    x = y2d.reshape(N, H, W, C)

    rep = 1
    if C <= 128 and 128 % C == 0 and Mo % (128 // C) == 0:
        rep = 128 // C
    rows, lanes = Mo // rep, C * rep

    # TODO(synk): move the pool-tap extraction into the kernel via
    #             index_map-driven BlockSpecs to avoid these XLA slice copies.
    windows = []
    for di in range(2):
        for dj in range(2):
            sl = x[:, di:di + pool_stride * (Ho - 1) + 1:pool_stride,
                      dj:dj + pool_stride * (Wo - 1) + 1:pool_stride, :]
            windows.append(sl.reshape(rows, lanes))
    scale_t = jnp.tile(scale, (1, rep))
    shift_t = jnp.tile(shift, (1, rep))

    out = pl.pallas_call(
        _bn_relu_pool_kernel,
        out_shape=jax.ShapeDtypeStruct((rows, lanes), jnp.float32),
    )(*windows, scale_t, shift_t)
    return out.reshape(N, Ho, Wo, C)


def pallas_pool_fc_head(y2d, N, H, W, C, scale, shift, w1, b1, w2, b2):
    """Fused pool2 + flatten + FC1 + ReLU + FC2 + sigmoid (one pallas_call).

    Pool taps are presented in NHWC-flatten order (N, Ho*Wo*C) so they feed
    FC1 (whose weight rows were permuted accordingly in prepare_params)."""
    Ho = (H - 2) // 2 + 1
    Wo = (W - 2) // 2 + 1
    F = Ho * Wo * C
    x = y2d.reshape(N, H, W, C)

    taps = []
    for di in range(2):
        for dj in range(2):
            sl = x[:, di:di + 2 * (Ho - 1) + 1:2, dj:dj + 2 * (Wo - 1) + 1:2, :]
            taps.append(sl.reshape(N, F))
    scale_t = jnp.tile(scale, (1, Ho * Wo))
    shift_t = jnp.tile(shift, (1, Ho * Wo))

    n_out = w2.shape[1]
    # Derived VMEM budget (feedback: don't blindly request 32 MiB on v7x).
    buf_bytes = (4 * N * F * 4 + 2 * F * 4
                 + w1.size * w1.dtype.itemsize + b1.size * 4
                 + w2.size * 4 + b2.size * 4 + N * n_out * 4)
    vmem_limit = max(2 * buf_bytes + (4 << 20), 16 << 20)   # <= every gen's default

    return pl.pallas_call(
        _pool_fc_kernel,
        out_shape=jax.ShapeDtypeStruct((N, n_out), jnp.float32),
        compiler_params=pltpu.CompilerParams(vmem_limit_bytes=int(vmem_limit)),
    )(*taps, scale_t, shift_t, w1, b1, w2, b2)


# ----------------------------------------------------------------------------
# Glue: im2col patch extraction (layout only; matmul is the Pallas hot path)
# TODO(synk): move im2col into the conv kernel (strided in-kernel slices /
#             shifted accumulated matmuls) to remove the XLA slice copies.
# ----------------------------------------------------------------------------
def im2col(x, k, stride, pad):
    """x: NHWC -> patches (N*Ho*Wo, C*k*k), feature index = c*k*k + kh*k + kw
    (matches PyTorch conv weight (Cout, Cin, kh, kw) flattening)."""
    N, H, W, C = x.shape
    xp = jnp.pad(x, ((0, 0), (pad, pad), (pad, pad), (0, 0)))
    Ho = (H + 2 * pad - k) // stride + 1
    Wo = (W + 2 * pad - k) // stride + 1
    cols = []
    for di in range(k):
        for dj in range(k):
            cols.append(xp[:, di:di + stride * (Ho - 1) + 1:stride,
                              dj:dj + stride * (Wo - 1) + 1:stride, :])
    patches = jnp.stack(cols, axis=-1)              # (N, Ho, Wo, C, k*k)
    return patches.reshape(N * Ho * Wo, C * k * k), Ho, Wo


# ----------------------------------------------------------------------------
# Parameters (deterministic synthetic init, PyTorch-shaped) + one-time layout
# ----------------------------------------------------------------------------
def init_params(key):
    ks = jax.random.split(key, 12)

    def scaled(k, shape, fan_in):
        return jax.random.normal(k, shape, jnp.float32) / jnp.sqrt(float(fan_in))

    return {
        "w1": scaled(ks[0], (32, 4, 3, 3), 4 * 9),       # Conv2d(4, 32, 3, s=2, p=1)
        "b1": 0.1 * jax.random.normal(ks[1], (32,), jnp.float32),
        "g1": 1.0 + 0.1 * jax.random.normal(ks[2], (32,), jnp.float32),
        "be1": 0.1 * jax.random.normal(ks[3], (32,), jnp.float32),
        "w2": scaled(ks[4], (64, 32, 3, 3), 32 * 9),     # Conv2d(32, 64, 3, s=1, p=1)
        "b2": 0.1 * jax.random.normal(ks[5], (64,), jnp.float32),
        "g2": 1.0 + 0.1 * jax.random.normal(ks[6], (64,), jnp.float32),
        "be2": 0.1 * jax.random.normal(ks[7], (64,), jnp.float32),
        "wfc1": scaled(ks[8], (512, 64 * 7 * 7), 64 * 7 * 7),   # Linear(3136, 512)
        "bfc1": 0.1 * jax.random.normal(ks[9], (512,), jnp.float32),
        "wfc2": scaled(ks[10], (2, 512), 512),                   # Linear(512, 2)
        "bfc2": 0.1 * jax.random.normal(ks[11], (2,), jnp.float32),
    }


def prepare_params(params):
    """One-time kernel-layout prep (run OUTSIDE jit):
      * conv weights -> (Cin*kh*kw, Cout) im2col matrices,
      * bias / gamma / beta -> (1, C) row vectors,
      * FC1 weight: transpose + permute rows from PyTorch NCHW-flatten order
        to NHWC-flatten order (folds the per-forward transpose into the
        weight) + cast to bf16 (halves the dominant HBM transfer),
      * FC2 weight transposed.
    """
    wfc1_perm = jnp.transpose(params["wfc1"].reshape(512, 64, 7, 7),
                              (2, 3, 1, 0)).reshape(64 * 7 * 7, 512)
    return {
        "w1m": params["w1"].reshape(32, -1).T,           # (36, 32)
        "b1": params["b1"].reshape(1, 32),
        "g1": params["g1"].reshape(1, 32),
        "be1": params["be1"].reshape(1, 32),
        "w2m": params["w2"].reshape(64, -1).T,           # (288, 64)
        "b2": params["b2"].reshape(1, 64),
        "g2": params["g2"].reshape(1, 64),
        "be2": params["be2"].reshape(1, 64),
        "wfc1t": wfc1_perm.astype(jnp.bfloat16),         # (3136, 512) bf16
        "bfc1": params["bfc1"].reshape(1, 512),
        "wfc2t": params["wfc2"].T,                       # (512, 2)
        "bfc2": params["bfc2"].reshape(1, 2),
    }


# ----------------------------------------------------------------------------
# Forward pass (mirrors QNetwork.forward; BatchNorm uses batch statistics,
# i.e. the training-mode behaviour of a freshly constructed nn.Module).
# ----------------------------------------------------------------------------
def qnetwork_forward(x_nchw, p):
    x = jnp.transpose(x_nchw.astype(jnp.float32), (0, 2, 3, 1))   # NCHW -> NHWC
    N = x.shape[0]

    # Conv1 (4->32, k3, s2, p1) + BN-stat epilogue, then BN+ReLU+MaxPool(2, s3).
    patches, H1, W1 = im2col(x, k=3, stride=2, pad=1)             # (N*42*42, 36)
    y1, sc1, sh1 = pallas_conv_bn(patches, p["w1m"], p["b1"], p["g1"], p["be1"])
    y1 = pallas_bn_relu_pool(y1, N, H1, W1, 32, sc1, sh1, pool_stride=3)  # (N,14,14,32)

    # Conv2 (32->64, k3, s1, p1) + BN-stat epilogue.
    patches, H2, W2 = im2col(y1, k=3, stride=1, pad=1)            # (N*14*14, 288)
    y2, sc2, sh2 = pallas_conv_bn(patches, p["w2m"], p["b2"], p["g2"], p["be2"])

    # BN + ReLU + MaxPool(2, s2) + flatten + FC1 + ReLU + FC2 + sigmoid, fused.
    return pallas_pool_fc_head(y2, N, H2, W2, 64, sc2, sh2,
                               p["wfc1t"], p["bfc1"], p["wfc2t"], p["bfc2"])


# ----------------------------------------------------------------------------
# Pure-JAX reference (f32 everywhere) for a tolerance check.
# ----------------------------------------------------------------------------
def reference_forward(x_nchw, raw):
    x = x_nchw.astype(jnp.float32)

    def conv(x, w, b, stride):
        y = jax.lax.conv_general_dilated(
            x, w, window_strides=(stride, stride), padding=((1, 1), (1, 1)),
            dimension_numbers=("NCHW", "OIHW", "NCHW"))
        return y + b.reshape(1, -1, 1, 1)

    def bn(x, g, be, eps=1e-5):
        mean = jnp.mean(x, axis=(0, 2, 3), keepdims=True)
        var = jnp.var(x, axis=(0, 2, 3), keepdims=True)        # biased (train mode)
        return ((x - mean) * jax.lax.rsqrt(var + eps) * g.reshape(1, -1, 1, 1)
                + be.reshape(1, -1, 1, 1))

    def pool(x, stride):
        return jax.lax.reduce_window(x, -jnp.inf, jax.lax.max,
                                     (1, 1, 2, 2), (1, 1, stride, stride), "VALID")

    y = pool(jax.nn.relu(bn(conv(x, raw["w1"], raw["b1"], 2), raw["g1"], raw["be1"])), 3)
    y = pool(jax.nn.relu(bn(conv(y, raw["w2"], raw["b2"], 1), raw["g2"], raw["be2"])), 2)
    y = y.reshape(y.shape[0], -1)                               # NCHW flatten
    h = jax.nn.relu(y @ raw["wfc1"].T + raw["bfc1"])
    return jax.nn.sigmoid(h @ raw["wfc2"].T + raw["bfc2"])


if __name__ == "__main__":
    # Spatial size is forced to 84x84 by the hard-coded Linear(64*7*7, 512).
    x = jax.random.normal(jax.random.PRNGKey(0), (2, 4, 84, 84), jnp.float32)
    raw = init_params(jax.random.PRNGKey(1))
    params = prepare_params(raw)

    fwd = jax.jit(qnetwork_forward)
    out = fwd(x, params)
    jax.block_until_ready(out)

    assert out.shape == (2, 2), out.shape
    assert bool(jnp.all(jnp.isfinite(out)))
    assert bool(jnp.all((out >= 0.0) & (out <= 1.0)))           # sigmoid range

    # Tolerance check vs pure-JAX f32 reference (loose: FC1 weight is bf16 in
    # the Pallas path by design).
    ref = reference_forward(x, raw)
    assert float(jnp.max(jnp.abs(out - ref))) < 5e-2

    print("KERNEL_OK")
</pallas_src>

<mosaic_0001>
module attributes {stable_mosaic.version = 11 : i64} {
  func.func @_conv_bn_kernel(%arg0: memref<3528x36xf32, #tpu.memory_space<vmem>>, %arg1: memref<36x32xf32, #tpu.memory_space<vmem>>, %arg2: memref<1x32xf32, #tpu.memory_space<vmem>>, %arg3: memref<1x32xf32, #tpu.memory_space<vmem>>, %arg4: memref<1x32xf32, #tpu.memory_space<vmem>>, %arg5: memref<3528x32xf32, #tpu.memory_space<vmem>>, %arg6: memref<1x32xf32, #tpu.memory_space<vmem>>, %arg7: memref<1x32xf32, #tpu.memory_space<vmem>>) attributes {dimension_semantics = [], scalar_prefetch = 0 : i64, scratch_operands = 0 : i64, tpu.core_type = #tpu.core_type<tc>} {
    %c0 = arith.constant 0 : index
    %c0_0 = arith.constant 0 : index
    %0 = vector.load %arg0[%c0, %c0_0] : memref<3528x36xf32, #tpu.memory_space<vmem>>, vector<3528x36xf32>
    %c0_1 = arith.constant 0 : index
    %c0_2 = arith.constant 0 : index
    %1 = vector.load %arg1[%c0_1, %c0_2] : memref<36x32xf32, #tpu.memory_space<vmem>>, vector<36x32xf32>
    %cst = arith.constant dense<0.000000e+00> : vector<3528x32xf32>
    %2 = tpu.matmul %0, %1, %cst {dimension_numbers = #tpu.dot_dimension_numbers<[1], [0], [0], [1], [0, 0, 1, 1], [], []>} : vector<3528x36xf32>, vector<36x32xf32>, vector<3528x32xf32> -> vector<3528x32xf32>
    %c0_3 = arith.constant 0 : index
    %c0_4 = arith.constant 0 : index
    %3 = vector.load %arg2[%c0_3, %c0_4] : memref<1x32xf32, #tpu.memory_space<vmem>>, vector<1x32xf32>
    %4 = vector.broadcast %3 : vector<1x32xf32> to vector<3528x32xf32>
    %5 = arith.addf %2, %4 : vector<3528x32xf32>
    %c0_5 = arith.constant 0 : index
    %c0_6 = arith.constant 0 : index
    %6 = vector.load %arg5[%c0_5, %c0_6] : memref<3528x32xf32, #tpu.memory_space<vmem>>, vector<3528x32xf32>
    tpu.vector_store %arg5[%c0_5, %c0_6], %5 {strides = array<i32>} : memref<3528x32xf32, #tpu.memory_space<vmem>>, vector<3528x32xf32>,
    %cst_7 = arith.constant dense<0.000000e+00> : vector<32xf32>
    %7 = vector.multi_reduction <add>, %5, %cst_7 [0] : vector<3528x32xf32> to vector<32xf32>
    %8 = vector.shape_cast %7 : vector<32xf32> to vector<1x32xf32>
    %cst_8 = arith.constant 2.83446716E-4 : f32
    %9 = vector.broadcast %cst_8 : f32 to vector<1x32xf32>
    %10 = arith.mulf %8, %9 : vector<1x32xf32>
    %11 = vector.broadcast %10 : vector<1x32xf32> to vector<3528x32xf32>
    %12 = arith.subf %5, %11 : vector<3528x32xf32>
    %13 = arith.mulf %12, %12 : vector<3528x32xf32>
    %cst_9 = arith.constant dense<0.000000e+00> : vector<32xf32>
    %14 = vector.multi_reduction <add>, %13, %cst_9 [0] : vector<3528x32xf32> to vector<32xf32>
    %15 = vector.shape_cast %14 : vector<32xf32> to vector<1x32xf32>
    %cst_10 = arith.constant 2.83446716E-4 : f32
    %16 = vector.broadcast %cst_10 : f32 to vector<1x32xf32>
    %17 = arith.mulf %15, %16 : vector<1x32xf32>
    %c0_11 = arith.constant 0 : index
    %c0_12 = arith.constant 0 : index
    %18 = vector.load %arg3[%c0_11, %c0_12] : memref<1x32xf32, #tpu.memory_space<vmem>>, vector<1x32xf32>
    %cst_13 = arith.constant 9.99999974E-6 : f32
    %19 = vector.broadcast %cst_13 : f32 to vector<1x32xf32>
    %20 = arith.addf %17, %19 : vector<1x32xf32>
    %21 = math.rsqrt %20 : vector<1x32xf32>
    %22 = arith.mulf %18, %21 : vector<1x32xf32>
    %c0_14 = arith.constant 0 : index
    %c0_15 = arith.constant 0 : index
    %23 = vector.load %arg6[%c0_14, %c0_15] : memref<1x32xf32, #tpu.memory_space<vmem>>, vector<1x32xf32>
    tpu.vector_store %arg6[%c0_14, %c0_15], %22 {strides = array<i32>} : memref<1x32xf32, #tpu.memory_space<vmem>>, vector<1x32xf32>,
    %c0_16 = arith.constant 0 : index
    %c0_17 = arith.constant 0 : index
    %24 = vector.load %arg4[%c0_16, %c0_17] : memref<1x32xf32, #tpu.memory_space<vmem>>, vector<1x32xf32>
    %25 = arith.mulf %10, %22 : vector<1x32xf32>
    %26 = arith.subf %24, %25 : vector<1x32xf32>
    %c0_18 = arith.constant 0 : index
    %c0_19 = arith.constant 0 : index
    %27 = vector.load %arg7[%c0_18, %c0_19] : memref<1x32xf32, #tpu.memory_space<vmem>>, vector<1x32xf32>
    tpu.vector_store %arg7[%c0_18, %c0_19], %26 {strides = array<i32>} : memref<1x32xf32, #tpu.memory_space<vmem>>, vector<1x32xf32>,
    return
  }
}

module attributes {stable_mosaic.version = 11 : i64} {
  func.func @_bn_relu_pool_kernel(%arg0: memref<98x128xf32, #tpu.memory_space<vmem>>, %arg1: memref<98x128xf32, #tpu.memory_space<vmem>>, %arg2: memref<98x128xf32, #tpu.memory_space<vmem>>, %arg3: memref<98x128xf32, #tpu.memory_space<vmem>>, %arg4: memref<1x128xf32, #tpu.memory_space<vmem>>, %arg5: memref<1x128xf32, #tpu.memory_space<vmem>>, %arg6: memref<98x128xf32, #tpu.memory_space<vmem>>) attributes {dimension_semantics = [], scalar_prefetch = 0 : i64, scratch_operands = 0 : i64, tpu.core_type = #tpu.core_type<tc>} {
    %c0 = arith.constant 0 : index
    %c0_0 = arith.constant 0 : index
    %0 = vector.load %arg4[%c0, %c0_0] : memref<1x128xf32, #tpu.memory_space<vmem>>, vector<1x128xf32>
    %c0_1 = arith.constant 0 : index
    %c0_2 = arith.constant 0 : index
    %1 = vector.load %arg5[%c0_1, %c0_2] : memref<1x128xf32, #tpu.memory_space<vmem>>, vector<1x128xf32>
    %c0_3 = arith.constant 0 : index
    %c0_4 = arith.constant 0 : index
    %2 = vector.load %arg0[%c0_3, %c0_4] : memref<98x128xf32, #tpu.memory_space<vmem>>, vector<98x128xf32>
    %3 = vector.broadcast %0 : vector<1x128xf32> to vector<98x128xf32>
    %4 = arith.mulf %2, %3 : vector<98x128xf32>
    %5 = vector.broadcast %1 : vector<1x128xf32> to vector<98x128xf32>
    %6 = arith.addf %4, %5 : vector<98x128xf32>
    %c0_5 = arith.constant 0 : index
    %c0_6 = arith.constant 0 : index
    %7 = vector.load %arg1[%c0_5, %c0_6] : memref<98x128xf32, #tpu.memory_space<vmem>>, vector<98x128xf32>
    %8 = vector.broadcast %0 : vector<1x128xf32> to vector<98x128xf32>
    %9 = arith.mulf %7, %8 : vector<98x128xf32>
    %10 = vector.broadcast %1 : vector<1x128xf32> to vector<98x128xf32>
    %11 = arith.addf %9, %10 : vector<98x128xf32>
    %12 = arith.maximumf %6, %11 : vector<98x128xf32>
    %c0_7 = arith.constant 0 : index
    %c0_8 = arith.constant 0 : index
    %13 = vector.load %arg2[%c0_7, %c0_8] : memref<98x128xf32, #tpu.memory_space<vmem>>, vector<98x128xf32>
    %14 = vector.broadcast %0 : vector<1x128xf32> to vector<98x128xf32>
    %15 = arith.mulf %13, %14 : vector<98x128xf32>
    %16 = vector.broadcast %1 : vector<1x128xf32> to vector<98x128xf32>
    %17 = arith.addf %15, %16 : vector<98x128xf32>
    %c0_9 = arith.constant 0 : index
    %c0_10 = arith.constant 0 : index
    %18 = vector.load %arg3[%c0_9, %c0_10] : memref<98x128xf32, #tpu.memory_space<vmem>>, vector<98x128xf32>
    %19 = vector.broadcast %0 : vector<1x128xf32> to vector<98x128xf32>
    %20 = arith.mulf %18, %19 : vector<98x128xf32>
    %21 = vector.broadcast %1 : vector<1x128xf32> to vector<98x128xf32>
    %22 = arith.addf %20, %21 : vector<98x128xf32>
    %23 = arith.maximumf %17, %22 : vector<98x128xf32>
    %24 = arith.maximumf %12, %23 : vector<98x128xf32>
    %cst = arith.constant 0.000000e+00 : f32
    %25 = vector.broadcast %cst : f32 to vector<98x128xf32>
    %26 = arith.maximumf %24, %25 : vector<98x128xf32>
    %c0_11 = arith.constant 0 : index
    %c0_12 = arith.constant 0 : index
    %27 = vector.load %arg6[%c0_11, %c0_12] : memref<98x128xf32, #tpu.memory_space<vmem>>, vector<98x128xf32>
    tpu.vector_store %arg6[%c0_11, %c0_12], %26 {strides = array<i32>} : memref<98x128xf32, #tpu.memory_space<vmem>>, vector<98x128xf32>,
    return
  }
}

module attributes {stable_mosaic.version = 11 : i64} {
  func.func @_conv_bn_kernel(%arg0: memref<392x288xf32, #tpu.memory_space<vmem>>, %arg1: memref<288x64xf32, #tpu.memory_space<vmem>>, %arg2: memref<1x64xf32, #tpu.memory_space<vmem>>, %arg3: memref<1x64xf32, #tpu.memory_space<vmem>>, %arg4: memref<1x64xf32, #tpu.memory_space<vmem>>, %arg5: memref<392x64xf32, #tpu.memory_space<vmem>>, %arg6: memref<1x64xf32, #tpu.memory_space<vmem>>, %arg7: memref<1x64xf32, #tpu.memory_space<vmem>>) attributes {dimension_semantics = [], scalar_prefetch = 0 : i64, scratch_operands = 0 : i64, tpu.core_type = #tpu.core_type<tc>} {
    %c0 = arith.constant 0 : index
    %c0_0 = arith.constant 0 : index
    %0 = vector.load %arg0[%c0, %c0_0] : memref<392x288xf32, #tpu.memory_space<vmem>>, vector<392x288xf32>
    %c0_1 = arith.constant 0 : index
    %c0_2 = arith.constant 0 : index
    %1 = vector.load %arg1[%c0_1, %c0_2] : memref<288x64xf32, #tpu.memory_space<vmem>>, vector<288x64xf32>
    %cst = arith.constant dense<0.000000e+00> : vector<392x64xf32>
    %2 = tpu.matmul %0, %1, %cst {dimension_numbers = #tpu.dot_dimension_numbers<[1], [0], [0], [1], [0, 0, 1, 1], [], []>} : vector<392x288xf32>, vector<288x64xf32>, vector<392x64xf32> -> vector<392x64xf32>
    %c0_3 = arith.constant 0 : index
    %c0_4 = arith.constant 0 : index
    %3 = vector.load %arg2[%c0_3, %c0_4] : memref<1x64xf32, #tpu.memory_space<vmem>>, vector<1x64xf32>
    %4 = vector.broadcast %3 : vector<1x64xf32> to vector<392x64xf32>
    %5 = arith.addf %2, %4 : vector<392x64xf32>
    %c0_5 = arith.constant 0 : index
    %c0_6 = arith.constant 0 : index
    %6 = vector.load %arg5[%c0_5, %c0_6] : memref<392x64xf32, #tpu.memory_space<vmem>>, vector<392x64xf32>
    tpu.vector_store %arg5[%c0_5, %c0_6], %5 {strides = array<i32>} : memref<392x64xf32, #tpu.memory_space<vmem>>, vector<392x64xf32>,
    %cst_7 = arith.constant dense<0.000000e+00> : vector<64xf32>
    %7 = vector.multi_reduction <add>, %5, %cst_7 [0] : vector<392x64xf32> to vector<64xf32>
    %8 = vector.shape_cast %7 : vector<64xf32> to vector<1x64xf32>
    %cst_8 = arith.constant 0.00255102036 : f32
    %9 = vector.broadcast %cst_8 : f32 to vector<1x64xf32>
    %10 = arith.mulf %8, %9 : vector<1x64xf32>
    %11 = vector.broadcast %10 : vector<1x64xf32> to vector<392x64xf32>
    %12 = arith.subf %5, %11 : vector<392x64xf32>
    %13 = arith.mulf %12, %12 : vector<392x64xf32>
    %cst_9 = arith.constant dense<0.000000e+00> : vector<64xf32>
    %14 = vector.multi_reduction <add>, %13, %cst_9 [0] : vector<392x64xf32> to vector<64xf32>
    %15 = vector.shape_cast %14 : vector<64xf32> to vector<1x64xf32>
    %cst_10 = arith.constant 0.00255102036 : f32
    %16 = vector.broadcast %cst_10 : f32 to vector<1x64xf32>
    %17 = arith.mulf %15, %16 : vector<1x64xf32>
    %c0_11 = arith.constant 0 : index
    %c0_12 = arith.constant 0 : index
    %18 = vector.load %arg3[%c0_11, %c0_12] : memref<1x64xf32, #tpu.memory_space<vmem>>, vector<1x64xf32>
    %cst_13 = arith.constant 9.99999974E-6 : f32
    %19 = vector.broadcast %cst_13 : f32 to vector<1x64xf32>
    %20 = arith.addf %17, %19 : vector<1x64xf32>
    %21 = math.rsqrt %20 : vector<1x64xf32>
    %22 = arith.mulf %18, %21 : vector<1x64xf32>
    %c0_14 = arith.constant 0 : index
    %c0_15 = arith.constant 0 : index
    %23 = vector.load %arg6[%c0_14, %c0_15] : memref<1x64xf32, #tpu.memory_space<vmem>>, vector<1x64xf32>
    tpu.vector_store %arg6[%c0_14, %c0_15], %22 {strides = array<i32>} : memref<1x64xf32, #tpu.memory_space<vmem>>, vector<1x64xf32>,
    %c0_16 = arith.constant 0 : index
    %c0_17 = arith.constant 0 : index
    %24 = vector.load %arg4[%c0_16, %c0_17] : memref<1x64xf32, #tpu.memory_space<vmem>>, vector<1x64xf32>
    %25 = arith.mulf %10, %22 : vector<1x64xf32>
    %26 = arith.subf %24, %25 : vector<1x64xf32>
    %c0_18 = arith.constant 0 : index
    %c0_19 = arith.constant 0 : index
    %27 = vector.load %arg7[%c0_18, %c0_19] : memref<1x64xf32, #tpu.memory_space<vmem>>, vector<1x64xf32>
    tpu.vector_store %arg7[%c0_18, %c0_19], %26 {strides = array<i32>} : memref<1x64xf32, #tpu.memory_space<vmem>>, vector<1x64xf32>,
    return
  }
}

module attributes {stable_mosaic.version = 11 : i64} {
  func.func @_pool_fc_kernel(%arg0: memref<2x3136xf32, #tpu.memory_space<vmem>>, %arg1: memref<2x3136xf32, #tpu.memory_space<vmem>>, %arg2: memref<2x3136xf32, #tpu.memory_space<vmem>>, %arg3: memref<2x3136xf32, #tpu.memory_space<vmem>>, %arg4: memref<1x3136xf32, #tpu.memory_space<vmem>>, %arg5: memref<1x3136xf32, #tpu.memory_space<vmem>>, %arg6: memref<3136x512xbf16, #tpu.memory_space<vmem>>, %arg7: memref<1x512xf32, #tpu.memory_space<vmem>>, %arg8: memref<512x2xf32, #tpu.memory_space<vmem>>, %arg9: memref<1x2xf32, #tpu.memory_space<vmem>>, %arg10: memref<2x2xf32, #tpu.memory_space<vmem>>) attributes {dimension_semantics = [], scalar_prefetch = 0 : i64, scratch_operands = 0 : i64, tpu.core_type = #tpu.core_type<tc>} {
    %c0 = arith.constant 0 : index
    %c0_0 = arith.constant 0 : index
    %0 = vector.load %arg4[%c0, %c0_0] : memref<1x3136xf32, #tpu.memory_space<vmem>>, vector<1x3136xf32>
    %c0_1 = arith.constant 0 : index
    %c0_2 = arith.constant 0 : index
    %1 = vector.load %arg5[%c0_1, %c0_2] : memref<1x3136xf32, #tpu.memory_space<vmem>>, vector<1x3136xf32>
    %c0_3 = arith.constant 0 : index
    %c0_4 = arith.constant 0 : index
    %2 = vector.load %arg0[%c0_3, %c0_4] : memref<2x3136xf32, #tpu.memory_space<vmem>>, vector<2x3136xf32>
    %3 = vector.broadcast %0 : vector<1x3136xf32> to vector<2x3136xf32>
    %4 = arith.mulf %2, %3 : vector<2x3136xf32>
    %5 = vector.broadcast %1 : vector<1x3136xf32> to vector<2x3136xf32>
    %6 = arith.addf %4, %5 : vector<2x3136xf32>
    %c0_5 = arith.constant 0 : index
    %c0_6 = arith.constant 0 : index
    %7 = vector.load %arg1[%c0_5, %c0_6] : memref<2x3136xf32, #tpu.memory_space<vmem>>, vector<2x3136xf32>
    %8 = vector.broadcast %0 : vector<1x3136xf32> to vector<2x3136xf32>
    %9 = arith.mulf %7, %8 : vector<2x3136xf32>
    %10 = vector.broadcast %1 : vector<1x3136xf32> to vector<2x3136xf32>
    %11 = arith.addf %9, %10 : vector<2x3136xf32>
    %12 = arith.maximumf %6, %11 : vector<2x3136xf32>
    %c0_7 = arith.constant 0 : index
    %c0_8 = arith.constant 0 : index
    %13 = vector.load %arg2[%c0_7, %c0_8] : memref<2x3136xf32, #tpu.memory_space<vmem>>, vector<2x3136xf32>
    %14 = vector.broadcast %0 : vector<1x3136xf32> to vector<2x3136xf32>
    %15 = arith.mulf %13, %14 : vector<2x3136xf32>
    %16 = vector.broadcast %1 : vector<1x3136xf32> to vector<2x3136xf32>
    %17 = arith.addf %15, %16 : vector<2x3136xf32>
    %c0_9 = arith.constant 0 : index
    %c0_10 = arith.constant 0 : index
    %18 = vector.load %arg3[%c0_9, %c0_10] : memref<2x3136xf32, #tpu.memory_space<vmem>>, vector<2x3136xf32>
    %19 = vector.broadcast %0 : vector<1x3136xf32> to vector<2x3136xf32>
    %20 = arith.mulf %18, %19 : vector<2x3136xf32>
    %21 = vector.broadcast %1 : vector<1x3136xf32> to vector<2x3136xf32>
    %22 = arith.addf %20, %21 : vector<2x3136xf32>
    %23 = arith.maximumf %17, %22 : vector<2x3136xf32>
    %24 = arith.maximumf %12, %23 : vector<2x3136xf32>
    %cst = arith.constant 0.000000e+00 : f32
    %25 = vector.broadcast %cst : f32 to vector<2x3136xf32>
    %26 = arith.maximumf %24, %25 : vector<2x3136xf32>
    %27 = arith.truncf %26 : vector<2x3136xf32> to vector<2x3136xbf16>
    %c0_11 = arith.constant 0 : index
    %c0_12 = arith.constant 0 : index
    %28 = vector.load %arg6[%c0_11, %c0_12] : memref<3136x512xbf16, #tpu.memory_space<vmem>>, vector<3136x512xbf16>
    %cst_13 = arith.constant dense<0.000000e+00> : vector<2x512xf32>
    %29 = tpu.matmul %27, %28, %cst_13 {dimension_numbers = #tpu.dot_dimension_numbers<[1], [0], [0], [1], [0, 0, 1, 1], [], []>} : vector<2x3136xbf16>, vector<3136x512xbf16>, vector<2x512xf32> -> vector<2x512xf32>
    %c0_14 = arith.constant 0 : index
    %c0_15 = arith.constant 0 : index
    %30 = vector.load %arg7[%c0_14, %c0_15] : memref<1x512xf32, #tpu.memory_space<vmem>>, vector<1x512xf32>
    %31 = vector.broadcast %30 : vector<1x512xf32> to vector<2x512xf32>
    %32 = arith.addf %29, %31 : vector<2x512xf32>
    %cst_16 = arith.constant 0.000000e+00 : f32
    %33 = vector.broadcast %cst_16 : f32 to vector<2x512xf32>
    %34 = arith.maximumf %32, %33 : vector<2x512xf32>
    %c0_17 = arith.constant 0 : index
    %c0_18 = arith.constant 0 : index
    %35 = vector.load %arg8[%c0_17, %c0_18] : memref<512x2xf32, #tpu.memory_space<vmem>>, vector<512x2xf32>
    %cst_19 = arith.constant dense<0.000000e+00> : vector<2x2xf32>
    %36 = tpu.matmul %34, %35, %cst_19 {dimension_numbers = #tpu.dot_dimension_numbers<[1], [0], [0], [1], [0, 0, 1, 1], [], []>} : vector<2x512xf32>, vector<512x2xf32>, vector<2x2xf32> -> vector<2x2xf32>
    %c0_20 = arith.constant 0 : index
    %c0_21 = arith.constant 0 : index
    %37 = vector.load %arg9[%c0_20, %c0_21] : memref<1x2xf32, #tpu.memory_space<vmem>>, vector<1x2xf32>
    %38 = vector.broadcast %37 : vector<1x2xf32> to vector<2x2xf32>
    %39 = arith.addf %36, %38 : vector<2x2xf32>
    %cst_22 = arith.constant 5.000000e-01 : f32
    %40 = vector.broadcast %cst_22 : f32 to vector<2x2xf32>
    %41 = arith.mulf %40, %39 : vector<2x2xf32>
    %42 = math.tanh %41 : vector<2x2xf32>
    %cst_23 = arith.constant 1.000000e+00 : f32
    %43 = vector.broadcast %cst_23 : f32 to vector<2x2xf32>
    %44 = arith.addf %42, %43 : vector<2x2xf32>
    %cst_24 = arith.constant 5.000000e-01 : f32
    %45 = vector.broadcast %cst_24 : f32 to vector<2x2xf32>
    %46 = arith.mulf %45, %44 : vector<2x2xf32>
    %c0_25 = arith.constant 0 : index
    %c0_26 = arith.constant 0 : index
    %47 = vector.load %arg10[%c0_25, %c0_26] : memref<2x2xf32, #tpu.memory_space<vmem>>, vector<2x2xf32>
    tpu.vector_store %arg10[%c0_25, %c0_26], %46 {strides = array<i32>} : memref<2x2xf32, #tpu.memory_space<vmem>>, vector<2x2xf32>,
    return
  }
}

</mosaic_0001>

<llo_original>
// kernel: qnetwork_forward.4
$region0: #{qnetwork_forward.4}
  #allocation0 [shape = 'u32[]', space=smem, size = 0x4, offset = 0x4, fixed_abs, tag = 'smem constant byte address 0x4 - core index']
  #allocation1 [shape = 'u32[72,128]{1,0:T(1,128)}', space=vmem, size = 0x9000, scoped, tag = 'internal scratch']
  %s0 = inlined_call_operand.vmem [shape: f32[3528,36], index: 0, kind: input, shape index: {}]
  %s1 = inlined_call_operand.vmem [shape: f32[36,32], index: 1, kind: input, shape index: {}]
  %s2 = inlined_call_operand.vmem [shape: f32[1,32], index: 2, kind: input, shape index: {}]
  %s3 = inlined_call_operand.vmem [shape: f32[1,32], index: 3, kind: input, shape index: {}]
  %s4 = inlined_call_operand.vmem [shape: f32[1,32], index: 4, kind: input, shape index: {}]
  %s5 = inlined_call_operand.vmem [shape: f32[3528,32], index: 5, kind: output, shape index: {0}]
  %s6 = inlined_call_operand.vmem [shape: f32[1,32], index: 6, kind: output, shape index: {1}]
  %s7 = inlined_call_operand.vmem [shape: f32[1,32], index: 7, kind: output, shape index: {2}]
  %8 = xla_tuple %s5, %s6, %s7
  %s9 = sld [smem:[#allocation0]]
  $region46: #{qnetwork_forward.4} parent=0
    _
  %s11 = ssub.s32 1, %s9
  %s12 = scalar_select 0, %s11, %s9
  // Predicated region
  $region2: #{qnetwork_forward.4} parent=0 // pred_check
    _
  $region3: #{qnetwork_forward.4} parent=0 // pred_check_branch
    %14 = sbr.rel (0) target = $region5
  $region4: #{qnetwork_forward.4} parent=0 // pred_region
    _
  $region5: #{qnetwork_forward.4} parent=0 // pred_fallthru
    _
  // Predicated region
  $region6: #{qnetwork_forward.4} parent=0 // pred_check
    _
  $region7: #{qnetwork_forward.4} parent=0 // pred_check_branch
    %16 = sbr.rel (0) target = $region9
  $region8: #{qnetwork_forward.4} parent=0 // pred_region
    _
  $region9: #{qnetwork_forward.4} parent=0 // pred_fallthru
    _
  // Predicated region
  $region10: #{qnetwork_forward.4} parent=0 // pred_check
    _
  $region11: #{qnetwork_forward.4} parent=0 // pred_check_branch
    %18 = sbr.rel (0) target = $region13
  $region12: #{qnetwork_forward.4} parent=0 // pred_region
    _
  $region13: #{qnetwork_forward.4} parent=0 // pred_fallthru
    _
  // Predicated region
  $region14: #{qnetwork_forward.4} parent=0 // pred_check
    _
  $region15: #{qnetwork_forward.4} parent=0 // pred_check_branch
    %20 = sbr.rel (0) target = $region17
  $region16: #{qnetwork_forward.4} parent=0 // pred_region
    _
  $region17: #{qnetwork_forward.4} parent=0 // pred_fallthru
    _
  // Predicated region
  $region18: #{qnetwork_forward.4} parent=0 // pred_check
    _
  $region19: #{qnetwork_forward.4} parent=0 // pred_check_branch
    %22 = sbr.rel (0) target = $region21
  $region20: #{qnetwork_forward.4} parent=0 // pred_region
    _
  $region21: #{qnetwork_forward.4} parent=0 // pred_fallthru
    _
  %v23 = vld [vmem:[%s0] sm:$0xff]
  %v24 = vld [vmem:[%s0 + $0x8] sm:$0xff]
  %v25 = vld [vmem:[%s0 + $0x10] sm:$0xff]
  %v26 = vld [vmem:[%s0 + $0x18] sm:$0xff]
  %v27 = vld [vmem:[%s0 + $0x20] sm:$0xff]
  %v28 = vld [vmem:[%s0 + $0x28] sm:$0xff]
  %v29 = vld [vmem:[%s0 + $0x30] sm:$0xff]
  %v30 = vld [vmem:[%s0 + $0x38] sm:$0xff]
  %v31 = vld [vmem:[%s0 + $0x40] sm:$0xff]
  %v32 = vld [vmem:[%s0 + $0x48] sm:$0xff]
  %v33 = vld [vmem:[%s0 + $0x50] sm:$0xff]
  %v34 = vld [vmem:[%s0 + $0x58] sm:$0xff]
  %v35 = vld [vmem:[%s0 + $0x60] sm:$0xff]
  %v36 = vld [vmem:[%s0 + $0x68] sm:$0xff]
  %v37 = vld [vmem:[%s0 + $0x70] sm:$0xff]
  %v38 = vld [vmem:[%s0 + $0x78] sm:$0xff]
  %v39 = vld [vmem:[%s0 + $0x80] sm:$0xff]
  %v40 = vld [vmem:[%s0 + $0x88] sm:$0xff]
  %v41 = vld [vmem:[%s0 + $0x90] sm:$0xff]
  %v42 = vld [vmem:[%s0 + $0x98] sm:$0xff]
  %v43 = vld [vmem:[%s0 + $0xa0] sm:$0xff]
  %v44 = vld [vmem:[%s0 + $0xa8] sm:$0xff]
  %v45 = vld [vmem:[%s0 + $0xb0] sm:$0xff]
  %v46 = vld [vmem:[%s0 + $0xb8] sm:$0xff]
  %v47 = vld [vmem:[%s0 + $0xc0] sm:$0xff]
  %v48 = vld [vmem:[%s0 + $0xc8] sm:$0xff]
  %v49 = vld [vmem:[%s0 + $0xd0] sm:$0xff]
  %v50 = vld [vmem:[%s0 + $0xd8] sm:$0xff]
  %v51 = vld [vmem:[%s0 + $0xe0] sm:$0xff]
  %v52 = vld [vmem:[%s0 + $0xe8] sm:$0xff]
  %v53 = vld [vmem:[%s0 + $0xf0] sm:$0xff]
  %v54 = vld [vmem:[%s0 + $0xf8] sm:$0xff]
  %v55 = vld [vmem:[%s0 + $0x100] sm:$0xff]
  %v56 = vld [vmem:[%s0 + $0x108] sm:$0xff]
  %v57 = vld [vmem:[%s0 + $0x110] sm:$0xff]
  %v58 = vld [vmem:[%s0 + $0x118] sm:$0xff]
  %v59 = vld [vmem:[%s0 + $0x120] sm:$0xff]
  %v60 = vld [vmem:[%s0 + $0x128] sm:$0xff]
  %v61 = vld [vmem:[%s0 + $0x130] sm:$0xff]
  %v62 = vld [vmem:[%s0 + $0x138] sm:$0xff]
  %v63 = vld [vmem:[%s0 + $0x140] sm:$0xff]
  %v64 = vld [vmem:[%s0 + $0x148] sm:$0xff]
  %v65 = vld [vmem:[%s0 + $0x150] sm:$0xff]
  %v66 = vld [vmem:[%s0 + $0x158] sm:$0xff]
  %v67 = vld [vmem:[%s0 + $0x160] sm:$0xff]
  %v68 = vld [vmem:[%s0 + $0x168] sm:$0xff]
  %v69 = vld [vmem:[%s0 + $0x170] sm:$0xff]
  %v70 = vld [vmem:[%s0 + $0x178] sm:$0xff]
  %v71 = vld [vmem:[%s0 + $0x180] sm:$0xff]
  %v72 = vld [vmem:[%s0 + $0x188] sm:$0xff]
  %v73 = vld [vmem:[%s0 + $0x190] sm:$0xff]
  %v74 = vld [vmem:[%s0 + $0x198] sm:$0xff]
  %v75 = vld [vmem:[%s0 + $0x1a0] sm:$0xff]
  %v76 = vld [vmem:[%s0 + $0x1a8] sm:$0xff]
  %v77 = vld [vmem:[%s0 + $0x1b0] sm:$0xff]
  %v78 = vld [vmem:[%s0 + $0x1b8] sm:$0xff]
  %v79 = vld [vmem:[%s0 + $0x1c0] sm:$0xff]
  %v80 = vld [vmem:[%s0 + $0x1c8] sm:$0xff]
  %v81 = vld [vmem:[%s0 + $0x1d0] sm:$0xff]
  %v82 = vld [vmem:[%s0 + $0x1d8] sm:$0xff]
  %v83 = vld [vmem:[%s0 + $0x1e0] sm:$0xff]
  %v84 = vld [vmem:[%s0 + $0x1e8] sm:$0xff]
  %v85 = vld [vmem:[%s0 + $0x1f0] sm:$0xff]
  %v86 = vld [vmem:[%s0 + $0x1f8] sm:$0xff]
  %v87 = vld [vmem:[%s0 + $0x200] sm:$0xff]
  %v88 = vld [vmem:[%s0 + $0x208] sm:$0xff]
  %v89 = vld [vmem:[%s0 + $0x210] sm:$0xff]
  %v90 = vld [vmem:[%s0 + $0x218] sm:$0xff]
  %v91 = vld [vmem:[%s0 + $0x220] sm:$0xff]
  %v92 = vld [vmem:[%s0 + $0x228] sm:$0xff]
  %v93 = vld [vmem:[%s0 + $0x230] sm:$0xff]
  %v94 = vld [vmem:[%s0 + $0x238] sm:$0xff]
  %v95 = vld [vmem:[%s0 + $0x240] sm:$0xff]
  %v96 = vld [vmem:[%s0 + $0x248] sm:$0xff]
  %v97 = vld [vmem:[%s0 + $0x250] sm:$0xff]
  %v98 = vld [vmem:[%s0 + $0x258] sm:$0xff]
  %v99 = vld [vmem:[%s0 + $0x260] sm:$0xff]
  %v100 = vld [vmem:[%s0 + $0x268] sm:$0xff]
  %v101 = vld [vmem:[%s0 + $0x270] sm:$0xff]
  %v102 = vld [vmem:[%s0 + $0x278] sm:$0xff]
  %v103 = vld [vmem:[%s0 + $0x280] sm:$0xff]
  %v104 = vld [vmem:[%s0 + $0x288] sm:$0xff]
  %v105 = vld [vmem:[%s0 + $0x290] sm:$0xff]
  %v106 = vld [vmem:[%s0 + $0x298] sm:$0xff]
  %v107 = vld [vmem:[%s0 + $0x2a0] sm:$0xff]
  %v108 = vld [vmem:[%s0 + $0x2a8] sm:$0xff]
  %v109 = vld [vmem:[%s0 + $0x2b0] sm:$0xff]
  %v110 = vld [vmem:[%s0 + $0x2b8] sm:$0xff]
  %v111 = vld [vmem:[%s0 + $0x2c0] sm:$0xff]
  %v112 = vld [vmem:[%s0 + $0x2c8] sm:$0xff]
  %v113 = vld [vmem:[%s0 + $0x2d0] sm:$0xff]
  %v114 = vld [vmem:[%s0 + $0x2d8] sm:$0xff]
  %v115 = vld [vmem:[%s0 + $0x2e0] sm:$0xff]
  %v116 = vld [vmem:[%s0 + $0x2e8] sm:$0xff]
  %v117 = vld [vmem:[%s0 + $0x2f0] sm:$0xff]
  %v118 = vld [vmem:[%s0 + $0x2f8] sm:$0xff]
  %v119 = vld [vmem:[%s0 + $0x300] sm:$0xff]
  %v120 = vld [vmem:[%s0 + $0x308] sm:$0xff]
  %v121 = vld [vmem:[%s0 + $0x310] sm:$0xff]
  %v122 = vld [vmem:[%s0 + $0x318] sm:$0xff]
  %v123 = vld [vmem:[%s0 + $0x320] sm:$0xff]
  %v124 = vld [vmem:[%s0 + $0x328] sm:$0xff]
  %v125 = vld [vmem:[%s0 + $0x330] sm:$0xff]
  %v126 = vld [vmem:[%s0 + $0x338] sm:$0xff]
  %v127 = vld [vmem:[%s0 + $0x340] sm:$0xff]
  %v128 = vld [vmem:[%s0 + $0x348] sm:$0xff]
  %v129 = vld [vmem:[%s0 + $0x350] sm:$0xff]
  %v130 = vld [vmem:[%s0 + $0x358] sm:$0xff]
  %v131 = vld [vmem:[%s0 + $0x360] sm:$0xff]
  %v132 = vld [vmem:[%s0 + $0x368] sm:$0xff]
  %v133 = vld [vmem:[%s0 + $0x370] sm:$0xff]
  %v134 = vld [vmem:[%s0 + $0x378] sm:$0xff]
  %v135 = vld [vmem:[%s0 + $0x380] sm:$0xff]
  %v136 = vld [vmem:[%s0 + $0x388] sm:$0xff]
  %v137 = vld [vmem:[%s0 + $0x390] sm:$0xff]
  %v138 = vld [vmem:[%s0 + $0x398] sm:$0xff]
  %v139 = vld [vmem:[%s0 + $0x3a0] sm:$0xff]
  %v140 = vld [vmem:[%s0 + $0x3a8] sm:$0xff]
  %v141 = vld [vmem:[%s0 + $0x3b0] sm:$0xff]
  %v142 = vld [vmem:[%s0 + $0x3b8] sm:$0xff]
  %v143 = vld [vmem:[%s0 + $0x3c0] sm:$0xff]
  %v144 = vld [vmem:[%s0 + $0x3c8] sm:$0xff]
  %v145 = vld [vmem:[%s0 + $0x3d0] sm:$0xff]
  %v146 = vld [vmem:[%s0 + $0x3d8] sm:$0xff]
  %v147 = vld [vmem:[%s0 + $0x3e0] sm:$0xff]
  %v148 = vld [vmem:[%s0 + $0x3e8] sm:$0xff]
  %v149 = vld [vmem:[%s0 + $0x3f0] sm:$0xff]
  %v150 = vld [vmem:[%s0 + $0x3f8] sm:$0xff]
  %v151 = vld [vmem:[%s0 + $0x400] sm:$0xff]
  %v152 = vld [vmem:[%s0 + $0x408] sm:$0xff]
  %v153 = vld [vmem:[%s0 + $0x410] sm:$0xff]
  %v154 = vld [vmem:[%s0 + $0x418] sm:$0xff]
  %v155 = vld [vmem:[%s0 + $0x420] sm:$0xff]
  %v156 = vld [vmem:[%s0 + $0x428] sm:$0xff]
  %v157 = vld [vmem:[%s0 + $0x430] sm:$0xff]
  %v158 = vld [vmem:[%s0 + $0x438] sm:$0xff]
  %v159 = vld [vmem:[%s0 + $0x440] sm:$0xff]
  %v160 = vld [vmem:[%s0 + $0x448] sm:$0xff]
  %v161 = vld [vmem:[%s0 + $0x450] sm:$0xff]
  %v162 = vld [vmem:[%s0 + $0x458] sm:$0xff]
  %v163 = vld [vmem:[%s0 + $0x460] sm:$0xff]
  %v164 = vld [vmem:[%s0 + $0x468] sm:$0xff]
  %v165 = vld [vmem:[%s0 + $0x470] sm:$0xff]
  %v166 = vld [vmem:[%s0 + $0x478] sm:$0xff]
  %v167 = vld [vmem:[%s0 + $0x480] sm:$0xff]
  %v168 = vld [vmem:[%s0 + $0x488] sm:$0xff]
  %v169 = vld [vmem:[%s0 + $0x490] sm:$0xff]
  %v170 = vld [vmem:[%s0 + $0x498] sm:$0xff]
  %v171 = vld [vmem:[%s0 + $0x4a0] sm:$0xff]
  %v172 = vld [vmem:[%s0 + $0x4a8] sm:$0xff]
  %v173 = vld [vmem:[%s0 + $0x4b0] sm:$0xff]
  %v174 = vld [vmem:[%s0 + $0x4b8] sm:$0xff]
  %v175 = vld [vmem:[%s0 + $0x4c0] sm:$0xff]
  %v176 = vld [vmem:[%s0 + $0x4c8] sm:$0xff]
  %v177 = vld [vmem:[%s0 + $0x4d0] sm:$0xff]
  %v178 = vld [vmem:[%s0 + $0x4d8] sm:$0xff]
  %v179 = vld [vmem:[%s0 + $0x4e0] sm:$0xff]
  %v180 = vld [vmem:[%s0 + $0x4e8] sm:$0xff]
  %v181 = vld [vmem:[%s0 + $0x4f0] sm:$0xff]
  %v182 = vld [vmem:[%s0 + $0x4f8] sm:$0xff]
  %v183 = vld [vmem:[%s0 + $0x500] sm:$0xff]
  %v184 = vld [vmem:[%s0 + $0x508] sm:$0xff]
  %v185 = vld [vmem:[%s0 + $0x510] sm:$0xff]
  %v186 = vld [vmem:[%s0 + $0x518] sm:$0xff]
  %v187 = vld [vmem:[%s0 + $0x520] sm:$0xff]
  %v188 = vld [vmem:[%s0 + $0x528] sm:$0xff]
  %v189 = vld [vmem:[%s0 + $0x530] sm:$0xff]
  %v190 = vld [vmem:[%s0 + $0x538] sm:$0xff]
  %v191 = vld [vmem:[%s0 + $0x540] sm:$0xff]
  %v192 = vld [vmem:[%s0 + $0x548] sm:$0xff]
  %v193 = vld [vmem:[%s0 + $0x550] sm:$0xff]
  %v194 = vld [vmem:[%s0 + $0x558] sm:$0xff]
  %v195 = vld [vmem:[%s0 + $0x560] sm:$0xff]
  %v196 = vld [vmem:[%s0 + $0x568] sm:$0xff]
  %v197 = vld [vmem:[%s0 + $0x570] sm:$0xff]
  %v198 = vld [vmem:[%s0 + $0x578] sm:$0xff]
  %v199 = vld [vmem:[%s0 + $0x580] sm:$0xff]
  %v200 = vld [vmem:[%s0 + $0x588] sm:$0xff]
  %v201 = vld [vmem:[%s0 + $0x590] sm:$0xff]
  %v202 = vld [vmem:[%s0 + $0x598] sm:$0xff]
  %v203 = vld [vmem:[%s0 + $0x5a0] sm:$0xff]
  %v204 = vld [vmem:[%s0 + $0x5a8] sm:$0xff]
  %v205 = vld [vmem:[%s0 + $0x5b0] sm:$0xff]
  %v206 = vld [vmem:[%s0 + $0x5b8] sm:$0xff]
  %v207 = vld [vmem:[%s0 + $0x5c0] sm:$0xff]
  %v208 = vld [vmem:[%s0 + $0x5c8] sm:$0xff]
  %v209 = vld [vmem:[%s0 + $0x5d0] sm:$0xff]
  %v210 = vld [vmem:[%s0 + $0x5d8] sm:$0xff]
  %v211 = vld [vmem:[%s0 + $0x5e0] sm:$0xff]
  %v212 = vld [vmem:[%s0 + $0x5e8] sm:$0xff]
  %v213 = vld [vmem:[%s0 + $0x5f0] sm:$0xff]
  %v214 = vld [vmem:[%s0 + $0x5f8] sm:$0xff]
  %v215 = vld [vmem:[%s0 + $0x600] sm:$0xff]
  %v216 = vld [vmem:[%s0 + $0x608] sm:$0xff]
  %v217 = vld [vmem:[%s0 + $0x610] sm:$0xff]
  %v218 = vld [vmem:[%s0 + $0x618] sm:$0xff]
  %v219 = vld [vmem:[%s0 + $0x620] sm:$0xff]
  %v220 = vld [vmem:[%s0 + $0x628] sm:$0xff]
  %v221 = vld [vmem:[%s0 + $0x630] sm:$0xff]
  %v222 = vld [vmem:[%s0 + $0x638] sm:$0xff]
  %v223 = vld [vmem:[%s0 + $0x640] sm:$0xff]
  %v224 = vld [vmem:[%s0 + $0x648] sm:$0xff]
  %v225 = vld [vmem:[%s0 + $0x650] sm:$0xff]
  %v226 = vld [vmem:[%s0 + $0x658] sm:$0xff]
  %v227 = vld [vmem:[%s0 + $0x660] sm:$0xff]
  %v228 = vld [vmem:[%s0 + $0x668] sm:$0xff]
  %v229 = vld [vmem:[%s0 + $0x670] sm:$0xff]
  %v230 = vld [vmem:[%s0 + $0x678] sm:$0xff]
  %v231 = vld [vmem:[%s0 + $0x680] sm:$0xff]
  %v232 = vld [vmem:[%s0 + $0x688] sm:$0xff]
  %v233 = vld [vmem:[%s0 + $0x690] sm:$0xff]
  %v234 = vld [vmem:[%s0 + $0x698] sm:$0xff]
  %v235 = vld [vmem:[%s0 + $0x6a0] sm:$0xff]
  %v236 = vld [vmem:[%s0 + $0x6a8] sm:$0xff]
  %v237 = vld [vmem:[%s0 + $0x6b0] sm:$0xff]
  %v238 = vld [vmem:[%s0 + $0x6b8] sm:$0xff]
  %v239 = vld [vmem:[%s0 + $0x6c0] sm:$0xff]
  %v240 = vld [vmem:[%s0 + $0x6c8] sm:$0xff]
  %v241 = vld [vmem:[%s0 + $0x6d0] sm:$0xff]
  %v242 = vld [vmem:[%s0 + $0x6d8] sm:$0xff]
  %v243 = vld [vmem:[%s0 + $0x6e0] sm:$0xff]
  %v244 = vld [vmem:[%s0 + $0x6e8] sm:$0xff]
  %v245 = vld [vmem:[%s0 + $0x6f0] sm:$0xff]
  %v246 = vld [vmem:[%s0 + $0x6f8] sm:$0xff]
  %v247 = vld [vmem:[%s0 + $0x700] sm:$0xff]
  %v248 = vld [vmem:[%s0 + $0x708] sm:$0xff]
  %v249 = vld [vmem:[%s0 + $0x710] sm:$0xff]
  %v250 = vld [vmem:[%s0 + $0x718] sm:$0xff]
  %v251 = vld [vmem:[%s0 + $0x720] sm:$0xff]
  %v252 = vld [vmem:[%s0 + $0x728] sm:$0xff]
  %v253 = vld [vmem:[%s0 + $0x730] sm:$0xff]
  %v254 = vld [vmem:[%s0 + $0x738] sm:$0xff]
  %v255 = vld [vmem:[%s0 + $0x740] sm:$0xff]
  %v256 = vld [vmem:[%s0 + $0x748] sm:$0xff]
  %v257 = vld [vmem:[%s0 + $0x750] sm:$0xff]
  %v258 = vld [vmem:[%s0 + $0x758] sm:$0xff]
  %v259 = vld [vmem:[%s0 + $0x760] sm:$0xff]
  %v260 = vld [vmem:[%s0 + $0x768] sm:$0xff]
  %v261 = vld [vmem:[%s0 + $0x770] sm:$0xff]
  %v262 = vld [vmem:[%s0 + $0x778] sm:$0xff]
  %v263 = vld [vmem:[%s0 + $0x780] sm:$0xff]
  %v264 = vld [vmem:[%s0 + $0x788] sm:$0xff]
  %v265 = vld [vmem:[%s0 + $0x790] sm:$0xff]
  %v266 = vld [vmem:[%s0 + $0x798] sm:$0xff]
  %v267 = vld [vmem:[%s0 + $0x7a0] sm:$0xff]
  %v268 = vld [vmem:[%s0 + $0x7a8] sm:$0xff]
  %v269 = vld [vmem:[%s0 + $0x7b0] sm:$0xff]
  %v270 = vld [vmem:[%s0 + $0x7b8] sm:$0xff]
  %v271 = vld [vmem:[%s0 + $0x7c0] sm:$0xff]
  %v272 = vld [vmem:[%s0 + $0x7c8] sm:$0xff]
  %v273 = vld [vmem:[%s0 + $0x7d0] sm:$0xff]
  %v274 = vld [vmem:[%s0 + $0x7d8] sm:$0xff]
  %v275 = vld [vmem:[%s0 + $0x7e0] sm:$0xff]
  %v276 = vld [vmem:[%s0 + $0x7e8] sm:$0xff]
  %v277 = vld [vmem:[%s0 + $0x7f0] sm:$0xff]
  %v278 = vld [vmem:[%s0 + $0x7f8] sm:$0xff]
  %v279 = vld [vmem:[%s0 + $0x800] sm:$0xff]
  %v280 = vld [vmem:[%s0 + $0x808] sm:$0xff]
  %v281 = vld [vmem:[%s0 + $0x810] sm:$0xff]
  %v282 = vld [vmem:[%s0 + $0x818] sm:$0xff]
  %v283 = vld [vmem:[%s0 + $0x820] sm:$0xff]
  %v284 = vld [vmem:[%s0 + $0x828] sm:$0xff]
  %v285 = vld [vmem:[%s0 + $0x830] sm:$0xff]
  %v286 = vld [vmem:[%s0 + $0x838] sm:$0xff]
  %v287 = vld [vmem:[%s0 + $0x840] sm:$0xff]
  %v288 = vld [vmem:[%s0 + $0x848] sm:$0xff]
  %v289 = vld [vmem:[%s0 + $0x850] sm:$0xff]
  %v290 = vld [vmem:[%s0 + $0x858] sm:$0xff]
  %v291 = vld [vmem:[%s0 + $0x860] sm:$0xff]
  %v292 = vld [vmem:[%s0 + $0x868] sm:$0xff]
  %v293 = vld [vmem:[%s0 + $0x870] sm:$0xff]
  %v294 = vld [vmem:[%s0 + $0x878] sm:$0xff]
  %v295 = vld [vmem:[%s0 + $0x880] sm:$0xff]
  %v296 = vld [vmem:[%s0 + $0x888] sm:$0xff]
  %v297 = vld [vmem:[%s0 + $0x890] sm:$0xff]
  %v298 = vld [vmem:[%s0 + $0x898] sm:$0xff]
  %v299 = vld [vmem:[%s0 + $0x8a0] sm:$0xff]
  %v300 = vld [vmem:[%s0 + $0x8a8] sm:$0xff]
  %v301 = vld [vmem:[%s0 + $0x8b0] sm:$0xff]
  %v302 = vld [vmem:[%s0 + $0x8b8] sm:$0xff]
  %v303 = vld [vmem:[%s0 + $0x8c0] sm:$0xff]
  %v304 = vld [vmem:[%s0 + $0x8c8] sm:$0xff]
  %v305 = vld [vmem:[%s0 + $0x8d0] sm:$0xff]
  %v306 = vld [vmem:[%s0 + $0x8d8] sm:$0xff]
  %v307 = vld [vmem:[%s0 + $0x8e0] sm:$0xff]
  %v308 = vld [vmem:[%s0 + $0x8e8] sm:$0xff]
  %v309 = vld [vmem:[%s0 + $0x8f0] sm:$0xff]
  %v310 = vld [vmem:[%s0 + $0x8f8] sm:$0xff]
  %v311 = vld [vmem:[%s0 + $0x900] sm:$0xff]
  %v312 = vld [vmem:[%s0 + $0x908] sm:$0xff]
  %v313 = vld [vmem:[%s0 + $0x910] sm:$0xff]
  %v314 = vld [vmem:[%s0 + $0x918] sm:$0xff]
  %v315 = vld [vmem:[%s0 + $0x920] sm:$0xff]
  %v316 = vld [vmem:[%s0 + $0x928] sm:$0xff]
  %v317 = vld [vmem:[%s0 + $0x930] sm:$0xff]
  %v318 = vld [vmem:[%s0 + $0x938] sm:$0xff]
  %v319 = vld [vmem:[%s0 + $0x940] sm:$0xff]
  %v320 = vld [vmem:[%s0 + $0x948] sm:$0xff]
  %v321 = vld [vmem:[%s0 + $0x950] sm:$0xff]
  %v322 = vld [vmem:[%s0 + $0x958] sm:$0xff]
  %v323 = vld [vmem:[%s0 + $0x960] sm:$0xff]
  %v324 = vld [vmem:[%s0 + $0x968] sm:$0xff]
  %v325 = vld [vmem:[%s0 + $0x970] sm:$0xff]
  %v326 = vld [vmem:[%s0 + $0x978] sm:$0xff]
  %v327 = vld [vmem:[%s0 + $0x980] sm:$0xff]
  %v328 = vld [vmem:[%s0 + $0x988] sm:$0xff]
  %v329 = vld [vmem:[%s0 + $0x990] sm:$0xff]
  %v330 = vld [vmem:[%s0 + $0x998] sm:$0xff]
  %v331 = vld [vmem:[%s0 + $0x9a0] sm:$0xff]
  %v332 = vld [vmem:[%s0 + $0x9a8] sm:$0xff]
  %v333 = vld [vmem:[%s0 + $0x9b0] sm:$0xff]
  %v334 = vld [vmem:[%s0 + $0x9b8] sm:$0xff]
  %v335 = vld [vmem:[%s0 + $0x9c0] sm:$0xff]
  %v336 = vld [vmem:[%s0 + $0x9c8] sm:$0xff]
  %v337 = vld [vmem:[%s0 + $0x9d0] sm:$0xff]
  %v338 = vld [vmem:[%s0 + $0x9d8] sm:$0xff]
  %v339 = vld [vmem:[%s0 + $0x9e0] sm:$0xff]
  %v340 = vld [vmem:[%s0 + $0x9e8] sm:$0xff]
  %v341 = vld [vmem:[%s0 + $0x9f0] sm:$0xff]
  %v342 = vld [vmem:[%s0 + $0x9f8] sm:$0xff]
  %v343 = vld [vmem:[%s0 + $0xa00] sm:$0xff]
  %v344 = vld [vmem:[%s0 + $0xa08] sm:$0xff]
  %v345 = vld [vmem:[%s0 + $0xa10] sm:$0xff]
  %v346 = vld [vmem:[%s0 + $0xa18] sm:$0xff]
  %v347 = vld [vmem:[%s0 + $0xa20] sm:$0xff]
  %v348 = vld [vmem:[%s0 + $0xa28] sm:$0xff]
  %v349 = vld [vmem:[%s0 + $0xa30] sm:$0xff]
  %v350 = vld [vmem:[%s0 + $0xa38] sm:$0xff]
  %v351 = vld [vmem:[%s0 + $0xa40] sm:$0xff]
  %v352 = vld [vmem:[%s0 + $0xa48] sm:$0xff]
  %v353 = vld [vmem:[%s0 + $0xa50] sm:$0xff]
  %v354 = vld [vmem:[%s0 + $0xa58] sm:$0xff]
  %v355 = vld [vmem:[%s0 + $0xa60] sm:$0xff]
  %v356 = vld [vmem:[%s0 + $0xa68] sm:$0xff]
  %v357 = vld [vmem:[%s0 + $0xa70] sm:$0xff]
  %v358 = vld [vmem:[%s0 + $0xa78] sm:$0xff]
  %v359 = vld [vmem:[%s0 + $0xa80] sm:$0xff]
  %v360 = vld [vmem:[%s0 + $0xa88] sm:$0xff]
  %v361 = vld [vmem:[%s0 + $0xa90] sm:$0xff]
  %v362 = vld [vmem:[%s0 + $0xa98] sm:$0xff]
  %v363 = vld [vmem:[%s0 + $0xaa0] sm:$0xff]
  %v364 = vld [vmem:[%s0 + $0xaa8] sm:$0xff]
  %v365 = vld [vmem:[%s0 + $0xab0] sm:$0xff]
  %v366 = vld [vmem:[%s0 + $0xab8] sm:$0xff]
  %v367 = vld [vmem:[%s0 + $0xac0] sm:$0xff]
  %v368 = vld [vmem:[%s0 + $0xac8] sm:$0xff]
  %v369 = vld [vmem:[%s0 + $0xad0] sm:$0xff]
  %v370 = vld [vmem:[%s0 + $0xad8] sm:$0xff]
  %v371 = vld [vmem:[%s0 + $0xae0] sm:$0xff]
  %v372 = vld [vmem:[%s0 + $0xae8] sm:$0xff]
  %v373 = vld [vmem:[%s0 + $0xaf0] sm:$0xff]
  %v374 = vld [vmem:[%s0 + $0xaf8] sm:$0xff]
  %v375 = vld [vmem:[%s0 + $0xb00] sm:$0xff]
  %v376 = vld [vmem:[%s0 + $0xb08] sm:$0xff]
  %v377 = vld [vmem:[%s0 + $0xb10] sm:$0xff]
  %v378 = vld [vmem:[%s0 + $0xb18] sm:$0xff]
  %v379 = vld [vmem:[%s0 + $0xb20] sm:$0xff]
  %v380 = vld [vmem:[%s0 + $0xb28] sm:$0xff]
  %v381 = vld [vmem:[%s0 + $0xb30] sm:$0xff]
  %v382 = vld [vmem:[%s0 + $0xb38] sm:$0xff]
  %v383 = vld [vmem:[%s0 + $0xb40] sm:$0xff]
  %v384 = vld [vmem:[%s0 + $0xb48] sm:$0xff]
  %v385 = vld [vmem:[%s0 + $0xb50] sm:$0xff]
  %v386 = vld [vmem:[%s0 + $0xb58] sm:$0xff]
  %v387 = vld [vmem:[%s0 + $0xb60] sm:$0xff]
  %v388 = vld [vmem:[%s0 + $0xb68] sm:$0xff]
  %v389 = vld [vmem:[%s0 + $0xb70] sm:$0xff]
  %v390 = vld [vmem:[%s0 + $0xb78] sm:$0xff]
  %v391 = vld [vmem:[%s0 + $0xb80] sm:$0xff]
  %v392 = vld [vmem:[%s0 + $0xb88] sm:$0xff]
  %v393 = vld [vmem:[%s0 + $0xb90] sm:$0xff]
  %v394 = vld [vmem:[%s0 + $0xb98] sm:$0xff]
  %v395 = vld [vmem:[%s0 + $0xba0] sm:$0xff]
  %v396 = vld [vmem:[%s0 + $0xba8] sm:$0xff]
  %v397 = vld [vmem:[%s0 + $0xbb0] sm:$0xff]
  %v398 = vld [vmem:[%s0 + $0xbb8] sm:$0xff]
  %v399 = vld [vmem:[%s0 + $0xbc0] sm:$0xff]
  %v400 = vld [vmem:[%s0 + $0xbc8] sm:$0xff]
  %v401 = vld [vmem:[%s0 + $0xbd0] sm:$0xff]
  %v402 = vld [vmem:[%s0 + $0xbd8] sm:$0xff]
  %v403 = vld [vmem:[%s0 + $0xbe0] sm:$0xff]
  %v404 = vld [vmem:[%s0 + $0xbe8] sm:$0xff]
  %v405 = vld [vmem:[%s0 + $0xbf0] sm:$0xff]
  %v406 = vld [vmem:[%s0 + $0xbf8] sm:$0xff]
  %v407 = vld [vmem:[%s0 + $0xc00] sm:$0xff]
  %v408 = vld [vmem:[%s0 + $0xc08] sm:$0xff]
  %v409 = vld [vmem:[%s0 + $0xc10] sm:$0xff]
  %v410 = vld [vmem:[%s0 + $0xc18] sm:$0xff]
  %v411 = vld [vmem:[%s0 + $0xc20] sm:$0xff]
  %v412 = vld [vmem:[%s0 + $0xc28] sm:$0xff]
  %v413 = vld [vmem:[%s0 + $0xc30] sm:$0xff]
  %v414 = vld [vmem:[%s0 + $0xc38] sm:$0xff]
  %v415 = vld [vmem:[%s0 + $0xc40] sm:$0xff]
  %v416 = vld [vmem:[%s0 + $0xc48] sm:$0xff]
  %v417 = vld [vmem:[%s0 + $0xc50] sm:$0xff]
  %v418 = vld [vmem:[%s0 + $0xc58] sm:$0xff]
  %v419 = vld [vmem:[%s0 + $0xc60] sm:$0xff]
  %v420 = vld [vmem:[%s0 + $0xc68] sm:$0xff]
  %v421 = vld [vmem:[%s0 + $0xc70] sm:$0xff]
  %v422 = vld [vmem:[%s0 + $0xc78] sm:$0xff]
  %v423 = vld [vmem:[%s0 + $0xc80] sm:$0xff]
  %v424 = vld [vmem:[%s0 + $0xc88] sm:$0xff]
  %v425 = vld [vmem:[%s0 + $0xc90] sm:$0xff]
  %v426 = vld [vmem:[%s0 + $0xc98] sm:$0xff]
  %v427 = vld [vmem:[%s0 + $0xca0] sm:$0xff]
  %v428 = vld [vmem:[%s0 + $0xca8] sm:$0xff]
  %v429 = vld [vmem:[%s0 + $0xcb0] sm:$0xff]
  %v430 = vld [vmem:[%s0 + $0xcb8] sm:$0xff]
  %v431 = vld [vmem:[%s0 + $0xcc0] sm:$0xff]
  %v432 = vld [vmem:[%s0 + $0xcc8] sm:$0xff]
  %v433 = vld [vmem:[%s0 + $0xcd0] sm:$0xff]
  %v434 = vld [vmem:[%s0 + $0xcd8] sm:$0xff]
  %v435 = vld [vmem:[%s0 + $0xce0] sm:$0xff]
  %v436 = vld [vmem:[%s0 + $0xce8] sm:$0xff]
  %v437 = vld [vmem:[%s0 + $0xcf0] sm:$0xff]
  %v438 = vld [vmem:[%s0 + $0xcf8] sm:$0xff]
  %v439 = vld [vmem:[%s0 + $0xd00] sm:$0xff]
  %v440 = vld [vmem:[%s0 + $0xd08] sm:$0xff]
  %v441 = vld [vmem:[%s0 + $0xd10] sm:$0xff]
  %v442 = vld [vmem:[%s0 + $0xd18] sm:$0xff]
  %v443 = vld [vmem:[%s0 + $0xd20] sm:$0xff]
  %v444 = vld [vmem:[%s0 + $0xd28] sm:$0xff]
  %v445 = vld [vmem:[%s0 + $0xd30] sm:$0xff]
  %v446 = vld [vmem:[%s0 + $0xd38] sm:$0xff]
  %v447 = vld [vmem:[%s0 + $0xd40] sm:$0xff]
  %v448 = vld [vmem:[%s0 + $0xd48] sm:$0xff]
  %v449 = vld [vmem:[%s0 + $0xd50] sm:$0xff]
  %v450 = vld [vmem:[%s0 + $0xd58] sm:$0xff]
  %v451 = vld [vmem:[%s0 + $0xd60] sm:$0xff]
  %v452 = vld [vmem:[%s0 + $0xd68] sm:$0xff]
  %v453 = vld [vmem:[%s0 + $0xd70] sm:$0xff]
  %v454 = vld [vmem:[%s0 + $0xd78] sm:$0xff]
  %v455 = vld [vmem:[%s0 + $0xd80] sm:$0xff]
  %v456 = vld [vmem:[%s0 + $0xd88] sm:$0xff]
  %v457 = vld [vmem:[%s0 + $0xd90] sm:$0xff]
  %v458 = vld [vmem:[%s0 + $0xd98] sm:$0xff]
  %v459 = vld [vmem:[%s0 + $0xda0] sm:$0xff]
  %v460 = vld [vmem:[%s0 + $0xda8] sm:$0xff]
  %v461 = vld [vmem:[%s0 + $0xdb0] sm:$0xff]
  %v462 = vld [vmem:[%s0 + $0xdb8] sm:$0xff]
  %v463 = vld [vmem:[%s0 + $0xdc0] sm:$0xff]
  %v464 = vld [vmem:[%s1] sm:$0xff]
  %v465 = vld [vmem:[%s1 + $0x8] sm:$0xff]
  %v466 = vld [vmem:[%s1 + $0x10] sm:$0xff]
  %v467 = vld [vmem:[%s1 + $0x18] sm:$0xff]
  %v468 = vld [vmem:[%s1 + $0x20] sm:$0xf]
  %v469 = vld [vmem:[%s2] sm:$0x1]
  %v471 = vperm.slane %v469, 0
  %vm473 = vcmask 293888
  %v475 = vsel %vm473, %v23, 0
  %v478 = vsel %vm473, %v24, 0
  %v481 = vsel %vm473, %v25, 0
  %v484 = vsel %vm473, %v26, 0
  %v487 = vsel %vm473, %v27, 0
  %v490 = vsel %vm473, %v28, 0
  %v493 = vsel %vm473, %v29, 0
  %v496 = vsel %vm473, %v30, 0
  %v499 = vsel %vm473, %v31, 0
  %v502 = vsel %vm473, %v32, 0
  %v505 = vsel %vm473, %v33, 0
  %v508 = vsel %vm473, %v34, 0
  %v511 = vsel %vm473, %v35, 0
  %v514 = vsel %vm473, %v36, 0
  %v517 = vsel %vm473, %v37, 0
  %v520 = vsel %vm473, %v38, 0
  %v523 = vsel %vm473, %v39, 0
  %v526 = vsel %vm473, %v40, 0
  %v529 = vsel %vm473, %v41, 0
  %v532 = vsel %vm473, %v42, 0
  %v535 = vsel %vm473, %v43, 0
  %v538 = vsel %vm473, %v44, 0
  %v541 = vsel %vm473, %v45, 0
  %v544 = vsel %vm473, %v46, 0
  %v547 = vsel %vm473, %v47, 0
  %v550 = vsel %vm473, %v48, 0
  %v553 = vsel %vm473, %v49, 0
  %v556 = vsel %vm473, %v50, 0
  %v559 = vsel %vm473, %v51, 0
  %v562 = vsel %vm473, %v52, 0
  %v565 = vsel %vm473, %v53, 0
  %v568 = vsel %vm473, %v54, 0
  %v571 = vsel %vm473, %v55, 0
  %v574 = vsel %vm473, %v56, 0
  %v577 = vsel %vm473, %v57, 0
  %v580 = vsel %vm473, %v58, 0
  %v583 = vsel %vm473, %v59, 0
  %v586 = vsel %vm473, %v60, 0
  %v589 = vsel %vm473, %v61, 0
  %v592 = vsel %vm473, %v62, 0
  %v595 = vsel %vm473, %v63, 0
  %v598 = vsel %vm473, %v64, 0
  %v601 = vsel %vm473, %v65, 0
  %v604 = vsel %vm473, %v66, 0
  %v607 = vsel %vm473, %v67, 0
  %v610 = vsel %vm473, %v68, 0
  %v613 = vsel %vm473, %v69, 0
  %v616 = vsel %vm473, %v70, 0
  %v619 = vsel %vm473, %v71, 0
  %v622 = vsel %vm473, %v72, 0
  %v625 = vsel %vm473, %v73, 0
  %v628 = vsel %vm473, %v74, 0
  %v631 = vsel %vm473, %v75, 0
  %v634 = vsel %vm473, %v76, 0
  %v637 = vsel %vm473, %v77, 0
  %v640 = vsel %vm473, %v78, 0
  %v643 = vsel %vm473, %v79, 0
  %v646 = vsel %vm473, %v80, 0
  %v649 = vsel %vm473, %v81, 0
  %v652 = vsel %vm473, %v82, 0
  %v655 = vsel %vm473, %v83, 0
  %v658 = vsel %vm473, %v84, 0
  %v661 = vsel %vm473, %v85, 0
  %v664 = vsel %vm473, %v86, 0
  %v667 = vsel %vm473, %v87, 0
  %v670 = vsel %vm473, %v88, 0
  %v673 = vsel %vm473, %v89, 0
  %v676 = vsel %vm473, %v90, 0
  %v679 = vsel %vm473, %v91, 0
  %v682 = vsel %vm473, %v92, 0
  %v685 = vsel %vm473, %v93, 0
  %v688 = vsel %vm473, %v94, 0
  %v691 = vsel %vm473, %v95, 0
  %v694 = vsel %vm473, %v96, 0
  %v697 = vsel %vm473, %v97, 0
  %v700 = vsel %vm473, %v98, 0
  %v703 = vsel %vm473, %v99, 0
  %v706 = vsel %vm473, %v100, 0
  %v709 = vsel %vm473, %v101, 0
  %v712 = vsel %vm473, %v102, 0
  %v715 = vsel %vm473, %v103, 0
  %v718 = vsel %vm473, %v104, 0
  %v721 = vsel %vm473, %v105, 0
  %v724 = vsel %vm473, %v106, 0
  %v727 = vsel %vm473, %v107, 0
  %v730 = vsel %vm473, %v108, 0
  %v733 = vsel %vm473, %v109, 0
  %v736 = vsel %vm473, %v110, 0
  %v739 = vsel %vm473, %v111, 0
  %v742 = vsel %vm473, %v112, 0
  %v745 = vsel %vm473, %v113, 0
  %v748 = vsel %vm473, %v114, 0
  %v751 = vsel %vm473, %v115, 0
  %v754 = vsel %vm473, %v116, 0
  %v757 = vsel %vm473, %v117, 0
  %v760 = vsel %vm473, %v118, 0
  %v763 = vsel %vm473, %v119, 0
  %v766 = vsel %vm473, %v120, 0
  %v769 = vsel %vm473, %v121, 0
  %v772 = vsel %vm473, %v122, 0
  %v775 = vsel %vm473, %v123, 0
  %v778 = vsel %vm473, %v124, 0
  %v781 = vsel %vm473, %v125, 0
  %v784 = vsel %vm473, %v126, 0
  %v787 = vsel %vm473, %v127, 0
  %v790 = vsel %vm473, %v128, 0
  %v793 = vsel %vm473, %v129, 0
  %v796 = vsel %vm473, %v130, 0
  %v799 = vsel %vm473, %v131, 0
  %v802 = vsel %vm473, %v132, 0
  %v805 = vsel %vm473, %v133, 0
  %v808 = vsel %vm473, %v134, 0
  %v811 = vsel %vm473, %v135, 0
  %v814 = vsel %vm473, %v136, 0
  %v817 = vsel %vm473, %v137, 0
  %v820 = vsel %vm473, %v138, 0
  %v823 = vsel %vm473, %v139, 0
  %v826 = vsel %vm473, %v140, 0
  %v829 = vsel %vm473, %v141, 0
  %v832 = vsel %vm473, %v142, 0
  %v835 = vsel %vm473, %v143, 0
  %v838 = vsel %vm473, %v144, 0
  %v841 = vsel %vm473, %v145, 0
  %v844 = vsel %vm473, %v146, 0
  %v847 = vsel %vm473, %v147, 0
  %v850 = vsel %vm473, %v148, 0
  %v853 = vsel %vm473, %v149, 0
  %v856 = vsel %vm473, %v150, 0
  %v859 = vsel %vm473, %v151, 0
  %v862 = vsel %vm473, %v152, 0
  %v865 = vsel %vm473, %v153, 0
  %v868 = vsel %vm473, %v154, 0
  %v871 = vsel %vm473, %v155, 0
  %v874 = vsel %vm473, %v156, 0
  %v877 = vsel %vm473, %v157, 0
  %v880 = vsel %vm473, %v158, 0
  %v883 = vsel %vm473, %v159, 0
  %v886 = vsel %vm473, %v160, 0
  %v889 = vsel %vm473, %v161, 0
  %v892 = vsel %vm473, %v162, 0
  %v895 = vsel %vm473, %v163, 0
  %v898 = vsel %vm473, %v164, 0
  %v901 = vsel %vm473, %v165, 0
  %v904 = vsel %vm473, %v166, 0
  %v907 = vsel %vm473, %v167, 0
  %v910 = vsel %vm473, %v168, 0
  %v913 = vsel %vm473, %v169, 0
  %v916 = vsel %vm473, %v170, 0
  %v919 = vsel %vm473, %v171, 0
  %v922 = vsel %vm473, %v172, 0
  %v925 = vsel %vm473, %v173, 0
  %v928 = vsel %vm473, %v174, 0
  %v931 = vsel %vm473, %v175, 0
  %v934 = vsel %vm473, %v176, 0
  %v937 = vsel %vm473, %v177, 0
  %v940 = vsel %vm473, %v178, 0
  %v943 = vsel %vm473, %v179, 0
  %v946 = vsel %vm473, %v180, 0
  %v949 = vsel %vm473, %v181, 0
  %v952 = vsel %vm473, %v182, 0
  %v955 = vsel %vm473, %v183, 0
  %v958 = vsel %vm473, %v184, 0
  %v961 = vsel %vm473, %v185, 0
  %v964 = vsel %vm473, %v186, 0
  %v967 = vsel %vm473, %v187, 0
  %v970 = vsel %vm473, %v188, 0
  %v973 = vsel %vm473, %v189, 0
  %v976 = vsel %vm473, %v190, 0
  %v979 = vsel %vm473, %v191, 0
  %v982 = vsel %vm473, %v192, 0
  %v985 = vsel %vm473, %v193, 0
  %v988 = vsel %vm473, %v194, 0
  %v991 = vsel %vm473, %v195, 0
  %v994 = vsel %vm473, %v196, 0
  %v997 = vsel %vm473, %v197, 0
  %v1000 = vsel %vm473, %v198, 0
  %v1003 = vsel %vm473, %v199, 0
  %v1006 = vsel %vm473, %v200, 0
  %v1009 = vsel %vm473, %v201, 0
  %v1012 = vsel %vm473, %v202, 0
  %v1015 = vsel %vm473, %v203, 0
  %v1018 = vsel %vm473, %v204, 0
  %v1021 = vsel %vm473, %v205, 0
  %v1024 = vsel %vm473, %v206, 0
  %v1027 = vsel %vm473, %v207, 0
  %v1030 = vsel %vm473, %v208, 0
  %v1033 = vsel %vm473, %v209, 0
  %v1036 = vsel %vm473, %v210, 0
  %v1039 = vsel %vm473, %v211, 0
  %v1042 = vsel %vm473, %v212, 0
  %v1045 = vsel %vm473, %v213, 0
  %v1048 = vsel %vm473, %v214, 0
  %v1051 = vsel %vm473, %v215, 0
  %v1054 = vsel %vm473, %v216, 0
  %v1057 = vsel %vm473, %v217, 0
  %v1060 = vsel %vm473, %v218, 0
  %v1063 = vsel %vm473, %v219, 0
  %v1066 = vsel %vm473, %v220, 0
  %v1069 = vsel %vm473, %v221, 0
  %v1072 = vsel %vm473, %v222, 0
  %v1075 = vsel %vm473, %v223, 0
  %v1078 = vsel %vm473, %v224, 0
  %v1081 = vsel %vm473, %v225, 0
  %v1084 = vsel %vm473, %v226, 0
  %v1087 = vsel %vm473, %v227, 0
  %v1090 = vsel %vm473, %v228, 0
  %v1093 = vsel %vm473, %v229, 0
  %v1096 = vsel %vm473, %v230, 0
  %v1099 = vsel %vm473, %v231, 0
  %v1102 = vsel %vm473, %v232, 0
  %v1105 = vsel %vm473, %v233, 0
  %v1108 = vsel %vm473, %v234, 0
  %v1111 = vsel %vm473, %v235, 0
  %v1114 = vsel %vm473, %v236, 0
  %v1117 = vsel %vm473, %v237, 0
  %v1120 = vsel %vm473, %v238, 0
  %v1123 = vsel %vm473, %v239, 0
  %v1126 = vsel %vm473, %v240, 0
  %v1129 = vsel %vm473, %v241, 0
  %v1132 = vsel %vm473, %v242, 0
  %v1135 = vsel %vm473, %v243, 0
  %v1138 = vsel %vm473, %v244, 0
  %v1141 = vsel %vm473, %v245, 0
  %v1144 = vsel %vm473, %v246, 0
  %v1147 = vsel %vm473, %v247, 0
  %v1150 = vsel %vm473, %v248, 0
  %v1153 = vsel %vm473, %v249, 0
  %v1156 = vsel %vm473, %v250, 0
  %v1159 = vsel %vm473, %v251, 0
  %v1162 = vsel %vm473, %v252, 0
  %v1165 = vsel %vm473, %v253, 0
  %v1168 = vsel %vm473, %v254, 0
  %v1171 = vsel %vm473, %v255, 0
  %v1174 = vsel %vm473, %v256, 0
  %v1177 = vsel %vm473, %v257, 0
  %v1180 = vsel %vm473, %v258, 0
  %v1183 = vsel %vm473, %v259, 0
  %v1186 = vsel %vm473, %v260, 0
  %v1189 = vsel %vm473, %v261, 0
  %v1192 = vsel %vm473, %v262, 0
  %v1195 = vsel %vm473, %v263, 0
  %v1198 = vsel %vm473, %v264, 0
  %v1201 = vsel %vm473, %v265, 0
  %v1204 = vsel %vm473, %v266, 0
  %v1207 = vsel %vm473, %v267, 0
  %v1210 = vsel %vm473, %v268, 0
  %v1213 = vsel %vm473, %v269, 0
  %v1216 = vsel %vm473, %v270, 0
  %v1219 = vsel %vm473, %v271, 0
  %v1222 = vsel %vm473, %v272, 0
  %v1225 = vsel %vm473, %v273, 0
  %v1228 = vsel %vm473, %v274, 0
  %v1231 = vsel %vm473, %v275, 0
  %v1234 = vsel %vm473, %v276, 0
  %v1237 = vsel %vm473, %v277, 0
  %v1240 = vsel %vm473, %v278, 0
  %v1243 = vsel %vm473, %v279, 0
  %v1246 = vsel %vm473, %v280, 0
  %v1249 = vsel %vm473, %v281, 0
  %v1252 = vsel %vm473, %v282, 0
  %v1255 = vsel %vm473, %v283, 0
  %v1258 = vsel %vm473, %v284, 0
  %v1261 = vsel %vm473, %v285, 0
  %v1264 = vsel %vm473, %v286, 0
  %v1267 = vsel %vm473, %v287, 0
  %v1270 = vsel %vm473, %v288, 0
  %v1273 = vsel %vm473, %v289, 0
  %v1276 = vsel %vm473, %v290, 0
  %v1279 = vsel %vm473, %v291, 0
  %v1282 = vsel %vm473, %v292, 0
  %v1285 = vsel %vm473, %v293, 0
  %v1288 = vsel %vm473, %v294, 0
  %v1291 = vsel %vm473, %v295, 0
  %v1294 = vsel %vm473, %v296, 0
  %v1297 = vsel %vm473, %v297, 0
  %v1300 = vsel %vm473, %v298, 0
  %v1303 = vsel %vm473, %v299, 0
  %v1306 = vsel %vm473, %v300, 0
  %v1309 = vsel %vm473, %v301, 0
  %v1312 = vsel %vm473, %v302, 0
  %v1315 = vsel %vm473, %v303, 0
  %v1318 = vsel %vm473, %v304, 0
  %v1321 = vsel %vm473, %v305, 0
  %v1324 = vsel %vm473, %v306, 0
  %v1327 = vsel %vm473, %v307, 0
  %v1330 = vsel %vm473, %v308, 0
  %v1333 = vsel %vm473, %v309, 0
  %v1336 = vsel %vm473, %v310, 0
  %v1339 = vsel %vm473, %v311, 0
  %v1342 = vsel %vm473, %v312, 0
  %v1345 = vsel %vm473, %v313, 0
  %v1348 = vsel %vm473, %v314, 0
  %v1351 = vsel %vm473, %v315, 0
  %v1354 = vsel %vm473, %v316, 0
  %v1357 = vsel %vm473, %v317, 0
  %v1360 = vsel %vm473, %v318, 0
  %v1363 = vsel %vm473, %v319, 0
  %v1366 = vsel %vm473, %v320, 0
  %v1369 = vsel %vm473, %v321, 0
  %v1372 = vsel %vm473, %v322, 0
  %v1375 = vsel %vm473, %v323, 0
  %v1378 = vsel %vm473, %v324, 0
  %v1381 = vsel %vm473, %v325, 0
  %v1384 = vsel %vm473, %v326, 0
  %v1387 = vsel %vm473, %v327, 0
  %v1390 = vsel %vm473, %v328, 0
  %v1393 = vsel %vm473, %v329, 0
  %v1396 = vsel %vm473, %v330, 0
  %v1399 = vsel %vm473, %v331, 0
  %v1402 = vsel %vm473, %v332, 0
  %v1405 = vsel %vm473, %v333, 0
  %v1408 = vsel %vm473, %v334, 0
  %v1411 = vsel %vm473, %v335, 0
  %v1414 = vsel %vm473, %v336, 0
  %v1417 = vsel %vm473, %v337, 0
  %v1420 = vsel %vm473, %v338, 0
  %v1423 = vsel %vm473, %v339, 0
  %v1426 = vsel %vm473, %v340, 0
  %v1429 = vsel %vm473, %v341, 0
  %v1432 = vsel %vm473, %v342, 0
  %v1435 = vsel %vm473, %v343, 0
  %v1438 = vsel %vm473, %v344, 0
  %v1441 = vsel %vm473, %v345, 0
  %v1444 = vsel %vm473, %v346, 0
  %v1447 = vsel %vm473, %v347, 0
  %v1450 = vsel %vm473, %v348, 0
  %v1453 = vsel %vm473, %v349, 0
  %v1456 = vsel %vm473, %v350, 0
  %v1459 = vsel %vm473, %v351, 0
  %v1462 = vsel %vm473, %v352, 0
  %v1465 = vsel %vm473, %v353, 0
  %v1468 = vsel %vm473, %v354, 0
  %v1471 = vsel %vm473, %v355, 0
  %v1474 = vsel %vm473, %v356, 0
  %v1477 = vsel %vm473, %v357, 0
  %v1480 = vsel %vm473, %v358, 0
  %v1483 = vsel %vm473, %v359, 0
  %v1486 = vsel %vm473, %v360, 0
  %v1489 = vsel %vm473, %v361, 0
  %v1492 = vsel %vm473, %v362, 0
  %v1495 = vsel %vm473, %v363, 0
  %v1498 = vsel %vm473, %v364, 0
  %v1501 = vsel %vm473, %v365, 0
  %v1504 = vsel %vm473, %v366, 0
  %v1507 = vsel %vm473, %v367, 0
  %v1510 = vsel %vm473, %v368, 0
  %v1513 = vsel %vm473, %v369, 0
  %v1516 = vsel %vm473, %v370, 0
  %v1519 = vsel %vm473, %v371, 0
  %v1522 = vsel %vm473, %v372, 0
  %v1525 = vsel %vm473, %v373, 0
  %v1528 = vsel %vm473, %v374, 0
  %v1531 = vsel %vm473, %v375, 0
  %v1534 = vsel %vm473, %v376, 0
  %v1537 = vsel %vm473, %v377, 0
  %v1540 = vsel %vm473, %v378, 0
  %v1543 = vsel %vm473, %v379, 0
  %v1546 = vsel %vm473, %v380, 0
  %v1549 = vsel %vm473, %v381, 0
  %v1552 = vsel %vm473, %v382, 0
  %v1555 = vsel %vm473, %v383, 0
  %v1558 = vsel %vm473, %v384, 0
  %v1561 = vsel %vm473, %v385, 0
  %v1564 = vsel %vm473, %v386, 0
  %v1567 = vsel %vm473, %v387, 0
  %v1570 = vsel %vm473, %v388, 0
  %v1573 = vsel %vm473, %v389, 0
  %v1576 = vsel %vm473, %v390, 0
  %v1579 = vsel %vm473, %v391, 0
  %v1582 = vsel %vm473, %v392, 0
  %v1585 = vsel %vm473, %v393, 0
  %v1588 = vsel %vm473, %v394, 0
  %v1591 = vsel %vm473, %v395, 0
  %v1594 = vsel %vm473, %v396, 0
  %v1597 = vsel %vm473, %v397, 0
  %v1600 = vsel %vm473, %v398, 0
  %v1603 = vsel %vm473, %v399, 0
  %v1606 = vsel %vm473, %v400, 0
  %v1609 = vsel %vm473, %v401, 0
  %v1612 = vsel %vm473, %v402, 0
  %v1615 = vsel %vm473, %v403, 0
  %v1618 = vsel %vm473, %v404, 0
  %v1621 = vsel %vm473, %v405, 0
  %v1624 = vsel %vm473, %v406, 0
  %v1627 = vsel %vm473, %v407, 0
  %v1630 = vsel %vm473, %v408, 0
  %v1633 = vsel %vm473, %v409, 0
  %v1636 = vsel %vm473, %v410, 0
  %v1639 = vsel %vm473, %v411, 0
  %v1642 = vsel %vm473, %v412, 0
  %v1645 = vsel %vm473, %v413, 0
  %v1648 = vsel %vm473, %v414, 0
  %v1651 = vsel %vm473, %v415, 0
  %v1654 = vsel %vm473, %v416, 0
  %v1657 = vsel %vm473, %v417, 0
  %v1660 = vsel %vm473, %v418, 0
  %v1663 = vsel %vm473, %v419, 0
  %v1666 = vsel %vm473, %v420, 0
  %v1669 = vsel %vm473, %v421, 0
  %v1672 = vsel %vm473, %v422, 0
  %v1675 = vsel %vm473, %v423, 0
  %v1678 = vsel %vm473, %v424, 0
  %v1681 = vsel %vm473, %v425, 0
  %v1684 = vsel %vm473, %v426, 0
  %v1687 = vsel %vm473, %v427, 0
  %v1690 = vsel %vm473, %v428, 0
  %v1693 = vsel %vm473, %v429, 0
  %v1696 = vsel %vm473, %v430, 0
  %v1699 = vsel %vm473, %v431, 0
  %v1702 = vsel %vm473, %v432, 0
  %v1705 = vsel %vm473, %v433, 0
  %v1708 = vsel %vm473, %v434, 0
  %v1711 = vsel %vm473, %v435, 0
  %v1714 = vsel %vm473, %v436, 0
  %v1717 = vsel %vm473, %v437, 0
  %v1720 = vsel %vm473, %v438, 0
  %v1723 = vsel %vm473, %v439, 0
  %v1726 = vsel %vm473, %v440, 0
  %v1729 = vsel %vm473, %v441, 0
  %v1732 = vsel %vm473, %v442, 0
  %v1735 = vsel %vm473, %v443, 0
  %v1738 = vsel %vm473, %v444, 0
  %v1741 = vsel %vm473, %v445, 0
  %v1744 = vsel %vm473, %v446, 0
  %v1747 = vsel %vm473, %v447, 0
  %v1750 = vsel %vm473, %v448, 0
  %v1753 = vsel %vm473, %v449, 0
  %v1756 = vsel %vm473, %v450, 0
  %v1759 = vsel %vm473, %v451, 0
  %v1762 = vsel %vm473, %v452, 0
  %v1765 = vsel %vm473, %v453, 0
  %v1768 = vsel %vm473, %v454, 0
  %v1771 = vsel %vm473, %v455, 0
  %v1774 = vsel %vm473, %v456, 0
  %v1777 = vsel %vm473, %v457, 0
  %v1780 = vsel %vm473, %v458, 0
  %v1783 = vsel %vm473, %v459, 0
  %v1786 = vsel %vm473, %v460, 0
  %v1789 = vsel %vm473, %v461, 0
  %v1792 = vsel %vm473, %v462, 0
  %v1795 = vsel %vm473, %v463, 0
  %vm1797 = vcmask 1043456
  %v1799 = vsel %vm1797, %v468, 0
  %1801 = vmatpush.msra.mxu0 0.0
  %1802 = vmatpush.msra.mxu0 0.0
  %1803 = vmatpush.msra.mxu0 0.0
  %1804 = vmatpush.msra.mxu0 0.0
  %1805 = vmatpush.msra.mxu0 0.0
  %1806 = vmatpush.msra.mxu0 0.0
  %1807 = vmatpush.msra.mxu0 0.0
  %1808 = vmatpush.msra.mxu0 0.0
  %1809 = vmatpush.msra.mxu0 0.0
  %1810 = vmatpush.msra.mxu0 0.0
  %1811 = vmatpush.msra.mxu0 0.0
  %1812 = vmatpush.msra.mxu0 %v1799
  %1813 = vmatpush.msra.mxu0 %v467
  %1814 = vmatpush.msra.mxu0 %v466
  %1815 = vmatpush.msra.mxu0 %v465
  %1816 = vmatpush.msra.mxu0 %v464
  %1817 = vmatmul.f32.gmra.mxu0 %v475
  %v1818 = vpop.f32.mrf.mxu0
  %v1819 = vadd.f32 %v471, %v1818
  %1820 = vmatmul.f32.gmra.mxu0 %v478
  %v1821 = vpop.f32.mrf.mxu0
  %v1822 = vadd.f32 %v471, %v1821
  %1823 = vmatmul.f32.gmra.mxu0 %v481
  %v1824 = vpop.f32.mrf.mxu0
  %v1825 = vadd.f32 %v471, %v1824
  %1826 = vmatmul.f32.gmra.mxu0 %v484
  %v1827 = vpop.f32.mrf.mxu0
  %v1828 = vadd.f32 %v471, %v1827
  %1829 = vmatmul.f32.gmra.mxu0 %v487
  %v1830 = vpop.f32.mrf.mxu0
  %v1831 = vadd.f32 %v471, %v1830
  %1832 = vmatmul.f32.gmra.mxu0 %v490
  %v1833 = vpop.f32.mrf.mxu0
  %v1834 = vadd.f32 %v471, %v1833
  %1835 = vmatmul.f32.gmra.mxu0 %v493
  %v1836 = vpop.f32.mrf.mxu0
  %v1837 = vadd.f32 %v471, %v1836
  %1838 = vmatmul.f32.gmra.mxu0 %v496
  %v1839 = vpop.f32.mrf.mxu0
  %v1840 = vadd.f32 %v471, %v1839
  %1841 = vmatmul.f32.gmra.mxu0 %v499
  %v1842 = vpop.f32.mrf.mxu0
  %v1843 = vadd.f32 %v471, %v1842
  %1844 = vmatmul.f32.gmra.mxu0 %v502
  %v1845 = vpop.f32.mrf.mxu0
  %v1846 = vadd.f32 %v471, %v1845
  %1847 = vmatmul.f32.gmra.mxu0 %v505
  %v1848 = vpop.f32.mrf.mxu0
  %v1849 = vadd.f32 %v471, %v1848
  %1850 = vmatmul.f32.gmra.mxu0 %v508
  %v1851 = vpop.f32.mrf.mxu0
  %v1852 = vadd.f32 %v471, %v1851
  %1853 = vmatmul.f32.gmra.mxu0 %v511
  %v1854 = vpop.f32.mrf.mxu0
  %v1855 = vadd.f32 %v471, %v1854
  %1856 = vmatmul.f32.gmra.mxu0 %v514
  %v1857 = vpop.f32.mrf.mxu0
  %v1858 = vadd.f32 %v471, %v1857
  %1859 = vmatmul.f32.gmra.mxu0 %v517
  %v1860 = vpop.f32.mrf.mxu0
  %v1861 = vadd.f32 %v471, %v1860
  %1862 = vmatmul.f32.gmra.mxu0 %v520
  %v1863 = vpop.f32.mrf.mxu0
  %v1864 = vadd.f32 %v471, %v1863
  %1865 = vmatmul.f32.gmra.mxu0 %v523
  %v1866 = vpop.f32.mrf.mxu0
  %v1867 = vadd.f32 %v471, %v1866
  %1868 = vmatmul.f32.gmra.mxu0 %v526
  %v1869 = vpop.f32.mrf.mxu0
  %v1870 = vadd.f32 %v471, %v1869
  %1871 = vmatmul.f32.gmra.mxu0 %v529
  %v1872 = vpop.f32.mrf.mxu0
  %v1873 = vadd.f32 %v471, %v1872
  %1874 = vmatmul.f32.gmra.mxu0 %v532
  %v1875 = vpop.f32.mrf.mxu0
  %v1876 = vadd.f32 %v471, %v1875
  %1877 = vmatmul.f32.gmra.mxu0 %v535
  %v1878 = vpop.f32.mrf.mxu0
  %v1879 = vadd.f32 %v471, %v1878
  %1880 = vmatmul.f32.gmra.mxu0 %v538
  %v1881 = vpop.f32.mrf.mxu0
  %v1882 = vadd.f32 %v471, %v1881
  %1883 = vmatmul.f32.gmra.mxu0 %v541
  %v1884 = vpop.f32.mrf.mxu0
  %v1885 = vadd.f32 %v471, %v1884
  %1886 = vmatmul.f32.gmra.mxu0 %v544
  %v1887 = vpop.f32.mrf.mxu0
  %v1888 = vadd.f32 %v471, %v1887
  %1889 = vmatmul.f32.gmra.mxu0 %v547
  %v1890 = vpop.f32.mrf.mxu0
  %v1891 = vadd.f32 %v471, %v1890
  %1892 = vmatmul.f32.gmra.mxu0 %v550
  %v1893 = vpop.f32.mrf.mxu0
  %v1894 = vadd.f32 %v471, %v1893
  %1895 = vmatmul.f32.gmra.mxu0 %v553
  %v1896 = vpop.f32.mrf.mxu0
  %v1897 = vadd.f32 %v471, %v1896
  %1898 = vmatmul.f32.gmra.mxu0 %v556
  %v1899 = vpop.f32.mrf.mxu0
  %v1900 = vadd.f32 %v471, %v1899
  %1901 = vmatmul.f32.gmra.mxu0 %v559
  %v1902 = vpop.f32.mrf.mxu0
  %v1903 = vadd.f32 %v471, %v1902
  %1904 = vmatmul.f32.gmra.mxu0 %v562
  %v1905 = vpop.f32.mrf.mxu0
  %v1906 = vadd.f32 %v471, %v1905
  %1907 = vmatmul.f32.gmra.mxu0 %v565
  %v1908 = vpop.f32.mrf.mxu0
  %v1909 = vadd.f32 %v471, %v1908
  %1910 = vmatmul.f32.gmra.mxu0 %v568
  %v1911 = vpop.f32.mrf.mxu0
  %v1912 = vadd.f32 %v471, %v1911
  %1913 = vmatmul.f32.gmra.mxu0 %v571
  %v1914 = vpop.f32.mrf.mxu0
  %v1915 = vadd.f32 %v471, %v1914
  %1916 = vmatmul.f32.gmra.mxu0 %v574
  %v1917 = vpop.f32.mrf.mxu0
  %v1918 = vadd.f32 %v471, %v1917
  %1919 = vmatmul.f32.gmra.mxu0 %v577
  %v1920 = vpop.f32.mrf.mxu0
  %v1921 = vadd.f32 %v471, %v1920
  %1922 = vmatmul.f32.gmra.mxu0 %v580
  %v1923 = vpop.f32.mrf.mxu0
  %v1924 = vadd.f32 %v471, %v1923
  %1925 = vmatmul.f32.gmra.mxu0 %v583
  %v1926 = vpop.f32.mrf.mxu0
  %v1927 = vadd.f32 %v471, %v1926
  %1928 = vmatmul.f32.gmra.mxu0 %v586
  %v1929 = vpop.f32.mrf.mxu0
  %v1930 = vadd.f32 %v471, %v1929
  %1931 = vmatmul.f32.gmra.mxu0 %v589
  %v1932 = vpop.f32.mrf.mxu0
  %v1933 = vadd.f32 %v471, %v1932
  %1934 = vmatmul.f32.gmra.mxu0 %v592
  %v1935 = vpop.f32.mrf.mxu0
  %v1936 = vadd.f32 %v471, %v1935
  %1937 = vmatmul.f32.gmra.mxu0 %v595
  %v1938 = vpop.f32.mrf.mxu0
  %v1939 = vadd.f32 %v471, %v1938
  %1940 = vmatmul.f32.gmra.mxu0 %v598
  %v1941 = vpop.f32.mrf.mxu0
  %v1942 = vadd.f32 %v471, %v1941
  %1943 = vmatmul.f32.gmra.mxu0 %v601
  %v1944 = vpop.f32.mrf.mxu0
  %v1945 = vadd.f32 %v471, %v1944
  %1946 = vmatmul.f32.gmra.mxu0 %v604
  %v1947 = vpop.f32.mrf.mxu0
  %v1948 = vadd.f32 %v471, %v1947
  %1949 = vmatmul.f32.gmra.mxu0 %v607
  %v1950 = vpop.f32.mrf.mxu0
  %v1951 = vadd.f32 %v471, %v1950
  %1952 = vmatmul.f32.gmra.mxu0 %v610
  %v1953 = vpop.f32.mrf.mxu0
  %v1954 = vadd.f32 %v471, %v1953
  %1955 = vmatmul.f32.gmra.mxu0 %v613
  %v1956 = vpop.f32.mrf.mxu0
  %v1957 = vadd.f32 %v471, %v1956
  %1958 = vmatmul.f32.gmra.mxu0 %v616
  %v1959 = vpop.f32.mrf.mxu0
  %v1960 = vadd.f32 %v471, %v1959
  %1961 = vmatmul.f32.gmra.mxu0 %v619
  %v1962 = vpop.f32.mrf.mxu0
  %v1963 = vadd.f32 %v471, %v1962
  %1964 = vmatmul.f32.gmra.mxu0 %v622
  %v1965 = vpop.f32.mrf.mxu0
  %v1966 = vadd.f32 %v471, %v1965
  %1967 = vmatmul.f32.gmra.mxu0 %v625
  %v1968 = vpop.f32.mrf.mxu0
  %v1969 = vadd.f32 %v471, %v1968
  %1970 = vmatmul.f32.gmra.mxu0 %v628
  %v1971 = vpop.f32.mrf.mxu0
  %v1972 = vadd.f32 %v471, %v1971
  %1973 = vmatmul.f32.gmra.mxu0 %v631
  %v1974 = vpop.f32.mrf.mxu0
  %v1975 = vadd.f32 %v471, %v1974
  %1976 = vmatmul.f32.gmra.mxu0 %v634
  %v1977 = vpop.f32.mrf.mxu0
  %v1978 = vadd.f32 %v471, %v1977
  %1979 = vmatmul.f32.gmra.mxu0 %v637
  %v1980 = vpop.f32.mrf.mxu0
  %v1981 = vadd.f32 %v471, %v1980
  %1982 = vmatmul.f32.gmra.mxu0 %v640
  %v1983 = vpop.f32.mrf.mxu0
  %v1984 = vadd.f32 %v471, %v1983
  %1985 = vmatmul.f32.gmra.mxu0 %v643
  %v1986 = vpop.f32.mrf.mxu0
  %v1987 = vadd.f32 %v471, %v1986
  %1988 = vmatmul.f32.gmra.mxu0 %v646
  %v1989 = vpop.f32.mrf.mxu0
  %v1990 = vadd.f32 %v471, %v1989
  %1991 = vmatmul.f32.gmra.mxu0 %v649
  %v1992 = vpop.f32.mrf.mxu0
  %v1993 = vadd.f32 %v471, %v1992
  %1994 = vmatmul.f32.gmra.mxu0 %v652
  %v1995 = vpop.f32.mrf.mxu0
  %v1996 = vadd.f32 %v471, %v1995
  %1997 = vmatmul.f32.gmra.mxu0 %v655
  %v1998 = vpop.f32.mrf.mxu0
  %v1999 = vadd.f32 %v471, %v1998
  %2000 = vmatmul.f32.gmra.mxu0 %v658
  %v2001 = vpop.f32.mrf.mxu0
  %v2002 = vadd.f32 %v471, %v2001
  %2003 = vmatmul.f32.gmra.mxu0 %v661
  %v2004 = vpop.f32.mrf.mxu0
  %v2005 = vadd.f32 %v471, %v2004
  %2006 = vmatmul.f32.gmra.mxu0 %v664
  %v2007 = vpop.f32.mrf.mxu0
  %v2008 = vadd.f32 %v471, %v2007
  %2009 = vmatmul.f32.gmra.mxu0 %v667
  %v2010 = vpop.f32.mrf.mxu0
  %v2011 = vadd.f32 %v471, %v2010
  %2012 = vmatmul.f32.gmra.mxu0 %v670
  %v2013 = vpop.f32.mrf.mxu0
  %v2014 = vadd.f32 %v471, %v2013
  %2015 = vmatmul.f32.gmra.mxu0 %v673
  %v2016 = vpop.f32.mrf.mxu0
  %v2017 = vadd.f32 %v471, %v2016
  %2018 = vmatmul.f32.gmra.mxu0 %v676
  %v2019 = vpop.f32.mrf.mxu0
  %v2020 = vadd.f32 %v471, %v2019
  %2021 = vmatmul.f32.gmra.mxu0 %v679
  %v2022 = vpop.f32.mrf.mxu0
  %v2023 = vadd.f32 %v471, %v2022
  %2024 = vmatmul.f32.gmra.mxu0 %v682
  %v2025 = vpop.f32.mrf.mxu0
  %v2026 = vadd.f32 %v471, %v2025
  %2027 = vmatmul.f32.gmra.mxu0 %v685
  %v2028 = vpop.f32.mrf.mxu0
  %v2029 = vadd.f32 %v471, %v2028
  %2030 = vmatmul.f32.gmra.mxu0 %v688
  %v2031 = vpop.f32.mrf.mxu0
  %v2032 = vadd.f32 %v471, %v2031
  %2033 = vmatmul.f32.gmra.mxu0 %v691
  %v2034 = vpop.f32.mrf.mxu0
  %v2035 = vadd.f32 %v471, %v2034
  %2036 = vmatmul.f32.gmra.mxu0 %v694
  %v2037 = vpop.f32.mrf.mxu0
  %v2038 = vadd.f32 %v471, %v2037
  %2039 = vmatmul.f32.gmra.mxu0 %v697
  %v2040 = vpop.f32.mrf.mxu0
  %v2041 = vadd.f32 %v471, %v2040
  %2042 = vmatmul.f32.gmra.mxu0 %v700
  %v2043 = vpop.f32.mrf.mxu0
  %v2044 = vadd.f32 %v471, %v2043
  %2045 = vmatmul.f32.gmra.mxu0 %v703
  %v2046 = vpop.f32.mrf.mxu0
  %v2047 = vadd.f32 %v471, %v2046
  %2048 = vmatmul.f32.gmra.mxu0 %v706
  %v2049 = vpop.f32.mrf.mxu0
  %v2050 = vadd.f32 %v471, %v2049
  %2051 = vmatmul.f32.gmra.mxu0 %v709
  %v2052 = vpop.f32.mrf.mxu0
  %v2053 = vadd.f32 %v471, %v2052
  %2054 = vmatmul.f32.gmra.mxu0 %v712
  %v2055 = vpop.f32.mrf.mxu0
  %v2056 = vadd.f32 %v471, %v2055
  %2057 = vmatmul.f32.gmra.mxu0 %v715
  %v2058 = vpop.f32.mrf.mxu0
  %v2059 = vadd.f32 %v471, %v2058
  %2060 = vmatmul.f32.gmra.mxu0 %v718
  %v2061 = vpop.f32.mrf.mxu0
  %v2062 = vadd.f32 %v471, %v2061
  %2063 = vmatmul.f32.gmra.mxu0 %v721
  %v2064 = vpop.f32.mrf.mxu0
  %v2065 = vadd.f32 %v471, %v2064
  %2066 = vmatmul.f32.gmra.mxu0 %v724
  %v2067 = vpop.f32.mrf.mxu0
  %v2068 = vadd.f32 %v471, %v2067
  %2069 = vmatmul.f32.gmra.mxu0 %v727
  %v2070 = vpop.f32.mrf.mxu0
  %v2071 = vadd.f32 %v471, %v2070
  %2072 = vmatmul.f32.gmra.mxu0 %v730
  %v2073 = vpop.f32.mrf.mxu0
  %v2074 = vadd.f32 %v471, %v2073
  %2075 = vmatmul.f32.gmra.mxu0 %v733
  %v2076 = vpop.f32.mrf.mxu0
  %v2077 = vadd.f32 %v471, %v2076
  %2078 = vmatmul.f32.gmra.mxu0 %v736
  %v2079 = vpop.f32.mrf.mxu0
  %v2080 = vadd.f32 %v471, %v2079
  %2081 = vmatmul.f32.gmra.mxu0 %v739
  %v2082 = vpop.f32.mrf.mxu0
  %v2083 = vadd.f32 %v471, %v2082
  %2084 = vmatmul.f32.gmra.mxu0 %v742
  %v2085 = vpop.f32.mrf.mxu0
  %v2086 = vadd.f32 %v471, %v2085
  %2087 = vmatmul.f32.gmra.mxu0 %v745
  %v2088 = vpop.f32.mrf.mxu0
  %v2089 = vadd.f32 %v471, %v2088
  %2090 = vmatmul.f32.gmra.mxu0 %v748
  %v2091 = vpop.f32.mrf.mxu0
  %v2092 = vadd.f32 %v471, %v2091
  %2093 = vmatmul.f32.gmra.mxu0 %v751
  %v2094 = vpop.f32.mrf.mxu0
  %v2095 = vadd.f32 %v471, %v2094
  %2096 = vmatmul.f32.gmra.mxu0 %v754
  %v2097 = vpop.f32.mrf.mxu0
  %v2098 = vadd.f32 %v471, %v2097
  %2099 = vmatmul.f32.gmra.mxu0 %v757
  %v2100 = vpop.f32.mrf.mxu0
  %v2101 = vadd.f32 %v471, %v2100
  %2102 = vmatmul.f32.gmra.mxu0 %v760
  %v2103 = vpop.f32.mrf.mxu0
  %v2104 = vadd.f32 %v471, %v2103
  %2105 = vmatmul.f32.gmra.mxu0 %v763
  %v2106 = vpop.f32.mrf.mxu0
  %v2107 = vadd.f32 %v471, %v2106
  %2108 = vmatmul.f32.gmra.mxu0 %v766
  %v2109 = vpop.f32.mrf.mxu0
  %v2110 = vadd.f32 %v471, %v2109
  %2111 = vmatmul.f32.gmra.mxu0 %v769
  %v2112 = vpop.f32.mrf.mxu0
  %v2113 = vadd.f32 %v471, %v2112
  %2114 = vmatmul.f32.gmra.mxu0 %v772
  %v2115 = vpop.f32.mrf.mxu0
  %v2116 = vadd.f32 %v471, %v2115
  %2117 = vmatmul.f32.gmra.mxu0 %v775
  %v2118 = vpop.f32.mrf.mxu0
  %v2119 = vadd.f32 %v471, %v2118
  %2120 = vmatmul.f32.gmra.mxu0 %v778
  %v2121 = vpop.f32.mrf.mxu0
  %v2122 = vadd.f32 %v471, %v2121
  %2123 = vmatmul.f32.gmra.mxu0 %v781
  %v2124 = vpop.f32.mrf.mxu0
  %v2125 = vadd.f32 %v471, %v2124
  %2126 = vmatmul.f32.gmra.mxu0 %v784
  %v2127 = vpop.f32.mrf.mxu0
  %v2128 = vadd.f32 %v471, %v2127
  %2129 = vmatmul.f32.gmra.mxu0 %v787
  %v2130 = vpop.f32.mrf.mxu0
  %v2131 = vadd.f32 %v471, %v2130
  %2132 = vmatmul.f32.gmra.mxu0 %v790
  %v2133 = vpop.f32.mrf.mxu0
  %v2134 = vadd.f32 %v471, %v2133
  %2135 = vmatmul.f32.gmra.mxu0 %v793
  %v2136 = vpop.f32.mrf.mxu0
  %v2137 = vadd.f32 %v471, %v2136
  %2138 = vmatmul.f32.gmra.mxu0 %v796
  %v2139 = vpop.f32.mrf.mxu0
  %v2140 = vadd.f32 %v471, %v2139
  %2141 = vmatmul.f32.gmra.mxu0 %v799
  %v2142 = vpop.f32.mrf.mxu0
  %v2143 = vadd.f32 %v471, %v2142
  %2144 = vmatmul.f32.gmra.mxu0 %v802
  %v2145 = vpop.f32.mrf.mxu0
  %v2146 = vadd.f32 %v471, %v2145
  %2147 = vmatmul.f32.gmra.mxu0 %v805
  %v2148 = vpop.f32.mrf.mxu0
  %v2149 = vadd.f32 %v471, %v2148
  %2150 = vmatmul.f32.gmra.mxu0 %v808
  %v2151 = vpop.f32.mrf.mxu0
  %v2152 = vadd.f32 %v471, %v2151
  %2153 = vmatmul.f32.gmra.mxu0 %v811
  %v2154 = vpop.f32.mrf.mxu0
  %v2155 = vadd.f32 %v471, %v2154
  %2156 = vmatmul.f32.gmra.mxu0 %v814
  %v2157 = vpop.f32.mrf.mxu0
  %v2158 = vadd.f32 %v471, %v2157
  %2159 = vmatmul.f32.gmra.mxu0 %v817
  %v2160 = vpop.f32.mrf.mxu0
  %v2161 = vadd.f32 %v471, %v2160
  %2162 = vmatmul.f32.gmra.mxu0 %v820
  %v2163 = vpop.f32.mrf.mxu0
  %v2164 = vadd.f32 %v471, %v2163
  %2165 = vmatmul.f32.gmra.mxu0 %v823
  %v2166 = vpop.f32.mrf.mxu0
  %v2167 = vadd.f32 %v471, %v2166
  %2168 = vmatmul.f32.gmra.mxu0 %v826
  %v2169 = vpop.f32.mrf.mxu0
  %v2170 = vadd.f32 %v471, %v2169
  %2171 = vmatmul.f32.gmra.mxu0 %v829
  %v2172 = vpop.f32.mrf.mxu0
  %v2173 = vadd.f32 %v471, %v2172
  %2174 = vmatmul.f32.gmra.mxu0 %v832
  %v2175 = vpop.f32.mrf.mxu0
  %v2176 = vadd.f32 %v471, %v2175
  %2177 = vmatmul.f32.gmra.mxu0 %v835
  %v2178 = vpop.f32.mrf.mxu0
  %v2179 = vadd.f32 %v471, %v2178
  %2180 = vmatmul.f32.gmra.mxu0 %v838
  %v2181 = vpop.f32.mrf.mxu0
  %v2182 = vadd.f32 %v471, %v2181
  %2183 = vmatmul.f32.gmra.mxu0 %v841
  %v2184 = vpop.f32.mrf.mxu0
  %v2185 = vadd.f32 %v471, %v2184
  %2186 = vmatmul.f32.gmra.mxu0 %v844
  %v2187 = vpop.f32.mrf.mxu0
  %v2188 = vadd.f32 %v471, %v2187
  %2189 = vmatmul.f32.gmra.mxu0 %v847
  %v2190 = vpop.f32.mrf.mxu0
  %v2191 = vadd.f32 %v471, %v2190
  %2192 = vmatmul.f32.gmra.mxu0 %v850
  %v2193 = vpop.f32.mrf.mxu0
  %v2194 = vadd.f32 %v471, %v2193
  %2195 = vmatmul.f32.gmra.mxu0 %v853
  %v2196 = vpop.f32.mrf.mxu0
  %v2197 = vadd.f32 %v471, %v2196
  %2198 = vmatmul.f32.gmra.mxu0 %v856
  %v2199 = vpop.f32.mrf.mxu0
  %v2200 = vadd.f32 %v471, %v2199
  %2201 = vmatmul.f32.gmra.mxu0 %v859
  %v2202 = vpop.f32.mrf.mxu0
  %v2203 = vadd.f32 %v471, %v2202
  %2204 = vmatmul.f32.gmra.mxu0 %v862
  %v2205 = vpop.f32.mrf.mxu0
  %v2206 = vadd.f32 %v471, %v2205
  %2207 = vmatmul.f32.gmra.mxu0 %v865
  %v2208 = vpop.f32.mrf.mxu0
  %v2209 = vadd.f32 %v471, %v2208
  %2210 = vmatmul.f32.gmra.mxu0 %v868
  %v2211 = vpop.f32.mrf.mxu0
  %v2212 = vadd.f32 %v471, %v2211
  %2213 = vmatmul.f32.gmra.mxu0 %v871
  %v2214 = vpop.f32.mrf.mxu0
  %v2215 = vadd.f32 %v471, %v2214
  %2216 = vmatmul.f32.gmra.mxu0 %v874
  %v2217 = vpop.f32.mrf.mxu0
  %v2218 = vadd.f32 %v471, %v2217
  %2219 = vmatmul.f32.gmra.mxu0 %v877
  %v2220 = vpop.f32.mrf.mxu0
  %v2221 = vadd.f32 %v471, %v2220
  %2222 = vmatmul.f32.gmra.mxu0 %v880
  %v2223 = vpop.f32.mrf.mxu0
  %v2224 = vadd.f32 %v471, %v2223
  %2225 = vmatmul.f32.gmra.mxu0 %v883
  %v2226 = vpop.f32.mrf.mxu0
  %v2227 = vadd.f32 %v471, %v2226
  %2228 = vmatmul.f32.gmra.mxu0 %v886
  %v2229 = vpop.f32.mrf.mxu0
  %v2230 = vadd.f32 %v471, %v2229
  %2231 = vmatmul.f32.gmra.mxu0 %v889
  %v2232 = vpop.f32.mrf.mxu0
  %v2233 = vadd.f32 %v471, %v2232
  %2234 = vmatmul.f32.gmra.mxu0 %v892
  %v2235 = vpop.f32.mrf.mxu0
  %v2236 = vadd.f32 %v471, %v2235
  %2237 = vmatmul.f32.gmra.mxu0 %v895
  %v2238 = vpop.f32.mrf.mxu0
  %v2239 = vadd.f32 %v471, %v2238
  %2240 = vmatmul.f32.gmra.mxu0 %v898
  %v2241 = vpop.f32.mrf.mxu0
  %v2242 = vadd.f32 %v471, %v2241
  %2243 = vmatmul.f32.gmra.mxu0 %v901
  %v2244 = vpop.f32.mrf.mxu0
  %v2245 = vadd.f32 %v471, %v2244
  %2246 = vmatmul.f32.gmra.mxu0 %v904
  %v2247 = vpop.f32.mrf.mxu0
  %v2248 = vadd.f32 %v471, %v2247
  %2249 = vmatmul.f32.gmra.mxu0 %v907
  %v2250 = vpop.f32.mrf.mxu0
  %v2251 = vadd.f32 %v471, %v2250
  %2252 = vmatmul.f32.gmra.mxu0 %v910
  %v2253 = vpop.f32.mrf.mxu0
  %v2254 = vadd.f32 %v471, %v2253
  %2255 = vmatmul.f32.gmra.mxu0 %v913
  %v2256 = vpop.f32.mrf.mxu0
  %v2257 = vadd.f32 %v471, %v2256
  %2258 = vmatmul.f32.gmra.mxu0 %v916
  %v2259 = vpop.f32.mrf.mxu0
  %v2260 = vadd.f32 %v471, %v2259
  %2261 = vmatmul.f32.gmra.mxu0 %v919
  %v2262 = vpop.f32.mrf.mxu0
  %v2263 = vadd.f32 %v471, %v2262
  %2264 = vmatmul.f32.gmra.mxu0 %v922
  %v2265 = vpop.f32.mrf.mxu0
  %v2266 = vadd.f32 %v471, %v2265
  %2267 = vmatmul.f32.gmra.mxu0 %v925
  %v2268 = vpop.f32.mrf.mxu0
  %v2269 = vadd.f32 %v471, %v2268
  %2270 = vmatmul.f32.gmra.mxu0 %v928
  %v2271 = vpop.f32.mrf.mxu0
  %v2272 = vadd.f32 %v471, %v2271
  %2273 = vmatmul.f32.gmra.mxu0 %v931
  %v2274 = vpop.f32.mrf.mxu0
  %v2275 = vadd.f32 %v471, %v2274
  %2276 = vmatmul.f32.gmra.mxu0 %v934
  %v2277 = vpop.f32.mrf.mxu0
  %v2278 = vadd.f32 %v471, %v2277
  %2279 = vmatmul.f32.gmra.mxu0 %v937
  %v2280 = vpop.f32.mrf.mxu0
  %v2281 = vadd.f32 %v471, %v2280
  %2282 = vmatmul.f32.gmra.mxu0 %v940
  %v2283 = vpop.f32.mrf.mxu0
  %v2284 = vadd.f32 %v471, %v2283
  %2285 = vmatmul.f32.gmra.mxu0 %v943
  %v2286 = vpop.f32.mrf.mxu0
  %v2287 = vadd.f32 %v471, %v2286
  %2288 = vmatmul.f32.gmra.mxu0 %v946
  %v2289 = vpop.f32.mrf.mxu0
  %v2290 = vadd.f32 %v471, %v2289
  %2291 = vmatmul.f32.gmra.mxu0 %v949
  %v2292 = vpop.f32.mrf.mxu0
  %v2293 = vadd.f32 %v471, %v2292
  %2294 = vmatmul.f32.gmra.mxu0 %v952
  %v2295 = vpop.f32.mrf.mxu0
  %v2296 = vadd.f32 %v471, %v2295
  %2297 = vmatmul.f32.gmra.mxu0 %v955
  %v2298 = vpop.f32.mrf.mxu0
  %v2299 = vadd.f32 %v471, %v2298
  %2300 = vmatmul.f32.gmra.mxu0 %v958
  %v2301 = vpop.f32.mrf.mxu0
  %v2302 = vadd.f32 %v471, %v2301
  %2303 = vmatmul.f32.gmra.mxu0 %v961
  %v2304 = vpop.f32.mrf.mxu0
  %v2305 = vadd.f32 %v471, %v2304
  %2306 = vmatmul.f32.gmra.mxu0 %v964
  %v2307 = vpop.f32.mrf.mxu0
  %v2308 = vadd.f32 %v471, %v2307
  %2309 = vmatmul.f32.gmra.mxu0 %v967
  %v2310 = vpop.f32.mrf.mxu0
  %v2311 = vadd.f32 %v471, %v2310
  %2312 = vmatmul.f32.gmra.mxu0 %v970
  %v2313 = vpop.f32.mrf.mxu0
  %v2314 = vadd.f32 %v471, %v2313
  %2315 = vmatmul.f32.gmra.mxu0 %v973
  %v2316 = vpop.f32.mrf.mxu0
  %v2317 = vadd.f32 %v471, %v2316
  %2318 = vmatmul.f32.gmra.mxu0 %v976
  %v2319 = vpop.f32.mrf.mxu0
  %v2320 = vadd.f32 %v471, %v2319
  %2321 = vmatmul.f32.gmra.mxu0 %v979
  %v2322 = vpop.f32.mrf.mxu0
  %v2323 = vadd.f32 %v471, %v2322
  %2324 = vmatmul.f32.gmra.mxu0 %v982
  %v2325 = vpop.f32.mrf.mxu0
  %v2326 = vadd.f32 %v471, %v2325
  %2327 = vmatmul.f32.gmra.mxu0 %v985
  %v2328 = vpop.f32.mrf.mxu0
  %v2329 = vadd.f32 %v471, %v2328
  %2330 = vmatmul.f32.gmra.mxu0 %v988
  %v2331 = vpop.f32.mrf.mxu0
  %v2332 = vadd.f32 %v471, %v2331
  %2333 = vmatmul.f32.gmra.mxu0 %v991
  %v2334 = vpop.f32.mrf.mxu0
  %v2335 = vadd.f32 %v471, %v2334
  %2336 = vmatmul.f32.gmra.mxu0 %v994
  %v2337 = vpop.f32.mrf.mxu0
  %v2338 = vadd.f32 %v471, %v2337
  %2339 = vmatmul.f32.gmra.mxu0 %v997
  %v2340 = vpop.f32.mrf.mxu0
  %v2341 = vadd.f32 %v471, %v2340
  %2342 = vmatmul.f32.gmra.mxu0 %v1000
  %v2343 = vpop.f32.mrf.mxu0
  %v2344 = vadd.f32 %v471, %v2343
  %2345 = vmatmul.f32.gmra.mxu0 %v1003
  %v2346 = vpop.f32.mrf.mxu0
  %v2347 = vadd.f32 %v471, %v2346
  %2348 = vmatmul.f32.gmra.mxu0 %v1006
  %v2349 = vpop.f32.mrf.mxu0
  %v2350 = vadd.f32 %v471, %v2349
  %2351 = vmatmul.f32.gmra.mxu0 %v1009
  %v2352 = vpop.f32.mrf.mxu0
  %v2353 = vadd.f32 %v471, %v2352
  %2354 = vmatmul.f32.gmra.mxu0 %v1012
  %v2355 = vpop.f32.mrf.mxu0
  %v2356 = vadd.f32 %v471, %v2355
  %2357 = vmatmul.f32.gmra.mxu0 %v1015
  %v2358 = vpop.f32.mrf.mxu0
  %v2359 = vadd.f32 %v471, %v2358
  %2360 = vmatmul.f32.gmra.mxu0 %v1018
  %v2361 = vpop.f32.mrf.mxu0
  %v2362 = vadd.f32 %v471, %v2361
  %2363 = vmatmul.f32.gmra.mxu0 %v1021
  %v2364 = vpop.f32.mrf.mxu0
  %v2365 = vadd.f32 %v471, %v2364
  %2366 = vmatmul.f32.gmra.mxu0 %v1024
  %v2367 = vpop.f32.mrf.mxu0
  %v2368 = vadd.f32 %v471, %v2367
  %2369 = vmatmul.f32.gmra.mxu0 %v1027
  %v2370 = vpop.f32.mrf.mxu0
  %v2371 = vadd.f32 %v471, %v2370
  %2372 = vmatmul.f32.gmra.mxu0 %v1030
  %v2373 = vpop.f32.mrf.mxu0
  %v2374 = vadd.f32 %v471, %v2373
  %2375 = vmatmul.f32.gmra.mxu0 %v1033
  %v2376 = vpop.f32.mrf.mxu0
  %v2377 = vadd.f32 %v471, %v2376
  %2378 = vmatmul.f32.gmra.mxu0 %v1036
  %v2379 = vpop.f32.mrf.mxu0
  %v2380 = vadd.f32 %v471, %v2379
  %2381 = vmatmul.f32.gmra.mxu0 %v1039
  %v2382 = vpop.f32.mrf.mxu0
  %v2383 = vadd.f32 %v471, %v2382
  %2384 = vmatmul.f32.gmra.mxu0 %v1042
  %v2385 = vpop.f32.mrf.mxu0
  %v2386 = vadd.f32 %v471, %v2385
  %2387 = vmatmul.f32.gmra.mxu0 %v1045
  %v2388 = vpop.f32.mrf.mxu0
  %v2389 = vadd.f32 %v471, %v2388
  %2390 = vmatmul.f32.gmra.mxu0 %v1048
  %v2391 = vpop.f32.mrf.mxu0
  %v2392 = vadd.f32 %v471, %v2391
  %2393 = vmatmul.f32.gmra.mxu0 %v1051
  %v2394 = vpop.f32.mrf.mxu0
  %v2395 = vadd.f32 %v471, %v2394
  %2396 = vmatmul.f32.gmra.mxu0 %v1054
  %v2397 = vpop.f32.mrf.mxu0
  %v2398 = vadd.f32 %v471, %v2397
  %2399 = vmatmul.f32.gmra.mxu0 %v1057
  %v2400 = vpop.f32.mrf.mxu0
  %v2401 = vadd.f32 %v471, %v2400
  %2402 = vmatmul.f32.gmra.mxu0 %v1060
  %v2403 = vpop.f32.mrf.mxu0
  %v2404 = vadd.f32 %v471, %v2403
  %2405 = vmatmul.f32.gmra.mxu0 %v1063
  %v2406 = vpop.f32.mrf.mxu0
  %v2407 = vadd.f32 %v471, %v2406
  %2408 = vmatmul.f32.gmra.mxu0 %v1066
  %v2409 = vpop.f32.mrf.mxu0
  %v2410 = vadd.f32 %v471, %v2409
  %2411 = vmatmul.f32.gmra.mxu0 %v1069
  %v2412 = vpop.f32.mrf.mxu0
  %v2413 = vadd.f32 %v471, %v2412
  %2414 = vmatmul.f32.gmra.mxu0 %v1072
  %v2415 = vpop.f32.mrf.mxu0
  %v2416 = vadd.f32 %v471, %v2415
  %2417 = vmatmul.f32.gmra.mxu0 %v1075
  %v2418 = vpop.f32.mrf.mxu0
  %v2419 = vadd.f32 %v471, %v2418
  %2420 = vmatmul.f32.gmra.mxu0 %v1078
  %v2421 = vpop.f32.mrf.mxu0
  %v2422 = vadd.f32 %v471, %v2421
  %2423 = vmatmul.f32.gmra.mxu0 %v1081
  %v2424 = vpop.f32.mrf.mxu0
  %v2425 = vadd.f32 %v471, %v2424
  %2426 = vmatmul.f32.gmra.mxu0 %v1084
  %v2427 = vpop.f32.mrf.mxu0
  %v2428 = vadd.f32 %v471, %v2427
  %2429 = vmatmul.f32.gmra.mxu0 %v1087
  %v2430 = vpop.f32.mrf.mxu0
  %v2431 = vadd.f32 %v471, %v2430
  %2432 = vmatmul.f32.gmra.mxu0 %v1090
  %v2433 = vpop.f32.mrf.mxu0
  %v2434 = vadd.f32 %v471, %v2433
  %2435 = vmatmul.f32.gmra.mxu0 %v1093
  %v2436 = vpop.f32.mrf.mxu0
  %v2437 = vadd.f32 %v471, %v2436
  %2438 = vmatmul.f32.gmra.mxu0 %v1096
  %v2439 = vpop.f32.mrf.mxu0
  %v2440 = vadd.f32 %v471, %v2439
  %2441 = vmatmul.f32.gmra.mxu0 %v1099
  %v2442 = vpop.f32.mrf.mxu0
  %v2443 = vadd.f32 %v471, %v2442
  %2444 = vmatmul.f32.gmra.mxu0 %v1102
  %v2445 = vpop.f32.mrf.mxu0
  %v2446 = vadd.f32 %v471, %v2445
  %2447 = vmatmul.f32.gmra.mxu0 %v1105
  %v2448 = vpop.f32.mrf.mxu0
  %v2449 = vadd.f32 %v471, %v2448
  %2450 = vmatmul.f32.gmra.mxu0 %v1108
  %v2451 = vpop.f32.mrf.mxu0
  %v2452 = vadd.f32 %v471, %v2451
  %2453 = vmatmul.f32.gmra.mxu0 %v1111
  %v2454 = vpop.f32.mrf.mxu0
  %v2455 = vadd.f32 %v471, %v2454
  %2456 = vmatmul.f32.gmra.mxu0 %v1114
  %v2457 = vpop.f32.mrf.mxu0
  %v2458 = vadd.f32 %v471, %v2457
  %2459 = vmatmul.f32.gmra.mxu0 %v1117
  %v2460 = vpop.f32.mrf.mxu0
  %v2461 = vadd.f32 %v471, %v2460
  %2462 = vmatmul.f32.gmra.mxu0 %v1120
  %v2463 = vpop.f32.mrf.mxu0
  %v2464 = vadd.f32 %v471, %v2463
  %2465 = vmatmul.f32.gmra.mxu0 %v1123
  %v2466 = vpop.f32.mrf.mxu0
  %v2467 = vadd.f32 %v471, %v2466
  %2468 = vmatmul.f32.gmra.mxu0 %v1126
  %v2469 = vpop.f32.mrf.mxu0
  %v2470 = vadd.f32 %v471, %v2469
  %2471 = vmatmul.f32.gmra.mxu0 %v1129
  %v2472 = vpop.f32.mrf.mxu0
  %v2473 = vadd.f32 %v471, %v2472
  %2474 = vmatmul.f32.gmra.mxu0 %v1132
  %v2475 = vpop.f32.mrf.mxu0
  %v2476 = vadd.f32 %v471, %v2475
  %2477 = vmatmul.f32.gmra.mxu0 %v1135
  %v2478 = vpop.f32.mrf.mxu0
  %v2479 = vadd.f32 %v471, %v2478
  %2480 = vmatmul.f32.gmra.mxu0 %v1138
  %v2481 = vpop.f32.mrf.mxu0
  %v2482 = vadd.f32 %v471, %v2481
  %2483 = vmatmul.f32.gmra.mxu0 %v1141
  %v2484 = vpop.f32.mrf.mxu0
  %v2485 = vadd.f32 %v471, %v2484
  %2486 = vmatmul.f32.gmra.mxu0 %v1144
  %v2487 = vpop.f32.mrf.mxu0
  %v2488 = vadd.f32 %v471, %v2487
  %2489 = vmatmul.f32.gmra.mxu0 %v1147
  %v2490 = vpop.f32.mrf.mxu0
  %v2491 = vadd.f32 %v471, %v2490
  %2492 = vmatmul.f32.gmra.mxu0 %v1150
  %v2493 = vpop.f32.mrf.mxu0
  %v2494 = vadd.f32 %v471, %v2493
  %2495 = vmatmul.f32.gmra.mxu0 %v1153
  %v2496 = vpop.f32.mrf.mxu0
  %v2497 = vadd.f32 %v471, %v2496
  %2498 = vmatmul.f32.gmra.mxu0 %v1156
  %v2499 = vpop.f32.mrf.mxu0
  %v2500 = vadd.f32 %v471, %v2499
  %2501 = vmatmul.f32.gmra.mxu0 %v1159
  %v2502 = vpop.f32.mrf.mxu0
  %v2503 = vadd.f32 %v471, %v2502
  %2504 = vmatmul.f32.gmra.mxu0 %v1162
  %v2505 = vpop.f32.mrf.mxu0
  %v2506 = vadd.f32 %v471, %v2505
  %2507 = vmatmul.f32.gmra.mxu0 %v1165
  %v2508 = vpop.f32.mrf.mxu0
  %v2509 = vadd.f32 %v471, %v2508
  %2510 = vmatmul.f32.gmra.mxu0 %v1168
  %v2511 = vpop.f32.mrf.mxu0
  %v2512 = vadd.f32 %v471, %v2511
  %2513 = vmatmul.f32.gmra.mxu0 %v1171
  %v2514 = vpop.f32.mrf.mxu0
  %v2515 = vadd.f32 %v471, %v2514
  %2516 = vmatmul.f32.gmra.mxu0 %v1174
  %v2517 = vpop.f32.mrf.mxu0
  %v2518 = vadd.f32 %v471, %v2517
  %2519 = vmatmul.f32.gmra.mxu0 %v1177
  %v2520 = vpop.f32.mrf.mxu0
  %v2521 = vadd.f32 %v471, %v2520
  %2522 = vmatmul.f32.gmra.mxu0 %v1180
  %v2523 = vpop.f32.mrf.mxu0
  %v2524 = vadd.f32 %v471, %v2523
  %2525 = vmatmul.f32.gmra.mxu0 %v1183
  %v2526 = vpop.f32.mrf.mxu0
  %v2527 = vadd.f32 %v471, %v2526
  %2528 = vmatmul.f32.gmra.mxu0 %v1186
  %v2529 = vpop.f32.mrf.mxu0
  %v2530 = vadd.f32 %v471, %v2529
  %2531 = vmatmul.f32.gmra.mxu0 %v1189
  %v2532 = vpop.f32.mrf.mxu0
  %v2533 = vadd.f32 %v471, %v2532
  %2534 = vmatmul.f32.gmra.mxu0 %v1192
  %v2535 = vpop.f32.mrf.mxu0
  %v2536 = vadd.f32 %v471, %v2535
  %2537 = vmatmul.f32.gmra.mxu0 %v1195
  %v2538 = vpop.f32.mrf.mxu0
  %v2539 = vadd.f32 %v471, %v2538
  %2540 = vmatmul.f32.gmra.mxu0 %v1198
  %v2541 = vpop.f32.mrf.mxu0
  %v2542 = vadd.f32 %v471, %v2541
  %2543 = vmatmul.f32.gmra.mxu0 %v1201
  %v2544 = vpop.f32.mrf.mxu0
  %v2545 = vadd.f32 %v471, %v2544
  %2546 = vmatmul.f32.gmra.mxu0 %v1204
  %v2547 = vpop.f32.mrf.mxu0
  %v2548 = vadd.f32 %v471, %v2547
  %2549 = vmatmul.f32.gmra.mxu0 %v1207
  %v2550 = vpop.f32.mrf.mxu0
  %v2551 = vadd.f32 %v471, %v2550
  %2552 = vmatmul.f32.gmra.mxu0 %v1210
  %v2553 = vpop.f32.mrf.mxu0
  %v2554 = vadd.f32 %v471, %v2553
  %2555 = vmatmul.f32.gmra.mxu0 %v1213
  %v2556 = vpop.f32.mrf.mxu0
  %v2557 = vadd.f32 %v471, %v2556
  %2558 = vmatmul.f32.gmra.mxu0 %v1216
  %v2559 = vpop.f32.mrf.mxu0
  %v2560 = vadd.f32 %v471, %v2559
  %2561 = vmatmul.f32.gmra.mxu0 %v1219
  %v2562 = vpop.f32.mrf.mxu0
  %v2563 = vadd.f32 %v471, %v2562
  %2564 = vmatmul.f32.gmra.mxu0 %v1222
  %v2565 = vpop.f32.mrf.mxu0
  %v2566 = vadd.f32 %v471, %v2565
  %2567 = vmatmul.f32.gmra.mxu0 %v1225
  %v2568 = vpop.f32.mrf.mxu0
  %v2569 = vadd.f32 %v471, %v2568
  %2570 = vmatmul.f32.gmra.mxu0 %v1228
  %v2571 = vpop.f32.mrf.mxu0
  %v2572 = vadd.f32 %v471, %v2571
  %2573 = vmatmul.f32.gmra.mxu0 %v1231
  %v2574 = vpop.f32.mrf.mxu0
  %v2575 = vadd.f32 %v471, %v2574
  %2576 = vmatmul.f32.gmra.mxu0 %v1234
  %v2577 = vpop.f32.mrf.mxu0
  %v2578 = vadd.f32 %v471, %v2577
  %2579 = vmatmul.f32.gmra.mxu0 %v1237
  %v2580 = vpop.f32.mrf.mxu0
  %v2581 = vadd.f32 %v471, %v2580
  %2582 = vmatmul.f32.gmra.mxu0 %v1240
  %v2583 = vpop.f32.mrf.mxu0
  %v2584 = vadd.f32 %v471, %v2583
  %2585 = vmatmul.f32.gmra.mxu0 %v1243
  %v2586 = vpop.f32.mrf.mxu0
  %v2587 = vadd.f32 %v471, %v2586
  %2588 = vmatmul.f32.gmra.mxu0 %v1246
  %v2589 = vpop.f32.mrf.mxu0
  %v2590 = vadd.f32 %v471, %v2589
  %2591 = vmatmul.f32.gmra.mxu0 %v1249
  %v2592 = vpop.f32.mrf.mxu0
  %v2593 = vadd.f32 %v471, %v2592
  %2594 = vmatmul.f32.gmra.mxu0 %v1252
  %v2595 = vpop.f32.mrf.mxu0
  %v2596 = vadd.f32 %v471, %v2595
  %2597 = vmatmul.f32.gmra.mxu0 %v1255
  %v2598 = vpop.f32.mrf.mxu0
  %v2599 = vadd.f32 %v471, %v2598
  %2600 = vmatmul.f32.gmra.mxu0 %v1258
  %v2601 = vpop.f32.mrf.mxu0
  %v2602 = vadd.f32 %v471, %v2601
  %2603 = vmatmul.f32.gmra.mxu0 %v1261
  %v2604 = vpop.f32.mrf.mxu0
  %v2605 = vadd.f32 %v471, %v2604
  %2606 = vmatmul.f32.gmra.mxu0 %v1264
  %v2607 = vpop.f32.mrf.mxu0
  %v2608 = vadd.f32 %v471, %v2607
  %2609 = vmatmul.f32.gmra.mxu0 %v1267
  %v2610 = vpop.f32.mrf.mxu0
  %v2611 = vadd.f32 %v471, %v2610
  %2612 = vmatmul.f32.gmra.mxu0 %v1270
  %v2613 = vpop.f32.mrf.mxu0
  %v2614 = vadd.f32 %v471, %v2613
  %2615 = vmatmul.f32.gmra.mxu0 %v1273
  %v2616 = vpop.f32.mrf.mxu0
  %v2617 = vadd.f32 %v471, %v2616
  %2618 = vmatmul.f32.gmra.mxu0 %v1276
  %v2619 = vpop.f32.mrf.mxu0
  %v2620 = vadd.f32 %v471, %v2619
  %2621 = vmatmul.f32.gmra.mxu0 %v1279
  %v2622 = vpop.f32.mrf.mxu0
  %v2623 = vadd.f32 %v471, %v2622
  %2624 = vmatmul.f32.gmra.mxu0 %v1282
  %v2625 = vpop.f32.mrf.mxu0
  %v2626 = vadd.f32 %v471, %v2625
  %2627 = vmatmul.f32.gmra.mxu0 %v1285
  %v2628 = vpop.f32.mrf.mxu0
  %v2629 = vadd.f32 %v471, %v2628
  %2630 = vmatmul.f32.gmra.mxu0 %v1288
  %v2631 = vpop.f32.mrf.mxu0
  %v2632 = vadd.f32 %v471, %v2631
  %2633 = vmatmul.f32.gmra.mxu0 %v1291
  %v2634 = vpop.f32.mrf.mxu0
  %v2635 = vadd.f32 %v471, %v2634
  %2636 = vmatmul.f32.gmra.mxu0 %v1294
  %v2637 = vpop.f32.mrf.mxu0
  %v2638 = vadd.f32 %v471, %v2637
  %2639 = vmatmul.f32.gmra.mxu0 %v1297
  %v2640 = vpop.f32.mrf.mxu0
  %v2641 = vadd.f32 %v471, %v2640
  %2642 = vmatmul.f32.gmra.mxu0 %v1300
  %v2643 = vpop.f32.mrf.mxu0
  %v2644 = vadd.f32 %v471, %v2643
  %2645 = vmatmul.f32.gmra.mxu0 %v1303
  %v2646 = vpop.f32.mrf.mxu0
  %v2647 = vadd.f32 %v471, %v2646
  %2648 = vmatmul.f32.gmra.mxu0 %v1306
  %v2649 = vpop.f32.mrf.mxu0
  %v2650 = vadd.f32 %v471, %v2649
  %2651 = vmatmul.f32.gmra.mxu0 %v1309
  %v2652 = vpop.f32.mrf.mxu0
  %v2653 = vadd.f32 %v471, %v2652
  %2654 = vmatmul.f32.gmra.mxu0 %v1312
  %v2655 = vpop.f32.mrf.mxu0
  %v2656 = vadd.f32 %v471, %v2655
  %2657 = vmatmul.f32.gmra.mxu0 %v1315
  %v2658 = vpop.f32.mrf.mxu0
  %v2659 = vadd.f32 %v471, %v2658
  %2660 = vmatmul.f32.gmra.mxu0 %v1318
  %v2661 = vpop.f32.mrf.mxu0
  %v2662 = vadd.f32 %v471, %v2661
  %2663 = vmatmul.f32.gmra.mxu0 %v1321
  %v2664 = vpop.f32.mrf.mxu0
  %v2665 = vadd.f32 %v471, %v2664
  %2666 = vmatmul.f32.gmra.mxu0 %v1324
  %v2667 = vpop.f32.mrf.mxu0
  %v2668 = vadd.f32 %v471, %v2667
  %2669 = vmatmul.f32.gmra.mxu0 %v1327
  %v2670 = vpop.f32.mrf.mxu0
  %v2671 = vadd.f32 %v471, %v2670
  %2672 = vmatmul.f32.gmra.mxu0 %v1330
  %v2673 = vpop.f32.mrf.mxu0
  %v2674 = vadd.f32 %v471, %v2673
  %2675 = vmatmul.f32.gmra.mxu0 %v1333
  %v2676 = vpop.f32.mrf.mxu0
  %v2677 = vadd.f32 %v471, %v2676
  %2678 = vmatmul.f32.gmra.mxu0 %v1336
  %v2679 = vpop.f32.mrf.mxu0
  %v2680 = vadd.f32 %v471, %v2679
  %2681 = vmatmul.f32.gmra.mxu0 %v1339
  %v2682 = vpop.f32.mrf.mxu0
  %v2683 = vadd.f32 %v471, %v2682
  %2684 = vmatmul.f32.gmra.mxu0 %v1342
  %v2685 = vpop.f32.mrf.mxu0
  %v2686 = vadd.f32 %v471, %v2685
  %2687 = vmatmul.f32.gmra.mxu0 %v1345
  %v2688 = vpop.f32.mrf.mxu0
  %v2689 = vadd.f32 %v471, %v2688
  %2690 = vmatmul.f32.gmra.mxu0 %v1348
  %v2691 = vpop.f32.mrf.mxu0
  %v2692 = vadd.f32 %v471, %v2691
  %2693 = vmatmul.f32.gmra.mxu0 %v1351
  %v2694 = vpop.f32.mrf.mxu0
  %v2695 = vadd.f32 %v471, %v2694
  %2696 = vmatmul.f32.gmra.mxu0 %v1354
  %v2697 = vpop.f32.mrf.mxu0
  %v2698 = vadd.f32 %v471, %v2697
  %2699 = vmatmul.f32.gmra.mxu0 %v1357
  %v2700 = vpop.f32.mrf.mxu0
  %v2701 = vadd.f32 %v471, %v2700
  %2702 = vmatmul.f32.gmra.mxu0 %v1360
  %v2703 = vpop.f32.mrf.mxu0
  %v2704 = vadd.f32 %v471, %v2703
  %2705 = vmatmul.f32.gmra.mxu0 %v1363
  %v2706 = vpop.f32.mrf.mxu0
  %v2707 = vadd.f32 %v471, %v2706
  %2708 = vmatmul.f32.gmra.mxu0 %v1366
  %v2709 = vpop.f32.mrf.mxu0
  %v2710 = vadd.f32 %v471, %v2709
  %2711 = vmatmul.f32.gmra.mxu0 %v1369
  %v2712 = vpop.f32.mrf.mxu0
  %v2713 = vadd.f32 %v471, %v2712
  %2714 = vmatmul.f32.gmra.mxu0 %v1372
  %v2715 = vpop.f32.mrf.mxu0
  %v2716 = vadd.f32 %v471, %v2715
  %2717 = vmatmul.f32.gmra.mxu0 %v1375
  %v2718 = vpop.f32.mrf.mxu0
  %v2719 = vadd.f32 %v471, %v2718
  %2720 = vmatmul.f32.gmra.mxu0 %v1378
  %v2721 = vpop.f32.mrf.mxu0
  %v2722 = vadd.f32 %v471, %v2721
  %2723 = vmatmul.f32.gmra.mxu0 %v1381
  %v2724 = vpop.f32.mrf.mxu0
  %v2725 = vadd.f32 %v471, %v2724
  %2726 = vmatmul.f32.gmra.mxu0 %v1384
  %v2727 = vpop.f32.mrf.mxu0
  %v2728 = vadd.f32 %v471, %v2727
  %2729 = vmatmul.f32.gmra.mxu0 %v1387
  %v2730 = vpop.f32.mrf.mxu0
  %v2731 = vadd.f32 %v471, %v2730
  %2732 = vmatmul.f32.gmra.mxu0 %v1390
  %v2733 = vpop.f32.mrf.mxu0
  %v2734 = vadd.f32 %v471, %v2733
  %2735 = vmatmul.f32.gmra.mxu0 %v1393
  %v2736 = vpop.f32.mrf.mxu0
  %v2737 = vadd.f32 %v471, %v2736
  %2738 = vmatmul.f32.gmra.mxu0 %v1396
  %v2739 = vpop.f32.mrf.mxu0
  %v2740 = vadd.f32 %v471, %v2739
  %2741 = vmatmul.f32.gmra.mxu0 %v1399
  %v2742 = vpop.f32.mrf.mxu0
  %v2743 = vadd.f32 %v471, %v2742
  %2744 = vmatmul.f32.gmra.mxu0 %v1402
  %v2745 = vpop.f32.mrf.mxu0
  %v2746 = vadd.f32 %v471, %v2745
  %2747 = vmatmul.f32.gmra.mxu0 %v1405
  %v2748 = vpop.f32.mrf.mxu0
  %v2749 = vadd.f32 %v471, %v2748
  %2750 = vmatmul.f32.gmra.mxu0 %v1408
  %v2751 = vpop.f32.mrf.mxu0
  %v2752 = vadd.f32 %v471, %v2751
  %2753 = vmatmul.f32.gmra.mxu0 %v1411
  %v2754 = vpop.f32.mrf.mxu0
  %v2755 = vadd.f32 %v471, %v2754
  %2756 = vmatmul.f32.gmra.mxu0 %v1414
  %v2757 = vpop.f32.mrf.mxu0
  %v2758 = vadd.f32 %v471, %v2757
  %2759 = vmatmul.f32.gmra.mxu0 %v1417
  %v2760 = vpop.f32.mrf.mxu0
  %v2761 = vadd.f32 %v471, %v2760
  %2762 = vmatmul.f32.gmra.mxu0 %v1420
  %v2763 = vpop.f32.mrf.mxu0
  %v2764 = vadd.f32 %v471, %v2763
  %2765 = vmatmul.f32.gmra.mxu0 %v1423
  %v2766 = vpop.f32.mrf.mxu0
  %v2767 = vadd.f32 %v471, %v2766
  %2768 = vmatmul.f32.gmra.mxu0 %v1426
  %v2769 = vpop.f32.mrf.mxu0
  %v2770 = vadd.f32 %v471, %v2769
  %2771 = vmatmul.f32.gmra.mxu0 %v1429
  %v2772 = vpop.f32.mrf.mxu0
  %v2773 = vadd.f32 %v471, %v2772
  %2774 = vmatmul.f32.gmra.mxu0 %v1432
  %v2775 = vpop.f32.mrf.mxu0
  %v2776 = vadd.f32 %v471, %v2775
  %2777 = vmatmul.f32.gmra.mxu0 %v1435
  %v2778 = vpop.f32.mrf.mxu0
  %v2779 = vadd.f32 %v471, %v2778
  %2780 = vmatmul.f32.gmra.mxu0 %v1438
  %v2781 = vpop.f32.mrf.mxu0
  %v2782 = vadd.f32 %v471, %v2781
  %2783 = vmatmul.f32.gmra.mxu0 %v1441
  %v2784 = vpop.f32.mrf.mxu0
  %v2785 = vadd.f32 %v471, %v2784
  %2786 = vmatmul.f32.gmra.mxu0 %v1444
  %v2787 = vpop.f32.mrf.mxu0
  %v2788 = vadd.f32 %v471, %v2787
  %2789 = vmatmul.f32.gmra.mxu0 %v1447
  %v2790 = vpop.f32.mrf.mxu0
  %v2791 = vadd.f32 %v471, %v2790
  %2792 = vmatmul.f32.gmra.mxu0 %v1450
  %v2793 = vpop.f32.mrf.mxu0
  %v2794 = vadd.f32 %v471, %v2793
  %2795 = vmatmul.f32.gmra.mxu0 %v1453
  %v2796 = vpop.f32.mrf.mxu0
  %v2797 = vadd.f32 %v471, %v2796
  %2798 = vmatmul.f32.gmra.mxu0 %v1456
  %v2799 = vpop.f32.mrf.mxu0
  %v2800 = vadd.f32 %v471, %v2799
  %2801 = vmatmul.f32.gmra.mxu0 %v1459
  %v2802 = vpop.f32.mrf.mxu0
  %v2803 = vadd.f32 %v471, %v2802
  %2804 = vmatmul.f32.gmra.mxu0 %v1462
  %v2805 = vpop.f32.mrf.mxu0
  %v2806 = vadd.f32 %v471, %v2805
  %2807 = vmatmul.f32.gmra.mxu0 %v1465
  %v2808 = vpop.f32.mrf.mxu0
  %v2809 = vadd.f32 %v471, %v2808
  %2810 = vmatmul.f32.gmra.mxu0 %v1468
  %v2811 = vpop.f32.mrf.mxu0
  %v2812 = vadd.f32 %v471, %v2811
  %2813 = vmatmul.f32.gmra.mxu0 %v1471
  %v2814 = vpop.f32.mrf.mxu0
  %v2815 = vadd.f32 %v471, %v2814
  %2816 = vmatmul.f32.gmra.mxu0 %v1474
  %v2817 = vpop.f32.mrf.mxu0
  %v2818 = vadd.f32 %v471, %v2817
  %2819 = vmatmul.f32.gmra.mxu0 %v1477
  %v2820 = vpop.f32.mrf.mxu0
  %v2821 = vadd.f32 %v471, %v2820
  %2822 = vmatmul.f32.gmra.mxu0 %v1480
  %v2823 = vpop.f32.mrf.mxu0
  %v2824 = vadd.f32 %v471, %v2823
  %2825 = vmatmul.f32.gmra.mxu0 %v1483
  %v2826 = vpop.f32.mrf.mxu0
  %v2827 = vadd.f32 %v471, %v2826
  %2828 = vmatmul.f32.gmra.mxu0 %v1486
  %v2829 = vpop.f32.mrf.mxu0
  %v2830 = vadd.f32 %v471, %v2829
  %2831 = vmatmul.f32.gmra.mxu0 %v1489
  %v2832 = vpop.f32.mrf.mxu0
  %v2833 = vadd.f32 %v471, %v2832
  %2834 = vmatmul.f32.gmra.mxu0 %v1492
  %v2835 = vpop.f32.mrf.mxu0
  %v2836 = vadd.f32 %v471, %v2835
  %2837 = vmatmul.f32.gmra.mxu0 %v1495
  %v2838 = vpop.f32.mrf.mxu0
  %v2839 = vadd.f32 %v471, %v2838
  %2840 = vmatmul.f32.gmra.mxu0 %v1498
  %v2841 = vpop.f32.mrf.mxu0
  %v2842 = vadd.f32 %v471, %v2841
  %2843 = vmatmul.f32.gmra.mxu0 %v1501
  %v2844 = vpop.f32.mrf.mxu0
  %v2845 = vadd.f32 %v471, %v2844
  %2846 = vmatmul.f32.gmra.mxu0 %v1504
  %v2847 = vpop.f32.mrf.mxu0
  %v2848 = vadd.f32 %v471, %v2847
  %2849 = vmatmul.f32.gmra.mxu0 %v1507
  %v2850 = vpop.f32.mrf.mxu0
  %v2851 = vadd.f32 %v471, %v2850
  %2852 = vmatmul.f32.gmra.mxu0 %v1510
  %v2853 = vpop.f32.mrf.mxu0
  %v2854 = vadd.f32 %v471, %v2853
  %2855 = vmatmul.f32.gmra.mxu0 %v1513
  %v2856 = vpop.f32.mrf.mxu0
  %v2857 = vadd.f32 %v471, %v2856
  %2858 = vmatmul.f32.gmra.mxu0 %v1516
  %v2859 = vpop.f32.mrf.mxu0
  %v2860 = vadd.f32 %v471, %v2859
  %2861 = vmatmul.f32.gmra.mxu0 %v1519
  %v2862 = vpop.f32.mrf.mxu0
  %v2863 = vadd.f32 %v471, %v2862
  %2864 = vmatmul.f32.gmra.mxu0 %v1522
  %v2865 = vpop.f32.mrf.mxu0
  %v2866 = vadd.f32 %v471, %v2865
  %2867 = vmatmul.f32.gmra.mxu0 %v1525
  %v2868 = vpop.f32.mrf.mxu0
  %v2869 = vadd.f32 %v471, %v2868
  %2870 = vmatmul.f32.gmra.mxu0 %v1528
  %v2871 = vpop.f32.mrf.mxu0
  %v2872 = vadd.f32 %v471, %v2871
  %2873 = vmatmul.f32.gmra.mxu0 %v1531
  %v2874 = vpop.f32.mrf.mxu0
  %v2875 = vadd.f32 %v471, %v2874
  %2876 = vmatmul.f32.gmra.mxu0 %v1534
  %v2877 = vpop.f32.mrf.mxu0
  %v2878 = vadd.f32 %v471, %v2877
  %2879 = vmatmul.f32.gmra.mxu0 %v1537
  %v2880 = vpop.f32.mrf.mxu0
  %v2881 = vadd.f32 %v471, %v2880
  %2882 = vmatmul.f32.gmra.mxu0 %v1540
  %v2883 = vpop.f32.mrf.mxu0
  %v2884 = vadd.f32 %v471, %v2883
  %2885 = vmatmul.f32.gmra.mxu0 %v1543
  %v2886 = vpop.f32.mrf.mxu0
  %v2887 = vadd.f32 %v471, %v2886
  %2888 = vmatmul.f32.gmra.mxu0 %v1546
  %v2889 = vpop.f32.mrf.mxu0
  %v2890 = vadd.f32 %v471, %v2889
  %2891 = vmatmul.f32.gmra.mxu0 %v1549
  %v2892 = vpop.f32.mrf.mxu0
  %v2893 = vadd.f32 %v471, %v2892
  %2894 = vmatmul.f32.gmra.mxu0 %v1552
  %v2895 = vpop.f32.mrf.mxu0
  %v2896 = vadd.f32 %v471, %v2895
  %2897 = vmatmul.f32.gmra.mxu0 %v1555
  %v2898 = vpop.f32.mrf.mxu0
  %v2899 = vadd.f32 %v471, %v2898
  %2900 = vmatmul.f32.gmra.mxu0 %v1558
  %v2901 = vpop.f32.mrf.mxu0
  %v2902 = vadd.f32 %v471, %v2901
  %2903 = vmatmul.f32.gmra.mxu0 %v1561
  %v2904 = vpop.f32.mrf.mxu0
  %v2905 = vadd.f32 %v471, %v2904
  %2906 = vmatmul.f32.gmra.mxu0 %v1564
  %v2907 = vpop.f32.mrf.mxu0
  %v2908 = vadd.f32 %v471, %v2907
  %2909 = vmatmul.f32.gmra.mxu0 %v1567
  %v2910 = vpop.f32.mrf.mxu0
  %v2911 = vadd.f32 %v471, %v2910
  %2912 = vmatmul.f32.gmra.mxu0 %v1570
  %v2913 = vpop.f32.mrf.mxu0
  %v2914 = vadd.f32 %v471, %v2913
  %2915 = vmatmul.f32.gmra.mxu0 %v1573
  %v2916 = vpop.f32.mrf.mxu0
  %v2917 = vadd.f32 %v471, %v2916
  %2918 = vmatmul.f32.gmra.mxu0 %v1576
  %v2919 = vpop.f32.mrf.mxu0
  %v2920 = vadd.f32 %v471, %v2919
  %2921 = vmatmul.f32.gmra.mxu0 %v1579
  %v2922 = vpop.f32.mrf.mxu0
  %v2923 = vadd.f32 %v471, %v2922
  %2924 = vmatmul.f32.gmra.mxu0 %v1582
  %v2925 = vpop.f32.mrf.mxu0
  %v2926 = vadd.f32 %v471, %v2925
  %2927 = vmatmul.f32.gmra.mxu0 %v1585
  %v2928 = vpop.f32.mrf.mxu0
  %v2929 = vadd.f32 %v471, %v2928
  %2930 = vmatmul.f32.gmra.mxu0 %v1588
  %v2931 = vpop.f32.mrf.mxu0
  %v2932 = vadd.f32 %v471, %v2931
  %2933 = vmatmul.f32.gmra.mxu0 %v1591
  %v2934 = vpop.f32.mrf.mxu0
  %v2935 = vadd.f32 %v471, %v2934
  %2936 = vmatmul.f32.gmra.mxu0 %v1594
  %v2937 = vpop.f32.mrf.mxu0
  %v2938 = vadd.f32 %v471, %v2937
  %2939 = vmatmul.f32.gmra.mxu0 %v1597
  %v2940 = vpop.f32.mrf.mxu0
  %v2941 = vadd.f32 %v471, %v2940
  %2942 = vmatmul.f32.gmra.mxu0 %v1600
  %v2943 = vpop.f32.mrf.mxu0
  %v2944 = vadd.f32 %v471, %v2943
  %2945 = vmatmul.f32.gmra.mxu0 %v1603
  %v2946 = vpop.f32.mrf.mxu0
  %v2947 = vadd.f32 %v471, %v2946
  %2948 = vmatmul.f32.gmra.mxu0 %v1606
  %v2949 = vpop.f32.mrf.mxu0
  %v2950 = vadd.f32 %v471, %v2949
  %2951 = vmatmul.f32.gmra.mxu0 %v1609
  %v2952 = vpop.f32.mrf.mxu0
  %v2953 = vadd.f32 %v471, %v2952
  %2954 = vmatmul.f32.gmra.mxu0 %v1612
  %v2955 = vpop.f32.mrf.mxu0
  %v2956 = vadd.f32 %v471, %v2955
  %2957 = vmatmul.f32.gmra.mxu0 %v1615
  %v2958 = vpop.f32.mrf.mxu0
  %v2959 = vadd.f32 %v471, %v2958
  %2960 = vmatmul.f32.gmra.mxu0 %v1618
  %v2961 = vpop.f32.mrf.mxu0
  %v2962 = vadd.f32 %v471, %v2961
  %2963 = vmatmul.f32.gmra.mxu0 %v1621
  %v2964 = vpop.f32.mrf.mxu0
  %v2965 = vadd.f32 %v471, %v2964
  %2966 = vmatmul.f32.gmra.mxu0 %v1624
  %v2967 = vpop.f32.mrf.mxu0
  %v2968 = vadd.f32 %v471, %v2967
  %2969 = vmatmul.f32.gmra.mxu0 %v1627
  %v2970 = vpop.f32.mrf.mxu0
  %v2971 = vadd.f32 %v471, %v2970
  %2972 = vmatmul.f32.gmra.mxu0 %v1630
  %v2973 = vpop.f32.mrf.mxu0
  %v2974 = vadd.f32 %v471, %v2973
  %2975 = vmatmul.f32.gmra.mxu0 %v1633
  %v2976 = vpop.f32.mrf.mxu0
  %v2977 = vadd.f32 %v471, %v2976
  %2978 = vmatmul.f32.gmra.mxu0 %v1636
  %v2979 = vpop.f32.mrf.mxu0
  %v2980 = vadd.f32 %v471, %v2979
  %2981 = vmatmul.f32.gmra.mxu0 %v1639
  %v2982 = vpop.f32.mrf.mxu0
  %v2983 = vadd.f32 %v471, %v2982
  %2984 = vmatmul.f32.gmra.mxu0 %v1642
  %v2985 = vpop.f32.mrf.mxu0
  %v2986 = vadd.f32 %v471, %v2985
  %2987 = vmatmul.f32.gmra.mxu0 %v1645
  %v2988 = vpop.f32.mrf.mxu0
  %v2989 = vadd.f32 %v471, %v2988
  %2990 = vmatmul.f32.gmra.mxu0 %v1648
  %v2991 = vpop.f32.mrf.mxu0
  %v2992 = vadd.f32 %v471, %v2991
  %2993 = vmatmul.f32.gmra.mxu0 %v1651
  %v2994 = vpop.f32.mrf.mxu0
  %v2995 = vadd.f32 %v471, %v2994
  %2996 = vmatmul.f32.gmra.mxu0 %v1654
  %v2997 = vpop.f32.mrf.mxu0
  %v2998 = vadd.f32 %v471, %v2997
  %2999 = vmatmul.f32.gmra.mxu0 %v1657
  %v3000 = vpop.f32.mrf.mxu0
  %v3001 = vadd.f32 %v471, %v3000
  %3002 = vmatmul.f32.gmra.mxu0 %v1660
  %v3003 = vpop.f32.mrf.mxu0
  %v3004 = vadd.f32 %v471, %v3003
  %3005 = vmatmul.f32.gmra.mxu0 %v1663
  %v3006 = vpop.f32.mrf.mxu0
  %v3007 = vadd.f32 %v471, %v3006
  %3008 = vmatmul.f32.gmra.mxu0 %v1666
  %v3009 = vpop.f32.mrf.mxu0
  %v3010 = vadd.f32 %v471, %v3009
  %3011 = vmatmul.f32.gmra.mxu0 %v1669
  %v3012 = vpop.f32.mrf.mxu0
  %v3013 = vadd.f32 %v471, %v3012
  %3014 = vmatmul.f32.gmra.mxu0 %v1672
  %v3015 = vpop.f32.mrf.mxu0
  %v3016 = vadd.f32 %v471, %v3015
  %3017 = vmatmul.f32.gmra.mxu0 %v1675
  %v3018 = vpop.f32.mrf.mxu0
  %v3019 = vadd.f32 %v471, %v3018
  %3020 = vmatmul.f32.gmra.mxu0 %v1678
  %v3021 = vpop.f32.mrf.mxu0
  %v3022 = vadd.f32 %v471, %v3021
  %3023 = vmatmul.f32.gmra.mxu0 %v1681
  %v3024 = vpop.f32.mrf.mxu0
  %v3025 = vadd.f32 %v471, %v3024
  %3026 = vmatmul.f32.gmra.mxu0 %v1684
  %v3027 = vpop.f32.mrf.mxu0
  %v3028 = vadd.f32 %v471, %v3027
  %3029 = vmatmul.f32.gmra.mxu0 %v1687
  %v3030 = vpop.f32.mrf.mxu0
  %v3031 = vadd.f32 %v471, %v3030
  %3032 = vmatmul.f32.gmra.mxu0 %v1690
  %v3033 = vpop.f32.mrf.mxu0
  %v3034 = vadd.f32 %v471, %v3033
  %3035 = vmatmul.f32.gmra.mxu0 %v1693
  %v3036 = vpop.f32.mrf.mxu0
  %v3037 = vadd.f32 %v471, %v3036
  %3038 = vmatmul.f32.gmra.mxu0 %v1696
  %v3039 = vpop.f32.mrf.mxu0
  %v3040 = vadd.f32 %v471, %v3039
  %3041 = vmatmul.f32.gmra.mxu0 %v1699
  %v3042 = vpop.f32.mrf.mxu0
  %v3043 = vadd.f32 %v471, %v3042
  %3044 = vmatmul.f32.gmra.mxu0 %v1702
  %v3045 = vpop.f32.mrf.mxu0
  %v3046 = vadd.f32 %v471, %v3045
  %3047 = vmatmul.f32.gmra.mxu0 %v1705
  %v3048 = vpop.f32.mrf.mxu0
  %v3049 = vadd.f32 %v471, %v3048
  %3050 = vmatmul.f32.gmra.mxu0 %v1708
  %v3051 = vpop.f32.mrf.mxu0
  %v3052 = vadd.f32 %v471, %v3051
  %3053 = vmatmul.f32.gmra.mxu0 %v1711
  %v3054 = vpop.f32.mrf.mxu0
  %v3055 = vadd.f32 %v471, %v3054
  %3056 = vmatmul.f32.gmra.mxu0 %v1714
  %v3057 = vpop.f32.mrf.mxu0
  %v3058 = vadd.f32 %v471, %v3057
  %3059 = vmatmul.f32.gmra.mxu0 %v1717
  %v3060 = vpop.f32.mrf.mxu0
  %v3061 = vadd.f32 %v471, %v3060
  %3062 = vmatmul.f32.gmra.mxu0 %v1720
  %v3063 = vpop.f32.mrf.mxu0
  %v3064 = vadd.f32 %v471, %v3063
  %3065 = vmatmul.f32.gmra.mxu0 %v1723
  %v3066 = vpop.f32.mrf.mxu0
  %v3067 = vadd.f32 %v471, %v3066
  %3068 = vmatmul.f32.gmra.mxu0 %v1726
  %v3069 = vpop.f32.mrf.mxu0
  %v3070 = vadd.f32 %v471, %v3069
  %3071 = vmatmul.f32.gmra.mxu0 %v1729
  %v3072 = vpop.f32.mrf.mxu0
  %v3073 = vadd.f32 %v471, %v3072
  %3074 = vmatmul.f32.gmra.mxu0 %v1732
  %v3075 = vpop.f32.mrf.mxu0
  %v3076 = vadd.f32 %v471, %v3075
  %3077 = vmatmul.f32.gmra.mxu0 %v1735
  %v3078 = vpop.f32.mrf.mxu0
  %v3079 = vadd.f32 %v471, %v3078
  %3080 = vmatmul.f32.gmra.mxu0 %v1738
  %v3081 = vpop.f32.mrf.mxu0
  %v3082 = vadd.f32 %v471, %v3081
  %3083 = vmatmul.f32.gmra.mxu0 %v1741
  %v3084 = vpop.f32.mrf.mxu0
  %v3085 = vadd.f32 %v471, %v3084
  %3086 = vmatmul.f32.gmra.mxu0 %v1744
  %v3087 = vpop.f32.mrf.mxu0
  %v3088 = vadd.f32 %v471, %v3087
  %3089 = vmatmul.f32.gmra.mxu0 %v1747
  %v3090 = vpop.f32.mrf.mxu0
  %v3091 = vadd.f32 %v471, %v3090
  %3092 = vmatmul.f32.gmra.mxu0 %v1750
  %v3093 = vpop.f32.mrf.mxu0
  %v3094 = vadd.f32 %v471, %v3093
  %3095 = vmatmul.f32.gmra.mxu0 %v1753
  %v3096 = vpop.f32.mrf.mxu0
  %v3097 = vadd.f32 %v471, %v3096
  %3098 = vmatmul.f32.gmra.mxu0 %v1756
  %v3099 = vpop.f32.mrf.mxu0
  %v3100 = vadd.f32 %v471, %v3099
  %3101 = vmatmul.f32.gmra.mxu0 %v1759
  %v3102 = vpop.f32.mrf.mxu0
  %v3103 = vadd.f32 %v471, %v3102
  %3104 = vmatmul.f32.gmra.mxu0 %v1762
  %v3105 = vpop.f32.mrf.mxu0
  %v3106 = vadd.f32 %v471, %v3105
  %3107 = vmatmul.f32.gmra.mxu0 %v1765
  %v3108 = vpop.f32.mrf.mxu0
  %v3109 = vadd.f32 %v471, %v3108
  %3110 = vmatmul.f32.gmra.mxu0 %v1768
  %v3111 = vpop.f32.mrf.mxu0
  %v3112 = vadd.f32 %v471, %v3111
  %3113 = vmatmul.f32.gmra.mxu0 %v1771
  %v3114 = vpop.f32.mrf.mxu0
  %v3115 = vadd.f32 %v471, %v3114
  %3116 = vmatmul.f32.gmra.mxu0 %v1774
  %v3117 = vpop.f32.mrf.mxu0
  %v3118 = vadd.f32 %v471, %v3117
  %3119 = vmatmul.f32.gmra.mxu0 %v1777
  %v3120 = vpop.f32.mrf.mxu0
  %v3121 = vadd.f32 %v471, %v3120
  %3122 = vmatmul.f32.gmra.mxu0 %v1780
  %v3123 = vpop.f32.mrf.mxu0
  %v3124 = vadd.f32 %v471, %v3123
  %3125 = vmatmul.f32.gmra.mxu0 %v1783
  %v3126 = vpop.f32.mrf.mxu0
  %v3127 = vadd.f32 %v471, %v3126
  %3128 = vmatmul.f32.gmra.mxu0 %v1786
  %v3129 = vpop.f32.mrf.mxu0
  %v3130 = vadd.f32 %v471, %v3129
  %3131 = vmatmul.f32.gmra.mxu0 %v1789
  %v3132 = vpop.f32.mrf.mxu0
  %v3133 = vadd.f32 %v471, %v3132
  %3134 = vmatmul.f32.gmra.mxu0 %v1792
  %v3135 = vpop.f32.mrf.mxu0
  %v3136 = vadd.f32 %v471, %v3135
  %3137 = vmatmul.f32.gmra.mxu0 %v1795
  %v3138 = vpop.f32.mrf.mxu0
  %v3139 = vadd.f32 %v471, %v3138
  %3140 = vdwg.mxu0
  %vm3141 = vcmask 261120
  %3142 = vst.msk [vmem:[%s5] sm:$0xff] %vm3141, %v1819
  %3143 = vst.msk [vmem:[%s5 + $0x8] sm:$0xff] %vm3141, %v1822
  %3144 = vst.msk [vmem:[%s5 + $0x10] sm:$0xff] %vm3141, %v1825
  %3145 = vst.msk [vmem:[%s5 + $0x18] sm:$0xff] %vm3141, %v1828
  %3146 = vst.msk [vmem:[%s5 + $0x20] sm:$0xff] %vm3141, %v1831
  %3147 = vst.msk [vmem:[%s5 + $0x28] sm:$0xff] %vm3141, %v1834
  %3148 = vst.msk [vmem:[%s5 + $0x30] sm:$0xff] %vm3141, %v1837
  %3149 = vst.msk [vmem:[%s5 + $0x38] sm:$0xff] %vm3141, %v1840
  %3150 = vst.msk [vmem:[%s5 + $0x40] sm:$0xff] %vm3141, %v1843
  %3151 = vst.msk [vmem:[%s5 + $0x48] sm:$0xff] %vm3141, %v1846
  %3152 = vst.msk [vmem:[%s5 + $0x50] sm:$0xff] %vm3141, %v1849
  %3153 = vst.msk [vmem:[%s5 + $0x58] sm:$0xff] %vm3141, %v1852
  %3154 = vst.msk [vmem:[%s5 + $0x60] sm:$0xff] %vm3141, %v1855
  %3155 = vst.msk [vmem:[%s5 + $0x68] sm:$0xff] %vm3141, %v1858
  %3156 = vst.msk [vmem:[%s5 + $0x70] sm:$0xff] %vm3141, %v1861
  %3157 = vst.msk [vmem:[%s5 + $0x78] sm:$0xff] %vm3141, %v1864
  %3158 = vst.msk [vmem:[%s5 + $0x80] sm:$0xff] %vm3141, %v1867
  %3159 = vst.msk [vmem:[%s5 + $0x88] sm:$0xff] %vm3141, %v1870
  %3160 = vst.msk [vmem:[%s5 + $0x90] sm:$0xff] %vm3141, %v1873
  %3161 = vst.msk [vmem:[%s5 + $0x98] sm:$0xff] %vm3141, %v1876
  %3162 = vst.msk [vmem:[%s5 + $0xa0] sm:$0xff] %vm3141, %v1879
  %3163 = vst.msk [vmem:[%s5 + $0xa8] sm:$0xff] %vm3141, %v1882
  %3164 = vst.msk [vmem:[%s5 + $0xb0] sm:$0xff] %vm3141, %v1885
  %3165 = vst.msk [vmem:[%s5 + $0xb8] sm:$0xff] %vm3141, %v1888
  %3166 = vst.msk [vmem:[%s5 + $0xc0] sm:$0xff] %vm3141, %v1891
  %3167 = vst.msk [vmem:[%s5 + $0xc8] sm:$0xff] %vm3141, %v1894
  %3168 = vst.msk [vmem:[%s5 + $0xd0] sm:$0xff] %vm3141, %v1897
  %3169 = vst.msk [vmem:[%s5 + $0xd8] sm:$0xff] %vm3141, %v1900
  %3170 = vst.msk [vmem:[%s5 + $0xe0] sm:$0xff] %vm3141, %v1903
  %3171 = vst.msk [vmem:[%s5 + $0xe8] sm:$0xff] %vm3141, %v1906
  %3172 = vst.msk [vmem:[%s5 + $0xf0] sm:$0xff] %vm3141, %v1909
  %3173 = vst.msk [vmem:[%s5 + $0xf8] sm:$0xff] %vm3141, %v1912
  %3174 = vst.msk [vmem:[%s5 + $0x100] sm:$0xff] %vm3141, %v1915
  %3175 = vst.msk [vmem:[%s5 + $0x108] sm:$0xff] %vm3141, %v1918
  %3176 = vst.msk [vmem:[%s5 + $0x110] sm:$0xff] %vm3141, %v1921
  %3177 = vst.msk [vmem:[%s5 + $0x118] sm:$0xff] %vm3141, %v1924
  %3178 = vst.msk [vmem:[%s5 + $0x120] sm:$0xff] %vm3141, %v1927
  %3179 = vst.msk [vmem:[%s5 + $0x128] sm:$0xff] %vm3141, %v1930
  %3180 = vst.msk [vmem:[%s5 + $0x130] sm:$0xff] %vm3141, %v1933
  %3181 = vst.msk [vmem:[%s5 + $0x138] sm:$0xff] %vm3141, %v1936
  %3182 = vst.msk [vmem:[%s5 + $0x140] sm:$0xff] %vm3141, %v1939
  %3183 = vst.msk [vmem:[%s5 + $0x148] sm:$0xff] %vm3141, %v1942
  %3184 = vst.msk [vmem:[%s5 + $0x150] sm:$0xff] %vm3141, %v1945
  %3185 = vst.msk [vmem:[%s5 + $0x158] sm:$0xff] %vm3141, %v1948
  %3186 = vst.msk [vmem:[%s5 + $0x160] sm:$0xff] %vm3141, %v1951
  %3187 = vst.msk [vmem:[%s5 + $0x168] sm:$0xff] %vm3141, %v1954
  %3188 = vst.msk [vmem:[%s5 + $0x170] sm:$0xff] %vm3141, %v1957
  %3189 = vst.msk [vmem:[%s5 + $0x178] sm:$0xff] %vm3141, %v1960
  %3190 = vst.msk [vmem:[%s5 + $0x180] sm:$0xff] %vm3141, %v1963
  %3191 = vst.msk [vmem:[%s5 + $0x188] sm:$0xff] %vm3141, %v1966
  %3192 = vst.msk [vmem:[%s5 + $0x190] sm:$0xff] %vm3141, %v1969
  %3193 = vst.msk [vmem:[%s5 + $0x198] sm:$0xff] %vm3141, %v1972
  %3194 = vst.msk [vmem:[%s5 + $0x1a0] sm:$0xff] %vm3141, %v1975
  %3195 = vst.msk [vmem:[%s5 + $0x1a8] sm:$0xff] %vm3141, %v1978
  %3196 = vst.msk [vmem:[%s5 + $0x1b0] sm:$0xff] %vm3141, %v1981
  %3197 = vst.msk [vmem:[%s5 + $0x1b8] sm:$0xff] %vm3141, %v1984
  %3198 = vst.msk [vmem:[%s5 + $0x1c0] sm:$0xff] %vm3141, %v1987
  %3199 = vst.msk [vmem:[%s5 + $0x1c8] sm:$0xff] %vm3141, %v1990
  %3200 = vst.msk [vmem:[%s5 + $0x1d0] sm:$0xff] %vm3141, %v1993
  %3201 = vst.msk [vmem:[%s5 + $0x1d8] sm:$0xff] %vm3141, %v1996
  %3202 = vst.msk [vmem:[%s5 + $0x1e0] sm:$0xff] %vm3141, %v1999
  %3203 = vst.msk [vmem:[%s5 + $0x1e8] sm:$0xff] %vm3141, %v2002
  %3204 = vst.msk [vmem:[%s5 + $0x1f0] sm:$0xff] %vm3141, %v2005
  %3205 = vst.msk [vmem:[%s5 + $0x1f8] sm:$0xff] %vm3141, %v2008
  %3206 = vst.msk [vmem:[%s5 + $0x200] sm:$0xff] %vm3141, %v2011
  %3207 = vst.msk [vmem:[%s5 + $0x208] sm:$0xff] %vm3141, %v2014
  %3208 = vst.msk [vmem:[%s5 + $0x210] sm:$0xff] %vm3141, %v2017
  %3209 = vst.msk [vmem:[%s5 + $0x218] sm:$0xff] %vm3141, %v2020
  %3210 = vst.msk [vmem:[%s5 + $0x220] sm:$0xff] %vm3141, %v2023
  %3211 = vst.msk [vmem:[%s5 + $0x228] sm:$0xff] %vm3141, %v2026
  %3212 = vst.msk [vmem:[%s5 + $0x230] sm:$0xff] %vm3141, %v2029
  %3213 = vst.msk [vmem:[%s5 + $0x238] sm:$0xff] %vm3141, %v2032
  %3214 = vst.msk [vmem:[%s5 + $0x240] sm:$0xff] %vm3141, %v2035
  %3215 = vst.msk [vmem:[%s5 + $0x248] sm:$0xff] %vm3141, %v2038
  %3216 = vst.msk [vmem:[%s5 + $0x250] sm:$0xff] %vm3141, %v2041
  %3217 = vst.msk [vmem:[%s5 + $0x258] sm:$0xff] %vm3141, %v2044
  %3218 = vst.msk [vmem:[%s5 + $0x260] sm:$0xff] %vm3141, %v2047
  %3219 = vst.msk [vmem:[%s5 + $0x268] sm:$0xff] %vm3141, %v2050
  %3220 = vst.msk [vmem:[%s5 + $0x270] sm:$0xff] %vm3141, %v2053
  %3221 = vst.msk [vmem:[%s5 + $0x278] sm:$0xff] %vm3141, %v2056
  %3222 = vst.msk [vmem:[%s5 + $0x280] sm:$0xff] %vm3141, %v2059
  %3223 = vst.msk [vmem:[%s5 + $0x288] sm:$0xff] %vm3141, %v2062
  %3224 = vst.msk [vmem:[%s5 + $0x290] sm:$0xff] %vm3141, %v2065
  %3225 = vst.msk [vmem:[%s5 + $0x298] sm:$0xff] %vm3141, %v2068
  %3226 = vst.msk [vmem:[%s5 + $0x2a0] sm:$0xff] %vm3141, %v2071
  %3227 = vst.msk [vmem:[%s5 + $0x2a8] sm:$0xff] %vm3141, %v2074
  %3228 = vst.msk [vmem:[%s5 + $0x2b0] sm:$0xff] %vm3141, %v2077
  %3229 = vst.msk [vmem:[%s5 + $0x2b8] sm:$0xff] %vm3141, %v2080
  %3230 = vst.msk [vmem:[%s5 + $0x2c0] sm:$0xff] %vm3141, %v2083
  %3231 = vst.msk [vmem:[%s5 + $0x2c8] sm:$0xff] %vm3141, %v2086
  %3232 = vst.msk [vmem:[%s5 + $0x2d0] sm:$0xff] %vm3141, %v2089
  %3233 = vst.msk [vmem:[%s5 + $0x2d8] sm:$0xff] %vm3141, %v2092
  %3234 = vst.msk [vmem:[%s5 + $0x2e0] sm:$0xff] %vm3141, %v2095
  %3235 = vst.msk [vmem:[%s5 + $0x2e8] sm:$0xff] %vm3141, %v2098
  %3236 = vst.msk [vmem:[%s5 + $0x2f0] sm:$0xff] %vm3141, %v2101
  %3237 = vst.msk [vmem:[%s5 + $0x2f8] sm:$0xff] %vm3141, %v2104
  %3238 = vst.msk [vmem:[%s5 + $0x300] sm:$0xff] %vm3141, %v2107
  %3239 = vst.msk [vmem:[%s5 + $0x308] sm:$0xff] %vm3141, %v2110
  %3240 = vst.msk [vmem:[%s5 + $0x310] sm:$0xff] %vm3141, %v2113
  %3241 = vst.msk [vmem:[%s5 + $0x318] sm:$0xff] %vm3141, %v2116
  %3242 = vst.msk [vmem:[%s5 + $0x320] sm:$0xff] %vm3141, %v2119
  %3243 = vst.msk [vmem:[%s5 + $0x328] sm:$0xff] %vm3141, %v2122
  %3244 = vst.msk [vmem:[%s5 + $0x330] sm:$0xff] %vm3141, %v2125
  %3245 = vst.msk [vmem:[%s5 + $0x338] sm:$0xff] %vm3141, %v2128
  %3246 = vst.msk [vmem:[%s5 + $0x340] sm:$0xff] %vm3141, %v2131
  %3247 = vst.msk [vmem:[%s5 + $0x348] sm:$0xff] %vm3141, %v2134
  %3248 = vst.msk [vmem:[%s5 + $0x350] sm:$0xff] %vm3141, %v2137
  %3249 = vst.msk [vmem:[%s5 + $0x358] sm:$0xff] %vm3141, %v2140
  %3250 = vst.msk [vmem:[%s5 + $0x360] sm:$0xff] %vm3141, %v2143
  %3251 = vst.msk [vmem:[%s5 + $0x368] sm:$0xff] %vm3141, %v2146
  %3252 = vst.msk [vmem:[%s5 + $0x370] sm:$0xff] %vm3141, %v2149
  %3253 = vst.msk [vmem:[%s5 + $0x378] sm:$0xff] %vm3141, %v2152
  %3254 = vst.msk [vmem:[%s5 + $0x380] sm:$0xff] %vm3141, %v2155
  %3255 = vst.msk [vmem:[%s5 + $0x388] sm:$0xff] %vm3141, %v2158
  %3256 = vst.msk [vmem:[%s5 + $0x390] sm:$0xff] %vm3141, %v2161
  %3257 = vst.msk [vmem:[%s5 + $0x398] sm:$0xff] %vm3141, %v2164
  %3258 = vst.msk [vmem:[%s5 + $0x3a0] sm:$0xff] %vm3141, %v2167
  %3259 = vst.msk [vmem:[%s5 + $0x3a8] sm:$0xff] %vm3141, %v2170
  %3260 = vst.msk [vmem:[%s5 + $0x3b0] sm:$0xff] %vm3141, %v2173
  %3261 = vst.msk [vmem:[%s5 + $0x3b8] sm:$0xff] %vm3141, %v2176
  %3262 = vst.msk [vmem:[%s5 + $0x3c0] sm:$0xff] %vm3141, %v2179
  %3263 = vst.msk [vmem:[%s5 + $0x3c8] sm:$0xff] %vm3141, %v2182
  %3264 = vst.msk [vmem:[%s5 + $0x3d0] sm:$0xff] %vm3141, %v2185
  %3265 = vst.msk [vmem:[%s5 + $0x3d8] sm:$0xff] %vm3141, %v2188
  %3266 = vst.msk [vmem:[%s5 + $0x3e0] sm:$0xff] %vm3141, %v2191
  %3267 = vst.msk [vmem:[%s5 + $0x3e8] sm:$0xff] %vm3141, %v2194
  %3268 = vst.msk [vmem:[%s5 + $0x3f0] sm:$0xff] %vm3141, %v2197
  %3269 = vst.msk [vmem:[%s5 + $0x3f8] sm:$0xff] %vm3141, %v2200
  %3270 = vst.msk [vmem:[%s5 + $0x400] sm:$0xff] %vm3141, %v2203
  %3271 = vst.msk [vmem:[%s5 + $0x408] sm:$0xff] %vm3141, %v2206
  %3272 = vst.msk [vmem:[%s5 + $0x410] sm:$0xff] %vm3141, %v2209
  %3273 = vst.msk [vmem:[%s5 + $0x418] sm:$0xff] %vm3141, %v2212
  %3274 = vst.msk [vmem:[%s5 + $0x420] sm:$0xff] %vm3141, %v2215
  %3275 = vst.msk [vmem:[%s5 + $0x428] sm:$0xff] %vm3141, %v2218
  %3276 = vst.msk [vmem:[%s5 + $0x430] sm:$0xff] %vm3141, %v2221
  %3277 = vst.msk [vmem:[%s5 + $0x438] sm:$0xff] %vm3141, %v2224
  %3278 = vst.msk [vmem:[%s5 + $0x440] sm:$0xff] %vm3141, %v2227
  %3279 = vst.msk [vmem:[%s5 + $0x448] sm:$0xff] %vm3141, %v2230
  %3280 = vst.msk [vmem:[%s5 + $0x450] sm:$0xff] %vm3141, %v2233
  %3281 = vst.msk [vmem:[%s5 + $0x458] sm:$0xff] %vm3141, %v2236
  %3282 = vst.msk [vmem:[%s5 + $0x460] sm:$0xff] %vm3141, %v2239
  %3283 = vst.msk [vmem:[%s5 + $0x468] sm:$0xff] %vm3141, %v2242
  %3284 = vst.msk [vmem:[%s5 + $0x470] sm:$0xff] %vm3141, %v2245
  %3285 = vst.msk [vmem:[%s5 + $0x478] sm:$0xff] %vm3141, %v2248
  %3286 = vst.msk [vmem:[%s5 + $0x480] sm:$0xff] %vm3141, %v2251
  %3287 = vst.msk [vmem:[%s5 + $0x488] sm:$0xff] %vm3141, %v2254
  %3288 = vst.msk [vmem:[%s5 + $0x490] sm:$0xff] %vm3141, %v2257
  %3289 = vst.msk [vmem:[%s5 + $0x498] sm:$0xff] %vm3141, %v2260
  %3290 = vst.msk [vmem:[%s5 + $0x4a0] sm:$0xff] %vm3141, %v2263
  %3291 = vst.msk [vmem:[%s5 + $0x4a8] sm:$0xff] %vm3141, %v2266
  %3292 = vst.msk [vmem:[%s5 + $0x4b0] sm:$0xff] %vm3141, %v2269
  %3293 = vst.msk [vmem:[%s5 + $0x4b8] sm:$0xff] %vm3141, %v2272
  %3294 = vst.msk [vmem:[%s5 + $0x4c0] sm:$0xff] %vm3141, %v2275
  %3295 = vst.msk [vmem:[%s5 + $0x4c8] sm:$0xff] %vm3141, %v2278
  %3296 = vst.msk [vmem:[%s5 + $0x4d0] sm:$0xff] %vm3141, %v2281
  %3297 = vst.msk [vmem:[%s5 + $0x4d8] sm:$0xff] %vm3141, %v2284
  %3298 = vst.msk [vmem:[%s5 + $0x4e0] sm:$0xff] %vm3141, %v2287
  %3299 = vst.msk [vmem:[%s5 + $0x4e8] sm:$0xff] %vm3141, %v2290
  %3300 = vst.msk [vmem:[%s5 + $0x4f0] sm:$0xff] %vm3141, %v2293
  %3301 = vst.msk [vmem:[%s5 + $0x4f8] sm:$0xff] %vm3141, %v2296
  %3302 = vst.msk [vmem:[%s5 + $0x500] sm:$0xff] %vm3141, %v2299
  %3303 = vst.msk [vmem:[%s5 + $0x508] sm:$0xff] %vm3141, %v2302
  %3304 = vst.msk [vmem:[%s5 + $0x510] sm:$0xff] %vm3141, %v2305
  %3305 = vst.msk [vmem:[%s5 + $0x518] sm:$0xff] %vm3141, %v2308
  %3306 = vst.msk [vmem:[%s5 + $0x520] sm:$0xff] %vm3141, %v2311
  %3307 = vst.msk [vmem:[%s5 + $0x528] sm:$0xff] %vm3141, %v2314
  %3308 = vst.msk [vmem:[%s5 + $0x530] sm:$0xff] %vm3141, %v2317
  %3309 = vst.msk [vmem:[%s5 + $0x538] sm:$0xff] %vm3141, %v2320
  %3310 = vst.msk [vmem:[%s5 + $0x540] sm:$0xff] %vm3141, %v2323
  %3311 = vst.msk [vmem:[%s5 + $0x548] sm:$0xff] %vm3141, %v2326
  %3312 = vst.msk [vmem:[%s5 + $0x550] sm:$0xff] %vm3141, %v2329
  %3313 = vst.msk [vmem:[%s5 + $0x558] sm:$0xff] %vm3141, %v2332
  %3314 = vst.msk [vmem:[%s5 + $0x560] sm:$0xff] %vm3141, %v2335
  %3315 = vst.msk [vmem:[%s5 + $0x568] sm:$0xff] %vm3141, %v2338
  %3316 = vst.msk [vmem:[%s5 + $0x570] sm:$0xff] %vm3141, %v2341
  %3317 = vst.msk [vmem:[%s5 + $0x578] sm:$0xff] %vm3141, %v2344
  %3318 = vst.msk [vmem:[%s5 + $0x580] sm:$0xff] %vm3141, %v2347
  %3319 = vst.msk [vmem:[%s5 + $0x588] sm:$0xff] %vm3141, %v2350
  %3320 = vst.msk [vmem:[%s5 + $0x590] sm:$0xff] %vm3141, %v2353
  %3321 = vst.msk [vmem:[%s5 + $0x598] sm:$0xff] %vm3141, %v2356
  %3322 = vst.msk [vmem:[%s5 + $0x5a0] sm:$0xff] %vm3141, %v2359
  %3323 = vst.msk [vmem:[%s5 + $0x5a8] sm:$0xff] %vm3141, %v2362
  %3324 = vst.msk [vmem:[%s5 + $0x5b0] sm:$0xff] %vm3141, %v2365
  %3325 = vst.msk [vmem:[%s5 + $0x5b8] sm:$0xff] %vm3141, %v2368
  %3326 = vst.msk [vmem:[%s5 + $0x5c0] sm:$0xff] %vm3141, %v2371
  %3327 = vst.msk [vmem:[%s5 + $0x5c8] sm:$0xff] %vm3141, %v2374
  %3328 = vst.msk [vmem:[%s5 + $0x5d0] sm:$0xff] %vm3141, %v2377
  %3329 = vst.msk [vmem:[%s5 + $0x5d8] sm:$0xff] %vm3141, %v2380
  %3330 = vst.msk [vmem:[%s5 + $0x5e0] sm:$0xff] %vm3141, %v2383
  %3331 = vst.msk [vmem:[%s5 + $0x5e8] sm:$0xff] %vm3141, %v2386
  %3332 = vst.msk [vmem:[%s5 + $0x5f0] sm:$0xff] %vm3141, %v2389
  %3333 = vst.msk [vmem:[%s5 + $0x5f8] sm:$0xff] %vm3141, %v2392
  %3334 = vst.msk [vmem:[%s5 + $0x600] sm:$0xff] %vm3141, %v2395
  %3335 = vst.msk [vmem:[%s5 + $0x608] sm:$0xff] %vm3141, %v2398
  %3336 = vst.msk [vmem:[%s5 + $0x610] sm:$0xff] %vm3141, %v2401
  %3337 = vst.msk [vmem:[%s5 + $0x618] sm:$0xff] %vm3141, %v2404
  %3338 = vst.msk [vmem:[%s5 + $0x620] sm:$0xff] %vm3141, %v2407
  %3339 = vst.msk [vmem:[%s5 + $0x628] sm:$0xff] %vm3141, %v2410
  %3340 = vst.msk [vmem:[%s5 + $0x630] sm:$0xff] %vm3141, %v2413
  %3341 = vst.msk [vmem:[%s5 + $0x638] sm:$0xff] %vm3141, %v2416
  %3342 = vst.msk [vmem:[%s5 + $0x640] sm:$0xff] %vm3141, %v2419
  %3343 = vst.msk [vmem:[%s5 + $0x648] sm:$0xff] %vm3141, %v2422
  %3344 = vst.msk [vmem:[%s5 + $0x650] sm:$0xff] %vm3141, %v2425
  %3345 = vst.msk [vmem:[%s5 + $0x658] sm:$0xff] %vm3141, %v2428
  %3346 = vst.msk [vmem:[%s5 + $0x660] sm:$0xff] %vm3141, %v2431
  %3347 = vst.msk [vmem:[%s5 + $0x668] sm:$0xff] %vm3141, %v2434
  %3348 = vst.msk [vmem:[%s5 + $0x670] sm:$0xff] %vm3141, %v2437
  %3349 = vst.msk [vmem:[%s5 + $0x678] sm:$0xff] %vm3141, %v2440
  %3350 = vst.msk [vmem:[%s5 + $0x680] sm:$0xff] %vm3141, %v2443
  %3351 = vst.msk [vmem:[%s5 + $0x688] sm:$0xff] %vm3141, %v2446
  %3352 = vst.msk [vmem:[%s5 + $0x690] sm:$0xff] %vm3141, %v2449
  %3353 = vst.msk [vmem:[%s5 + $0x698] sm:$0xff] %vm3141, %v2452
  %3354 = vst.msk [vmem:[%s5 + $0x6a0] sm:$0xff] %vm3141, %v2455
  %3355 = vst.msk [vmem:[%s5 + $0x6a8] sm:$0xff] %vm3141, %v2458
  %3356 = vst.msk [vmem:[%s5 + $0x6b0] sm:$0xff] %vm3141, %v2461
  %3357 = vst.msk [vmem:[%s5 + $0x6b8] sm:$0xff] %vm3141, %v2464
  %3358 = vst.msk [vmem:[%s5 + $0x6c0] sm:$0xff] %vm3141, %v2467
  %3359 = vst.msk [vmem:[%s5 + $0x6c8] sm:$0xff] %vm3141, %v2470
  %3360 = vst.msk [vmem:[%s5 + $0x6d0] sm:$0xff] %vm3141, %v2473
  %3361 = vst.msk [vmem:[%s5 + $0x6d8] sm:$0xff] %vm3141, %v2476
  %3362 = vst.msk [vmem:[%s5 + $0x6e0] sm:$0xff] %vm3141, %v2479
  %3363 = vst.msk [vmem:[%s5 + $0x6e8] sm:$0xff] %vm3141, %v2482
  %3364 = vst.msk [vmem:[%s5 + $0x6f0] sm:$0xff] %vm3141, %v2485
  %3365 = vst.msk [vmem:[%s5 + $0x6f8] sm:$0xff] %vm3141, %v2488
  %3366 = vst.msk [vmem:[%s5 + $0x700] sm:$0xff] %vm3141, %v2491
  %3367 = vst.msk [vmem:[%s5 + $0x708] sm:$0xff] %vm3141, %v2494
  %3368 = vst.msk [vmem:[%s5 + $0x710] sm:$0xff] %vm3141, %v2497
  %3369 = vst.msk [vmem:[%s5 + $0x718] sm:$0xff] %vm3141, %v2500
  %3370 = vst.msk [vmem:[%s5 + $0x720] sm:$0xff] %vm3141, %v2503
  %3371 = vst.msk [vmem:[%s5 + $0x728] sm:$0xff] %vm3141, %v2506
  %3372 = vst.msk [vmem:[%s5 + $0x730] sm:$0xff] %vm3141, %v2509
  %3373 = vst.msk [vmem:[%s5 + $0x738] sm:$0xff] %vm3141, %v2512
  %3374 = vst.msk [vmem:[%s5 + $0x740] sm:$0xff] %vm3141, %v2515
  %3375 = vst.msk [vmem:[%s5 + $0x748] sm:$0xff] %vm3141, %v2518
  %3376 = vst.msk [vmem:[%s5 + $0x750] sm:$0xff] %vm3141, %v2521
  %3377 = vst.msk [vmem:[%s5 + $0x758] sm:$0xff] %vm3141, %v2524
  %3378 = vst.msk [vmem:[%s5 + $0x760] sm:$0xff] %vm3141, %v2527
  %3379 = vst.msk [vmem:[%s5 + $0x768] sm:$0xff] %vm3141, %v2530
  %3380 = vst.msk [vmem:[%s5 + $0x770] sm:$0xff] %vm3141, %v2533
  %3381 = vst.msk [vmem:[%s5 + $0x778] sm:$0xff] %vm3141, %v2536
  %3382 = vst.msk [vmem:[%s5 + $0x780] sm:$0xff] %vm3141, %v2539
  %3383 = vst.msk [vmem:[%s5 + $0x788] sm:$0xff] %vm3141, %v2542
  %3384 = vst.msk [vmem:[%s5 + $0x790] sm:$0xff] %vm3141, %v2545
  %3385 = vst.msk [vmem:[%s5 + $0x798] sm:$0xff] %vm3141, %v2548
  %3386 = vst.msk [vmem:[%s5 + $0x7a0] sm:$0xff] %vm3141, %v2551
  %3387 = vst.msk [vmem:[%s5 + $0x7a8] sm:$0xff] %vm3141, %v2554
  %3388 = vst.msk [vmem:[%s5 + $0x7b0] sm:$0xff] %vm3141, %v2557
  %3389 = vst.msk [vmem:[%s5 + $0x7b8] sm:$0xff] %vm3141, %v2560
  %3390 = vst.msk [vmem:[%s5 + $0x7c0] sm:$0xff] %vm3141, %v2563
  %3391 = vst.msk [vmem:[%s5 + $0x7c8] sm:$0xff] %vm3141, %v2566
  %3392 = vst.msk [vmem:[%s5 + $0x7d0] sm:$0xff] %vm3141, %v2569
  %3393 = vst.msk [vmem:[%s5 + $0x7d8] sm:$0xff] %vm3141, %v2572
  %3394 = vst.msk [vmem:[%s5 + $0x7e0] sm:$0xff] %vm3141, %v2575
  %3395 = vst.msk [vmem:[%s5 + $0x7e8] sm:$0xff] %vm3141, %v2578
  %3396 = vst.msk [vmem:[%s5 + $0x7f0] sm:$0xff] %vm3141, %v2581
  %3397 = vst.msk [vmem:[%s5 + $0x7f8] sm:$0xff] %vm3141, %v2584
  %3398 = vst.msk [vmem:[%s5 + $0x800] sm:$0xff] %vm3141, %v2587
  %3399 = vst.msk [vmem:[%s5 + $0x808] sm:$0xff] %vm3141, %v2590
  %3400 = vst.msk [vmem:[%s5 + $0x810] sm:$0xff] %vm3141, %v2593
  %3401 = vst.msk [vmem:[%s5 + $0x818] sm:$0xff] %vm3141, %v2596
  %3402 = vst.msk [vmem:[%s5 + $0x820] sm:$0xff] %vm3141, %v2599
  %3403 = vst.msk [vmem:[%s5 + $0x828] sm:$0xff] %vm3141, %v2602
  %3404 = vst.msk [vmem:[%s5 + $0x830] sm:$0xff] %vm3141, %v2605
  %3405 = vst.msk [vmem:[%s5 + $0x838] sm:$0xff] %vm3141, %v2608
  %3406 = vst.msk [vmem:[%s5 + $0x840] sm:$0xff] %vm3141, %v2611
  %3407 = vst.msk [vmem:[%s5 + $0x848] sm:$0xff] %vm3141, %v2614
  %3408 = vst.msk [vmem:[%s5 + $0x850] sm:$0xff] %vm3141, %v2617
  %3409 = vst.msk [vmem:[%s5 + $0x858] sm:$0xff] %vm3141, %v2620
  %3410 = vst.msk [vmem:[%s5 + $0x860] sm:$0xff] %vm3141, %v2623
  %3411 = vst.msk [vmem:[%s5 + $0x868] sm:$0xff] %vm3141, %v2626
  %3412 = vst.msk [vmem:[%s5 + $0x870] sm:$0xff] %vm3141, %v2629
  %3413 = vst.msk [vmem:[%s5 + $0x878] sm:$0xff] %vm3141, %v2632
  %3414 = vst.msk [vmem:[%s5 + $0x880] sm:$0xff] %vm3141, %v2635
  %3415 = vst.msk [vmem:[%s5 + $0x888] sm:$0xff] %vm3141, %v2638
  %3416 = vst.msk [vmem:[%s5 + $0x890] sm:$0xff] %vm3141, %v2641
  %3417 = vst.msk [vmem:[%s5 + $0x898] sm:$0xff] %vm3141, %v2644
  %3418 = vst.msk [vmem:[%s5 + $0x8a0] sm:$0xff] %vm3141, %v2647
  %3419 = vst.msk [vmem:[%s5 + $0x8a8] sm:$0xff] %vm3141, %v2650
  %3420 = vst.msk [vmem:[%s5 + $0x8b0] sm:$0xff] %vm3141, %v2653
  %3421 = vst.msk [vmem:[%s5 + $0x8b8] sm:$0xff] %vm3141, %v2656
  %3422 = vst.msk [vmem:[%s5 + $0x8c0] sm:$0xff] %vm3141, %v2659
  %3423 = vst.msk [vmem:[%s5 + $0x8c8] sm:$0xff] %vm3141, %v2662
  %3424 = vst.msk [vmem:[%s5 + $0x8d0] sm:$0xff] %vm3141, %v2665
  %3425 = vst.msk [vmem:[%s5 + $0x8d8] sm:$0xff] %vm3141, %v2668
  %3426 = vst.msk [vmem:[%s5 + $0x8e0] sm:$0xff] %vm3141, %v2671
  %3427 = vst.msk [vmem:[%s5 + $0x8e8] sm:$0xff] %vm3141, %v2674
  %3428 = vst.msk [vmem:[%s5 + $0x8f0] sm:$0xff] %vm3141, %v2677
  %3429 = vst.msk [vmem:[%s5 + $0x8f8] sm:$0xff] %vm3141, %v2680
  %3430 = vst.msk [vmem:[%s5 + $0x900] sm:$0xff] %vm3141, %v2683
  %3431 = vst.msk [vmem:[%s5 + $0x908] sm:$0xff] %vm3141, %v2686
  %3432 = vst.msk [vmem:[%s5 + $0x910] sm:$0xff] %vm3141, %v2689
  %3433 = vst.msk [vmem:[%s5 + $0x918] sm:$0xff] %vm3141, %v2692
  %3434 = vst.msk [vmem:[%s5 + $0x920] sm:$0xff] %vm3141, %v2695
  %3435 = vst.msk [vmem:[%s5 + $0x928] sm:$0xff] %vm3141, %v2698
  %3436 = vst.msk [vmem:[%s5 + $0x930] sm:$0xff] %vm3141, %v2701
  %3437 = vst.msk [vmem:[%s5 + $0x938] sm:$0xff] %vm3141, %v2704
  %3438 = vst.msk [vmem:[%s5 + $0x940] sm:$0xff] %vm3141, %v2707
  %3439 = vst.msk [vmem:[%s5 + $0x948] sm:$0xff] %vm3141, %v2710
  %3440 = vst.msk [vmem:[%s5 + $0x950] sm:$0xff] %vm3141, %v2713
  %3441 = vst.msk [vmem:[%s5 + $0x958] sm:$0xff] %vm3141, %v2716
  %3442 = vst.msk [vmem:[%s5 + $0x960] sm:$0xff] %vm3141, %v2719
  %3443 = vst.msk [vmem:[%s5 + $0x968] sm:$0xff] %vm3141, %v2722
  %3444 = vst.msk [vmem:[%s5 + $0x970] sm:$0xff] %vm3141, %v2725
  %3445 = vst.msk [vmem:[%s5 + $0x978] sm:$0xff] %vm3141, %v2728
  %3446 = vst.msk [vmem:[%s5 + $0x980] sm:$0xff] %vm3141, %v2731
  %3447 = vst.msk [vmem:[%s5 + $0x988] sm:$0xff] %vm3141, %v2734
  %3448 = vst.msk [vmem:[%s5 + $0x990] sm:$0xff] %vm3141, %v2737
  %3449 = vst.msk [vmem:[%s5 + $0x998] sm:$0xff] %vm3141, %v2740
  %3450 = vst.msk [vmem:[%s5 + $0x9a0] sm:$0xff] %vm3141, %v2743
  %3451 = vst.msk [vmem:[%s5 + $0x9a8] sm:$0xff] %vm3141, %v2746
  %3452 = vst.msk [vmem:[%s5 + $0x9b0] sm:$0xff] %vm3141, %v2749
  %3453 = vst.msk [vmem:[%s5 + $0x9b8] sm:$0xff] %vm3141, %v2752
  %3454 = vst.msk [vmem:[%s5 + $0x9c0] sm:$0xff] %vm3141, %v2755
  %3455 = vst.msk [vmem:[%s5 + $0x9c8] sm:$0xff] %vm3141, %v2758
  %3456 = vst.msk [vmem:[%s5 + $0x9d0] sm:$0xff] %vm3141, %v2761
  %3457 = vst.msk [vmem:[%s5 + $0x9d8] sm:$0xff] %vm3141, %v2764
  %3458 = vst.msk [vmem:[%s5 + $0x9e0] sm:$0xff] %vm3141, %v2767
  %3459 = vst.msk [vmem:[%s5 + $0x9e8] sm:$0xff] %vm3141, %v2770
  %3460 = vst.msk [vmem:[%s5 + $0x9f0] sm:$0xff] %vm3141, %v2773
  %3461 = vst.msk [vmem:[%s5 + $0x9f8] sm:$0xff] %vm3141, %v2776
  %3462 = vst.msk [vmem:[%s5 + $0xa00] sm:$0xff] %vm3141, %v2779
  %3463 = vst.msk [vmem:[%s5 + $0xa08] sm:$0xff] %vm3141, %v2782
  %3464 = vst.msk [vmem:[%s5 + $0xa10] sm:$0xff] %vm3141, %v2785
  %3465 = vst.msk [vmem:[%s5 + $0xa18] sm:$0xff] %vm3141, %v2788
  %3466 = vst.msk [vmem:[%s5 + $0xa20] sm:$0xff] %vm3141, %v2791
  %3467 = vst.msk [vmem:[%s5 + $0xa28] sm:$0xff] %vm3141, %v2794
  %3468 = vst.msk [vmem:[%s5 + $0xa30] sm:$0xff] %vm3141, %v2797
  %3469 = vst.msk [vmem:[%s5 + $0xa38] sm:$0xff] %vm3141, %v2800
  %3470 = vst.msk [vmem:[%s5 + $0xa40] sm:$0xff] %vm3141, %v2803
  %3471 = vst.msk [vmem:[%s5 + $0xa48] sm:$0xff] %vm3141, %v2806
  %3472 = vst.msk [vmem:[%s5 + $0xa50] sm:$0xff] %vm3141, %v2809
  %3473 = vst.msk [vmem:[%s5 + $0xa58] sm:$0xff] %vm3141, %v2812
  %3474 = vst.msk [vmem:[%s5 + $0xa60] sm:$0xff] %vm3141, %v2815
  %3475 = vst.msk [vmem:[%s5 + $0xa68] sm:$0xff] %vm3141, %v2818
  %3476 = vst.msk [vmem:[%s5 + $0xa70] sm:$0xff] %vm3141, %v2821
  %3477 = vst.msk [vmem:[%s5 + $0xa78] sm:$0xff] %vm3141, %v2824
  %3478 = vst.msk [vmem:[%s5 + $0xa80] sm:$0xff] %vm3141, %v2827
  %3479 = vst.msk [vmem:[%s5 + $0xa88] sm:$0xff] %vm3141, %v2830
  %3480 = vst.msk [vmem:[%s5 + $0xa90] sm:$0xff] %vm3141, %v2833
  %3481 = vst.msk [vmem:[%s5 + $0xa98] sm:$0xff] %vm3141, %v2836
  %3482 = vst.msk [vmem:[%s5 + $0xaa0] sm:$0xff] %vm3141, %v2839
  %3483 = vst.msk [vmem:[%s5 + $0xaa8] sm:$0xff] %vm3141, %v2842
  %3484 = vst.msk [vmem:[%s5 + $0xab0] sm:$0xff] %vm3141, %v2845
  %3485 = vst.msk [vmem:[%s5 + $0xab8] sm:$0xff] %vm3141, %v2848
  %3486 = vst.msk [vmem:[%s5 + $0xac0] sm:$0xff] %vm3141, %v2851
  %3487 = vst.msk [vmem:[%s5 + $0xac8] sm:$0xff] %vm3141, %v2854
  %3488 = vst.msk [vmem:[%s5 + $0xad0] sm:$0xff] %vm3141, %v2857
  %3489 = vst.msk [vmem:[%s5 + $0xad8] sm:$0xff] %vm3141, %v2860
  %3490 = vst.msk [vmem:[%s5 + $0xae0] sm:$0xff] %vm3141, %v2863
  %3491 = vst.msk [vmem:[%s5 + $0xae8] sm:$0xff] %vm3141, %v2866
  %3492 = vst.msk [vmem:[%s5 + $0xaf0] sm:$0xff] %vm3141, %v2869
  %3493 = vst.msk [vmem:[%s5 + $0xaf8] sm:$0xff] %vm3141, %v2872
  %3494 = vst.msk [vmem:[%s5 + $0xb00] sm:$0xff] %vm3141, %v2875
  %3495 = vst.msk [vmem:[%s5 + $0xb08] sm:$0xff] %vm3141, %v2878
  %3496 = vst.msk [vmem:[%s5 + $0xb10] sm:$0xff] %vm3141, %v2881
  %3497 = vst.msk [vmem:[%s5 + $0xb18] sm:$0xff] %vm3141, %v2884
  %3498 = vst.msk [vmem:[%s5 + $0xb20] sm:$0xff] %vm3141, %v2887
  %3499 = vst.msk [vmem:[%s5 + $0xb28] sm:$0xff] %vm3141, %v2890
  %3500 = vst.msk [vmem:[%s5 + $0xb30] sm:$0xff] %vm3141, %v2893
  %3501 = vst.msk [vmem:[%s5 + $0xb38] sm:$0xff] %vm3141, %v2896
  %3502 = vst.msk [vmem:[%s5 + $0xb40] sm:$0xff] %vm3141, %v2899
  %3503 = vst.msk [vmem:[%s5 + $0xb48] sm:$0xff] %vm3141, %v2902
  %3504 = vst.msk [vmem:[%s5 + $0xb50] sm:$0xff] %vm3141, %v2905
  %3505 = vst.msk [vmem:[%s5 + $0xb58] sm:$0xff] %vm3141, %v2908
  %3506 = vst.msk [vmem:[%s5 + $0xb60] sm:$0xff] %vm3141, %v2911
  %3507 = vst.msk [vmem:[%s5 + $0xb68] sm:$0xff] %vm3141, %v2914
  %3508 = vst.msk [vmem:[%s5 + $0xb70] sm:$0xff] %vm3141, %v2917
  %3509 = vst.msk [vmem:[%s5 + $0xb78] sm:$0xff] %vm3141, %v2920
  %3510 = vst.msk [vmem:[%s5 + $0xb80] sm:$0xff] %vm3141, %v2923
  %3511 = vst.msk [vmem:[%s5 + $0xb88] sm:$0xff] %vm3141, %v2926
  %3512 = vst.msk [vmem:[%s5 + $0xb90] sm:$0xff] %vm3141, %v2929
  %3513 = vst.msk [vmem:[%s5 + $0xb98] sm:$0xff] %vm3141, %v2932
  %3514 = vst.msk [vmem:[%s5 + $0xba0] sm:$0xff] %vm3141, %v2935
  %3515 = vst.msk [vmem:[%s5 + $0xba8] sm:$0xff] %vm3141, %v2938
  %3516 = vst.msk [vmem:[%s5 + $0xbb0] sm:$0xff] %vm3141, %v2941
  %3517 = vst.msk [vmem:[%s5 + $0xbb8] sm:$0xff] %vm3141, %v2944
  %3518 = vst.msk [vmem:[%s5 + $0xbc0] sm:$0xff] %vm3141, %v2947
  %3519 = vst.msk [vmem:[%s5 + $0xbc8] sm:$0xff] %vm3141, %v2950
  %3520 = vst.msk [vmem:[%s5 + $0xbd0] sm:$0xff] %vm3141, %v2953
  %3521 = vst.msk [vmem:[%s5 + $0xbd8] sm:$0xff] %vm3141, %v2956
  %3522 = vst.msk [vmem:[%s5 + $0xbe0] sm:$0xff] %vm3141, %v2959
  %3523 = vst.msk [vmem:[%s5 + $0xbe8] sm:$0xff] %vm3141, %v2962
  %3524 = vst.msk [vmem:[%s5 + $0xbf0] sm:$0xff] %vm3141, %v2965
  %3525 = vst.msk [vmem:[%s5 + $0xbf8] sm:$0xff] %vm3141, %v2968
  %3526 = vst.msk [vmem:[%s5 + $0xc00] sm:$0xff] %vm3141, %v2971
  %3527 = vst.msk [vmem:[%s5 + $0xc08] sm:$0xff] %vm3141, %v2974
  %3528 = vst.msk [vmem:[%s5 + $0xc10] sm:$0xff] %vm3141, %v2977
  %3529 = vst.msk [vmem:[%s5 + $0xc18] sm:$0xff] %vm3141, %v2980
  %3530 = vst.msk [vmem:[%s5 + $0xc20] sm:$0xff] %vm3141, %v2983
  %3531 = vst.msk [vmem:[%s5 + $0xc28] sm:$0xff] %vm3141, %v2986
  %3532 = vst.msk [vmem:[%s5 + $0xc30] sm:$0xff] %vm3141, %v2989
  %3533 = vst.msk [vmem:[%s5 + $0xc38] sm:$0xff] %vm3141, %v2992
  %3534 = vst.msk [vmem:[%s5 + $0xc40] sm:$0xff] %vm3141, %v2995
  %3535 = vst.msk [vmem:[%s5 + $0xc48] sm:$0xff] %vm3141, %v2998
  %3536 = vst.msk [vmem:[%s5 + $0xc50] sm:$0xff] %vm3141, %v3001
  %3537 = vst.msk [vmem:[%s5 + $0xc58] sm:$0xff] %vm3141, %v3004
  %3538 = vst.msk [vmem:[%s5 + $0xc60] sm:$0xff] %vm3141, %v3007
  %3539 = vst.msk [vmem:[%s5 + $0xc68] sm:$0xff] %vm3141, %v3010
  %3540 = vst.msk [vmem:[%s5 + $0xc70] sm:$0xff] %vm3141, %v3013
  %3541 = vst.msk [vmem:[%s5 + $0xc78] sm:$0xff] %vm3141, %v3016
  %3542 = vst.msk [vmem:[%s5 + $0xc80] sm:$0xff] %vm3141, %v3019
  %3543 = vst.msk [vmem:[%s5 + $0xc88] sm:$0xff] %vm3141, %v3022
  %3544 = vst.msk [vmem:[%s5 + $0xc90] sm:$0xff] %vm3141, %v3025
  %3545 = vst.msk [vmem:[%s5 + $0xc98] sm:$0xff] %vm3141, %v3028
  %3546 = vst.msk [vmem:[%s5 + $0xca0] sm:$0xff] %vm3141, %v3031
  %3547 = vst.msk [vmem:[%s5 + $0xca8] sm:$0xff] %vm3141, %v3034
  %3548 = vst.msk [vmem:[%s5 + $0xcb0] sm:$0xff] %vm3141, %v3037
  %3549 = vst.msk [vmem:[%s5 + $0xcb8] sm:$0xff] %vm3141, %v3040
  %3550 = vst.msk [vmem:[%s5 + $0xcc0] sm:$0xff] %vm3141, %v3043
  %3551 = vst.msk [vmem:[%s5 + $0xcc8] sm:$0xff] %vm3141, %v3046
  %3552 = vst.msk [vmem:[%s5 + $0xcd0] sm:$0xff] %vm3141, %v3049
  %3553 = vst.msk [vmem:[%s5 + $0xcd8] sm:$0xff] %vm3141, %v3052
  %3554 = vst.msk [vmem:[%s5 + $0xce0] sm:$0xff] %vm3141, %v3055
  %3555 = vst.msk [vmem:[%s5 + $0xce8] sm:$0xff] %vm3141, %v3058
  %3556 = vst.msk [vmem:[%s5 + $0xcf0] sm:$0xff] %vm3141, %v3061
  %3557 = vst.msk [vmem:[%s5 + $0xcf8] sm:$0xff] %vm3141, %v3064
  %3558 = vst.msk [vmem:[%s5 + $0xd00] sm:$0xff] %vm3141, %v3067
  %3559 = vst.msk [vmem:[%s5 + $0xd08] sm:$0xff] %vm3141, %v3070
  %3560 = vst.msk [vmem:[%s5 + $0xd10] sm:$0xff] %vm3141, %v3073
  %3561 = vst.msk [vmem:[%s5 + $0xd18] sm:$0xff] %vm3141, %v3076
  %3562 = vst.msk [vmem:[%s5 + $0xd20] sm:$0xff] %vm3141, %v3079
  %3563 = vst.msk [vmem:[%s5 + $0xd28] sm:$0xff] %vm3141, %v3082
  %3564 = vst.msk [vmem:[%s5 + $0xd30] sm:$0xff] %vm3141, %v3085
  %3565 = vst.msk [vmem:[%s5 + $0xd38] sm:$0xff] %vm3141, %v3088
  %3566 = vst.msk [vmem:[%s5 + $0xd40] sm:$0xff] %vm3141, %v3091
  %3567 = vst.msk [vmem:[%s5 + $0xd48] sm:$0xff] %vm3141, %v3094
  %3568 = vst.msk [vmem:[%s5 + $0xd50] sm:$0xff] %vm3141, %v3097
  %3569 = vst.msk [vmem:[%s5 + $0xd58] sm:$0xff] %vm3141, %v3100
  %3570 = vst.msk [vmem:[%s5 + $0xd60] sm:$0xff] %vm3141, %v3103
  %3571 = vst.msk [vmem:[%s5 + $0xd68] sm:$0xff] %vm3141, %v3106
  %3572 = vst.msk [vmem:[%s5 + $0xd70] sm:$0xff] %vm3141, %v3109
  %3573 = vst.msk [vmem:[%s5 + $0xd78] sm:$0xff] %vm3141, %v3112
  %3574 = vst.msk [vmem:[%s5 + $0xd80] sm:$0xff] %vm3141, %v3115
  %3575 = vst.msk [vmem:[%s5 + $0xd88] sm:$0xff] %vm3141, %v3118
  %3576 = vst.msk [vmem:[%s5 + $0xd90] sm:$0xff] %vm3141, %v3121
  %3577 = vst.msk [vmem:[%s5 + $0xd98] sm:$0xff] %vm3141, %v3124
  %3578 = vst.msk [vmem:[%s5 + $0xda0] sm:$0xff] %vm3141, %v3127
  %3579 = vst.msk [vmem:[%s5 + $0xda8] sm:$0xff] %vm3141, %v3130
  %3580 = vst.msk [vmem:[%s5 + $0xdb0] sm:$0xff] %vm3141, %v3133
  %3581 = vst.msk [vmem:[%s5 + $0xdb8] sm:$0xff] %vm3141, %v3136
  %3582 = vst.msk [vmem:[%s5 + $0xdc0] sm:$0xff] %vm3141, %v3139
  %v3583 = vsel %vm3141, %v1819, 0.0
  %v3584 = vsel %vm3141, %v1822, 0.0
  %v3585 = vadd.f32 %v3583, %v3584
  %v3586 = vsel %vm3141, %v1825, 0.0
  %v3587 = vadd.f32 %v3585, %v3586
  %v3588 = vsel %vm3141, %v1828, 0.0
  %v3589 = vadd.f32 %v3587, %v3588
  %v3590 = vsel %vm3141, %v1831, 0.0
  %v3591 = vadd.f32 %v3589, %v3590
  %v3592 = vsel %vm3141, %v1834, 0.0
  %v3593 = vadd.f32 %v3591, %v3592
  %v3594 = vsel %vm3141, %v1837, 0.0
  %v3595 = vadd.f32 %v3593, %v3594
  %v3596 = vsel %vm3141, %v1840, 0.0
  %v3597 = vadd.f32 %v3595, %v3596
  %v3598 = vsel %vm3141, %v1843, 0.0
  %v3599 = vadd.f32 %v3597, %v3598
  %v3600 = vsel %vm3141, %v1846, 0.0
  %v3601 = vadd.f32 %v3599, %v3600
  %v3602 = vsel %vm3141, %v1849, 0.0
  %v3603 = vadd.f32 %v3601, %v3602
  %v3604 = vsel %vm3141, %v1852, 0.0
  %v3605 = vadd.f32 %v3603, %v3604
  %v3606 = vsel %vm3141, %v1855, 0.0
  %v3607 = vadd.f32 %v3605, %v3606
  %v3608 = vsel %vm3141, %v1858, 0.0
  %v3609 = vadd.f32 %v3607, %v3608
  %v3610 = vsel %vm3141, %v1861, 0.0
  %v3611 = vadd.f32 %v3609, %v3610
  %v3612 = vsel %vm3141, %v1864, 0.0
  %v3613 = vadd.f32 %v3611, %v3612
  %v3614 = vsel %vm3141, %v1867, 0.0
  %v3615 = vadd.f32 %v3613, %v3614
  %v3616 = vsel %vm3141, %v1870, 0.0
  %v3617 = vadd.f32 %v3615, %v3616
  %v3618 = vsel %vm3141, %v1873, 0.0
  %v3619 = vadd.f32 %v3617, %v3618
  %v3620 = vsel %vm3141, %v1876, 0.0
  %v3621 = vadd.f32 %v3619, %v3620
  %v3622 = vsel %vm3141, %v1879, 0.0
  %v3623 = vadd.f32 %v3621, %v3622
  %v3624 = vsel %vm3141, %v1882, 0.0
  %v3625 = vadd.f32 %v3623, %v3624
  %v3626 = vsel %vm3141, %v1885, 0.0
  %v3627 = vadd.f32 %v3625, %v3626
  %v3628 = vsel %vm3141, %v1888, 0.0
  %v3629 = vadd.f32 %v3627, %v3628
  %v3630 = vsel %vm3141, %v1891, 0.0
  %v3631 = vadd.f32 %v3629, %v3630
  %v3632 = vsel %vm3141, %v1894, 0.0
  %v3633 = vadd.f32 %v3631, %v3632
  %v3634 = vsel %vm3141, %v1897, 0.0
  %v3635 = vadd.f32 %v3633, %v3634
  %v3636 = vsel %vm3141, %v1900, 0.0
  %v3637 = vadd.f32 %v3635, %v3636
  %v3638 = vsel %vm3141, %v1903, 0.0
  %v3639 = vadd.f32 %v3637, %v3638
  %v3640 = vsel %vm3141, %v1906, 0.0
  %v3641 = vadd.f32 %v3639, %v3640
  %v3642 = vsel %vm3141, %v1909, 0.0
  %v3643 = vadd.f32 %v3641, %v3642
  %v3644 = vsel %vm3141, %v1912, 0.0
  %v3645 = vadd.f32 %v3643, %v3644
  %v3646 = vsel %vm3141, %v1915, 0.0
  %v3647 = vadd.f32 %v3645, %v3646
  %v3648 = vsel %vm3141, %v1918, 0.0
  %v3649 = vadd.f32 %v3647, %v3648
  %v3650 = vsel %vm3141, %v1921, 0.0
  %v3651 = vadd.f32 %v3649, %v3650
  %v3652 = vsel %vm3141, %v1924, 0.0
  %v3653 = vadd.f32 %v3651, %v3652
  %v3654 = vsel %vm3141, %v1927, 0.0
  %v3655 = vadd.f32 %v3653, %v3654
  %v3656 = vsel %vm3141, %v1930, 0.0
  %v3657 = vadd.f32 %v3655, %v3656
  %v3658 = vsel %vm3141, %v1933, 0.0
  %v3659 = vadd.f32 %v3657, %v3658
  %v3660 = vsel %vm3141, %v1936, 0.0
  %v3661 = vadd.f32 %v3659, %v3660
  %v3662 = vsel %vm3141, %v1939, 0.0
  %v3663 = vadd.f32 %v3661, %v3662
  %v3664 = vsel %vm3141, %v1942, 0.0
  %v3665 = vadd.f32 %v3663, %v3664
  %v3666 = vsel %vm3141, %v1945, 0.0
  %v3667 = vadd.f32 %v3665, %v3666
  %v3668 = vsel %vm3141, %v1948, 0.0
  %v3669 = vadd.f32 %v3667, %v3668
  %v3670 = vsel %vm3141, %v1951, 0.0
  %v3671 = vadd.f32 %v3669, %v3670
  %v3672 = vsel %vm3141, %v1954, 0.0
  %v3673 = vadd.f32 %v3671, %v3672
  %v3674 = vsel %vm3141, %v1957, 0.0
  %v3675 = vadd.f32 %v3673, %v3674
  %v3676 = vsel %vm3141, %v1960, 0.0
  %v3677 = vadd.f32 %v3675, %v3676
  %v3678 = vsel %vm3141, %v1963, 0.0
  %v3679 = vadd.f32 %v3677, %v3678
  %v3680 = vsel %vm3141, %v1966, 0.0
  %v3681 = vadd.f32 %v3679, %v3680
  %v3682 = vsel %vm3141, %v1969, 0.0
  %v3683 = vadd.f32 %v3681, %v3682
  %v3684 = vsel %vm3141, %v1972, 0.0
  %v3685 = vadd.f32 %v3683, %v3684
  %v3686 = vsel %vm3141, %v1975, 0.0
  %v3687 = vadd.f32 %v3685, %v3686
  %v3688 = vsel %vm3141, %v1978, 0.0
  %v3689 = vadd.f32 %v3687, %v3688
  %v3690 = vsel %vm3141, %v1981, 0.0
  %v3691 = vadd.f32 %v3689, %v3690
  %v3692 = vsel %vm3141, %v1984, 0.0
  %v3693 = vadd.f32 %v3691, %v3692
  %v3694 = vsel %vm3141, %v1987, 0.0
  %v3695 = vadd.f32 %v3693, %v3694
  %v3696 = vsel %vm3141, %v1990, 0.0
  %v3697 = vadd.f32 %v3695, %v3696
  %v3698 = vsel %vm3141, %v1993, 0.0
  %v3699 = vadd.f32 %v3697, %v3698
  %v3700 = vsel %vm3141, %v1996, 0.0
  %v3701 = vadd.f32 %v3699, %v3700
  %v3702 = vsel %vm3141, %v1999, 0.0
  %v3703 = vadd.f32 %v3701, %v3702
  %v3704 = vsel %vm3141, %v2002, 0.0
  %v3705 = vadd.f32 %v3703, %v3704
  %v3706 = vsel %vm3141, %v2005, 0.0
  %v3707 = vadd.f32 %v3705, %v3706
  %v3708 = vsel %vm3141, %v2008, 0.0
  %v3709 = vadd.f32 %v3707, %v3708
  %v3710 = vsel %vm3141, %v2011, 0.0
  %v3711 = vadd.f32 %v3709, %v3710
  %v3712 = vsel %vm3141, %v2014, 0.0
  %v3713 = vadd.f32 %v3711, %v3712
  %v3714 = vsel %vm3141, %v2017, 0.0
  %v3715 = vadd.f32 %v3713, %v3714
  %v3716 = vsel %vm3141, %v2020, 0.0
  %v3717 = vadd.f32 %v3715, %v3716
  %v3718 = vsel %vm3141, %v2023, 0.0
  %v3719 = vadd.f32 %v3717, %v3718
  %v3720 = vsel %vm3141, %v2026, 0.0
  %v3721 = vadd.f32 %v3719, %v3720
  %v3722 = vsel %vm3141, %v2029, 0.0
  %v3723 = vadd.f32 %v3721, %v3722
  %v3724 = vsel %vm3141, %v2032, 0.0
  %v3725 = vadd.f32 %v3723, %v3724
  %v3726 = vsel %vm3141, %v2035, 0.0
  %v3727 = vadd.f32 %v3725, %v3726
  %v3728 = vsel %vm3141, %v2038, 0.0
  %v3729 = vadd.f32 %v3727, %v3728
  %v3730 = vsel %vm3141, %v2041, 0.0
  %v3731 = vadd.f32 %v3729, %v3730
  %v3732 = vsel %vm3141, %v2044, 0.0
  %v3733 = vadd.f32 %v3731, %v3732
  %v3734 = vsel %vm3141, %v2047, 0.0
  %v3735 = vadd.f32 %v3733, %v3734
  %v3736 = vsel %vm3141, %v2050, 0.0
  %v3737 = vadd.f32 %v3735, %v3736
  %v3738 = vsel %vm3141, %v2053, 0.0
  %v3739 = vadd.f32 %v3737, %v3738
  %v3740 = vsel %vm3141, %v2056, 0.0
  %v3741 = vadd.f32 %v3739, %v3740
  %v3742 = vsel %vm3141, %v2059, 0.0
  %v3743 = vadd.f32 %v3741, %v3742
  %v3744 = vsel %vm3141, %v2062, 0.0
  %v3745 = vadd.f32 %v3743, %v3744
  %v3746 = vsel %vm3141, %v2065, 0.0
  %v3747 = vadd.f32 %v3745, %v3746
  %v3748 = vsel %vm3141, %v2068, 0.0
  %v3749 = vadd.f32 %v3747, %v3748
  %v3750 = vsel %vm3141, %v2071, 0.0
  %v3751 = vadd.f32 %v3749, %v3750
  %v3752 = vsel %vm3141, %v2074, 0.0
  %v3753 = vadd.f32 %v3751, %v3752
  %v3754 = vsel %vm3141, %v2077, 0.0
  %v3755 = vadd.f32 %v3753, %v3754
  %v3756 = vsel %vm3141, %v2080, 0.0
  %v3757 = vadd.f32 %v3755, %v3756
  %v3758 = vsel %vm3141, %v2083, 0.0
  %v3759 = vadd.f32 %v3757, %v3758
  %v3760 = vsel %vm3141, %v2086, 0.0
  %v3761 = vadd.f32 %v3759, %v3760
  %v3762 = vsel %vm3141, %v2089, 0.0
  %v3763 = vadd.f32 %v3761, %v3762
  %v3764 = vsel %vm3141, %v2092, 0.0
  %v3765 = vadd.f32 %v3763, %v3764
  %v3766 = vsel %vm3141, %v2095, 0.0
  %v3767 = vadd.f32 %v3765, %v3766
  %v3768 = vsel %vm3141, %v2098, 0.0
  %v3769 = vadd.f32 %v3767, %v3768
  %v3770 = vsel %vm3141, %v2101, 0.0
  %v3771 = vadd.f32 %v3769, %v3770
  %v3772 = vsel %vm3141, %v2104, 0.0
  %v3773 = vadd.f32 %v3771, %v3772
  %v3774 = vsel %vm3141, %v2107, 0.0
  %v3775 = vadd.f32 %v3773, %v3774
  %v3776 = vsel %vm3141, %v2110, 0.0
  %v3777 = vadd.f32 %v3775, %v3776
  %v3778 = vsel %vm3141, %v2113, 0.0
  %v3779 = vadd.f32 %v3777, %v3778
  %v3780 = vsel %vm3141, %v2116, 0.0
  %v3781 = vadd.f32 %v3779, %v3780
  %v3782 = vsel %vm3141, %v2119, 0.0
  %v3783 = vadd.f32 %v3781, %v3782
  %v3784 = vsel %vm3141, %v2122, 0.0
  %v3785 = vadd.f32 %v3783, %v3784
  %v3786 = vsel %vm3141, %v2125, 0.0
  %v3787 = vadd.f32 %v3785, %v3786
  %v3788 = vsel %vm3141, %v2128, 0.0
  %v3789 = vadd.f32 %v3787, %v3788
  %v3790 = vsel %vm3141, %v2131, 0.0
  %v3791 = vadd.f32 %v3789, %v3790
  %v3792 = vsel %vm3141, %v2134, 0.0
  %v3793 = vadd.f32 %v3791, %v3792
  %v3794 = vsel %vm3141, %v2137, 0.0
  %v3795 = vadd.f32 %v3793, %v3794
  %v3796 = vsel %vm3141, %v2140, 0.0
  %v3797 = vadd.f32 %v3795, %v3796
  %v3798 = vsel %vm3141, %v2143, 0.0
  %v3799 = vadd.f32 %v3797, %v3798
  %v3800 = vsel %vm3141, %v2146, 0.0
  %v3801 = vadd.f32 %v3799, %v3800
  %v3802 = vsel %vm3141, %v2149, 0.0
  %v3803 = vadd.f32 %v3801, %v3802
  %v3804 = vsel %vm3141, %v2152, 0.0
  %v3805 = vadd.f32 %v3803, %v3804
  %v3806 = vsel %vm3141, %v2155, 0.0
  %v3807 = vadd.f32 %v3805, %v3806
  %v3808 = vsel %vm3141, %v2158, 0.0
  %v3809 = vadd.f32 %v3807, %v3808
  %v3810 = vsel %vm3141, %v2161, 0.0
  %v3811 = vadd.f32 %v3809, %v3810
  %v3812 = vsel %vm3141, %v2164, 0.0
  %v3813 = vadd.f32 %v3811, %v3812
  %v3814 = vsel %vm3141, %v2167, 0.0
  %v3815 = vadd.f32 %v3813, %v3814
  %v3816 = vsel %vm3141, %v2170, 0.0
  %v3817 = vadd.f32 %v3815, %v3816
  %v3818 = vsel %vm3141, %v2173, 0.0
  %v3819 = vadd.f32 %v3817, %v3818
  %v3820 = vsel %vm3141, %v2176, 0.0
  %v3821 = vadd.f32 %v3819, %v3820
  %v3822 = vsel %vm3141, %v2179, 0.0
  %v3823 = vadd.f32 %v3821, %v3822
  %v3824 = vsel %vm3141, %v2182, 0.0
  %v3825 = vadd.f32 %v3823, %v3824
  %v3826 = vsel %vm3141, %v2185, 0.0
  %v3827 = vadd.f32 %v3825, %v3826
  %v3828 = vsel %vm3141, %v2188, 0.0
  %v3829 = vadd.f32 %v3827, %v3828
  %v3830 = vsel %vm3141, %v2191, 0.0
  %v3831 = vadd.f32 %v3829, %v3830
  %v3832 = vsel %vm3141, %v2194, 0.0
  %v3833 = vadd.f32 %v3831, %v3832
  %v3834 = vsel %vm3141, %v2197, 0.0
  %v3835 = vadd.f32 %v3833, %v3834
  %v3836 = vsel %vm3141, %v2200, 0.0
  %v3837 = vadd.f32 %v3835, %v3836
  %v3838 = vsel %vm3141, %v2203, 0.0
  %v3839 = vadd.f32 %v3837, %v3838
  %v3840 = vsel %vm3141, %v2206, 0.0
  %v3841 = vadd.f32 %v3839, %v3840
  %v3842 = vsel %vm3141, %v2209, 0.0
  %v3843 = vadd.f32 %v3841, %v3842
  %v3844 = vsel %vm3141, %v2212, 0.0
  %v3845 = vadd.f32 %v3843, %v3844
  %v3846 = vsel %vm3141, %v2215, 0.0
  %v3847 = vadd.f32 %v3845, %v3846
  %v3848 = vsel %vm3141, %v2218, 0.0
  %v3849 = vadd.f32 %v3847, %v3848
  %v3850 = vsel %vm3141, %v2221, 0.0
  %v3851 = vadd.f32 %v3849, %v3850
  %v3852 = vsel %vm3141, %v2224, 0.0
  %v3853 = vadd.f32 %v3851, %v3852
  %v3854 = vsel %vm3141, %v2227, 0.0
  %v3855 = vadd.f32 %v3853, %v3854
  %v3856 = vsel %vm3141, %v2230, 0.0
  %v3857 = vadd.f32 %v3855, %v3856
  %v3858 = vsel %vm3141, %v2233, 0.0
  %v3859 = vadd.f32 %v3857, %v3858
  %v3860 = vsel %vm3141, %v2236, 0.0
  %v3861 = vadd.f32 %v3859, %v3860
  %v3862 = vsel %vm3141, %v2239, 0.0
  %v3863 = vadd.f32 %v3861, %v3862
  %v3864 = vsel %vm3141, %v2242, 0.0
  %v3865 = vadd.f32 %v3863, %v3864
  %v3866 = vsel %vm3141, %v2245, 0.0
  %v3867 = vadd.f32 %v3865, %v3866
  %v3868 = vsel %vm3141, %v2248, 0.0
  %v3869 = vadd.f32 %v3867, %v3868
  %v3870 = vsel %vm3141, %v2251, 0.0
  %v3871 = vadd.f32 %v3869, %v3870
  %v3872 = vsel %vm3141, %v2254, 0.0
  %v3873 = vadd.f32 %v3871, %v3872
  %v3874 = vsel %vm3141, %v2257, 0.0
  %v3875 = vadd.f32 %v3873, %v3874
  %v3876 = vsel %vm3141, %v2260, 0.0
  %v3877 = vadd.f32 %v3875, %v3876
  %v3878 = vsel %vm3141, %v2263, 0.0
  %v3879 = vadd.f32 %v3877, %v3878
  %v3880 = vsel %vm3141, %v2266, 0.0
  %v3881 = vadd.f32 %v3879, %v3880
  %v3882 = vsel %vm3141, %v2269, 0.0
  %v3883 = vadd.f32 %v3881, %v3882
  %v3884 = vsel %vm3141, %v2272, 0.0
  %v3885 = vadd.f32 %v3883, %v3884
  %v3886 = vsel %vm3141, %v2275, 0.0
  %v3887 = vadd.f32 %v3885, %v3886
  %v3888 = vsel %vm3141, %v2278, 0.0
  %v3889 = vadd.f32 %v3887, %v3888
  %v3890 = vsel %vm3141, %v2281, 0.0
  %v3891 = vadd.f32 %v3889, %v3890
  %v3892 = vsel %vm3141, %v2284, 0.0
  %v3893 = vadd.f32 %v3891, %v3892
  %v3894 = vsel %vm3141, %v2287, 0.0
  %v3895 = vadd.f32 %v3893, %v3894
  %v3896 = vsel %vm3141, %v2290, 0.0
  %v3897 = vadd.f32 %v3895, %v3896
  %v3898 = vsel %vm3141, %v2293, 0.0
  %v3899 = vadd.f32 %v3897, %v3898
  %v3900 = vsel %vm3141, %v2296, 0.0
  %v3901 = vadd.f32 %v3899, %v3900
  %v3902 = vsel %vm3141, %v2299, 0.0
  %v3903 = vadd.f32 %v3901, %v3902
  %v3904 = vsel %vm3141, %v2302, 0.0
  %v3905 = vadd.f32 %v3903, %v3904
  %v3906 = vsel %vm3141, %v2305, 0.0
  %v3907 = vadd.f32 %v3905, %v3906
  %v3908 = vsel %vm3141, %v2308, 0.0
  %v3909 = vadd.f32 %v3907, %v3908
  %v3910 = vsel %vm3141, %v2311, 0.0
  %v3911 = vadd.f32 %v3909, %v3910
  %v3912 = vsel %vm3141, %v2314, 0.0
  %v3913 = vadd.f32 %v3911, %v3912
  %v3914 = vsel %vm3141, %v2317, 0.0
  %v3915 = vadd.f32 %v3913, %v3914
  %v3916 = vsel %vm3141, %v2320, 0.0
  %v3917 = vadd.f32 %v3915, %v3916
  %v3918 = vsel %vm3141, %v2323, 0.0
  %v3919 = vadd.f32 %v3917, %v3918
  %v3920 = vsel %vm3141, %v2326, 0.0
  %v3921 = vadd.f32 %v3919, %v3920
  %v3922 = vsel %vm3141, %v2329, 0.0
  %v3923 = vadd.f32 %v3921, %v3922
  %v3924 = vsel %vm3141, %v2332, 0.0
  %v3925 = vadd.f32 %v3923, %v3924
  %v3926 = vsel %vm3141, %v2335, 0.0
  %v3927 = vadd.f32 %v3925, %v3926
  %v3928 = vsel %vm3141, %v2338, 0.0
  %v3929 = vadd.f32 %v3927, %v3928
  %v3930 = vsel %vm3141, %v2341, 0.0
  %v3931 = vadd.f32 %v3929, %v3930
  %v3932 = vsel %vm3141, %v2344, 0.0
  %v3933 = vadd.f32 %v3931, %v3932
  %v3934 = vsel %vm3141, %v2347, 0.0
  %v3935 = vadd.f32 %v3933, %v3934
  %v3936 = vsel %vm3141, %v2350, 0.0
  %v3937 = vadd.f32 %v3935, %v3936
  %v3938 = vsel %vm3141, %v2353, 0.0
  %v3939 = vadd.f32 %v3937, %v3938
  %v3940 = vsel %vm3141, %v2356, 0.0
  %v3941 = vadd.f32 %v3939, %v3940
  %v3942 = vsel %vm3141, %v2359, 0.0
  %v3943 = vadd.f32 %v3941, %v3942
  %v3944 = vsel %vm3141, %v2362, 0.0
  %v3945 = vadd.f32 %v3943, %v3944
  %v3946 = vsel %vm3141, %v2365, 0.0
  %v3947 = vadd.f32 %v3945, %v3946
  %v3948 = vsel %vm3141, %v2368, 0.0
  %v3949 = vadd.f32 %v3947, %v3948
  %v3950 = vsel %vm3141, %v2371, 0.0
  %v3951 = vadd.f32 %v3949, %v3950
  %v3952 = vsel %vm3141, %v2374, 0.0
  %v3953 = vadd.f32 %v3951, %v3952
  %v3954 = vsel %vm3141, %v2377, 0.0
  %v3955 = vadd.f32 %v3953, %v3954
  %v3956 = vsel %vm3141, %v2380, 0.0
  %v3957 = vadd.f32 %v3955, %v3956
  %v3958 = vsel %vm3141, %v2383, 0.0
  %v3959 = vadd.f32 %v3957, %v3958
  %v3960 = vsel %vm3141, %v2386, 0.0
  %v3961 = vadd.f32 %v3959, %v3960
  %v3962 = vsel %vm3141, %v2389, 0.0
  %v3963 = vadd.f32 %v3961, %v3962
  %v3964 = vsel %vm3141, %v2392, 0.0
  %v3965 = vadd.f32 %v3963, %v3964
  %v3966 = vsel %vm3141, %v2395, 0.0
  %v3967 = vadd.f32 %v3965, %v3966
  %v3968 = vsel %vm3141, %v2398, 0.0
  %v3969 = vadd.f32 %v3967, %v3968
  %v3970 = vsel %vm3141, %v2401, 0.0
  %v3971 = vadd.f32 %v3969, %v3970
  %v3972 = vsel %vm3141, %v2404, 0.0
  %v3973 = vadd.f32 %v3971, %v3972
  %v3974 = vsel %vm3141, %v2407, 0.0
  %v3975 = vadd.f32 %v3973, %v3974
  %v3976 = vsel %vm3141, %v2410, 0.0
  %v3977 = vadd.f32 %v3975, %v3976
  %v3978 = vsel %vm3141, %v2413, 0.0
  %v3979 = vadd.f32 %v3977, %v3978
  %v3980 = vsel %vm3141, %v2416, 0.0
  %v3981 = vadd.f32 %v3979, %v3980
  %v3982 = vsel %vm3141, %v2419, 0.0
  %v3983 = vadd.f32 %v3981, %v3982
  %v3984 = vsel %vm3141, %v2422, 0.0
  %v3985 = vadd.f32 %v3983, %v3984
  %v3986 = vsel %vm3141, %v2425, 0.0
  %v3987 = vadd.f32 %v3985, %v3986
  %v3988 = vsel %vm3141, %v2428, 0.0
  %v3989 = vadd.f32 %v3987, %v3988
  %v3990 = vsel %vm3141, %v2431, 0.0
  %v3991 = vadd.f32 %v3989, %v3990
  %v3992 = vsel %vm3141, %v2434, 0.0
  %v3993 = vadd.f32 %v3991, %v3992
  %v3994 = vsel %vm3141, %v2437, 0.0
  %v3995 = vadd.f32 %v3993, %v3994
  %v3996 = vsel %vm3141, %v2440, 0.0
  %v3997 = vadd.f32 %v3995, %v3996
  %v3998 = vsel %vm3141, %v2443, 0.0
  %v3999 = vadd.f32 %v3997, %v3998
  %v4000 = vsel %vm3141, %v2446, 0.0
  %v4001 = vadd.f32 %v3999, %v4000
  %v4002 = vsel %vm3141, %v2449, 0.0
  %v4003 = vadd.f32 %v4001, %v4002
  %v4004 = vsel %vm3141, %v2452, 0.0
  %v4005 = vadd.f32 %v4003, %v4004
  %v4006 = vsel %vm3141, %v2455, 0.0
  %v4007 = vadd.f32 %v4005, %v4006
  %v4008 = vsel %vm3141, %v2458, 0.0
  %v4009 = vadd.f32 %v4007, %v4008
  %v4010 = vsel %vm3141, %v2461, 0.0
  %v4011 = vadd.f32 %v4009, %v4010
  %v4012 = vsel %vm3141, %v2464, 0.0
  %v4013 = vadd.f32 %v4011, %v4012
  %v4014 = vsel %vm3141, %v2467, 0.0
  %v4015 = vadd.f32 %v4013, %v4014
  %v4016 = vsel %vm3141, %v2470, 0.0
  %v4017 = vadd.f32 %v4015, %v4016
  %v4018 = vsel %vm3141, %v2473, 0.0
  %v4019 = vadd.f32 %v4017, %v4018
  %v4020 = vsel %vm3141, %v2476, 0.0
  %v4021 = vadd.f32 %v4019, %v4020
  %v4022 = vsel %vm3141, %v2479, 0.0
  %v4023 = vadd.f32 %v4021, %v4022
  %v4024 = vsel %vm3141, %v2482, 0.0
  %v4025 = vadd.f32 %v4023, %v4024
  %v4026 = vsel %vm3141, %v2485, 0.0
  %v4027 = vadd.f32 %v4025, %v4026
  %v4028 = vsel %vm3141, %v2488, 0.0
  %v4029 = vadd.f32 %v4027, %v4028
  %v4030 = vsel %vm3141, %v2491, 0.0
  %v4031 = vadd.f32 %v4029, %v4030
  %v4032 = vsel %vm3141, %v2494, 0.0
  %v4033 = vadd.f32 %v4031, %v4032
  %v4034 = vsel %vm3141, %v2497, 0.0
  %v4035 = vadd.f32 %v4033, %v4034
  %v4036 = vsel %vm3141, %v2500, 0.0
  %v4037 = vadd.f32 %v4035, %v4036
  %v4038 = vsel %vm3141, %v2503, 0.0
  %v4039 = vadd.f32 %v4037, %v4038
  %v4040 = vsel %vm3141, %v2506, 0.0
  %v4041 = vadd.f32 %v4039, %v4040
  %v4042 = vsel %vm3141, %v2509, 0.0
  %v4043 = vadd.f32 %v4041, %v4042
  %v4044 = vsel %vm3141, %v2512, 0.0
  %v4045 = vadd.f32 %v4043, %v4044
  %v4046 = vsel %vm3141, %v2515, 0.0
  %v4047 = vadd.f32 %v4045, %v4046
  %v4048 = vsel %vm3141, %v2518, 0.0
  %v4049 = vadd.f32 %v4047, %v4048
  %v4050 = vsel %vm3141, %v2521, 0.0
  %v4051 = vadd.f32 %v4049, %v4050
  %v4052 = vsel %vm3141, %v2524, 0.0
  %v4053 = vadd.f32 %v4051, %v4052
  %v4054 = vsel %vm3141, %v2527, 0.0
  %v4055 = vadd.f32 %v4053, %v4054
  %v4056 = vsel %vm3141, %v2530, 0.0
  %v4057 = vadd.f32 %v4055, %v4056
  %v4058 = vsel %vm3141, %v2533, 0.0
  %v4059 = vadd.f32 %v4057, %v4058
  %v4060 = vsel %vm3141, %v2536, 0.0
  %v4061 = vadd.f32 %v4059, %v4060
  %v4062 = vsel %vm3141, %v2539, 0.0
  %v4063 = vadd.f32 %v4061, %v4062
  %v4064 = vsel %vm3141, %v2542, 0.0
  %v4065 = vadd.f32 %v4063, %v4064
  %v4066 = vsel %vm3141, %v2545, 0.0
  %v4067 = vadd.f32 %v4065, %v4066
  %v4068 = vsel %vm3141, %v2548, 0.0
  %v4069 = vadd.f32 %v4067, %v4068
  %v4070 = vsel %vm3141, %v2551, 0.0
  %v4071 = vadd.f32 %v4069, %v4070
  %v4072 = vsel %vm3141, %v2554, 0.0
  %v4073 = vadd.f32 %v4071, %v4072
  %v4074 = vsel %vm3141, %v2557, 0.0
  %v4075 = vadd.f32 %v4073, %v4074
  %v4076 = vsel %vm3141, %v2560, 0.0
  %v4077 = vadd.f32 %v4075, %v4076
  %v4078 = vsel %vm3141, %v2563, 0.0
  %v4079 = vadd.f32 %v4077, %v4078
  %v4080 = vsel %vm3141, %v2566, 0.0
  %v4081 = vadd.f32 %v4079, %v4080
  %v4082 = vsel %vm3141, %v2569, 0.0
  %v4083 = vadd.f32 %v4081, %v4082
  %v4084 = vsel %vm3141, %v2572, 0.0
  %v4085 = vadd.f32 %v4083, %v4084
  %v4086 = vsel %vm3141, %v2575, 0.0
  %v4087 = vadd.f32 %v4085, %v4086
  %v4088 = vsel %vm3141, %v2578, 0.0
  %v4089 = vadd.f32 %v4087, %v4088
  %v4090 = vsel %vm3141, %v2581, 0.0
  %v4091 = vadd.f32 %v4089, %v4090
  %v4092 = vsel %vm3141, %v2584, 0.0
  %v4093 = vadd.f32 %v4091, %v4092
  %v4094 = vsel %vm3141, %v2587, 0.0
  %v4095 = vadd.f32 %v4093, %v4094
  %v4096 = vsel %vm3141, %v2590, 0.0
  %v4097 = vadd.f32 %v4095, %v4096
  %v4098 = vsel %vm3141, %v2593, 0.0
  %v4099 = vadd.f32 %v4097, %v4098
  %v4100 = vsel %vm3141, %v2596, 0.0
  %v4101 = vadd.f32 %v4099, %v4100
  %v4102 = vsel %vm3141, %v2599, 0.0
  %v4103 = vadd.f32 %v4101, %v4102
  %v4104 = vsel %vm3141, %v2602, 0.0
  %v4105 = vadd.f32 %v4103, %v4104
  %v4106 = vsel %vm3141, %v2605, 0.0
  %v4107 = vadd.f32 %v4105, %v4106
  %v4108 = vsel %vm3141, %v2608, 0.0
  %v4109 = vadd.f32 %v4107, %v4108
  %v4110 = vsel %vm3141, %v2611, 0.0
  %v4111 = vadd.f32 %v4109, %v4110
  %v4112 = vsel %vm3141, %v2614, 0.0
  %v4113 = vadd.f32 %v4111, %v4112
  %v4114 = vsel %vm3141, %v2617, 0.0
  %v4115 = vadd.f32 %v4113, %v4114
  %v4116 = vsel %vm3141, %v2620, 0.0
  %v4117 = vadd.f32 %v4115, %v4116
  %v4118 = vsel %vm3141, %v2623, 0.0
  %v4119 = vadd.f32 %v4117, %v4118
  %v4120 = vsel %vm3141, %v2626, 0.0
  %v4121 = vadd.f32 %v4119, %v4120
  %v4122 = vsel %vm3141, %v2629, 0.0
  %v4123 = vadd.f32 %v4121, %v4122
  %v4124 = vsel %vm3141, %v2632, 0.0
  %v4125 = vadd.f32 %v4123, %v4124
  %v4126 = vsel %vm3141, %v2635, 0.0
  %v4127 = vadd.f32 %v4125, %v4126
  %v4128 = vsel %vm3141, %v2638, 0.0
  %v4129 = vadd.f32 %v4127, %v4128
  %v4130 = vsel %vm3141, %v2641, 0.0
  %v4131 = vadd.f32 %v4129, %v4130
  %v4132 = vsel %vm3141, %v2644, 0.0
  %v4133 = vadd.f32 %v4131, %v4132
  %v4134 = vsel %vm3141, %v2647, 0.0
  %v4135 = vadd.f32 %v4133, %v4134
  %v4136 = vsel %vm3141, %v2650, 0.0
  %v4137 = vadd.f32 %v4135, %v4136
  %v4138 = vsel %vm3141, %v2653, 0.0
  %v4139 = vadd.f32 %v4137, %v4138
  %v4140 = vsel %vm3141, %v2656, 0.0
  %v4141 = vadd.f32 %v4139, %v4140
  %v4142 = vsel %vm3141, %v2659, 0.0
  %v4143 = vadd.f32 %v4141, %v4142
  %v4144 = vsel %vm3141, %v2662, 0.0
  %v4145 = vadd.f32 %v4143, %v4144
  %v4146 = vsel %vm3141, %v2665, 0.0
  %v4147 = vadd.f32 %v4145, %v4146
  %v4148 = vsel %vm3141, %v2668, 0.0
  %v4149 = vadd.f32 %v4147, %v4148
  %v4150 = vsel %vm3141, %v2671, 0.0
  %v4151 = vadd.f32 %v4149, %v4150
  %v4152 = vsel %vm3141, %v2674, 0.0
  %v4153 = vadd.f32 %v4151, %v4152
  %v4154 = vsel %vm3141, %v2677, 0.0
  %v4155 = vadd.f32 %v4153, %v4154
  %v4156 = vsel %vm3141, %v2680, 0.0
  %v4157 = vadd.f32 %v4155, %v4156
  %v4158 = vsel %vm3141, %v2683, 0.0
  %v4159 = vadd.f32 %v4157, %v4158
  %v4160 = vsel %vm3141, %v2686, 0.0
  %v4161 = vadd.f32 %v4159, %v4160
  %v4162 = vsel %vm3141, %v2689, 0.0
  %v4163 = vadd.f32 %v4161, %v4162
  %v4164 = vsel %vm3141, %v2692, 0.0
  %v4165 = vadd.f32 %v4163, %v4164
  %v4166 = vsel %vm3141, %v2695, 0.0
  %v4167 = vadd.f32 %v4165, %v4166
  %v4168 = vsel %vm3141, %v2698, 0.0
  %v4169 = vadd.f32 %v4167, %v4168
  %v4170 = vsel %vm3141, %v2701, 0.0
  %v4171 = vadd.f32 %v4169, %v4170
  %v4172 = vsel %vm3141, %v2704, 0.0
  %v4173 = vadd.f32 %v4171, %v4172
  %v4174 = vsel %vm3141, %v2707, 0.0
  %v4175 = vadd.f32 %v4173, %v4174
  %v4176 = vsel %vm3141, %v2710, 0.0
  %v4177 = vadd.f32 %v4175, %v4176
  %v4178 = vsel %vm3141, %v2713, 0.0
  %v4179 = vadd.f32 %v4177, %v4178
  %v4180 = vsel %vm3141, %v2716, 0.0
  %v4181 = vadd.f32 %v4179, %v4180
  %v4182 = vsel %vm3141, %v2719, 0.0
  %v4183 = vadd.f32 %v4181, %v4182
  %v4184 = vsel %vm3141, %v2722, 0.0
  %v4185 = vadd.f32 %v4183, %v4184
  %v4186 = vsel %vm3141, %v2725, 0.0
  %v4187 = vadd.f32 %v4185, %v4186
  %v4188 = vsel %vm3141, %v2728, 0.0
  %v4189 = vadd.f32 %v4187, %v4188
  %v4190 = vsel %vm3141, %v2731, 0.0
  %v4191 = vadd.f32 %v4189, %v4190
  %v4192 = vsel %vm3141, %v2734, 0.0
  %v4193 = vadd.f32 %v4191, %v4192
  %v4194 = vsel %vm3141, %v2737, 0.0
  %v4195 = vadd.f32 %v4193, %v4194
  %v4196 = vsel %vm3141, %v2740, 0.0
  %v4197 = vadd.f32 %v4195, %v4196
  %v4198 = vsel %vm3141, %v2743, 0.0
  %v4199 = vadd.f32 %v4197, %v4198
  %v4200 = vsel %vm3141, %v2746, 0.0
  %v4201 = vadd.f32 %v4199, %v4200
  %v4202 = vsel %vm3141, %v2749, 0.0
  %v4203 = vadd.f32 %v4201, %v4202
  %v4204 = vsel %vm3141, %v2752, 0.0
  %v4205 = vadd.f32 %v4203, %v4204
  %v4206 = vsel %vm3141, %v2755, 0.0
  %v4207 = vadd.f32 %v4205, %v4206
  %v4208 = vsel %vm3141, %v2758, 0.0
  %v4209 = vadd.f32 %v4207, %v4208
  %v4210 = vsel %vm3141, %v2761, 0.0
  %v4211 = vadd.f32 %v4209, %v4210
  %v4212 = vsel %vm3141, %v2764, 0.0
  %v4213 = vadd.f32 %v4211, %v4212
  %v4214 = vsel %vm3141, %v2767, 0.0
  %v4215 = vadd.f32 %v4213, %v4214
  %v4216 = vsel %vm3141, %v2770, 0.0
  %v4217 = vadd.f32 %v4215, %v4216
  %v4218 = vsel %vm3141, %v2773, 0.0
  %v4219 = vadd.f32 %v4217, %v4218
  %v4220 = vsel %vm3141, %v2776, 0.0
  %v4221 = vadd.f32 %v4219, %v4220
  %v4222 = vsel %vm3141, %v2779, 0.0
  %v4223 = vadd.f32 %v4221, %v4222
  %v4224 = vsel %vm3141, %v2782, 0.0
  %v4225 = vadd.f32 %v4223, %v4224
  %v4226 = vsel %vm3141, %v2785, 0.0
  %v4227 = vadd.f32 %v4225, %v4226
  %v4228 = vsel %vm3141, %v2788, 0.0
  %v4229 = vadd.f32 %v4227, %v4228
  %v4230 = vsel %vm3141, %v2791, 0.0
  %v4231 = vadd.f32 %v4229, %v4230
  %v4232 = vsel %vm3141, %v2794, 0.0
  %v4233 = vadd.f32 %v4231, %v4232
  %v4234 = vsel %vm3141, %v2797, 0.0
  %v4235 = vadd.f32 %v4233, %v4234
  %v4236 = vsel %vm3141, %v2800, 0.0
  %v4237 = vadd.f32 %v4235, %v4236
  %v4238 = vsel %vm3141, %v2803, 0.0
  %v4239 = vadd.f32 %v4237, %v4238
  %v4240 = vsel %vm3141, %v2806, 0.0
  %v4241 = vadd.f32 %v4239, %v4240
  %v4242 = vsel %vm3141, %v2809, 0.0
  %v4243 = vadd.f32 %v4241, %v4242
  %v4244 = vsel %vm3141, %v2812, 0.0
  %v4245 = vadd.f32 %v4243, %v4244
  %v4246 = vsel %vm3141, %v2815, 0.0
  %v4247 = vadd.f32 %v4245, %v4246
  %v4248 = vsel %vm3141, %v2818, 0.0
  %v4249 = vadd.f32 %v4247, %v4248
  %v4250 = vsel %vm3141, %v2821, 0.0
  %v4251 = vadd.f32 %v4249, %v4250
  %v4252 = vsel %vm3141, %v2824, 0.0
  %v4253 = vadd.f32 %v4251, %v4252
  %v4254 = vsel %vm3141, %v2827, 0.0
  %v4255 = vadd.f32 %v4253, %v4254
  %v4256 = vsel %vm3141, %v2830, 0.0
  %v4257 = vadd.f32 %v4255, %v4256
  %v4258 = vsel %vm3141, %v2833, 0.0
  %v4259 = vadd.f32 %v4257, %v4258
  %v4260 = vsel %vm3141, %v2836, 0.0
  %v4261 = vadd.f32 %v4259, %v4260
  %v4262 = vsel %vm3141, %v2839, 0.0
  %v4263 = vadd.f32 %v4261, %v4262
  %v4264 = vsel %vm3141, %v2842, 0.0
  %v4265 = vadd.f32 %v4263, %v4264
  %v4266 = vsel %vm3141, %v2845, 0.0
  %v4267 = vadd.f32 %v4265, %v4266
  %v4268 = vsel %vm3141, %v2848, 0.0
  %v4269 = vadd.f32 %v4267, %v4268
  %v4270 = vsel %vm3141, %v2851, 0.0
  %v4271 = vadd.f32 %v4269, %v4270
  %v4272 = vsel %vm3141, %v2854, 0.0
  %v4273 = vadd.f32 %v4271, %v4272
  %v4274 = vsel %vm3141, %v2857, 0.0
  %v4275 = vadd.f32 %v4273, %v4274
  %v4276 = vsel %vm3141, %v2860, 0.0
  %v4277 = vadd.f32 %v4275, %v4276
  %v4278 = vsel %vm3141, %v2863, 0.0
  %v4279 = vadd.f32 %v4277, %v4278
  %v4280 = vsel %vm3141, %v2866, 0.0
  %v4281 = vadd.f32 %v4279, %v4280
  %v4282 = vsel %vm3141, %v2869, 0.0
  %v4283 = vadd.f32 %v4281, %v4282
  %v4284 = vsel %vm3141, %v2872, 0.0
  %v4285 = vadd.f32 %v4283, %v4284
  %v4286 = vsel %vm3141, %v2875, 0.0
  %v4287 = vadd.f32 %v4285, %v4286
  %v4288 = vsel %vm3141, %v2878, 0.0
  %v4289 = vadd.f32 %v4287, %v4288
  %v4290 = vsel %vm3141, %v2881, 0.0
  %v4291 = vadd.f32 %v4289, %v4290
  %v4292 = vsel %vm3141, %v2884, 0.0
  %v4293 = vadd.f32 %v4291, %v4292
  %v4294 = vsel %vm3141, %v2887, 0.0
  %v4295 = vadd.f32 %v4293, %v4294
  %v4296 = vsel %vm3141, %v2890, 0.0
  %v4297 = vadd.f32 %v4295, %v4296
  %v4298 = vsel %vm3141, %v2893, 0.0
  %v4299 = vadd.f32 %v4297, %v4298
  %v4300 = vsel %vm3141, %v2896, 0.0
  %v4301 = vadd.f32 %v4299, %v4300
  %v4302 = vsel %vm3141, %v2899, 0.0
  %v4303 = vadd.f32 %v4301, %v4302
  %v4304 = vsel %vm3141, %v2902, 0.0
  %v4305 = vadd.f32 %v4303, %v4304
  %v4306 = vsel %vm3141, %v2905, 0.0
  %v4307 = vadd.f32 %v4305, %v4306
  %v4308 = vsel %vm3141, %v2908, 0.0
  %v4309 = vadd.f32 %v4307, %v4308
  %v4310 = vsel %vm3141, %v2911, 0.0
  %v4311 = vadd.f32 %v4309, %v4310
  %v4312 = vsel %vm3141, %v2914, 0.0
  %v4313 = vadd.f32 %v4311, %v4312
  %v4314 = vsel %vm3141, %v2917, 0.0
  %v4315 = vadd.f32 %v4313, %v4314
  %v4316 = vsel %vm3141, %v2920, 0.0
  %v4317 = vadd.f32 %v4315, %v4316
  %v4318 = vsel %vm3141, %v2923, 0.0
  %v4319 = vadd.f32 %v4317, %v4318
  %v4320 = vsel %vm3141, %v2926, 0.0
  %v4321 = vadd.f32 %v4319, %v4320
  %v4322 = vsel %vm3141, %v2929, 0.0
  %v4323 = vadd.f32 %v4321, %v4322
  %v4324 = vsel %vm3141, %v2932, 0.0
  %v4325 = vadd.f32 %v4323, %v4324
  %v4326 = vsel %vm3141, %v2935, 0.0
  %v4327 = vadd.f32 %v4325, %v4326
  %v4328 = vsel %vm3141, %v2938, 0.0
  %v4329 = vadd.f32 %v4327, %v4328
  %v4330 = vsel %vm3141, %v2941, 0.0
  %v4331 = vadd.f32 %v4329, %v4330
  %v4332 = vsel %vm3141, %v2944, 0.0
  %v4333 = vadd.f32 %v4331, %v4332
  %v4334 = vsel %vm3141, %v2947, 0.0
  %v4335 = vadd.f32 %v4333, %v4334
  %v4336 = vsel %vm3141, %v2950, 0.0
  %v4337 = vadd.f32 %v4335, %v4336
  %v4338 = vsel %vm3141, %v2953, 0.0
  %v4339 = vadd.f32 %v4337, %v4338
  %v4340 = vsel %vm3141, %v2956, 0.0
  %v4341 = vadd.f32 %v4339, %v4340
  %v4342 = vsel %vm3141, %v2959, 0.0
  %v4343 = vadd.f32 %v4341, %v4342
  %v4344 = vsel %vm3141, %v2962, 0.0
  %v4345 = vadd.f32 %v4343, %v4344
  %v4346 = vsel %vm3141, %v2965, 0.0
  %v4347 = vadd.f32 %v4345, %v4346
  %v4348 = vsel %vm3141, %v2968, 0.0
  %v4349 = vadd.f32 %v4347, %v4348
  %v4350 = vsel %vm3141, %v2971, 0.0
  %v4351 = vadd.f32 %v4349, %v4350
  %v4352 = vsel %vm3141, %v2974, 0.0
  %v4353 = vadd.f32 %v4351, %v4352
  %v4354 = vsel %vm3141, %v2977, 0.0
  %v4355 = vadd.f32 %v4353, %v4354
  %v4356 = vsel %vm3141, %v2980, 0.0
  %v4357 = vadd.f32 %v4355, %v4356
  %v4358 = vsel %vm3141, %v2983, 0.0
  %v4359 = vadd.f32 %v4357, %v4358
  %v4360 = vsel %vm3141, %v2986, 0.0
  %v4361 = vadd.f32 %v4359, %v4360
  %v4362 = vsel %vm3141, %v2989, 0.0
  %v4363 = vadd.f32 %v4361, %v4362
  %v4364 = vsel %vm3141, %v2992, 0.0
  %v4365 = vadd.f32 %v4363, %v4364
  %v4366 = vsel %vm3141, %v2995, 0.0
  %v4367 = vadd.f32 %v4365, %v4366
  %v4368 = vsel %vm3141, %v2998, 0.0
  %v4369 = vadd.f32 %v4367, %v4368
  %v4370 = vsel %vm3141, %v3001, 0.0
  %v4371 = vadd.f32 %v4369, %v4370
  %v4372 = vsel %vm3141, %v3004, 0.0
  %v4373 = vadd.f32 %v4371, %v4372
  %v4374 = vsel %vm3141, %v3007, 0.0
  %v4375 = vadd.f32 %v4373, %v4374
  %v4376 = vsel %vm3141, %v3010, 0.0
  %v4377 = vadd.f32 %v4375, %v4376
  %v4378 = vsel %vm3141, %v3013, 0.0
  %v4379 = vadd.f32 %v4377, %v4378
  %v4380 = vsel %vm3141, %v3016, 0.0
  %v4381 = vadd.f32 %v4379, %v4380
  %v4382 = vsel %vm3141, %v3019, 0.0
  %v4383 = vadd.f32 %v4381, %v4382
  %v4384 = vsel %vm3141, %v3022, 0.0
  %v4385 = vadd.f32 %v4383, %v4384
  %v4386 = vsel %vm3141, %v3025, 0.0
  %v4387 = vadd.f32 %v4385, %v4386
  %v4388 = vsel %vm3141, %v3028, 0.0
  %v4389 = vadd.f32 %v4387, %v4388
  %v4390 = vsel %vm3141, %v3031, 0.0
  %v4391 = vadd.f32 %v4389, %v4390
  %v4392 = vsel %vm3141, %v3034, 0.0
  %v4393 = vadd.f32 %v4391, %v4392
  %v4394 = vsel %vm3141, %v3037, 0.0
  %v4395 = vadd.f32 %v4393, %v4394
  %v4396 = vsel %vm3141, %v3040, 0.0
  %v4397 = vadd.f32 %v4395, %v4396
  %v4398 = vsel %vm3141, %v3043, 0.0
  %v4399 = vadd.f32 %v4397, %v4398
  %v4400 = vsel %vm3141, %v3046, 0.0
  %v4401 = vadd.f32 %v4399, %v4400
  %v4402 = vsel %vm3141, %v3049, 0.0
  %v4403 = vadd.f32 %v4401, %v4402
  %v4404 = vsel %vm3141, %v3052, 0.0
  %v4405 = vadd.f32 %v4403, %v4404
  %v4406 = vsel %vm3141, %v3055, 0.0
  %v4407 = vadd.f32 %v4405, %v4406
  %v4408 = vsel %vm3141, %v3058, 0.0
  %v4409 = vadd.f32 %v4407, %v4408
  %v4410 = vsel %vm3141, %v3061, 0.0
  %v4411 = vadd.f32 %v4409, %v4410
  %v4412 = vsel %vm3141, %v3064, 0.0
  %v4413 = vadd.f32 %v4411, %v4412
  %v4414 = vsel %vm3141, %v3067, 0.0
  %v4415 = vadd.f32 %v4413, %v4414
  %v4416 = vsel %vm3141, %v3070, 0.0
  %v4417 = vadd.f32 %v4415, %v4416
  %v4418 = vsel %vm3141, %v3073, 0.0
  %v4419 = vadd.f32 %v4417, %v4418
  %v4420 = vsel %vm3141, %v3076, 0.0
  %v4421 = vadd.f32 %v4419, %v4420
  %v4422 = vsel %vm3141, %v3079, 0.0
  %v4423 = vadd.f32 %v4421, %v4422
  %v4424 = vsel %vm3141, %v3082, 0.0
  %v4425 = vadd.f32 %v4423, %v4424
  %v4426 = vsel %vm3141, %v3085, 0.0
  %v4427 = vadd.f32 %v4425, %v4426
  %v4428 = vsel %vm3141, %v3088, 0.0
  %v4429 = vadd.f32 %v4427, %v4428
  %v4430 = vsel %vm3141, %v3091, 0.0
  %v4431 = vadd.f32 %v4429, %v4430
  %v4432 = vsel %vm3141, %v3094, 0.0
  %v4433 = vadd.f32 %v4431, %v4432
  %v4434 = vsel %vm3141, %v3097, 0.0
  %v4435 = vadd.f32 %v4433, %v4434
  %v4436 = vsel %vm3141, %v3100, 0.0
  %v4437 = vadd.f32 %v4435, %v4436
  %v4438 = vsel %vm3141, %v3103, 0.0
  %v4439 = vadd.f32 %v4437, %v4438
  %v4440 = vsel %vm3141, %v3106, 0.0
  %v4441 = vadd.f32 %v4439, %v4440
  %v4442 = vsel %vm3141, %v3109, 0.0
  %v4443 = vadd.f32 %v4441, %v4442
  %v4444 = vsel %vm3141, %v3112, 0.0
  %v4445 = vadd.f32 %v4443, %v4444
  %v4446 = vsel %vm3141, %v3115, 0.0
  %v4447 = vadd.f32 %v4445, %v4446
  %v4448 = vsel %vm3141, %v3118, 0.0
  %v4449 = vadd.f32 %v4447, %v4448
  %v4450 = vsel %vm3141, %v3121, 0.0
  %v4451 = vadd.f32 %v4449, %v4450
  %v4452 = vsel %vm3141, %v3124, 0.0
  %v4453 = vadd.f32 %v4451, %v4452
  %v4454 = vsel %vm3141, %v3127, 0.0
  %v4455 = vadd.f32 %v4453, %v4454
  %v4456 = vsel %vm3141, %v3130, 0.0
  %v4457 = vadd.f32 %v4455, %v4456
  %v4458 = vsel %vm3141, %v3133, 0.0
  %v4459 = vadd.f32 %v4457, %v4458
  %v4460 = vsel %vm3141, %v3136, 0.0
  %v4461 = vadd.f32 %v4459, %v4460
  %v4462 = vsel %vm3141, %v3139, 0.0
  %v4463 = vadd.f32 %v4461, %v4462
  %v4464 = vrot.slane %v4463, 4
  %v4465 = vadd.f32 %v4463, %v4464
  %v4466 = vrot.slane %v4465, 2
  %v4467 = vadd.f32 %v4465, %v4466
  %v4468 = vrot.slane %v4467, 1
  %v4469 = vadd.f32 %v4467, %v4468
  %v4470 = vmul.f32 %v4469, 0.00028344672
  %v4471 = vsub.f32 %v1819, %v4470
  %v4472 = vsub.f32 %v1822, %v4470
  %v4473 = vsub.f32 %v1825, %v4470
  %v4474 = vsub.f32 %v1828, %v4470
  %v4475 = vsub.f32 %v1831, %v4470
  %v4476 = vsub.f32 %v1834, %v4470
  %v4477 = vsub.f32 %v1837, %v4470
  %v4478 = vsub.f32 %v1840, %v4470
  %v4479 = vsub.f32 %v1843, %v4470
  %v4480 = vsub.f32 %v1846, %v4470
  %v4481 = vsub.f32 %v1849, %v4470
  %v4482 = vsub.f32 %v1852, %v4470
  %v4483 = vsub.f32 %v1855, %v4470
  %v4484 = vsub.f32 %v1858, %v4470
  %v4485 = vsub.f32 %v1861, %v4470
  %v4486 = vsub.f32 %v1864, %v4470
  %v4487 = vsub.f32 %v1867, %v4470
  %v4488 = vsub.f32 %v1870, %v4470
  %v4489 = vsub.f32 %v1873, %v4470
  %v4490 = vsub.f32 %v1876, %v4470
  %v4491 = vsub.f32 %v1879, %v4470
  %v4492 = vsub.f32 %v1882, %v4470
  %v4493 = vsub.f32 %v1885, %v4470
  %v4494 = vsub.f32 %v1888, %v4470
  %v4495 = vsub.f32 %v1891, %v4470
  %v4496 = vsub.f32 %v1894, %v4470
  %v4497 = vsub.f32 %v1897, %v4470
  %v4498 = vsub.f32 %v1900, %v4470
  %v4499 = vsub.f32 %v1903, %v4470
  %v4500 = vsub.f32 %v1906, %v4470
  %v4501 = vsub.f32 %v1909, %v4470
  %v4502 = vsub.f32 %v1912, %v4470
  %v4503 = vsub.f32 %v1915, %v4470
  %v4504 = vsub.f32 %v1918, %v4470
  %v4505 = vsub.f32 %v1921, %v4470
  %v4506 = vsub.f32 %v1924, %v4470
  %v4507 = vsub.f32 %v1927, %v4470
  %v4508 = vsub.f32 %v1930, %v4470
  %v4509 = vsub.f32 %v1933, %v4470
  %v4510 = vsub.f32 %v1936, %v4470
  %v4511 = vsub.f32 %v1939, %v4470
  %v4512 = vsub.f32 %v1942, %v4470
  %v4513 = vsub.f32 %v1945, %v4470
  %v4514 = vsub.f32 %v1948, %v4470
  %v4515 = vsub.f32 %v1951, %v4470
  %v4516 = vsub.f32 %v1954, %v4470
  %v4517 = vsub.f32 %v1957, %v4470
  %v4518 = vsub.f32 %v1960, %v4470
  %v4519 = vsub.f32 %v1963, %v4470
  %v4520 = vsub.f32 %v1966, %v4470
  %v4521 = vsub.f32 %v1969, %v4470
  %v4522 = vsub.f32 %v1972, %v4470
  %v4523 = vsub.f32 %v1975, %v4470
  %v4524 = vsub.f32 %v1978, %v4470
  %v4525 = vsub.f32 %v1981, %v4470
  %v4526 = vsub.f32 %v1984, %v4470
  %v4527 = vsub.f32 %v1987, %v4470
  %v4528 = vsub.f32 %v1990, %v4470
  %v4529 = vsub.f32 %v1993, %v4470
  %v4530 = vsub.f32 %v1996, %v4470
  %v4531 = vsub.f32 %v1999, %v4470
  %v4532 = vsub.f32 %v2002, %v4470
  %v4533 = vsub.f32 %v2005, %v4470
  %v4534 = vsub.f32 %v2008, %v4470
  %v4535 = vsub.f32 %v2011, %v4470
  %v4536 = vsub.f32 %v2014, %v4470
  %v4537 = vsub.f32 %v2017, %v4470
  %v4538 = vsub.f32 %v2020, %v4470
  %v4539 = vsub.f32 %v2023, %v4470
  %v4540 = vsub.f32 %v2026, %v4470
  %v4541 = vsub.f32 %v2029, %v4470
  %v4542 = vsub.f32 %v2032, %v4470
  %v4543 = vsub.f32 %v2035, %v4470
  %v4544 = vsub.f32 %v2038, %v4470
  %v4545 = vsub.f32 %v2041, %v4470
  %v4546 = vsub.f32 %v2044, %v4470
  %v4547 = vsub.f32 %v2047, %v4470
  %v4548 = vsub.f32 %v2050, %v4470
  %v4549 = vsub.f32 %v2053, %v4470
  %v4550 = vsub.f32 %v2056, %v4470
  %v4551 = vsub.f32 %v2059, %v4470
  %v4552 = vsub.f32 %v2062, %v4470
  %v4553 = vsub.f32 %v2065, %v4470
  %v4554 = vsub.f32 %v2068, %v4470
  %v4555 = vsub.f32 %v2071, %v4470
  %v4556 = vsub.f32 %v2074, %v4470
  %v4557 = vsub.f32 %v2077, %v4470
  %v4558 = vsub.f32 %v2080, %v4470
  %v4559 = vsub.f32 %v2083, %v4470
  %v4560 = vsub.f32 %v2086, %v4470
  %v4561 = vsub.f32 %v2089, %v4470
  %v4562 = vsub.f32 %v2092, %v4470
  %v4563 = vsub.f32 %v2095, %v4470
  %v4564 = vsub.f32 %v2098, %v4470
  %v4565 = vsub.f32 %v2101, %v4470
  %v4566 = vsub.f32 %v2104, %v4470
  %v4567 = vsub.f32 %v2107, %v4470
  %v4568 = vsub.f32 %v2110, %v4470
  %v4569 = vsub.f32 %v2113, %v4470
  %v4570 = vsub.f32 %v2116, %v4470
  %v4571 = vsub.f32 %v2119, %v4470
  %v4572 = vsub.f32 %v2122, %v4470
  %v4573 = vsub.f32 %v2125, %v4470
  %v4574 = vsub.f32 %v2128, %v4470
  %v4575 = vsub.f32 %v2131, %v4470
  %v4576 = vsub.f32 %v2134, %v4470
  %v4577 = vsub.f32 %v2137, %v4470
  %v4578 = vsub.f32 %v2140, %v4470
  %v4579 = vsub.f32 %v2143, %v4470
  %v4580 = vsub.f32 %v2146, %v4470
  %v4581 = vsub.f32 %v2149, %v4470
  %v4582 = vsub.f32 %v2152, %v4470
  %v4583 = vsub.f32 %v2155, %v4470
  %v4584 = vsub.f32 %v2158, %v4470
  %v4585 = vsub.f32 %v2161, %v4470
  %v4586 = vsub.f32 %v2164, %v4470
  %v4587 = vsub.f32 %v2167, %v4470
  %v4588 = vsub.f32 %v2170, %v4470
  %v4589 = vsub.f32 %v2173, %v4470
  %v4590 = vsub.f32 %v2176, %v4470
  %v4591 = vsub.f32 %v2179, %v4470
  %v4592 = vsub.f32 %v2182, %v4470
  %v4593 = vsub.f32 %v2185, %v4470
  %v4594 = vsub.f32 %v2188, %v4470
  %v4595 = vsub.f32 %v2191, %v4470
  %v4596 = vsub.f32 %v2194, %v4470
  %v4597 = vsub.f32 %v2197, %v4470
  %v4598 = vsub.f32 %v2200, %v4470
  %v4599 = vsub.f32 %v2203, %v4470
  %v4600 = vsub.f32 %v2206, %v4470
  %v4601 = vsub.f32 %v2209, %v4470
  %v4602 = vsub.f32 %v2212, %v4470
  %v4603 = vsub.f32 %v2215, %v4470
  %v4604 = vsub.f32 %v2218, %v4470
  %v4605 = vsub.f32 %v2221, %v4470
  %v4606 = vsub.f32 %v2224, %v4470
  %v4607 = vsub.f32 %v2227, %v4470
  %v4608 = vsub.f32 %v2230, %v4470
  %v4609 = vsub.f32 %v2233, %v4470
  %v4610 = vsub.f32 %v2236, %v4470
  %v4611 = vsub.f32 %v2239, %v4470
  %v4612 = vsub.f32 %v2242, %v4470
  %v4613 = vsub.f32 %v2245, %v4470
  %v4614 = vsub.f32 %v2248, %v4470
  %v4615 = vsub.f32 %v2251, %v4470
  %v4616 = vsub.f32 %v2254, %v4470
  %v4617 = vsub.f32 %v2257, %v4470
  %v4618 = vsub.f32 %v2260, %v4470
  %v4619 = vsub.f32 %v2263, %v4470
  %v4620 = vsub.f32 %v2266, %v4470
  %v4621 = vsub.f32 %v2269, %v4470
  %v4622 = vsub.f32 %v2272, %v4470
  %v4623 = vsub.f32 %v2275, %v4470
  %v4624 = vsub.f32 %v2278, %v4470
  %v4625 = vsub.f32 %v2281, %v4470
  %v4626 = vsub.f32 %v2284, %v4470
  %v4627 = vsub.f32 %v2287, %v4470
  %v4628 = vsub.f32 %v2290, %v4470
  %v4629 = vsub.f32 %v2293, %v4470
  %v4630 = vsub.f32 %v2296, %v4470
  %v4631 = vsub.f32 %v2299, %v4470
  %v4632 = vsub.f32 %v2302, %v4470
  %v4633 = vsub.f32 %v2305, %v4470
  %v4634 = vsub.f32 %v2308, %v4470
  %v4635 = vsub.f32 %v2311, %v4470
  %v4636 = vsub.f32 %v2314, %v4470
  %v4637 = vsub.f32 %v2317, %v4470
  %v4638 = vsub.f32 %v2320, %v4470
  %v4639 = vsub.f32 %v2323, %v4470
  %v4640 = vsub.f32 %v2326, %v4470
  %v4641 = vsub.f32 %v2329, %v4470
  %v4642 = vsub.f32 %v2332, %v4470
  %v4643 = vsub.f32 %v2335, %v4470
  %v4644 = vsub.f32 %v2338, %v4470
  %v4645 = vsub.f32 %v2341, %v4470
  %v4646 = vsub.f32 %v2344, %v4470
  %v4647 = vsub.f32 %v2347, %v4470
  %v4648 = vsub.f32 %v2350, %v4470
  %v4649 = vsub.f32 %v2353, %v4470
  %v4650 = vsub.f32 %v2356, %v4470
  %v4651 = vsub.f32 %v2359, %v4470
  %v4652 = vsub.f32 %v2362, %v4470
  %v4653 = vsub.f32 %v2365, %v4470
  %v4654 = vsub.f32 %v2368, %v4470
  %v4655 = vsub.f32 %v2371, %v4470
  %v4656 = vsub.f32 %v2374, %v4470
  %v4657 = vsub.f32 %v2377, %v4470
  %v4658 = vsub.f32 %v2380, %v4470
  %v4659 = vsub.f32 %v2383, %v4470
  %v4660 = vsub.f32 %v2386, %v4470
  %v4661 = vsub.f32 %v2389, %v4470
  %v4662 = vsub.f32 %v2392, %v4470
  %v4663 = vsub.f32 %v2395, %v4470
  %v4664 = vsub.f32 %v2398, %v4470
  %v4665 = vsub.f32 %v2401, %v4470
  %v4666 = vsub.f32 %v2404, %v4470
  %v4667 = vsub.f32 %v2407, %v4470
  %v4668 = vsub.f32 %v2410, %v4470
  %v4669 = vsub.f32 %v2413, %v4470
  %v4670 = vsub.f32 %v2416, %v4470
  %v4671 = vsub.f32 %v2419, %v4470
  %v4672 = vsub.f32 %v2422, %v4470
  %v4673 = vsub.f32 %v2425, %v4470
  %v4674 = vsub.f32 %v2428, %v4470
  %v4675 = vsub.f32 %v2431, %v4470
  %v4676 = vsub.f32 %v2434, %v4470
  %v4677 = vsub.f32 %v2437, %v4470
  %v4678 = vsub.f32 %v2440, %v4470
  %v4679 = vsub.f32 %v2443, %v4470
  %v4680 = vsub.f32 %v2446, %v4470
  %v4681 = vsub.f32 %v2449, %v4470
  %v4682 = vsub.f32 %v2452, %v4470
  %v4683 = vsub.f32 %v2455, %v4470
  %v4684 = vsub.f32 %v2458, %v4470
  %v4685 = vsub.f32 %v2461, %v4470
  %v4686 = vsub.f32 %v2464, %v4470
  %v4687 = vsub.f32 %v2467, %v4470
  %v4688 = vsub.f32 %v2470, %v4470
  %v4689 = vsub.f32 %v2473, %v4470
  %v4690 = vsub.f32 %v2476, %v4470
  %v4691 = vsub.f32 %v2479, %v4470
  %v4692 = vsub.f32 %v2482, %v4470
  %v4693 = vsub.f32 %v2485, %v4470
  %v4694 = vsub.f32 %v2488, %v4470
  %v4695 = vsub.f32 %v2491, %v4470
  %v4696 = vsub.f32 %v2494, %v4470
  %v4697 = vsub.f32 %v2497, %v4470
  %v4698 = vsub.f32 %v2500, %v4470
  %v4699 = vsub.f32 %v2503, %v4470
  %v4700 = vsub.f32 %v2506, %v4470
  %v4701 = vsub.f32 %v2509, %v4470
  %v4702 = vsub.f32 %v2512, %v4470
  %v4703 = vsub.f32 %v2515, %v4470
  %v4704 = vsub.f32 %v2518, %v4470
  %v4705 = vsub.f32 %v2521, %v4470
  %v4706 = vsub.f32 %v2524, %v4470
  %v4707 = vsub.f32 %v2527, %v4470
  %v4708 = vsub.f32 %v2530, %v4470
  %v4709 = vsub.f32 %v2533, %v4470
  %v4710 = vsub.f32 %v2536, %v4470
  %v4711 = vsub.f32 %v2539, %v4470
  %v4712 = vsub.f32 %v2542, %v4470
  %v4713 = vsub.f32 %v2545, %v4470
  %v4714 = vsub.f32 %v2548, %v4470
  %v4715 = vsub.f32 %v2551, %v4470
  %v4716 = vsub.f32 %v2554, %v4470
  %v4717 = vsub.f32 %v2557, %v4470
  %v4718 = vsub.f32 %v2560, %v4470
  %v4719 = vsub.f32 %v2563, %v4470
  %v4720 = vsub.f32 %v2566, %v4470
  %v4721 = vsub.f32 %v2569, %v4470
  %v4722 = vsub.f32 %v2572, %v4470
  %v4723 = vsub.f32 %v2575, %v4470
  %v4724 = vsub.f32 %v2578, %v4470
  %v4725 = vsub.f32 %v2581, %v4470
  %v4726 = vsub.f32 %v2584, %v4470
  %v4727 = vsub.f32 %v2587, %v4470
  %v4728 = vsub.f32 %v2590, %v4470
  %v4729 = vsub.f32 %v2593, %v4470
  %v4730 = vsub.f32 %v2596, %v4470
  %v4731 = vsub.f32 %v2599, %v4470
  %v4732 = vsub.f32 %v2602, %v4470
  %v4733 = vsub.f32 %v2605, %v4470
  %v4734 = vsub.f32 %v2608, %v4470
  %v4735 = vsub.f32 %v2611, %v4470
  %v4736 = vsub.f32 %v2614, %v4470
  %v4737 = vsub.f32 %v2617, %v4470
  %v4738 = vsub.f32 %v2620, %v4470
  %v4739 = vsub.f32 %v2623, %v4470
  %v4740 = vsub.f32 %v2626, %v4470
  %v4741 = vsub.f32 %v2629, %v4470
  %v4742 = vsub.f32 %v2632, %v4470
  %v4743 = vsub.f32 %v2635, %v4470
  %v4744 = vsub.f32 %v2638, %v4470
  %v4745 = vsub.f32 %v2641, %v4470
  %v4746 = vsub.f32 %v2644, %v4470
  %v4747 = vsub.f32 %v2647, %v4470
  %v4748 = vsub.f32 %v2650, %v4470
  %v4749 = vsub.f32 %v2653, %v4470
  %v4750 = vsub.f32 %v2656, %v4470
  %v4751 = vsub.f32 %v2659, %v4470
  %v4752 = vsub.f32 %v2662, %v4470
  %v4753 = vsub.f32 %v2665, %v4470
  %v4754 = vsub.f32 %v2668, %v4470
  %v4755 = vsub.f32 %v2671, %v4470
  %v4756 = vsub.f32 %v2674, %v4470
  %v4757 = vsub.f32 %v2677, %v4470
  %v4758 = vsub.f32 %v2680, %v4470
  %v4759 = vsub.f32 %v2683, %v4470
  %v4760 = vsub.f32 %v2686, %v4470
  %v4761 = vsub.f32 %v2689, %v4470
  %v4762 = vsub.f32 %v2692, %v4470
  %v4763 = vsub.f32 %v2695, %v4470
  %v4764 = vsub.f32 %v2698, %v4470
  %v4765 = vsub.f32 %v2701, %v4470
  %v4766 = vsub.f32 %v2704, %v4470
  %v4767 = vsub.f32 %v2707, %v4470
  %v4768 = vsub.f32 %v2710, %v4470
  %v4769 = vsub.f32 %v2713, %v4470
  %v4770 = vsub.f32 %v2716, %v4470
  %v4771 = vsub.f32 %v2719, %v4470
  %v4772 = vsub.f32 %v2722, %v4470
  %v4773 = vsub.f32 %v2725, %v4470
  %v4774 = vsub.f32 %v2728, %v4470
  %v4775 = vsub.f32 %v2731, %v4470
  %v4776 = vsub.f32 %v2734, %v4470
  %v4777 = vsub.f32 %v2737, %v4470
  %v4778 = vsub.f32 %v2740, %v4470
  %v4779 = vsub.f32 %v2743, %v4470
  %v4780 = vsub.f32 %v2746, %v4470
  %v4781 = vsub.f32 %v2749, %v4470
  %v4782 = vsub.f32 %v2752, %v4470
  %v4783 = vsub.f32 %v2755, %v4470
  %v4784 = vsub.f32 %v2758, %v4470
  %v4785 = vsub.f32 %v2761, %v4470
  %v4786 = vsub.f32 %v2764, %v4470
  %v4787 = vsub.f32 %v2767, %v4470
  %v4788 = vsub.f32 %v2770, %v4470
  %v4789 = vsub.f32 %v2773, %v4470
  %v4790 = vsub.f32 %v2776, %v4470
  %v4791 = vsub.f32 %v2779, %v4470
  %v4792 = vsub.f32 %v2782, %v4470
  %v4793 = vsub.f32 %v2785, %v4470
  %v4794 = vsub.f32 %v2788, %v4470
  %v4795 = vsub.f32 %v2791, %v4470
  %v4796 = vsub.f32 %v2794, %v4470
  %v4797 = vsub.f32 %v2797, %v4470
  %v4798 = vsub.f32 %v2800, %v4470
  %v4799 = vsub.f32 %v2803, %v4470
  %v4800 = vsub.f32 %v2806, %v4470
  %v4801 = vsub.f32 %v2809, %v4470
  %v4802 = vsub.f32 %v2812, %v4470
  %v4803 = vsub.f32 %v2815, %v4470
  %v4804 = vsub.f32 %v2818, %v4470
  %v4805 = vsub.f32 %v2821, %v4470
  %v4806 = vsub.f32 %v2824, %v4470
  %v4807 = vsub.f32 %v2827, %v4470
  %v4808 = vsub.f32 %v2830, %v4470
  %v4809 = vsub.f32 %v2833, %v4470
  %v4810 = vsub.f32 %v2836, %v4470
  %v4811 = vsub.f32 %v2839, %v4470
  %v4812 = vsub.f32 %v2842, %v4470
  %v4813 = vsub.f32 %v2845, %v4470
  %v4814 = vsub.f32 %v2848, %v4470
  %v4815 = vsub.f32 %v2851, %v4470
  %v4816 = vsub.f32 %v2854, %v4470
  %v4817 = vsub.f32 %v2857, %v4470
  %v4818 = vsub.f32 %v2860, %v4470
  %v4819 = vsub.f32 %v2863, %v4470
  %v4820 = vsub.f32 %v2866, %v4470
  %v4821 = vsub.f32 %v2869, %v4470
  %v4822 = vsub.f32 %v2872, %v4470
  %v4823 = vsub.f32 %v2875, %v4470
  %v4824 = vsub.f32 %v2878, %v4470
  %v4825 = vsub.f32 %v2881, %v4470
  %v4826 = vsub.f32 %v2884, %v4470
  %v4827 = vsub.f32 %v2887, %v4470
  %v4828 = vsub.f32 %v2890, %v4470
  %v4829 = vsub.f32 %v2893, %v4470
  %v4830 = vsub.f32 %v2896, %v4470
  %v4831 = vsub.f32 %v2899, %v4470
  %v4832 = vsub.f32 %v2902, %v4470
  %v4833 = vsub.f32 %v2905, %v4470
  %v4834 = vsub.f32 %v2908, %v4470
  %v4835 = vsub.f32 %v2911, %v4470
  %v4836 = vsub.f32 %v2914, %v4470
  %v4837 = vsub.f32 %v2917, %v4470
  %v4838 = vsub.f32 %v2920, %v4470
  %v4839 = vsub.f32 %v2923, %v4470
  %v4840 = vsub.f32 %v2926, %v4470
  %v4841 = vsub.f32 %v2929, %v4470
  %v4842 = vsub.f32 %v2932, %v4470
  %v4843 = vsub.f32 %v2935, %v4470
  %v4844 = vsub.f32 %v2938, %v4470
  %v4845 = vsub.f32 %v2941, %v4470
  %v4846 = vsub.f32 %v2944, %v4470
  %v4847 = vsub.f32 %v2947, %v4470
  %v4848 = vsub.f32 %v2950, %v4470
  %v4849 = vsub.f32 %v2953, %v4470
  %v4850 = vsub.f32 %v2956, %v4470
  %v4851 = vsub.f32 %v2959, %v4470
  %v4852 = vsub.f32 %v2962, %v4470
  %v4853 = vsub.f32 %v2965, %v4470
  %v4854 = vsub.f32 %v2968, %v4470
  %v4855 = vsub.f32 %v2971, %v4470
  %v4856 = vsub.f32 %v2974, %v4470
  %v4857 = vsub.f32 %v2977, %v4470
  %v4858 = vsub.f32 %v2980, %v4470
  %v4859 = vsub.f32 %v2983, %v4470
  %v4860 = vsub.f32 %v2986, %v4470
  %v4861 = vsub.f32 %v2989, %v4470
  %v4862 = vsub.f32 %v2992, %v4470
  %v4863 = vsub.f32 %v2995, %v4470
  %v4864 = vsub.f32 %v2998, %v4470
  %v4865 = vsub.f32 %v3001, %v4470
  %v4866 = vsub.f32 %v3004, %v4470
  %v4867 = vsub.f32 %v3007, %v4470
  %v4868 = vsub.f32 %v3010, %v4470
  %v4869 = vsub.f32 %v3013, %v4470
  %v4870 = vsub.f32 %v3016, %v4470
  %v4871 = vsub.f32 %v3019, %v4470
  %v4872 = vsub.f32 %v3022, %v4470
  %v4873 = vsub.f32 %v3025, %v4470
  %v4874 = vsub.f32 %v3028, %v4470
  %v4875 = vsub.f32 %v3031, %v4470
  %v4876 = vsub.f32 %v3034, %v4470
  %v4877 = vsub.f32 %v3037, %v4470
  %v4878 = vsub.f32 %v3040, %v4470
  %v4879 = vsub.f32 %v3043, %v4470
  %v4880 = vsub.f32 %v3046, %v4470
  %v4881 = vsub.f32 %v3049, %v4470
  %v4882 = vsub.f32 %v3052, %v4470
  %v4883 = vsub.f32 %v3055, %v4470
  %v4884 = vsub.f32 %v3058, %v4470
  %v4885 = vsub.f32 %v3061, %v4470
  %v4886 = vsub.f32 %v3064, %v4470
  %v4887 = vsub.f32 %v3067, %v4470
  %v4888 = vsub.f32 %v3070, %v4470
  %v4889 = vsub.f32 %v3073, %v4470
  %v4890 = vsub.f32 %v3076, %v4470
  %v4891 = vsub.f32 %v3079, %v4470
  %v4892 = vsub.f32 %v3082, %v4470
  %v4893 = vsub.f32 %v3085, %v4470
  %v4894 = vsub.f32 %v3088, %v4470
  %v4895 = vsub.f32 %v3091, %v4470
  %v4896 = vsub.f32 %v3094, %v4470
  %v4897 = vsub.f32 %v3097, %v4470
  %v4898 = vsub.f32 %v3100, %v4470
  %v4899 = vsub.f32 %v3103, %v4470
  %v4900 = vsub.f32 %v3106, %v4470
  %v4901 = vsub.f32 %v3109, %v4470
  %v4902 = vsub.f32 %v3112, %v4470
  %v4903 = vsub.f32 %v3115, %v4470
  %v4904 = vsub.f32 %v3118, %v4470
  %v4905 = vsub.f32 %v3121, %v4470
  %v4906 = vsub.f32 %v3124, %v4470
  %v4907 = vsub.f32 %v3127, %v4470
  %v4908 = vsub.f32 %v3130, %v4470
  %v4909 = vsub.f32 %v3133, %v4470
  %v4910 = vsub.f32 %v3136, %v4470
  %v4911 = vsub.f32 %v3139, %v4470
  %v4912 = vmul.f32 %v4471, %v4471
  %v4913 = vmul.f32 %v4472, %v4472
  %v4914 = vmul.f32 %v4473, %v4473
  %v4915 = vmul.f32 %v4474, %v4474
  %v4916 = vmul.f32 %v4475, %v4475
  %v4917 = vmul.f32 %v4476, %v4476
  %v4918 = vmul.f32 %v4477, %v4477
  %v4919 = vmul.f32 %v4478, %v4478
  %v4920 = vmul.f32 %v4479, %v4479
  %v4921 = vmul.f32 %v4480, %v4480
  %v4922 = vmul.f32 %v4481, %v4481
  %v4923 = vmul.f32 %v4482, %v4482
  %v4924 = vmul.f32 %v4483, %v4483
  %v4925 = vmul.f32 %v4484, %v4484
  %v4926 = vmul.f32 %v4485, %v4485
  %v4927 = vmul.f32 %v4486, %v4486
  %v4928 = vmul.f32 %v4487, %v4487
  %v4929 = vmul.f32 %v4488, %v4488
  %v4930 = vmul.f32 %v4489, %v4489
  %v4931 = vmul.f32 %v4490, %v4490
  %v4932 = vmul.f32 %v4491, %v4491
  %v4933 = vmul.f32 %v4492, %v4492
  %v4934 = vmul.f32 %v4493, %v4493
  %v4935 = vmul.f32 %v4494, %v4494
  %v4936 = vmul.f32 %v4495, %v4495
  %v4937 = vmul.f32 %v4496, %v4496
  %v4938 = vmul.f32 %v4497, %v4497
  %v4939 = vmul.f32 %v4498, %v4498
  %v4940 = vmul.f32 %v4499, %v4499
  %v4941 = vmul.f32 %v4500, %v4500
  %v4942 = vmul.f32 %v4501, %v4501
  %v4943 = vmul.f32 %v4502, %v4502
  %v4944 = vmul.f32 %v4503, %v4503
  %v4945 = vmul.f32 %v4504, %v4504
  %v4946 = vmul.f32 %v4505, %v4505
  %v4947 = vmul.f32 %v4506, %v4506
  %v4948 = vmul.f32 %v4507, %v4507
  %v4949 = vmul.f32 %v4508, %v4508
  %v4950 = vmul.f32 %v4509, %v4509
  %v4951 = vmul.f32 %v4510, %v4510
  %v4952 = vmul.f32 %v4511, %v4511
  %v4953 = vmul.f32 %v4512, %v4512
  %v4954 = vmul.f32 %v4513, %v4513
  %v4955 = vmul.f32 %v4514, %v4514
  %v4956 = vmul.f32 %v4515, %v4515
  %v4957 = vmul.f32 %v4516, %v4516
  %v4958 = vmul.f32 %v4517, %v4517
  %v4959 = vmul.f32 %v4518, %v4518
  %v4960 = vmul.f32 %v4519, %v4519
  %v4961 = vmul.f32 %v4520, %v4520
  %v4962 = vmul.f32 %v4521, %v4521
  %v4963 = vmul.f32 %v4522, %v4522
  %v4964 = vmul.f32 %v4523, %v4523
  %v4965 = vmul.f32 %v4524, %v4524
  %v4966 = vmul.f32 %v4525, %v4525
  %v4967 = vmul.f32 %v4526, %v4526
  %v4968 = vmul.f32 %v4527, %v4527
  %v4969 = vmul.f32 %v4528, %v4528
  %v4970 = vmul.f32 %v4529, %v4529
  %v4971 = vmul.f32 %v4530, %v4530
  %v4972 = vmul.f32 %v4531, %v4531
  %v4973 = vmul.f32 %v4532, %v4532
  %v4974 = vmul.f32 %v4533, %v4533
  %v4975 = vmul.f32 %v4534, %v4534
  %v4976 = vmul.f32 %v4535, %v4535
  %v4977 = vmul.f32 %v4536, %v4536
  %v4978 = vmul.f32 %v4537, %v4537
  %v4979 = vmul.f32 %v4538, %v4538
  %v4980 = vmul.f32 %v4539, %v4539
  %v4981 = vmul.f32 %v4540, %v4540
  %v4982 = vmul.f32 %v4541, %v4541
  %v4983 = vmul.f32 %v4542, %v4542
  %v4984 = vmul.f32 %v4543, %v4543
  %v4985 = vmul.f32 %v4544, %v4544
  %v4986 = vmul.f32 %v4545, %v4545
  %v4987 = vmul.f32 %v4546, %v4546
  %v4988 = vmul.f32 %v4547, %v4547
  %v4989 = vmul.f32 %v4548, %v4548
  %v4990 = vmul.f32 %v4549, %v4549
  %v4991 = vmul.f32 %v4550, %v4550
  %v4992 = vmul.f32 %v4551, %v4551
  %v4993 = vmul.f32 %v4552, %v4552
  %v4994 = vmul.f32 %v4553, %v4553
  %v4995 = vmul.f32 %v4554, %v4554
  %v4996 = vmul.f32 %v4555, %v4555
  %v4997 = vmul.f32 %v4556, %v4556
  %v4998 = vmul.f32 %v4557, %v4557
  %v4999 = vmul.f32 %v4558, %v4558
  %v5000 = vmul.f32 %v4559, %v4559
  %v5001 = vmul.f32 %v4560, %v4560
  %v5002 = vmul.f32 %v4561, %v4561
  %v5003 = vmul.f32 %v4562, %v4562
  %v5004 = vmul.f32 %v4563, %v4563
  %v5005 = vmul.f32 %v4564, %v4564
  %v5006 = vmul.f32 %v4565, %v4565
  %v5007 = vmul.f32 %v4566, %v4566
  %v5008 = vmul.f32 %v4567, %v4567
  %v5009 = vmul.f32 %v4568, %v4568
  %v5010 = vmul.f32 %v4569, %v4569
  %v5011 = vmul.f32 %v4570, %v4570
  %v5012 = vmul.f32 %v4571, %v4571
  %v5013 = vmul.f32 %v4572, %v4572
  %v5014 = vmul.f32 %v4573, %v4573
  %v5015 = vmul.f32 %v4574, %v4574
  %v5016 = vmul.f32 %v4575, %v4575
  %v5017 = vmul.f32 %v4576, %v4576
  %v5018 = vmul.f32 %v4577, %v4577
  %v5019 = vmul.f32 %v4578, %v4578
  %v5020 = vmul.f32 %v4579, %v4579
  %v5021 = vmul.f32 %v4580, %v4580
  %v5022 = vmul.f32 %v4581, %v4581
  %v5023 = vmul.f32 %v4582, %v4582
  %v5024 = vmul.f32 %v4583, %v4583
  %v5025 = vmul.f32 %v4584, %v4584
  %v5026 = vmul.f32 %v4585, %v4585
  %v5027 = vmul.f32 %v4586, %v4586
  %v5028 = vmul.f32 %v4587, %v4587
  %v5029 = vmul.f32 %v4588, %v4588
  %v5030 = vmul.f32 %v4589, %v4589
  %v5031 = vmul.f32 %v4590, %v4590
  %v5032 = vmul.f32 %v4591, %v4591
  %v5033 = vmul.f32 %v4592, %v4592
  %v5034 = vmul.f32 %v4593, %v4593
  %v5035 = vmul.f32 %v4594, %v4594
  %v5036 = vmul.f32 %v4595, %v4595
  %v5037 = vmul.f32 %v4596, %v4596
  %v5038 = vmul.f32 %v4597, %v4597
  %v5039 = vmul.f32 %v4598, %v4598
  %v5040 = vmul.f32 %v4599, %v4599
  %v5041 = vmul.f32 %v4600, %v4600
  %v5042 = vmul.f32 %v4601, %v4601
  %v5043 = vmul.f32 %v4602, %v4602
  %v5044 = vmul.f32 %v4603, %v4603
  %v5045 = vmul.f32 %v4604, %v4604
  %v5046 = vmul.f32 %v4605, %v4605
  %v5047 = vmul.f32 %v4606, %v4606
  %v5048 = vmul.f32 %v4607, %v4607
  %v5049 = vmul.f32 %v4608, %v4608
  %v5050 = vmul.f32 %v4609, %v4609
  %v5051 = vmul.f32 %v4610, %v4610
  %v5052 = vmul.f32 %v4611, %v4611
  %v5053 = vmul.f32 %v4612, %v4612
  %v5054 = vmul.f32 %v4613, %v4613
  %v5055 = vmul.f32 %v4614, %v4614
  %v5056 = vmul.f32 %v4615, %v4615
  %v5057 = vmul.f32 %v4616, %v4616
  %v5058 = vmul.f32 %v4617, %v4617
  %v5059 = vmul.f32 %v4618, %v4618
  %v5060 = vmul.f32 %v4619, %v4619
  %v5061 = vmul.f32 %v4620, %v4620
  %v5062 = vmul.f32 %v4621, %v4621
  %v5063 = vmul.f32 %v4622, %v4622
  %v5064 = vmul.f32 %v4623, %v4623
  %v5065 = vmul.f32 %v4624, %v4624
  %v5066 = vmul.f32 %v4625, %v4625
  %v5067 = vmul.f32 %v4626, %v4626
  %v5068 = vmul.f32 %v4627, %v4627
  %v5069 = vmul.f32 %v4628, %v4628
  %v5070 = vmul.f32 %v4629, %v4629
  %v5071 = vmul.f32 %v4630, %v4630
  %v5072 = vmul.f32 %v4631, %v4631
  %v5073 = vmul.f32 %v4632, %v4632
  %v5074 = vmul.f32 %v4633, %v4633
  %v5075 = vmul.f32 %v4634, %v4634
  %v5076 = vmul.f32 %v4635, %v4635
  %v5077 = vmul.f32 %v4636, %v4636
  %v5078 = vmul.f32 %v4637, %v4637
  %v5079 = vmul.f32 %v4638, %v4638
  %v5080 = vmul.f32 %v4639, %v4639
  %v5081 = vmul.f32 %v4640, %v4640
  %v5082 = vmul.f32 %v4641, %v4641
  %v5083 = vmul.f32 %v4642, %v4642
  %v5084 = vmul.f32 %v4643, %v4643
  %v5085 = vmul.f32 %v4644, %v4644
  %v5086 = vmul.f32 %v4645, %v4645
  %v5087 = vmul.f32 %v4646, %v4646
  %v5088 = vmul.f32 %v4647, %v4647
  %v5089 = vmul.f32 %v4648, %v4648
  %v5090 = vmul.f32 %v4649, %v4649
  %v5091 = vmul.f32 %v4650, %v4650
  %v5092 = vmul.f32 %v4651, %v4651
  %v5093 = vmul.f32 %v4652, %v4652
  %v5094 = vmul.f32 %v4653, %v4653
  %v5095 = vmul.f32 %v4654, %v4654
  %v5096 = vmul.f32 %v4655, %v4655
  %v5097 = vmul.f32 %v4656, %v4656
  %v5098 = vmul.f32 %v4657, %v4657
  %v5099 = vmul.f32 %v4658, %v4658
  %v5100 = vmul.f32 %v4659, %v4659
  %v5101 = vmul.f32 %v4660, %v4660
  %v5102 = vmul.f32 %v4661, %v4661
  %v5103 = vmul.f32 %v4662, %v4662
  %v5104 = vmul.f32 %v4663, %v4663
  %v5105 = vmul.f32 %v4664, %v4664
  %v5106 = vmul.f32 %v4665, %v4665
  %v5107 = vmul.f32 %v4666, %v4666
  %v5108 = vmul.f32 %v4667, %v4667
  %v5109 = vmul.f32 %v4668, %v4668
  %v5110 = vmul.f32 %v4669, %v4669
  %v5111 = vmul.f32 %v4670, %v4670
  %v5112 = vmul.f32 %v4671, %v4671
  %v5113 = vmul.f32 %v4672, %v4672
  %v5114 = vmul.f32 %v4673, %v4673
  %v5115 = vmul.f32 %v4674, %v4674
  %v5116 = vmul.f32 %v4675, %v4675
  %v5117 = vmul.f32 %v4676, %v4676
  %v5118 = vmul.f32 %v4677, %v4677
  %v5119 = vmul.f32 %v4678, %v4678
  %v5120 = vmul.f32 %v4679, %v4679
  %v5121 = vmul.f32 %v4680, %v4680
  %v5122 = vmul.f32 %v4681, %v4681
  %v5123 = vmul.f32 %v4682, %v4682
  %v5124 = vmul.f32 %v4683, %v4683
  %v5125 = vmul.f32 %v4684, %v4684
  %v5126 = vmul.f32 %v4685, %v4685
  %v5127 = vmul.f32 %v4686, %v4686
  %v5128 = vmul.f32 %v4687, %v4687
  %v5129 = vmul.f32 %v4688, %v4688
  %v5130 = vmul.f32 %v4689, %v4689
  %v5131 = vmul.f32 %v4690, %v4690
  %v5132 = vmul.f32 %v4691, %v4691
  %v5133 = vmul.f32 %v4692, %v4692
  %v5134 = vmul.f32 %v4693, %v4693
  %v5135 = vmul.f32 %v4694, %v4694
  %v5136 = vmul.f32 %v4695, %v4695
  %v5137 = vmul.f32 %v4696, %v4696
  %v5138 = vmul.f32 %v4697, %v4697
  %v5139 = vmul.f32 %v4698, %v4698
  %v5140 = vmul.f32 %v4699, %v4699
  %v5141 = vmul.f32 %v4700, %v4700
  %v5142 = vmul.f32 %v4701, %v4701
  %v5143 = vmul.f32 %v4702, %v4702
  %v5144 = vmul.f32 %v4703, %v4703
  %v5145 = vmul.f32 %v4704, %v4704
  %v5146 = vmul.f32 %v4705, %v4705
  %v5147 = vmul.f32 %v4706, %v4706
  %v5148 = vmul.f32 %v4707, %v4707
  %v5149 = vmul.f32 %v4708, %v4708
  %v5150 = vmul.f32 %v4709, %v4709
  %v5151 = vmul.f32 %v4710, %v4710
  %v5152 = vmul.f32 %v4711, %v4711
  %v5153 = vmul.f32 %v4712, %v4712
  %v5154 = vmul.f32 %v4713, %v4713
  %v5155 = vmul.f32 %v4714, %v4714
  %v5156 = vmul.f32 %v4715, %v4715
  %v5157 = vmul.f32 %v4716, %v4716
  %v5158 = vmul.f32 %v4717, %v4717
  %v5159 = vmul.f32 %v4718, %v4718
  %v5160 = vmul.f32 %v4719, %v4719
  %v5161 = vmul.f32 %v4720, %v4720
  %v5162 = vmul.f32 %v4721, %v4721
  %v5163 = vmul.f32 %v4722, %v4722
  %v5164 = vmul.f32 %v4723, %v4723
  %v5165 = vmul.f32 %v4724, %v4724
  %v5166 = vmul.f32 %v4725, %v4725
  %v5167 = vmul.f32 %v4726, %v4726
  %v5168 = vmul.f32 %v4727, %v4727
  %v5169 = vmul.f32 %v4728, %v4728
  %v5170 = vmul.f32 %v4729, %v4729
  %v5171 = vmul.f32 %v4730, %v4730
  %v5172 = vmul.f32 %v4731, %v4731
  %v5173 = vmul.f32 %v4732, %v4732
  %v5174 = vmul.f32 %v4733, %v4733
  %v5175 = vmul.f32 %v4734, %v4734
  %v5176 = vmul.f32 %v4735, %v4735
  %v5177 = vmul.f32 %v4736, %v4736
  %v5178 = vmul.f32 %v4737, %v4737
  %v5179 = vmul.f32 %v4738, %v4738
  %v5180 = vmul.f32 %v4739, %v4739
  %v5181 = vmul.f32 %v4740, %v4740
  %v5182 = vmul.f32 %v4741, %v4741
  %v5183 = vmul.f32 %v4742, %v4742
  %v5184 = vmul.f32 %v4743, %v4743
  %v5185 = vmul.f32 %v4744, %v4744
  %v5186 = vmul.f32 %v4745, %v4745
  %v5187 = vmul.f32 %v4746, %v4746
  %v5188 = vmul.f32 %v4747, %v4747
  %v5189 = vmul.f32 %v4748, %v4748
  %v5190 = vmul.f32 %v4749, %v4749
  %v5191 = vmul.f32 %v4750, %v4750
  %v5192 = vmul.f32 %v4751, %v4751
  %v5193 = vmul.f32 %v4752, %v4752
  %v5194 = vmul.f32 %v4753, %v4753
  %v5195 = vmul.f32 %v4754, %v4754
  %v5196 = vmul.f32 %v4755, %v4755
  %v5197 = vmul.f32 %v4756, %v4756
  %v5198 = vmul.f32 %v4757, %v4757
  %v5199 = vmul.f32 %v4758, %v4758
  %v5200 = vmul.f32 %v4759, %v4759
  %v5201 = vmul.f32 %v4760, %v4760
  %v5202 = vmul.f32 %v4761, %v4761
  %v5203 = vmul.f32 %v4762, %v4762
  %v5204 = vmul.f32 %v4763, %v4763
  %v5205 = vmul.f32 %v4764, %v4764
  %v5206 = vmul.f32 %v4765, %v4765
  %v5207 = vmul.f32 %v4766, %v4766
  %v5208 = vmul.f32 %v4767, %v4767
  %v5209 = vmul.f32 %v4768, %v4768
  %v5210 = vmul.f32 %v4769, %v4769
  %v5211 = vmul.f32 %v4770, %v4770
  %v5212 = vmul.f32 %v4771, %v4771
  %v5213 = vmul.f32 %v4772, %v4772
  %v5214 = vmul.f32 %v4773, %v4773
  %v5215 = vmul.f32 %v4774, %v4774
  %v5216 = vmul.f32 %v4775, %v4775
  %v5217 = vmul.f32 %v4776, %v4776
  %v5218 = vmul.f32 %v4777, %v4777
  %v5219 = vmul.f32 %v4778, %v4778
  %v5220 = vmul.f32 %v4779, %v4779
  %v5221 = vmul.f32 %v4780, %v4780
  %v5222 = vmul.f32 %v4781, %v4781
  %v5223 = vmul.f32 %v4782, %v4782
  %v5224 = vmul.f32 %v4783, %v4783
  %v5225 = vmul.f32 %v4784, %v4784
  %v5226 = vmul.f32 %v4785, %v4785
  %v5227 = vmul.f32 %v4786, %v4786
  %v5228 = vmul.f32 %v4787, %v4787
  %v5229 = vmul.f32 %v4788, %v4788
  %v5230 = vmul.f32 %v4789, %v4789
  %v5231 = vmul.f32 %v4790, %v4790
  %v5232 = vmul.f32 %v4791, %v4791
  %v5233 = vmul.f32 %v4792, %v4792
  %v5234 = vmul.f32 %v4793, %v4793
  %v5235 = vmul.f32 %v4794, %v4794
  %v5236 = vmul.f32 %v4795, %v4795
  %v5237 = vmul.f32 %v4796, %v4796
  %v5238 = vmul.f32 %v4797, %v4797
  %v5239 = vmul.f32 %v4798, %v4798
  %v5240 = vmul.f32 %v4799, %v4799
  %v5241 = vmul.f32 %v4800, %v4800
  %v5242 = vmul.f32 %v4801, %v4801
  %v5243 = vmul.f32 %v4802, %v4802
  %v5244 = vmul.f32 %v4803, %v4803
  %v5245 = vmul.f32 %v4804, %v4804
  %v5246 = vmul.f32 %v4805, %v4805
  %v5247 = vmul.f32 %v4806, %v4806
  %v5248 = vmul.f32 %v4807, %v4807
  %v5249 = vmul.f32 %v4808, %v4808
  %v5250 = vmul.f32 %v4809, %v4809
  %v5251 = vmul.f32 %v4810, %v4810
  %v5252 = vmul.f32 %v4811, %v4811
  %v5253 = vmul.f32 %v4812, %v4812
  %v5254 = vmul.f32 %v4813, %v4813
  %v5255 = vmul.f32 %v4814, %v4814
  %v5256 = vmul.f32 %v4815, %v4815
  %v5257 = vmul.f32 %v4816, %v4816
  %v5258 = vmul.f32 %v4817, %v4817
  %v5259 = vmul.f32 %v4818, %v4818
  %v5260 = vmul.f32 %v4819, %v4819
  %v5261 = vmul.f32 %v4820, %v4820
  %v5262 = vmul.f32 %v4821, %v4821
  %v5263 = vmul.f32 %v4822, %v4822
  %v5264 = vmul.f32 %v4823, %v4823
  %v5265 = vmul.f32 %v4824, %v4824
  %v5266 = vmul.f32 %v4825, %v4825
  %v5267 = vmul.f32 %v4826, %v4826
  %v5268 = vmul.f32 %v4827, %v4827
  %v5269 = vmul.f32 %v4828, %v4828
  %v5270 = vmul.f32 %v4829, %v4829
  %v5271 = vmul.f32 %v4830, %v4830
  %v5272 = vmul.f32 %v4831, %v4831
  %v5273 = vmul.f32 %v4832, %v4832
  %v5274 = vmul.f32 %v4833, %v4833
  %v5275 = vmul.f32 %v4834, %v4834
  %v5276 = vmul.f32 %v4835, %v4835
  %v5277 = vmul.f32 %v4836, %v4836
  %v5278 = vmul.f32 %v4837, %v4837
  %v5279 = vmul.f32 %v4838, %v4838
  %v5280 = vmul.f32 %v4839, %v4839
  %v5281 = vmul.f32 %v4840, %v4840
  %v5282 = vmul.f32 %v4841, %v4841
  %v5283 = vmul.f32 %v4842, %v4842
  %v5284 = vmul.f32 %v4843, %v4843
  %v5285 = vmul.f32 %v4844, %v4844
  %v5286 = vmul.f32 %v4845, %v4845
  %v5287 = vmul.f32 %v4846, %v4846
  %v5288 = vmul.f32 %v4847, %v4847
  %v5289 = vmul.f32 %v4848, %v4848
  %v5290 = vmul.f32 %v4849, %v4849
  %v5291 = vmul.f32 %v4850, %v4850
  %v5292 = vmul.f32 %v4851, %v4851
  %v5293 = vmul.f32 %v4852, %v4852
  %v5294 = vmul.f32 %v4853, %v4853
  %v5295 = vmul.f32 %v4854, %v4854
  %v5296 = vmul.f32 %v4855, %v4855
  %v5297 = vmul.f32 %v4856, %v4856
  %v5298 = vmul.f32 %v4857, %v4857
  %v5299 = vmul.f32 %v4858, %v4858
  %v5300 = vmul.f32 %v4859, %v4859
  %v5301 = vmul.f32 %v4860, %v4860
  %v5302 = vmul.f32 %v4861, %v4861
  %v5303 = vmul.f32 %v4862, %v4862
  %v5304 = vmul.f32 %v4863, %v4863
  %v5305 = vmul.f32 %v4864, %v4864
  %v5306 = vmul.f32 %v4865, %v4865
  %v5307 = vmul.f32 %v4866, %v4866
  %v5308 = vmul.f32 %v4867, %v4867
  %v5309 = vmul.f32 %v4868, %v4868
  %v5310 = vmul.f32 %v4869, %v4869
  %v5311 = vmul.f32 %v4870, %v4870
  %v5312 = vmul.f32 %v4871, %v4871
  %v5313 = vmul.f32 %v4872, %v4872
  %v5314 = vmul.f32 %v4873, %v4873
  %v5315 = vmul.f32 %v4874, %v4874
  %v5316 = vmul.f32 %v4875, %v4875
  %v5317 = vmul.f32 %v4876, %v4876
  %v5318 = vmul.f32 %v4877, %v4877
  %v5319 = vmul.f32 %v4878, %v4878
  %v5320 = vmul.f32 %v4879, %v4879
  %v5321 = vmul.f32 %v4880, %v4880
  %v5322 = vmul.f32 %v4881, %v4881
  %v5323 = vmul.f32 %v4882, %v4882
  %v5324 = vmul.f32 %v4883, %v4883
  %v5325 = vmul.f32 %v4884, %v4884
  %v5326 = vmul.f32 %v4885, %v4885
  %v5327 = vmul.f32 %v4886, %v4886
  %v5328 = vmul.f32 %v4887, %v4887
  %v5329 = vmul.f32 %v4888, %v4888
  %v5330 = vmul.f32 %v4889, %v4889
  %v5331 = vmul.f32 %v4890, %v4890
  %v5332 = vmul.f32 %v4891, %v4891
  %v5333 = vmul.f32 %v4892, %v4892
  %v5334 = vmul.f32 %v4893, %v4893
  %v5335 = vmul.f32 %v4894, %v4894
  %v5336 = vmul.f32 %v4895, %v4895
  %v5337 = vmul.f32 %v4896, %v4896
  %v5338 = vmul.f32 %v4897, %v4897
  %v5339 = vmul.f32 %v4898, %v4898
  %v5340 = vmul.f32 %v4899, %v4899
  %v5341 = vmul.f32 %v4900, %v4900
  %v5342 = vmul.f32 %v4901, %v4901
  %v5343 = vmul.f32 %v4902, %v4902
  %v5344 = vmul.f32 %v4903, %v4903
  %v5345 = vmul.f32 %v4904, %v4904
  %v5346 = vmul.f32 %v4905, %v4905
  %v5347 = vmul.f32 %v4906, %v4906
  %v5348 = vmul.f32 %v4907, %v4907
  %v5349 = vmul.f32 %v4908, %v4908
  %v5350 = vmul.f32 %v4909, %v4909
  %v5351 = vmul.f32 %v4910, %v4910
  %v5352 = vmul.f32 %v4911, %v4911
  %v5353 = vsel %vm3141, %v4912, 0.0
  %v5354 = vsel %vm3141, %v4913, 0.0
  %v5355 = vadd.f32 %v5353, %v5354
  %v5356 = vsel %vm3141, %v4914, 0.0
  %v5357 = vadd.f32 %v5355, %v5356
  %v5358 = vsel %vm3141, %v4915, 0.0
  %v5359 = vadd.f32 %v5357, %v5358
  %v5360 = vsel %vm3141, %v4916, 0.0
  %v5361 = vadd.f32 %v5359, %v5360
  %v5362 = vsel %vm3141, %v4917, 0.0
  %v5363 = vadd.f32 %v5361, %v5362
  %v5364 = vsel %vm3141, %v4918, 0.0
  %v5365 = vadd.f32 %v5363, %v5364
  %v5366 = vsel %vm3141, %v4919, 0.0
  %v5367 = vadd.f32 %v5365, %v5366
  %v5368 = vsel %vm3141, %v4920, 0.0
  %v5369 = vadd.f32 %v5367, %v5368
  %v5370 = vsel %vm3141, %v4921, 0.0
  %v5371 = vadd.f32 %v5369, %v5370
  %v5372 = vsel %vm3141, %v4922, 0.0
  %v5373 = vadd.f32 %v5371, %v5372
  %v5374 = vsel %vm3141, %v4923, 0.0
  %v5375 = vadd.f32 %v5373, %v5374
  %v5376 = vsel %vm3141, %v4924, 0.0
  %v5377 = vadd.f32 %v5375, %v5376
  %v5378 = vsel %vm3141, %v4925, 0.0
  %v5379 = vadd.f32 %v5377, %v5378
  %v5380 = vsel %vm3141, %v4926, 0.0
  %v5381 = vadd.f32 %v5379, %v5380
  %v5382 = vsel %vm3141, %v4927, 0.0
  %v5383 = vadd.f32 %v5381, %v5382
  %v5384 = vsel %vm3141, %v4928, 0.0
  %v5385 = vadd.f32 %v5383, %v5384
  %v5386 = vsel %vm3141, %v4929, 0.0
  %v5387 = vadd.f32 %v5385, %v5386
  %v5388 = vsel %vm3141, %v4930, 0.0
  %v5389 = vadd.f32 %v5387, %v5388
  %v5390 = vsel %vm3141, %v4931, 0.0
  %v5391 = vadd.f32 %v5389, %v5390
  %v5392 = vsel %vm3141, %v4932, 0.0
  %v5393 = vadd.f32 %v5391, %v5392
  %v5394 = vsel %vm3141, %v4933, 0.0
  %v5395 = vadd.f32 %v5393, %v5394
  %v5396 = vsel %vm3141, %v4934, 0.0
  %v5397 = vadd.f32 %v5395, %v5396
  %v5398 = vsel %vm3141, %v4935, 0.0
  %v5399 = vadd.f32 %v5397, %v5398
  %v5400 = vsel %vm3141, %v4936, 0.0
  %v5401 = vadd.f32 %v5399, %v5400
  %v5402 = vsel %vm3141, %v4937, 0.0
  %v5403 = vadd.f32 %v5401, %v5402
  %v5404 = vsel %vm3141, %v4938, 0.0
  %v5405 = vadd.f32 %v5403, %v5404
  %v5406 = vsel %vm3141, %v4939, 0.0
  %v5407 = vadd.f32 %v5405, %v5406
  %v5408 = vsel %vm3141, %v4940, 0.0
  %v5409 = vadd.f32 %v5407, %v5408
  %v5410 = vsel %vm3141, %v4941, 0.0
  %v5411 = vadd.f32 %v5409, %v5410
  %v5412 = vsel %vm3141, %v4942, 0.0
  %v5413 = vadd.f32 %v5411, %v5412
  %v5414 = vsel %vm3141, %v4943, 0.0
  %v5415 = vadd.f32 %v5413, %v5414
  %v5416 = vsel %vm3141, %v4944, 0.0
  %v5417 = vadd.f32 %v5415, %v5416
  %v5418 = vsel %vm3141, %v4945, 0.0
  %v5419 = vadd.f32 %v5417, %v5418
  %v5420 = vsel %vm3141, %v4946, 0.0
  %v5421 = vadd.f32 %v5419, %v5420
  %v5422 = vsel %vm3141, %v4947, 0.0
  %v5423 = vadd.f32 %v5421, %v5422
  %v5424 = vsel %vm3141, %v4948, 0.0
  %v5425 = vadd.f32 %v5423, %v5424
  %v5426 = vsel %vm3141, %v4949, 0.0
  %v5427 = vadd.f32 %v5425, %v5426
  %v5428 = vsel %vm3141, %v4950, 0.0
  %v5429 = vadd.f32 %v5427, %v5428
  %v5430 = vsel %vm3141, %v4951, 0.0
  %v5431 = vadd.f32 %v5429, %v5430
  %v5432 = vsel %vm3141, %v4952, 0.0
  %v5433 = vadd.f32 %v5431, %v5432
  %v5434 = vsel %vm3141, %v4953, 0.0
  %v5435 = vadd.f32 %v5433, %v5434
  %v5436 = vsel %vm3141, %v4954, 0.0
  %v5437 = vadd.f32 %v5435, %v5436
  %v5438 = vsel %vm3141, %v4955, 0.0
  %v5439 = vadd.f32 %v5437, %v5438
  %v5440 = vsel %vm3141, %v4956, 0.0
  %v5441 = vadd.f32 %v5439, %v5440
  %v5442 = vsel %vm3141, %v4957, 0.0
  %v5443 = vadd.f32 %v5441, %v5442
  %v5444 = vsel %vm3141, %v4958, 0.0
  %v5445 = vadd.f32 %v5443, %v5444
  %v5446 = vsel %vm3141, %v4959, 0.0
  %v5447 = vadd.f32 %v5445, %v5446
  %v5448 = vsel %vm3141, %v4960, 0.0
  %v5449 = vadd.f32 %v5447, %v5448
  %v5450 = vsel %vm3141, %v4961, 0.0
  %v5451 = vadd.f32 %v5449, %v5450
  %v5452 = vsel %vm3141, %v4962, 0.0
  %v5453 = vadd.f32 %v5451, %v5452
  %v5454 = vsel %vm3141, %v4963, 0.0
  %v5455 = vadd.f32 %v5453, %v5454
  %v5456 = vsel %vm3141, %v4964, 0.0
  %v5457 = vadd.f32 %v5455, %v5456
  %v5458 = vsel %vm3141, %v4965, 0.0
  %v5459 = vadd.f32 %v5457, %v5458
  %v5460 = vsel %vm3141, %v4966, 0.0
  %v5461 = vadd.f32 %v5459, %v5460
  %v5462 = vsel %vm3141, %v4967, 0.0
  %v5463 = vadd.f32 %v5461, %v5462
  %v5464 = vsel %vm3141, %v4968, 0.0
  %v5465 = vadd.f32 %v5463, %v5464
  %v5466 = vsel %vm3141, %v4969, 0.0
  %v5467 = vadd.f32 %v5465, %v5466
  %v5468 = vsel %vm3141, %v4970, 0.0
  %v5469 = vadd.f32 %v5467, %v5468
  %v5470 = vsel %vm3141, %v4971, 0.0
  %v5471 = vadd.f32 %v5469, %v5470
  %v5472 = vsel %vm3141, %v4972, 0.0
  %v5473 = vadd.f32 %v5471, %v5472
  %v5474 = vsel %vm3141, %v4973, 0.0
  %v5475 = vadd.f32 %v5473, %v5474
  %v5476 = vsel %vm3141, %v4974, 0.0
  %v5477 = vadd.f32 %v5475, %v5476
  %v5478 = vsel %vm3141, %v4975, 0.0
  %v5479 = vadd.f32 %v5477, %v5478
  %v5480 = vsel %vm3141, %v4976, 0.0
  %v5481 = vadd.f32 %v5479, %v5480
  %v5482 = vsel %vm3141, %v4977, 0.0
  %v5483 = vadd.f32 %v5481, %v5482
  %v5484 = vsel %vm3141, %v4978, 0.0
  %v5485 = vadd.f32 %v5483, %v5484
  %v5486 = vsel %vm3141, %v4979, 0.0
  %v5487 = vadd.f32 %v5485, %v5486
  %v5488 = vsel %vm3141, %v4980, 0.0
  %v5489 = vadd.f32 %v5487, %v5488
  %v5490 = vsel %vm3141, %v4981, 0.0
  %v5491 = vadd.f32 %v5489, %v5490
  %v5492 = vsel %vm3141, %v4982, 0.0
  %v5493 = vadd.f32 %v5491, %v5492
  %v5494 = vsel %vm3141, %v4983, 0.0
  %v5495 = vadd.f32 %v5493, %v5494
  %v5496 = vsel %vm3141, %v4984, 0.0
  %v5497 = vadd.f32 %v5495, %v5496
  %v5498 = vsel %vm3141, %v4985, 0.0
  %v5499 = vadd.f32 %v5497, %v5498
  %v5500 = vsel %vm3141, %v4986, 0.0
  %v5501 = vadd.f32 %v5499, %v5500
  %v5502 = vsel %vm3141, %v4987, 0.0
  %v5503 = vadd.f32 %v5501, %v5502
  %v5504 = vsel %vm3141, %v4988, 0.0
  %v5505 = vadd.f32 %v5503, %v5504
  %v5506 = vsel %vm3141, %v4989, 0.0
  %v5507 = vadd.f32 %v5505, %v5506
  %v5508 = vsel %vm3141, %v4990, 0.0
  %v5509 = vadd.f32 %v5507, %v5508
  %v5510 = vsel %vm3141, %v4991, 0.0
  %v5511 = vadd.f32 %v5509, %v5510
  %v5512 = vsel %vm3141, %v4992, 0.0
  %v5513 = vadd.f32 %v5511, %v5512
  %v5514 = vsel %vm3141, %v4993, 0.0
  %v5515 = vadd.f32 %v5513, %v5514
  %v5516 = vsel %vm3141, %v4994, 0.0
  %v5517 = vadd.f32 %v5515, %v5516
  %v5518 = vsel %vm3141, %v4995, 0.0
  %v5519 = vadd.f32 %v5517, %v5518
  %v5520 = vsel %vm3141, %v4996, 0.0
  %v5521 = vadd.f32 %v5519, %v5520
  %v5522 = vsel %vm3141, %v4997, 0.0
  %v5523 = vadd.f32 %v5521, %v5522
  %v5524 = vsel %vm3141, %v4998, 0.0
  %v5525 = vadd.f32 %v5523, %v5524
  %v5526 = vsel %vm3141, %v4999, 0.0
  %v5527 = vadd.f32 %v5525, %v5526
  %v5528 = vsel %vm3141, %v5000, 0.0
  %v5529 = vadd.f32 %v5527, %v5528
  %v5530 = vsel %vm3141, %v5001, 0.0
  %v5531 = vadd.f32 %v5529, %v5530
  %v5532 = vsel %vm3141, %v5002, 0.0
  %v5533 = vadd.f32 %v5531, %v5532
  %v5534 = vsel %vm3141, %v5003, 0.0
  %v5535 = vadd.f32 %v5533, %v5534
  %v5536 = vsel %vm3141, %v5004, 0.0
  %v5537 = vadd.f32 %v5535, %v5536
  %v5538 = vsel %vm3141, %v5005, 0.0
  %v5539 = vadd.f32 %v5537, %v5538
  %v5540 = vsel %vm3141, %v5006, 0.0
  %v5541 = vadd.f32 %v5539, %v5540
  %v5542 = vsel %vm3141, %v5007, 0.0
  %v5543 = vadd.f32 %v5541, %v5542
  %v5544 = vsel %vm3141, %v5008, 0.0
  %v5545 = vadd.f32 %v5543, %v5544
  %v5546 = vsel %vm3141, %v5009, 0.0
  %v5547 = vadd.f32 %v5545, %v5546
  %v5548 = vsel %vm3141, %v5010, 0.0
  %v5549 = vadd.f32 %v5547, %v5548
  %v5550 = vsel %vm3141, %v5011, 0.0
  %v5551 = vadd.f32 %v5549, %v5550
  %v5552 = vsel %vm3141, %v5012, 0.0
  %v5553 = vadd.f32 %v5551, %v5552
  %v5554 = vsel %vm3141, %v5013, 0.0
  %v5555 = vadd.f32 %v5553, %v5554
  %v5556 = vsel %vm3141, %v5014, 0.0
  %v5557 = vadd.f32 %v5555, %v5556
  %v5558 = vsel %vm3141, %v5015, 0.0
  %v5559 = vadd.f32 %v5557, %v5558
  %v5560 = vsel %vm3141, %v5016, 0.0
  %v5561 = vadd.f32 %v5559, %v5560
  %v5562 = vsel %vm3141, %v5017, 0.0
  %v5563 = vadd.f32 %v5561, %v5562
  %v5564 = vsel %vm3141, %v5018, 0.0
  %v5565 = vadd.f32 %v5563, %v5564
  %v5566 = vsel %vm3141, %v5019, 0.0
  %v5567 = vadd.f32 %v5565, %v5566
  %v5568 = vsel %vm3141, %v5020, 0.0
  %v5569 = vadd.f32 %v5567, %v5568
  %v5570 = vsel %vm3141, %v5021, 0.0
  %v5571 = vadd.f32 %v5569, %v5570
  %v5572 = vsel %vm3141, %v5022, 0.0
  %v5573 = vadd.f32 %v5571, %v5572
  %v5574 = vsel %vm3141, %v5023, 0.0
  %v5575 = vadd.f32 %v5573, %v5574
  %v5576 = vsel %vm3141, %v5024, 0.0
  %v5577 = vadd.f32 %v5575, %v5576
  %v5578 = vsel %vm3141, %v5025, 0.0
  %v5579 = vadd.f32 %v5577, %v5578
  %v5580 = vsel %vm3141, %v5026, 0.0
  %v5581 = vadd.f32 %v5579, %v5580
  %v5582 = vsel %vm3141, %v5027, 0.0
  %v5583 = vadd.f32 %v5581, %v5582
  %v5584 = vsel %vm3141, %v5028, 0.0
  %v5585 = vadd.f32 %v5583, %v5584
  %v5586 = vsel %vm3141, %v5029, 0.0
  %v5587 = vadd.f32 %v5585, %v5586
  %v5588 = vsel %vm3141, %v5030, 0.0
  %v5589 = vadd.f32 %v5587, %v5588
  %v5590 = vsel %vm3141, %v5031, 0.0
  %v5591 = vadd.f32 %v5589, %v5590
  %v5592 = vsel %vm3141, %v5032, 0.0
  %v5593 = vadd.f32 %v5591, %v5592
  %v5594 = vsel %vm3141, %v5033, 0.0
  %v5595 = vadd.f32 %v5593, %v5594
  %v5596 = vsel %vm3141, %v5034, 0.0
  %v5597 = vadd.f32 %v5595, %v5596
  %v5598 = vsel %vm3141, %v5035, 0.0
  %v5599 = vadd.f32 %v5597, %v5598
  %v5600 = vsel %vm3141, %v5036, 0.0
  %v5601 = vadd.f32 %v5599, %v5600
  %v5602 = vsel %vm3141, %v5037, 0.0
  %v5603 = vadd.f32 %v5601, %v5602
  %v5604 = vsel %vm3141, %v5038, 0.0
  %v5605 = vadd.f32 %v5603, %v5604
  %v5606 = vsel %vm3141, %v5039, 0.0
  %v5607 = vadd.f32 %v5605, %v5606
  %v5608 = vsel %vm3141, %v5040, 0.0
  %v5609 = vadd.f32 %v5607, %v5608
  %v5610 = vsel %vm3141, %v5041, 0.0
  %v5611 = vadd.f32 %v5609, %v5610
  %v5612 = vsel %vm3141, %v5042, 0.0
  %v5613 = vadd.f32 %v5611, %v5612
  %v5614 = vsel %vm3141, %v5043, 0.0
  %v5615 = vadd.f32 %v5613, %v5614
  %v5616 = vsel %vm3141, %v5044, 0.0
  %v5617 = vadd.f32 %v5615, %v5616
  %v5618 = vsel %vm3141, %v5045, 0.0
  %v5619 = vadd.f32 %v5617, %v5618
  %v5620 = vsel %vm3141, %v5046, 0.0
  %v5621 = vadd.f32 %v5619, %v5620
  %v5622 = vsel %vm3141, %v5047, 0.0
  %v5623 = vadd.f32 %v5621, %v5622
  %v5624 = vsel %vm3141, %v5048, 0.0
  %v5625 = vadd.f32 %v5623, %v5624
  %v5626 = vsel %vm3141, %v5049, 0.0
  %v5627 = vadd.f32 %v5625, %v5626
  %v5628 = vsel %vm3141, %v5050, 0.0
  %v5629 = vadd.f32 %v5627, %v5628
  %v5630 = vsel %vm3141, %v5051, 0.0
  %v5631 = vadd.f32 %v5629, %v5630
  %v5632 = vsel %vm3141, %v5052, 0.0
  %v5633 = vadd.f32 %v5631, %v5632
  %v5634 = vsel %vm3141, %v5053, 0.0
  %v5635 = vadd.f32 %v5633, %v5634
  %v5636 = vsel %vm3141, %v5054, 0.0
  %v5637 = vadd.f32 %v5635, %v5636
  %v5638 = vsel %vm3141, %v5055, 0.0
  %v5639 = vadd.f32 %v5637, %v5638
  %v5640 = vsel %vm3141, %v5056, 0.0
  %v5641 = vadd.f32 %v5639, %v5640
  %v5642 = vsel %vm3141, %v5057, 0.0
  %v5643 = vadd.f32 %v5641, %v5642
  %v5644 = vsel %vm3141, %v5058, 0.0
  %v5645 = vadd.f32 %v5643, %v5644
  %v5646 = vsel %vm3141, %v5059, 0.0
  %v5647 = vadd.f32 %v5645, %v5646
  %v5648 = vsel %vm3141, %v5060, 0.0
  %v5649 = vadd.f32 %v5647, %v5648
  %v5650 = vsel %vm3141, %v5061, 0.0
  %v5651 = vadd.f32 %v5649, %v5650
  %v5652 = vsel %vm3141, %v5062, 0.0
  %v5653 = vadd.f32 %v5651, %v5652
  %v5654 = vsel %vm3141, %v5063, 0.0
  %v5655 = vadd.f32 %v5653, %v5654
  %v5656 = vsel %vm3141, %v5064, 0.0
  %v5657 = vadd.f32 %v5655, %v5656
  %v5658 = vsel %vm3141, %v5065, 0.0
  %v5659 = vadd.f32 %v5657, %v5658
  %v5660 = vsel %vm3141, %v5066, 0.0
  %v5661 = vadd.f32 %v5659, %v5660
  %v5662 = vsel %vm3141, %v5067, 0.0
  %v5663 = vadd.f32 %v5661, %v5662
  %v5664 = vsel %vm3141, %v5068, 0.0
  %v5665 = vadd.f32 %v5663, %v5664
  %v5666 = vsel %vm3141, %v5069, 0.0
  %v5667 = vadd.f32 %v5665, %v5666
  %v5668 = vsel %vm3141, %v5070, 0.0
  %v5669 = vadd.f32 %v5667, %v5668
  %v5670 = vsel %vm3141, %v5071, 0.0
  %v5671 = vadd.f32 %v5669, %v5670
  %v5672 = vsel %vm3141, %v5072, 0.0
  %v5673 = vadd.f32 %v5671, %v5672
  %v5674 = vsel %vm3141, %v5073, 0.0
  %v5675 = vadd.f32 %v5673, %v5674
  %v5676 = vsel %vm3141, %v5074, 0.0
  %v5677 = vadd.f32 %v5675, %v5676
  %v5678 = vsel %vm3141, %v5075, 0.0
  %v5679 = vadd.f32 %v5677, %v5678
  %v5680 = vsel %vm3141, %v5076, 0.0
  %v5681 = vadd.f32 %v5679, %v5680
  %v5682 = vsel %vm3141, %v5077, 0.0
  %v5683 = vadd.f32 %v5681, %v5682
  %v5684 = vsel %vm3141, %v5078, 0.0
  %v5685 = vadd.f32 %v5683, %v5684
  %v5686 = vsel %vm3141, %v5079, 0.0
  %v5687 = vadd.f32 %v5685, %v5686
  %v5688 = vsel %vm3141, %v5080, 0.0
  %v5689 = vadd.f32 %v5687, %v5688
  %v5690 = vsel %vm3141, %v5081, 0.0
  %v5691 = vadd.f32 %v5689, %v5690
  %v5692 = vsel %vm3141, %v5082, 0.0
  %v5693 = vadd.f32 %v5691, %v5692
  %v5694 = vsel %vm3141, %v5083, 0.0
  %v5695 = vadd.f32 %v5693, %v5694
  %v5696 = vsel %vm3141, %v5084, 0.0
  %v5697 = vadd.f32 %v5695, %v5696
  %v5698 = vsel %vm3141, %v5085, 0.0
  %v5699 = vadd.f32 %v5697, %v5698
  %v5700 = vsel %vm3141, %v5086, 0.0
  %v5701 = vadd.f32 %v5699, %v5700
  %v5702 = vsel %vm3141, %v5087, 0.0
  %v5703 = vadd.f32 %v5701, %v5702
  %v5704 = vsel %vm3141, %v5088, 0.0
  %v5705 = vadd.f32 %v5703, %v5704
  %v5706 = vsel %vm3141, %v5089, 0.0
  %v5707 = vadd.f32 %v5705, %v5706
  %v5708 = vsel %vm3141, %v5090, 0.0
  %v5709 = vadd.f32 %v5707, %v5708
  %v5710 = vsel %vm3141, %v5091, 0.0
  %v5711 = vadd.f32 %v5709, %v5710
  %v5712 = vsel %vm3141, %v5092, 0.0
  %v5713 = vadd.f32 %v5711, %v5712
  %v5714 = vsel %vm3141, %v5093, 0.0
  %v5715 = vadd.f32 %v5713, %v5714
  %v5716 = vsel %vm3141, %v5094, 0.0
  %v5717 = vadd.f32 %v5715, %v5716
  %v5718 = vsel %vm3141, %v5095, 0.0
  %v5719 = vadd.f32 %v5717, %v5718
  %v5720 = vsel %vm3141, %v5096, 0.0
  %v5721 = vadd.f32 %v5719, %v5720
  %v5722 = vsel %vm3141, %v5097, 0.0
  %v5723 = vadd.f32 %v5721, %v5722
  %v5724 = vsel %vm3141, %v5098, 0.0
  %v5725 = vadd.f32 %v5723, %v5724
  %v5726 = vsel %vm3141, %v5099, 0.0
  %v5727 = vadd.f32 %v5725, %v5726
  %v5728 = vsel %vm3141, %v5100, 0.0
  %v5729 = vadd.f32 %v5727, %v5728
  %v5730 = vsel %vm3141, %v5101, 0.0
  %v5731 = vadd.f32 %v5729, %v5730
  %v5732 = vsel %vm3141, %v5102, 0.0
  %v5733 = vadd.f32 %v5731, %v5732
  %v5734 = vsel %vm3141, %v5103, 0.0
  %v5735 = vadd.f32 %v5733, %v5734
  %v5736 = vsel %vm3141, %v5104, 0.0
  %v5737 = vadd.f32 %v5735, %v5736
  %v5738 = vsel %vm3141, %v5105, 0.0
  %v5739 = vadd.f32 %v5737, %v5738
  %v5740 = vsel %vm3141, %v5106, 0.0
  %v5741 = vadd.f32 %v5739, %v5740
  %v5742 = vsel %vm3141, %v5107, 0.0
  %v5743 = vadd.f32 %v5741, %v5742
  %v5744 = vsel %vm3141, %v5108, 0.0
  %v5745 = vadd.f32 %v5743, %v5744
  %v5746 = vsel %vm3141, %v5109, 0.0
  %v5747 = vadd.f32 %v5745, %v5746
  %v5748 = vsel %vm3141, %v5110, 0.0
  %v5749 = vadd.f32 %v5747, %v5748
  %v5750 = vsel %vm3141, %v5111, 0.0
  %v5751 = vadd.f32 %v5749, %v5750
  %v5752 = vsel %vm3141, %v5112, 0.0
  %v5753 = vadd.f32 %v5751, %v5752
  %v5754 = vsel %vm3141, %v5113, 0.0
  %v5755 = vadd.f32 %v5753, %v5754
  %v5756 = vsel %vm3141, %v5114, 0.0
  %v5757 = vadd.f32 %v5755, %v5756
  %v5758 = vsel %vm3141, %v5115, 0.0
  %v5759 = vadd.f32 %v5757, %v5758
  %v5760 = vsel %vm3141, %v5116, 0.0
  %v5761 = vadd.f32 %v5759, %v5760
  %v5762 = vsel %vm3141, %v5117, 0.0
  %v5763 = vadd.f32 %v5761, %v5762
  %v5764 = vsel %vm3141, %v5118, 0.0
  %v5765 = vadd.f32 %v5763, %v5764
  %v5766 = vsel %vm3141, %v5119, 0.0
  %v5767 = vadd.f32 %v5765, %v5766
  %v5768 = vsel %vm3141, %v5120, 0.0
  %v5769 = vadd.f32 %v5767, %v5768
  %v5770 = vsel %vm3141, %v5121, 0.0
  %v5771 = vadd.f32 %v5769, %v5770
  %v5772 = vsel %vm3141, %v5122, 0.0
  %v5773 = vadd.f32 %v5771, %v5772
  %v5774 = vsel %vm3141, %v5123, 0.0
  %v5775 = vadd.f32 %v5773, %v5774
  %v5776 = vsel %vm3141, %v5124, 0.0
  %v5777 = vadd.f32 %v5775, %v5776
  %v5778 = vsel %vm3141, %v5125, 0.0
  %v5779 = vadd.f32 %v5777, %v5778
  %v5780 = vsel %vm3141, %v5126, 0.0
  %v5781 = vadd.f32 %v5779, %v5780
  %v5782 = vsel %vm3141, %v5127, 0.0
  %v5783 = vadd.f32 %v5781, %v5782
  %v5784 = vsel %vm3141, %v5128, 0.0
  %v5785 = vadd.f32 %v5783, %v5784
  %v5786 = vsel %vm3141, %v5129, 0.0
  %v5787 = vadd.f32 %v5785, %v5786
  %v5788 = vsel %vm3141, %v5130, 0.0
  %v5789 = vadd.f32 %v5787, %v5788
  %v5790 = vsel %vm3141, %v5131, 0.0
  %v5791 = vadd.f32 %v5789, %v5790
  %v5792 = vsel %vm3141, %v5132, 0.0
  %v5793 = vadd.f32 %v5791, %v5792
  %v5794 = vsel %vm3141, %v5133, 0.0
  %v5795 = vadd.f32 %v5793, %v5794
  %v5796 = vsel %vm3141, %v5134, 0.0
  %v5797 = vadd.f32 %v5795, %v5796
  %v5798 = vsel %vm3141, %v5135, 0.0
  %v5799 = vadd.f32 %v5797, %v5798
  %v5800 = vsel %vm3141, %v5136, 0.0
  %v5801 = vadd.f32 %v5799, %v5800
  %v5802 = vsel %vm3141, %v5137, 0.0
  %v5803 = vadd.f32 %v5801, %v5802
  %v5804 = vsel %vm3141, %v5138, 0.0
  %v5805 = vadd.f32 %v5803, %v5804
  %v5806 = vsel %vm3141, %v5139, 0.0
  %v5807 = vadd.f32 %v5805, %v5806
  %v5808 = vsel %vm3141, %v5140, 0.0
  %v5809 = vadd.f32 %v5807, %v5808
  %v5810 = vsel %vm3141, %v5141, 0.0
  %v5811 = vadd.f32 %v5809, %v5810
  %v5812 = vsel %vm3141, %v5142, 0.0
  %v5813 = vadd.f32 %v5811, %v5812
  %v5814 = vsel %vm3141, %v5143, 0.0
  %v5815 = vadd.f32 %v5813, %v5814
  %v5816 = vsel %vm3141, %v5144, 0.0
  %v5817 = vadd.f32 %v5815, %v5816
  %v5818 = vsel %vm3141, %v5145, 0.0
  %v5819 = vadd.f32 %v5817, %v5818
  %v5820 = vsel %vm3141, %v5146, 0.0
  %v5821 = vadd.f32 %v5819, %v5820
  %v5822 = vsel %vm3141, %v5147, 0.0
  %v5823 = vadd.f32 %v5821, %v5822
  %v5824 = vsel %vm3141, %v5148, 0.0
  %v5825 = vadd.f32 %v5823, %v5824
  %v5826 = vsel %vm3141, %v5149, 0.0
  %v5827 = vadd.f32 %v5825, %v5826
  %v5828 = vsel %vm3141, %v5150, 0.0
  %v5829 = vadd.f32 %v5827, %v5828
  %v5830 = vsel %vm3141, %v5151, 0.0
  %v5831 = vadd.f32 %v5829, %v5830
  %v5832 = vsel %vm3141, %v5152, 0.0
  %v5833 = vadd.f32 %v5831, %v5832
  %v5834 = vsel %vm3141, %v5153, 0.0
  %v5835 = vadd.f32 %v5833, %v5834
  %v5836 = vsel %vm3141, %v5154, 0.0
  %v5837 = vadd.f32 %v5835, %v5836
  %v5838 = vsel %vm3141, %v5155, 0.0
  %v5839 = vadd.f32 %v5837, %v5838
  %v5840 = vsel %vm3141, %v5156, 0.0
  %v5841 = vadd.f32 %v5839, %v5840
  %v5842 = vsel %vm3141, %v5157, 0.0
  %v5843 = vadd.f32 %v5841, %v5842
  %v5844 = vsel %vm3141, %v5158, 0.0
  %v5845 = vadd.f32 %v5843, %v5844
  %v5846 = vsel %vm3141, %v5159, 0.0
  %v5847 = vadd.f32 %v5845, %v5846
  %v5848 = vsel %vm3141, %v5160, 0.0
  %v5849 = vadd.f32 %v5847, %v5848
  %v5850 = vsel %vm3141, %v5161, 0.0
  %v5851 = vadd.f32 %v5849, %v5850
  %v5852 = vsel %vm3141, %v5162, 0.0
  %v5853 = vadd.f32 %v5851, %v5852
  %v5854 = vsel %vm3141, %v5163, 0.0
  %v5855 = vadd.f32 %v5853, %v5854
  %v5856 = vsel %vm3141, %v5164, 0.0
  %v5857 = vadd.f32 %v5855, %v5856
  %v5858 = vsel %vm3141, %v5165, 0.0
  %v5859 = vadd.f32 %v5857, %v5858
  %v5860 = vsel %vm3141, %v5166, 0.0
  %v5861 = vadd.f32 %v5859, %v5860
  %v5862 = vsel %vm3141, %v5167, 0.0
  %v5863 = vadd.f32 %v5861, %v5862
  %v5864 = vsel %vm3141, %v5168, 0.0
  %v5865 = vadd.f32 %v5863, %v5864
  %v5866 = vsel %vm3141, %v5169, 0.0
  %v5867 = vadd.f32 %v5865, %v5866
  %v5868 = vsel %vm3141, %v5170, 0.0
  %v5869 = vadd.f32 %v5867, %v5868
  %v5870 = vsel %vm3141, %v5171, 0.0
  %v5871 = vadd.f32 %v5869, %v5870
  %v5872 = vsel %vm3141, %v5172, 0.0
  %v5873 = vadd.f32 %v5871, %v5872
  %v5874 = vsel %vm3141, %v5173, 0.0
  %v5875 = vadd.f32 %v5873, %v5874
  %v5876 = vsel %vm3141, %v5174, 0.0
  %v5877 = vadd.f32 %v5875, %v5876
  %v5878 = vsel %vm3141, %v5175, 0.0
  %v5879 = vadd.f32 %v5877, %v5878
  %v5880 = vsel %vm3141, %v5176, 0.0
  %v5881 = vadd.f32 %v5879, %v5880
  %v5882 = vsel %vm3141, %v5177, 0.0
  %v5883 = vadd.f32 %v5881, %v5882
  %v5884 = vsel %vm3141, %v5178, 0.0
  %v5885 = vadd.f32 %v5883, %v5884
  %v5886 = vsel %vm3141, %v5179, 0.0
  %v5887 = vadd.f32 %v5885, %v5886
  %v5888 = vsel %vm3141, %v5180, 0.0
  %v5889 = vadd.f32 %v5887, %v5888
  %v5890 = vsel %vm3141, %v5181, 0.0
  %v5891 = vadd.f32 %v5889, %v5890
  %v5892 = vsel %vm3141, %v5182, 0.0
  %v5893 = vadd.f32 %v5891, %v5892
  %v5894 = vsel %vm3141, %v5183, 0.0
  %v5895 = vadd.f32 %v5893, %v5894
  %v5896 = vsel %vm3141, %v5184, 0.0
  %v5897 = vadd.f32 %v5895, %v5896
  %v5898 = vsel %vm3141, %v5185, 0.0
  %v5899 = vadd.f32 %v5897, %v5898
  %v5900 = vsel %vm3141, %v5186, 0.0
  %v5901 = vadd.f32 %v5899, %v5900
  %v5902 = vsel %vm3141, %v5187, 0.0
  %v5903 = vadd.f32 %v5901, %v5902
  %v5904 = vsel %vm3141, %v5188, 0.0
  %v5905 = vadd.f32 %v5903, %v5904
  %v5906 = vsel %vm3141, %v5189, 0.0
  %v5907 = vadd.f32 %v5905, %v5906
  %v5908 = vsel %vm3141, %v5190, 0.0
  %v5909 = vadd.f32 %v5907, %v5908
  %v5910 = vsel %vm3141, %v5191, 0.0
  %v5911 = vadd.f32 %v5909, %v5910
  %v5912 = vsel %vm3141, %v5192, 0.0
  %v5913 = vadd.f32 %v5911, %v5912
  %v5914 = vsel %vm3141, %v5193, 0.0
  %v5915 = vadd.f32 %v5913, %v5914
  %v5916 = vsel %vm3141, %v5194, 0.0
  %v5917 = vadd.f32 %v5915, %v5916
  %v5918 = vsel %vm3141, %v5195, 0.0
  %v5919 = vadd.f32 %v5917, %v5918
  %v5920 = vsel %vm3141, %v5196, 0.0
  %v5921 = vadd.f32 %v5919, %v5920
  %v5922 = vsel %vm3141, %v5197, 0.0
  %v5923 = vadd.f32 %v5921, %v5922
  %v5924 = vsel %vm3141, %v5198, 0.0
  %v5925 = vadd.f32 %v5923, %v5924
  %v5926 = vsel %vm3141, %v5199, 0.0
  %v5927 = vadd.f32 %v5925, %v5926
  %v5928 = vsel %vm3141, %v5200, 0.0
  %v5929 = vadd.f32 %v5927, %v5928
  %v5930 = vsel %vm3141, %v5201, 0.0
  %v5931 = vadd.f32 %v5929, %v5930
  %v5932 = vsel %vm3141, %v5202, 0.0
  %v5933 = vadd.f32 %v5931, %v5932
  %v5934 = vsel %vm3141, %v5203, 0.0
  %v5935 = vadd.f32 %v5933, %v5934
  %v5936 = vsel %vm3141, %v5204, 0.0
  %v5937 = vadd.f32 %v5935, %v5936
  %v5938 = vsel %vm3141, %v5205, 0.0
  %v5939 = vadd.f32 %v5937, %v5938
  %v5940 = vsel %vm3141, %v5206, 0.0
  %v5941 = vadd.f32 %v5939, %v5940
  %v5942 = vsel %vm3141, %v5207, 0.0
  %v5943 = vadd.f32 %v5941, %v5942
  %v5944 = vsel %vm3141, %v5208, 0.0
  %v5945 = vadd.f32 %v5943, %v5944
  %v5946 = vsel %vm3141, %v5209, 0.0
  %v5947 = vadd.f32 %v5945, %v5946
  %v5948 = vsel %vm3141, %v5210, 0.0
  %v5949 = vadd.f32 %v5947, %v5948
  %v5950 = vsel %vm3141, %v5211, 0.0
  %v5951 = vadd.f32 %v5949, %v5950
  %v5952 = vsel %vm3141, %v5212, 0.0
  %v5953 = vadd.f32 %v5951, %v5952
  %v5954 = vsel %vm3141, %v5213, 0.0
  %v5955 = vadd.f32 %v5953, %v5954
  %v5956 = vsel %vm3141, %v5214, 0.0
  %v5957 = vadd.f32 %v5955, %v5956
  %v5958 = vsel %vm3141, %v5215, 0.0
  %v5959 = vadd.f32 %v5957, %v5958
  %v5960 = vsel %vm3141, %v5216, 0.0
  %v5961 = vadd.f32 %v5959, %v5960
  %v5962 = vsel %vm3141, %v5217, 0.0
  %v5963 = vadd.f32 %v5961, %v5962
  %v5964 = vsel %vm3141, %v5218, 0.0
  %v5965 = vadd.f32 %v5963, %v5964
  %v5966 = vsel %vm3141, %v5219, 0.0
  %v5967 = vadd.f32 %v5965, %v5966
  %v5968 = vsel %vm3141, %v5220, 0.0
  %v5969 = vadd.f32 %v5967, %v5968
  %v5970 = vsel %vm3141, %v5221, 0.0
  %v5971 = vadd.f32 %v5969, %v5970
  %v5972 = vsel %vm3141, %v5222, 0.0
  %v5973 = vadd.f32 %v5971, %v5972
  %v5974 = vsel %vm3141, %v5223, 0.0
  %v5975 = vadd.f32 %v5973, %v5974
  %v5976 = vsel %vm3141, %v5224, 0.0
  %v5977 = vadd.f32 %v5975, %v5976
  %v5978 = vsel %vm3141, %v5225, 0.0
  %v5979 = vadd.f32 %v5977, %v5978
  %v5980 = vsel %vm3141, %v5226, 0.0
  %v5981 = vadd.f32 %v5979, %v5980
  %v5982 = vsel %vm3141, %v5227, 0.0
  %v5983 = vadd.f32 %v5981, %v5982
  %v5984 = vsel %vm3141, %v5228, 0.0
  %v5985 = vadd.f32 %v5983, %v5984
  %v5986 = vsel %vm3141, %v5229, 0.0
  %v5987 = vadd.f32 %v5985, %v5986
  %v5988 = vsel %vm3141, %v5230, 0.0
  %v5989 = vadd.f32 %v5987, %v5988
  %v5990 = vsel %vm3141, %v5231, 0.0
  %v5991 = vadd.f32 %v5989, %v5990
  %v5992 = vsel %vm3141, %v5232, 0.0
  %v5993 = vadd.f32 %v5991, %v5992
  %v5994 = vsel %vm3141, %v5233, 0.0
  %v5995 = vadd.f32 %v5993, %v5994
  %v5996 = vsel %vm3141, %v5234, 0.0
  %v5997 = vadd.f32 %v5995, %v5996
  %v5998 = vsel %vm3141, %v5235, 0.0
  %v5999 = vadd.f32 %v5997, %v5998
  %v6000 = vsel %vm3141, %v5236, 0.0
  %v6001 = vadd.f32 %v5999, %v6000
  %v6002 = vsel %vm3141, %v5237, 0.0
  %v6003 = vadd.f32 %v6001, %v6002
  %v6004 = vsel %vm3141, %v5238, 0.0
  %v6005 = vadd.f32 %v6003, %v6004
  %v6006 = vsel %vm3141, %v5239, 0.0
  %v6007 = vadd.f32 %v6005, %v6006
  %v6008 = vsel %vm3141, %v5240, 0.0
  %v6009 = vadd.f32 %v6007, %v6008
  %v6010 = vsel %vm3141, %v5241, 0.0
  %v6011 = vadd.f32 %v6009, %v6010
  %v6012 = vsel %vm3141, %v5242, 0.0
  %v6013 = vadd.f32 %v6011, %v6012
  %v6014 = vsel %vm3141, %v5243, 0.0
  %v6015 = vadd.f32 %v6013, %v6014
  %v6016 = vsel %vm3141, %v5244, 0.0
  %v6017 = vadd.f32 %v6015, %v6016
  %v6018 = vsel %vm3141, %v5245, 0.0
  %v6019 = vadd.f32 %v6017, %v6018
  %v6020 = vsel %vm3141, %v5246, 0.0
  %v6021 = vadd.f32 %v6019, %v6020
  %v6022 = vsel %vm3141, %v5247, 0.0
  %v6023 = vadd.f32 %v6021, %v6022
  %v6024 = vsel %vm3141, %v5248, 0.0
  %v6025 = vadd.f32 %v6023, %v6024
  %v6026 = vsel %vm3141, %v5249, 0.0
  %v6027 = vadd.f32 %v6025, %v6026
  %v6028 = vsel %vm3141, %v5250, 0.0
  %v6029 = vadd.f32 %v6027, %v6028
  %v6030 = vsel %vm3141, %v5251, 0.0
  %v6031 = vadd.f32 %v6029, %v6030
  %v6032 = vsel %vm3141, %v5252, 0.0
  %v6033 = vadd.f32 %v6031, %v6032
  %v6034 = vsel %vm3141, %v5253, 0.0
  %v6035 = vadd.f32 %v6033, %v6034
  %v6036 = vsel %vm3141, %v5254, 0.0
  %v6037 = vadd.f32 %v6035, %v6036
  %v6038 = vsel %vm3141, %v5255, 0.0
  %v6039 = vadd.f32 %v6037, %v6038
  %v6040 = vsel %vm3141, %v5256, 0.0
  %v6041 = vadd.f32 %v6039, %v6040
  %v6042 = vsel %vm3141, %v5257, 0.0
  %v6043 = vadd.f32 %v6041, %v6042
  %v6044 = vsel %vm3141, %v5258, 0.0
  %v6045 = vadd.f32 %v6043, %v6044
  %v6046 = vsel %vm3141, %v5259, 0.0
  %v6047 = vadd.f32 %v6045, %v6046
  %v6048 = vsel %vm3141, %v5260, 0.0
  %v6049 = vadd.f32 %v6047, %v6048
  %v6050 = vsel %vm3141, %v5261, 0.0
  %v6051 = vadd.f32 %v6049, %v6050
  %v6052 = vsel %vm3141, %v5262, 0.0
  %v6053 = vadd.f32 %v6051, %v6052
  %v6054 = vsel %vm3141, %v5263, 0.0
  %v6055 = vadd.f32 %v6053, %v6054
  %v6056 = vsel %vm3141, %v5264, 0.0
  %v6057 = vadd.f32 %v6055, %v6056
  %v6058 = vsel %vm3141, %v5265, 0.0
  %v6059 = vadd.f32 %v6057, %v6058
  %v6060 = vsel %vm3141, %v5266, 0.0
  %v6061 = vadd.f32 %v6059, %v6060
  %v6062 = vsel %vm3141, %v5267, 0.0
  %v6063 = vadd.f32 %v6061, %v6062
  %v6064 = vsel %vm3141, %v5268, 0.0
  %v6065 = vadd.f32 %v6063, %v6064
  %v6066 = vsel %vm3141, %v5269, 0.0
  %v6067 = vadd.f32 %v6065, %v6066
  %v6068 = vsel %vm3141, %v5270, 0.0
  %v6069 = vadd.f32 %v6067, %v6068
  %v6070 = vsel %vm3141, %v5271, 0.0
  %v6071 = vadd.f32 %v6069, %v6070
  %v6072 = vsel %vm3141, %v5272, 0.0
  %v6073 = vadd.f32 %v6071, %v6072
  %v6074 = vsel %vm3141, %v5273, 0.0
  %v6075 = vadd.f32 %v6073, %v6074
  %v6076 = vsel %vm3141, %v5274, 0.0
  %v6077 = vadd.f32 %v6075, %v6076
  %v6078 = vsel %vm3141, %v5275, 0.0
  %v6079 = vadd.f32 %v6077, %v6078
  %v6080 = vsel %vm3141, %v5276, 0.0
  %v6081 = vadd.f32 %v6079, %v6080
  %v6082 = vsel %vm3141, %v5277, 0.0
  %v6083 = vadd.f32 %v6081, %v6082
  %v6084 = vsel %vm3141, %v5278, 0.0
  %v6085 = vadd.f32 %v6083, %v6084
  %v6086 = vsel %vm3141, %v5279, 0.0
  %v6087 = vadd.f32 %v6085, %v6086
  %v6088 = vsel %vm3141, %v5280, 0.0
  %v6089 = vadd.f32 %v6087, %v6088
  %v6090 = vsel %vm3141, %v5281, 0.0
  %v6091 = vadd.f32 %v6089, %v6090
  %v6092 = vsel %vm3141, %v5282, 0.0
  %v6093 = vadd.f32 %v6091, %v6092
  %v6094 = vsel %vm3141, %v5283, 0.0
  %v6095 = vadd.f32 %v6093, %v6094
  %v6096 = vsel %vm3141, %v5284, 0.0
  %v6097 = vadd.f32 %v6095, %v6096
  %v6098 = vsel %vm3141, %v5285, 0.0
  %v6099 = vadd.f32 %v6097, %v6098
  %v6100 = vsel %vm3141, %v5286, 0.0
  %v6101 = vadd.f32 %v6099, %v6100
  %v6102 = vsel %vm3141, %v5287, 0.0
  %v6103 = vadd.f32 %v6101, %v6102
  %v6104 = vsel %vm3141, %v5288, 0.0
  %v6105 = vadd.f32 %v6103, %v6104
  %v6106 = vsel %vm3141, %v5289, 0.0
  %v6107 = vadd.f32 %v6105, %v6106
  %v6108 = vsel %vm3141, %v5290, 0.0
  %v6109 = vadd.f32 %v6107, %v6108
  %v6110 = vsel %vm3141, %v5291, 0.0
  %v6111 = vadd.f32 %v6109, %v6110
  %v6112 = vsel %vm3141, %v5292, 0.0
  %v6113 = vadd.f32 %v6111, %v6112
  %v6114 = vsel %vm3141, %v5293, 0.0
  %v6115 = vadd.f32 %v6113, %v6114
  %v6116 = vsel %vm3141, %v5294, 0.0
  %v6117 = vadd.f32 %v6115, %v6116
  %v6118 = vsel %vm3141, %v5295, 0.0
  %v6119 = vadd.f32 %v6117, %v6118
  %v6120 = vsel %vm3141, %v5296, 0.0
  %v6121 = vadd.f32 %v6119, %v6120
  %v6122 = vsel %vm3141, %v5297, 0.0
  %v6123 = vadd.f32 %v6121, %v6122
  %v6124 = vsel %vm3141, %v5298, 0.0
  %v6125 = vadd.f32 %v6123, %v6124
  %v6126 = vsel %vm3141, %v5299, 0.0
  %v6127 = vadd.f32 %v6125, %v6126
  %v6128 = vsel %vm3141, %v5300, 0.0
  %v6129 = vadd.f32 %v6127, %v6128
  %v6130 = vsel %vm3141, %v5301, 0.0
  %v6131 = vadd.f32 %v6129, %v6130
  %v6132 = vsel %vm3141, %v5302, 0.0
  %v6133 = vadd.f32 %v6131, %v6132
  %v6134 = vsel %vm3141, %v5303, 0.0
  %v6135 = vadd.f32 %v6133, %v6134
  %v6136 = vsel %vm3141, %v5304, 0.0
  %v6137 = vadd.f32 %v6135, %v6136
  %v6138 = vsel %vm3141, %v5305, 0.0
  %v6139 = vadd.f32 %v6137, %v6138
  %v6140 = vsel %vm3141, %v5306, 0.0
  %v6141 = vadd.f32 %v6139, %v6140
  %v6142 = vsel %vm3141, %v5307, 0.0
  %v6143 = vadd.f32 %v6141, %v6142
  %v6144 = vsel %vm3141, %v5308, 0.0
  %v6145 = vadd.f32 %v6143, %v6144
  %v6146 = vsel %vm3141, %v5309, 0.0
  %v6147 = vadd.f32 %v6145, %v6146
  %v6148 = vsel %vm3141, %v5310, 0.0
  %v6149 = vadd.f32 %v6147, %v6148
  %v6150 = vsel %vm3141, %v5311, 0.0
  %v6151 = vadd.f32 %v6149, %v6150
  %v6152 = vsel %vm3141, %v5312, 0.0
  %v6153 = vadd.f32 %v6151, %v6152
  %v6154 = vsel %vm3141, %v5313, 0.0
  %v6155 = vadd.f32 %v6153, %v6154
  %v6156 = vsel %vm3141, %v5314, 0.0
  %v6157 = vadd.f32 %v6155, %v6156
  %v6158 = vsel %vm3141, %v5315, 0.0
  %v6159 = vadd.f32 %v6157, %v6158
  %v6160 = vsel %vm3141, %v5316, 0.0
  %v6161 = vadd.f32 %v6159, %v6160
  %v6162 = vsel %vm3141, %v5317, 0.0
  %v6163 = vadd.f32 %v6161, %v6162
  %v6164 = vsel %vm3141, %v5318, 0.0
  %v6165 = vadd.f32 %v6163, %v6164
  %v6166 = vsel %vm3141, %v5319, 0.0
  %v6167 = vadd.f32 %v6165, %v6166
  %v6168 = vsel %vm3141, %v5320, 0.0
  %v6169 = vadd.f32 %v6167, %v6168
  %v6170 = vsel %vm3141, %v5321, 0.0
  %v6171 = vadd.f32 %v6169, %v6170
  %v6172 = vsel %vm3141, %v5322, 0.0
  %v6173 = vadd.f32 %v6171, %v6172
  %v6174 = vsel %vm3141, %v5323, 0.0
  %v6175 = vadd.f32 %v6173, %v6174
  %v6176 = vsel %vm3141, %v5324, 0.0
  %v6177 = vadd.f32 %v6175, %v6176
  %v6178 = vsel %vm3141, %v5325, 0.0
  %v6179 = vadd.f32 %v6177, %v6178
  %v6180 = vsel %vm3141, %v5326, 0.0
  %v6181 = vadd.f32 %v6179, %v6180
  %v6182 = vsel %vm3141, %v5327, 0.0
  %v6183 = vadd.f32 %v6181, %v6182
  %v6184 = vsel %vm3141, %v5328, 0.0
  %v6185 = vadd.f32 %v6183, %v6184
  %v6186 = vsel %vm3141, %v5329, 0.0
  %v6187 = vadd.f32 %v6185, %v6186
  %v6188 = vsel %vm3141, %v5330, 0.0
  %v6189 = vadd.f32 %v6187, %v6188
  %v6190 = vsel %vm3141, %v5331, 0.0
  %v6191 = vadd.f32 %v6189, %v6190
  %v6192 = vsel %vm3141, %v5332, 0.0
  %v6193 = vadd.f32 %v6191, %v6192
  %v6194 = vsel %vm3141, %v5333, 0.0
  %v6195 = vadd.f32 %v6193, %v6194
  %v6196 = vsel %vm3141, %v5334, 0.0
  %v6197 = vadd.f32 %v6195, %v6196
  %v6198 = vsel %vm3141, %v5335, 0.0
  %v6199 = vadd.f32 %v6197, %v6198
  %v6200 = vsel %vm3141, %v5336, 0.0
  %v6201 = vadd.f32 %v6199, %v6200
  %v6202 = vsel %vm3141, %v5337, 0.0
  %v6203 = vadd.f32 %v6201, %v6202
  %v6204 = vsel %vm3141, %v5338, 0.0
  %v6205 = vadd.f32 %v6203, %v6204
  %v6206 = vsel %vm3141, %v5339, 0.0
  %v6207 = vadd.f32 %v6205, %v6206
  %v6208 = vsel %vm3141, %v5340, 0.0
  %v6209 = vadd.f32 %v6207, %v6208
  %v6210 = vsel %vm3141, %v5341, 0.0
  %v6211 = vadd.f32 %v6209, %v6210
  %v6212 = vsel %vm3141, %v5342, 0.0
  %v6213 = vadd.f32 %v6211, %v6212
  %v6214 = vsel %vm3141, %v5343, 0.0
  %v6215 = vadd.f32 %v6213, %v6214
  %v6216 = vsel %vm3141, %v5344, 0.0
  %v6217 = vadd.f32 %v6215, %v6216
  %v6218 = vsel %vm3141, %v5345, 0.0
  %v6219 = vadd.f32 %v6217, %v6218
  %v6220 = vsel %vm3141, %v5346, 0.0
  %v6221 = vadd.f32 %v6219, %v6220
  %v6222 = vsel %vm3141, %v5347, 0.0
  %v6223 = vadd.f32 %v6221, %v6222
  %v6224 = vsel %vm3141, %v5348, 0.0
  %v6225 = vadd.f32 %v6223, %v6224
  %v6226 = vsel %vm3141, %v5349, 0.0
  %v6227 = vadd.f32 %v6225, %v6226
  %v6228 = vsel %vm3141, %v5350, 0.0
  %v6229 = vadd.f32 %v6227, %v6228
  %v6230 = vsel %vm3141, %v5351, 0.0
  %v6231 = vadd.f32 %v6229, %v6230
  %v6232 = vsel %vm3141, %v5352, 0.0
  %v6233 = vadd.f32 %v6231, %v6232
  %v6234 = vrot.slane %v6233, 4
  %v6235 = vadd.f32 %v6233, %v6234
  %v6236 = vrot.slane %v6235, 2
  %v6237 = vadd.f32 %v6235, %v6236
  %v6238 = vrot.slane %v6237, 1
  %v6239 = vadd.f32 %v6237, %v6238
  %v6240 = vmul.f32 %v6239, 0.00028344672
  %v6241 = vld [vmem:[%s3] sm:$0x1]
  %v6242 = vadd.f32 %v6240, 1e-05
  %v6243 = vrsqrt.pop %v6242
  %v6244 = vmul.f32 %v6243, %v6242
  %v6245 = vmul.f32 %v6244, %v6243
  %v6246 = vmul.f32 0.5, %v6245
  %v6247 = vsub.f32 1.5, %v6246
  %v6248 = vmul.f32 %v6243, %v6247
  %vm6249 = vweird.f32 %v6242
  %vm6250 = vweird.f32 %v6243
  %vm6251 = vmor %vm6249, %vm6250
  %v6252 = vsel %vm6251, %v6243, %v6248
  %v6253 = vmul.f32 %v6241, %v6252
  %vm6254 = vcmask 253952
  %6255 = vst.msk [vmem:[%s6] sm:$0x1] %vm6254, %v6253
  %v6256 = vld [vmem:[%s4] sm:$0x1]
  %v6257 = vmul.f32 %v4470, %v6253
  %v6258 = vsub.f32 %v6256, %v6257
  %6259 = vst.msk [vmem:[%s7] sm:$0x1] %vm6254, %v6258
  // Predicated region
  $region22: #{qnetwork_forward.4} parent=0 // pred_check
    _
  $region23: #{qnetwork_forward.4} parent=0 // pred_check_branch
    %6261 = sbr.rel (0) target = $region25
  $region24: #{qnetwork_forward.4} parent=0 // pred_region
    _
  $region25: #{qnetwork_forward.4} parent=0 // pred_fallthru
    _
  // Predicated region
  $region26: #{qnetwork_forward.4} parent=0 // pred_check
    _
  $region27: #{qnetwork_forward.4} parent=0 // pred_check_branch
    %6263 = sbr.rel (0) target = $region29
  $region28: #{qnetwork_forward.4} parent=0 // pred_region
    _
  $region29: #{qnetwork_forward.4} parent=0 // pred_fallthru
    _
  // Predicated region
  $region30: #{qnetwork_forward.4} parent=0 // pred_check
    _
  $region31: #{qnetwork_forward.4} parent=0 // pred_check_branch
    %6265 = sbr.rel (0) target = $region33
  $region32: #{qnetwork_forward.4} parent=0 // pred_region
    _
  $region33: #{qnetwork_forward.4} parent=0 // pred_fallthru
    _
  // Predicated region
  $region34: #{qnetwork_forward.4} parent=0 // pred_check
    _
  $region35: #{qnetwork_forward.4} parent=0 // pred_check_branch
    %6267 = sbr.rel (0) target = $region37
  $region36: #{qnetwork_forward.4} parent=0 // pred_region
    _
  $region37: #{qnetwork_forward.4} parent=0 // pred_fallthru
    _
  // Predicated region
  $region38: #{qnetwork_forward.4} parent=0 // pred_check
    _
  $region39: #{qnetwork_forward.4} parent=0 // pred_check_branch
    %6269 = sbr.rel (0) target = $region41
  $region40: #{qnetwork_forward.4} parent=0 // pred_region
    _
  $region41: #{qnetwork_forward.4} parent=0 // pred_fallthru
    _
  // Predicated region
  $region42: #{qnetwork_forward.4} parent=0 // pred_check
    _
  $region43: #{qnetwork_forward.4} parent=0 // pred_check_branch
    %6271 = sbr.rel (0) target = $region45
  $region44: #{qnetwork_forward.4} parent=0 // pred_region
    _
  $region45: #{qnetwork_forward.4} parent=0 // pred_fallthru
    _

// kernel: qnetwork_forward.5
$region0: #{qnetwork_forward.5}
  #allocation0 [shape = 'u32[]', space=smem, size = 0x4, offset = 0x4, fixed_abs, tag = 'smem constant byte address 0x4 - core index']
  #allocation1 [shape = 'u32[72,128]{1,0:T(1,128)}', space=vmem, size = 0x9000, scoped, tag = 'internal scratch']
  %s0 = inlined_call_operand.vmem [shape: f32[98,128], index: 0, kind: input, shape index: {}]
  %s1 = inlined_call_operand.vmem [shape: f32[98,128], index: 1, kind: input, shape index: {}]
  %s2 = inlined_call_operand.vmem [shape: f32[98,128], index: 2, kind: input, shape index: {}]
  %s3 = inlined_call_operand.vmem [shape: f32[98,128], index: 3, kind: input, shape index: {}]
  %s4 = inlined_call_operand.vmem [shape: f32[1,128], index: 4, kind: input, shape index: {}]
  %s5 = inlined_call_operand.vmem [shape: f32[1,128], index: 5, kind: input, shape index: {}]
  %s6 = inlined_call_operand.vmem [shape: f32[98,128], index: 6, kind: output, shape index: {}]
  %s7 = sld [smem:[#allocation0]]
  $region34: #{qnetwork_forward.5} parent=0
    _
  %s9 = ssub.s32 1, %s7
  %s10 = scalar_select 0, %s9, %s7
  // Predicated region
  $region2: #{qnetwork_forward.5} parent=0 // pred_check
    _
  $region3: #{qnetwork_forward.5} parent=0 // pred_check_branch
    %12 = sbr.rel (0) target = $region5
  $region4: #{qnetwork_forward.5} parent=0 // pred_region
    _
  $region5: #{qnetwork_forward.5} parent=0 // pred_fallthru
    _
  // Predicated region
  $region6: #{qnetwork_forward.5} parent=0 // pred_check
    _
  $region7: #{qnetwork_forward.5} parent=0 // pred_check_branch
    %14 = sbr.rel (0) target = $region9
  $region8: #{qnetwork_forward.5} parent=0 // pred_region
    _
  $region9: #{qnetwork_forward.5} parent=0 // pred_fallthru
    _
  // Predicated region
  $region10: #{qnetwork_forward.5} parent=0 // pred_check
    _
  $region11: #{qnetwork_forward.5} parent=0 // pred_check_branch
    %16 = sbr.rel (0) target = $region13
  $region12: #{qnetwork_forward.5} parent=0 // pred_region
    _
  $region13: #{qnetwork_forward.5} parent=0 // pred_fallthru
    _
  // Predicated region
  $region14: #{qnetwork_forward.5} parent=0 // pred_check
    _
  $region15: #{qnetwork_forward.5} parent=0 // pred_check_branch
    %18 = sbr.rel (0) target = $region17
  $region16: #{qnetwork_forward.5} parent=0 // pred_region
    _
  $region17: #{qnetwork_forward.5} parent=0 // pred_fallthru
    _
  // Predicated region
  $region18: #{qnetwork_forward.5} parent=0 // pred_check
    _
  $region19: #{qnetwork_forward.5} parent=0 // pred_check_branch
    %20 = sbr.rel (0) target = $region21
  $region20: #{qnetwork_forward.5} parent=0 // pred_region
    _
  $region21: #{qnetwork_forward.5} parent=0 // pred_fallthru
    _
  // Predicated region
  $region22: #{qnetwork_forward.5} parent=0 // pred_check
    _
  $region23: #{qnetwork_forward.5} parent=0 // pred_check_branch
    %22 = sbr.rel (0) target = $region25
  $region24: #{qnetwork_forward.5} parent=0 // pred_region
    _
  $region25: #{qnetwork_forward.5} parent=0 // pred_fallthru
    _
  %v23 = vld [vmem:[%s4] sm:$0x1]
  %v24 = vld [vmem:[%s5] sm:$0x1]
  %v25 = vld [vmem:[%s0] sm:$0xff]
  %v26 = vld [vmem:[%s0 + $0x8] sm:$0xff]
  %v27 = vld [vmem:[%s0 + $0x10] sm:$0xff]
  %v28 = vld [vmem:[%s0 + $0x18] sm:$0xff]
  %v29 = vld [vmem:[%s0 + $0x20] sm:$0xff]
  %v30 = vld [vmem:[%s0 + $0x28] sm:$0xff]
  %v31 = vld [vmem:[%s0 + $0x30] sm:$0xff]
  %v32 = vld [vmem:[%s0 + $0x38] sm:$0xff]
  %v33 = vld [vmem:[%s0 + $0x40] sm:$0xff]
  %v34 = vld [vmem:[%s0 + $0x48] sm:$0xff]
  %v35 = vld [vmem:[%s0 + $0x50] sm:$0xff]
  %v36 = vld [vmem:[%s0 + $0x58] sm:$0xff]
  %v37 = vld [vmem:[%s0 + $0x60] sm:$0x3]
  %v39 = vperm.slane %v23, 0
  %v41 = vmul.f32 %v25, %v39
  %v42 = vmul.f32 %v26, %v39
  %v43 = vmul.f32 %v27, %v39
  %v44 = vmul.f32 %v28, %v39
  %v45 = vmul.f32 %v29, %v39
  %v46 = vmul.f32 %v30, %v39
  %v47 = vmul.f32 %v31, %v39
  %v48 = vmul.f32 %v32, %v39
  %v49 = vmul.f32 %v33, %v39
  %v50 = vmul.f32 %v34, %v39
  %v51 = vmul.f32 %v35, %v39
  %v52 = vmul.f32 %v36, %v39
  %v53 = vmul.f32 %v37, %v39
  %v55 = vperm.slane %v24, 0
  %v57 = vadd.f32 %v41, %v55
  %v58 = vadd.f32 %v42, %v55
  %v59 = vadd.f32 %v43, %v55
  %v60 = vadd.f32 %v44, %v55
  %v61 = vadd.f32 %v45, %v55
  %v62 = vadd.f32 %v46, %v55
  %v63 = vadd.f32 %v47, %v55
  %v64 = vadd.f32 %v48, %v55
  %v65 = vadd.f32 %v49, %v55
  %v66 = vadd.f32 %v50, %v55
  %v67 = vadd.f32 %v51, %v55
  %v68 = vadd.f32 %v52, %v55
  %v69 = vadd.f32 %v53, %v55
  %v70 = vld [vmem:[%s1] sm:$0xff]
  %v71 = vld [vmem:[%s1 + $0x8] sm:$0xff]
  %v72 = vld [vmem:[%s1 + $0x10] sm:$0xff]
  %v73 = vld [vmem:[%s1 + $0x18] sm:$0xff]
  %v74 = vld [vmem:[%s1 + $0x20] sm:$0xff]
  %v75 = vld [vmem:[%s1 + $0x28] sm:$0xff]
  %v76 = vld [vmem:[%s1 + $0x30] sm:$0xff]
  %v77 = vld [vmem:[%s1 + $0x38] sm:$0xff]
  %v78 = vld [vmem:[%s1 + $0x40] sm:$0xff]
  %v79 = vld [vmem:[%s1 + $0x48] sm:$0xff]
  %v80 = vld [vmem:[%s1 + $0x50] sm:$0xff]
  %v81 = vld [vmem:[%s1 + $0x58] sm:$0xff]
  %v82 = vld [vmem:[%s1 + $0x60] sm:$0x3]
  %v83 = vmul.f32 %v70, %v39
  %v84 = vmul.f32 %v71, %v39
  %v85 = vmul.f32 %v72, %v39
  %v86 = vmul.f32 %v73, %v39
  %v87 = vmul.f32 %v74, %v39
  %v88 = vmul.f32 %v75, %v39
  %v89 = vmul.f32 %v76, %v39
  %v90 = vmul.f32 %v77, %v39
  %v91 = vmul.f32 %v78, %v39
  %v92 = vmul.f32 %v79, %v39
  %v93 = vmul.f32 %v80, %v39
  %v94 = vmul.f32 %v81, %v39
  %v95 = vmul.f32 %v82, %v39
  %v96 = vadd.f32 %v83, %v55
  %v97 = vadd.f32 %v84, %v55
  %v98 = vadd.f32 %v85, %v55
  %v99 = vadd.f32 %v86, %v55
  %v100 = vadd.f32 %v87, %v55
  %v101 = vadd.f32 %v88, %v55
  %v102 = vadd.f32 %v89, %v55
  %v103 = vadd.f32 %v90, %v55
  %v104 = vadd.f32 %v91, %v55
  %v105 = vadd.f32 %v92, %v55
  %v106 = vadd.f32 %v93, %v55
  %v107 = vadd.f32 %v94, %v55
  %v108 = vadd.f32 %v95, %v55
  %v109 = vmax.f32 %v57, %v96
  %v110 = vmax.f32 %v58, %v97
  %v111 = vmax.f32 %v59, %v98
  %v112 = vmax.f32 %v60, %v99
  %v113 = vmax.f32 %v61, %v100
  %v114 = vmax.f32 %v62, %v101
  %v115 = vmax.f32 %v63, %v102
  %v116 = vmax.f32 %v64, %v103
  %v117 = vmax.f32 %v65, %v104
  %v118 = vmax.f32 %v66, %v105
  %v119 = vmax.f32 %v67, %v106
  %v120 = vmax.f32 %v68, %v107
  %v121 = vmax.f32 %v69, %v108
  %v122 = vld [vmem:[%s2] sm:$0xff]
  %v123 = vld [vmem:[%s2 + $0x8] sm:$0xff]
  %v124 = vld [vmem:[%s2 + $0x10] sm:$0xff]
  %v125 = vld [vmem:[%s2 + $0x18] sm:$0xff]
  %v126 = vld [vmem:[%s2 + $0x20] sm:$0xff]
  %v127 = vld [vmem:[%s2 + $0x28] sm:$0xff]
  %v128 = vld [vmem:[%s2 + $0x30] sm:$0xff]
  %v129 = vld [vmem:[%s2 + $0x38] sm:$0xff]
  %v130 = vld [vmem:[%s2 + $0x40] sm:$0xff]
  %v131 = vld [vmem:[%s2 + $0x48] sm:$0xff]
  %v132 = vld [vmem:[%s2 + $0x50] sm:$0xff]
  %v133 = vld [vmem:[%s2 + $0x58] sm:$0xff]
  %v134 = vld [vmem:[%s2 + $0x60] sm:$0x3]
  %v135 = vmul.f32 %v122, %v39
  %v136 = vmul.f32 %v123, %v39
  %v137 = vmul.f32 %v124, %v39
  %v138 = vmul.f32 %v125, %v39
  %v139 = vmul.f32 %v126, %v39
  %v140 = vmul.f32 %v127, %v39
  %v141 = vmul.f32 %v128, %v39
  %v142 = vmul.f32 %v129, %v39
  %v143 = vmul.f32 %v130, %v39
  %v144 = vmul.f32 %v131, %v39
  %v145 = vmul.f32 %v132, %v39
  %v146 = vmul.f32 %v133, %v39
  %v147 = vmul.f32 %v134, %v39
  %v148 = vadd.f32 %v135, %v55
  %v149 = vadd.f32 %v136, %v55
  %v150 = vadd.f32 %v137, %v55
  %v151 = vadd.f32 %v138, %v55
  %v152 = vadd.f32 %v139, %v55
  %v153 = vadd.f32 %v140, %v55
  %v154 = vadd.f32 %v141, %v55
  %v155 = vadd.f32 %v142, %v55
  %v156 = vadd.f32 %v143, %v55
  %v157 = vadd.f32 %v144, %v55
  %v158 = vadd.f32 %v145, %v55
  %v159 = vadd.f32 %v146, %v55
  %v160 = vadd.f32 %v147, %v55
  %v161 = vld [vmem:[%s3] sm:$0xff]
  %v162 = vld [vmem:[%s3 + $0x8] sm:$0xff]
  %v163 = vld [vmem:[%s3 + $0x10] sm:$0xff]
  %v164 = vld [vmem:[%s3 + $0x18] sm:$0xff]
  %v165 = vld [vmem:[%s3 + $0x20] sm:$0xff]
  %v166 = vld [vmem:[%s3 + $0x28] sm:$0xff]
  %v167 = vld [vmem:[%s3 + $0x30] sm:$0xff]
  %v168 = vld [vmem:[%s3 + $0x38] sm:$0xff]
  %v169 = vld [vmem:[%s3 + $0x40] sm:$0xff]
  %v170 = vld [vmem:[%s3 + $0x48] sm:$0xff]
  %v171 = vld [vmem:[%s3 + $0x50] sm:$0xff]
  %v172 = vld [vmem:[%s3 + $0x58] sm:$0xff]
  %v173 = vld [vmem:[%s3 + $0x60] sm:$0x3]
  %v174 = vmul.f32 %v161, %v39
  %v175 = vmul.f32 %v162, %v39
  %v176 = vmul.f32 %v163, %v39
  %v177 = vmul.f32 %v164, %v39
  %v178 = vmul.f32 %v165, %v39
  %v179 = vmul.f32 %v166, %v39
  %v180 = vmul.f32 %v167, %v39
  %v181 = vmul.f32 %v168, %v39
  %v182 = vmul.f32 %v169, %v39
  %v183 = vmul.f32 %v170, %v39
  %v184 = vmul.f32 %v171, %v39
  %v185 = vmul.f32 %v172, %v39
  %v186 = vmul.f32 %v173, %v39
  %v187 = vadd.f32 %v174, %v55
  %v188 = vadd.f32 %v175, %v55
  %v189 = vadd.f32 %v176, %v55
  %v190 = vadd.f32 %v177, %v55
  %v191 = vadd.f32 %v178, %v55
  %v192 = vadd.f32 %v179, %v55
  %v193 = vadd.f32 %v180, %v55
  %v194 = vadd.f32 %v181, %v55
  %v195 = vadd.f32 %v182, %v55
  %v196 = vadd.f32 %v183, %v55
  %v197 = vadd.f32 %v184, %v55
  %v198 = vadd.f32 %v185, %v55
  %v199 = vadd.f32 %v186, %v55
  %v200 = vmax.f32 %v148, %v187
  %v201 = vmax.f32 %v149, %v188
  %v202 = vmax.f32 %v150, %v189
  %v203 = vmax.f32 %v151, %v190
  %v204 = vmax.f32 %v152, %v191
  %v205 = vmax.f32 %v153, %v192
  %v206 = vmax.f32 %v154, %v193
  %v207 = vmax.f32 %v155, %v194
  %v208 = vmax.f32 %v156, %v195
  %v209 = vmax.f32 %v157, %v196
  %v210 = vmax.f32 %v158, %v197
  %v211 = vmax.f32 %v159, %v198
  %v212 = vmax.f32 %v160, %v199
  %v213 = vmax.f32 %v109, %v200
  %v214 = vmax.f32 %v110, %v201
  %v215 = vmax.f32 %v111, %v202
  %v216 = vmax.f32 %v112, %v203
  %v217 = vmax.f32 %v113, %v204
  %v218 = vmax.f32 %v114, %v205
  %v219 = vmax.f32 %v115, %v206
  %v220 = vmax.f32 %v116, %v207
  %v221 = vmax.f32 %v117, %v208
  %v222 = vmax.f32 %v118, %v209
  %v223 = vmax.f32 %v119, %v210
  %v224 = vmax.f32 %v120, %v211
  %v225 = vmax.f32 %v121, %v212
  %v226 = vmax.f32 %v213, 0.0
  %v227 = vmax.f32 %v214, 0.0
  %v228 = vmax.f32 %v215, 0.0
  %v229 = vmax.f32 %v216, 0.0
  %v230 = vmax.f32 %v217, 0.0
  %v231 = vmax.f32 %v218, 0.0
  %v232 = vmax.f32 %v219, 0.0
  %v233 = vmax.f32 %v220, 0.0
  %v234 = vmax.f32 %v221, 0.0
  %v235 = vmax.f32 %v222, 0.0
  %v236 = vmax.f32 %v223, 0.0
  %v237 = vmax.f32 %v224, 0.0
  %v238 = vmax.f32 %v225, 0.0
  %239 = vst [vmem:[%s6] sm:$0xff] %v226
  %240 = vst [vmem:[%s6 + $0x8] sm:$0xff] %v227
  %241 = vst [vmem:[%s6 + $0x10] sm:$0xff] %v228
  %242 = vst [vmem:[%s6 + $0x18] sm:$0xff] %v229
  %243 = vst [vmem:[%s6 + $0x20] sm:$0xff] %v230
  %244 = vst [vmem:[%s6 + $0x28] sm:$0xff] %v231
  %245 = vst [vmem:[%s6 + $0x30] sm:$0xff] %v232
  %246 = vst [vmem:[%s6 + $0x38] sm:$0xff] %v233
  %247 = vst [vmem:[%s6 + $0x40] sm:$0xff] %v234
  %248 = vst [vmem:[%s6 + $0x48] sm:$0xff] %v235
  %249 = vst [vmem:[%s6 + $0x50] sm:$0xff] %v236
  %250 = vst [vmem:[%s6 + $0x58] sm:$0xff] %v237
  %251 = vst [vmem:[%s6 + $0x60] sm:$0x3] %v238
  // Predicated region
  $region26: #{qnetwork_forward.5} parent=0 // pred_check
    _
  $region27: #{qnetwork_forward.5} parent=0 // pred_check_branch
    %253 = sbr.rel (0) target = $region29
  $region28: #{qnetwork_forward.5} parent=0 // pred_region
    _
  $region29: #{qnetwork_forward.5} parent=0 // pred_fallthru
    _
  // Predicated region
  $region30: #{qnetwork_forward.5} parent=0 // pred_check
    _
  $region31: #{qnetwork_forward.5} parent=0 // pred_check_branch
    %255 = sbr.rel (0) target = $region33
  $region32: #{qnetwork_forward.5} parent=0 // pred_region
    _
  $region33: #{qnetwork_forward.5} parent=0 // pred_fallthru
    _

// kernel: qnetwork_forward.6
$region0: #{qnetwork_forward.6}
  #allocation0 [shape = 'u32[]', space=smem, size = 0x4, offset = 0x4, fixed_abs, tag = 'smem constant byte address 0x4 - core index']
  #allocation1 [shape = 'u32[72,128]{1,0:T(1,128)}', space=vmem, size = 0x9000, scoped, tag = 'internal scratch']
  %s0 = inlined_call_operand.vmem [shape: f32[392,288], index: 0, kind: input, shape index: {}]
  %s1 = inlined_call_operand.vmem [shape: f32[288,64], index: 1, kind: input, shape index: {}]
  %s2 = inlined_call_operand.vmem [shape: f32[1,64], index: 2, kind: input, shape index: {}]
  %s3 = inlined_call_operand.vmem [shape: f32[1,64], index: 3, kind: input, shape index: {}]
  %s4 = inlined_call_operand.vmem [shape: f32[1,64], index: 4, kind: input, shape index: {}]
  %s5 = inlined_call_operand.vmem [shape: f32[392,64], index: 5, kind: output, shape index: {0}]
  %s6 = inlined_call_operand.vmem [shape: f32[1,64], index: 6, kind: output, shape index: {1}]
  %s7 = inlined_call_operand.vmem [shape: f32[1,64], index: 7, kind: output, shape index: {2}]
  %8 = xla_tuple %s5, %s6, %s7
  %s9 = sld [smem:[#allocation0]]
  $region46: #{qnetwork_forward.6} parent=0
    _
  %s11 = ssub.s32 1, %s9
  %s12 = scalar_select 0, %s11, %s9
  // Predicated region
  $region2: #{qnetwork_forward.6} parent=0 // pred_check
    _
  $region3: #{qnetwork_forward.6} parent=0 // pred_check_branch
    %14 = sbr.rel (0) target = $region5
  $region4: #{qnetwork_forward.6} parent=0 // pred_region
    _
  $region5: #{qnetwork_forward.6} parent=0 // pred_fallthru
    _
  // Predicated region
  $region6: #{qnetwork_forward.6} parent=0 // pred_check
    _
  $region7: #{qnetwork_forward.6} parent=0 // pred_check_branch
    %16 = sbr.rel (0) target = $region9
  $region8: #{qnetwork_forward.6} parent=0 // pred_region
    _
  $region9: #{qnetwork_forward.6} parent=0 // pred_fallthru
    _
  // Predicated region
  $region10: #{qnetwork_forward.6} parent=0 // pred_check
    _
  $region11: #{qnetwork_forward.6} parent=0 // pred_check_branch
    %18 = sbr.rel (0) target = $region13
  $region12: #{qnetwork_forward.6} parent=0 // pred_region
    _
  $region13: #{qnetwork_forward.6} parent=0 // pred_fallthru
    _
  // Predicated region
  $region14: #{qnetwork_forward.6} parent=0 // pred_check
    _
  $region15: #{qnetwork_forward.6} parent=0 // pred_check_branch
    %20 = sbr.rel (0) target = $region17
  $region16: #{qnetwork_forward.6} parent=0 // pred_region
    _
  $region17: #{qnetwork_forward.6} parent=0 // pred_fallthru
    _
  // Predicated region
  $region18: #{qnetwork_forward.6} parent=0 // pred_check
    _
  $region19: #{qnetwork_forward.6} parent=0 // pred_check_branch
    %22 = sbr.rel (0) target = $region21
  $region20: #{qnetwork_forward.6} parent=0 // pred_region
    _
  $region21: #{qnetwork_forward.6} parent=0 // pred_fallthru
    _
  %v23 = vld [vmem:[%s0] sm:$0xff]
  %v24 = vld [vmem:[%s0 + $0x8] sm:$0xff]
  %v25 = vld [vmem:[%s0 + $0x10] sm:$0xff]
  %v26 = vld [vmem:[%s0 + $0x18] sm:$0xff]
  %v27 = vld [vmem:[%s0 + $0x20] sm:$0xff]
  %v28 = vld [vmem:[%s0 + $0x28] sm:$0xff]
  %v29 = vld [vmem:[%s0 + $0x30] sm:$0xff]
  %v30 = vld [vmem:[%s0 + $0x38] sm:$0xff]
  %v31 = vld [vmem:[%s0 + $0x40] sm:$0xff]
  %v32 = vld [vmem:[%s0 + $0x48] sm:$0xff]
  %v33 = vld [vmem:[%s0 + $0x50] sm:$0xff]
  %v34 = vld [vmem:[%s0 + $0x58] sm:$0xff]
  %v35 = vld [vmem:[%s0 + $0x60] sm:$0xff]
  %v36 = vld [vmem:[%s0 + $0x68] sm:$0xff]
  %v37 = vld [vmem:[%s0 + $0x70] sm:$0xff]
  %v38 = vld [vmem:[%s0 + $0x78] sm:$0xff]
  %v39 = vld [vmem:[%s0 + $0x80] sm:$0xff]
  %v40 = vld [vmem:[%s0 + $0x88] sm:$0xff]
  %v41 = vld [vmem:[%s0 + $0x90] sm:$0xff]
  %v42 = vld [vmem:[%s0 + $0x98] sm:$0xff]
  %v43 = vld [vmem:[%s0 + $0xa0] sm:$0xff]
  %v44 = vld [vmem:[%s0 + $0xa8] sm:$0xff]
  %v45 = vld [vmem:[%s0 + $0xb0] sm:$0xff]
  %v46 = vld [vmem:[%s0 + $0xb8] sm:$0xff]
  %v47 = vld [vmem:[%s0 + $0xc0] sm:$0xff]
  %v48 = vld [vmem:[%s0 + $0xc8] sm:$0xff]
  %v49 = vld [vmem:[%s0 + $0xd0] sm:$0xff]
  %v50 = vld [vmem:[%s0 + $0xd8] sm:$0xff]
  %v51 = vld [vmem:[%s0 + $0xe0] sm:$0xff]
  %v52 = vld [vmem:[%s0 + $0xe8] sm:$0xff]
  %v53 = vld [vmem:[%s0 + $0xf0] sm:$0xff]
  %v54 = vld [vmem:[%s0 + $0xf8] sm:$0xff]
  %v55 = vld [vmem:[%s0 + $0x100] sm:$0xff]
  %v56 = vld [vmem:[%s0 + $0x108] sm:$0xff]
  %v57 = vld [vmem:[%s0 + $0x110] sm:$0xff]
  %v58 = vld [vmem:[%s0 + $0x118] sm:$0xff]
  %v59 = vld [vmem:[%s0 + $0x120] sm:$0xff]
  %v60 = vld [vmem:[%s0 + $0x128] sm:$0xff]
  %v61 = vld [vmem:[%s0 + $0x130] sm:$0xff]
  %v62 = vld [vmem:[%s0 + $0x138] sm:$0xff]
  %v63 = vld [vmem:[%s0 + $0x140] sm:$0xff]
  %v64 = vld [vmem:[%s0 + $0x148] sm:$0xff]
  %v65 = vld [vmem:[%s0 + $0x150] sm:$0xff]
  %v66 = vld [vmem:[%s0 + $0x158] sm:$0xff]
  %v67 = vld [vmem:[%s0 + $0x160] sm:$0xff]
  %v68 = vld [vmem:[%s0 + $0x168] sm:$0xff]
  %v69 = vld [vmem:[%s0 + $0x170] sm:$0xff]
  %v70 = vld [vmem:[%s0 + $0x178] sm:$0xff]
  %v71 = vld [vmem:[%s0 + $0x180] sm:$0xff]
  %v72 = vld [vmem:[%s0 + $0x188] sm:$0xff]
  %v73 = vld [vmem:[%s0 + $0x190] sm:$0xff]
  %v74 = vld [vmem:[%s0 + $0x198] sm:$0xff]
  %v75 = vld [vmem:[%s0 + $0x1a0] sm:$0xff]
  %v76 = vld [vmem:[%s0 + $0x1a8] sm:$0xff]
  %v77 = vld [vmem:[%s0 + $0x1b0] sm:$0xff]
  %v78 = vld [vmem:[%s0 + $0x1b8] sm:$0xff]
  %v79 = vld [vmem:[%s0 + $0x1c0] sm:$0xff]
  %v80 = vld [vmem:[%s0 + $0x1c8] sm:$0xff]
  %v81 = vld [vmem:[%s0 + $0x1d0] sm:$0xff]
  %v82 = vld [vmem:[%s0 + $0x1d8] sm:$0xff]
  %v83 = vld [vmem:[%s0 + $0x1e0] sm:$0xff]
  %v84 = vld [vmem:[%s0 + $0x1e8] sm:$0xff]
  %v85 = vld [vmem:[%s0 + $0x1f0] sm:$0xff]
  %v86 = vld [vmem:[%s0 + $0x1f8] sm:$0xff]
  %v87 = vld [vmem:[%s0 + $0x200] sm:$0xff]
  %v88 = vld [vmem:[%s0 + $0x208] sm:$0xff]
  %v89 = vld [vmem:[%s0 + $0x210] sm:$0xff]
  %v90 = vld [vmem:[%s0 + $0x218] sm:$0xff]
  %v91 = vld [vmem:[%s0 + $0x220] sm:$0xff]
  %v92 = vld [vmem:[%s0 + $0x228] sm:$0xff]
  %v93 = vld [vmem:[%s0 + $0x230] sm:$0xff]
  %v94 = vld [vmem:[%s0 + $0x238] sm:$0xff]
  %v95 = vld [vmem:[%s0 + $0x240] sm:$0xff]
  %v96 = vld [vmem:[%s0 + $0x248] sm:$0xff]
  %v97 = vld [vmem:[%s0 + $0x250] sm:$0xff]
  %v98 = vld [vmem:[%s0 + $0x258] sm:$0xff]
  %v99 = vld [vmem:[%s0 + $0x260] sm:$0xff]
  %v100 = vld [vmem:[%s0 + $0x268] sm:$0xff]
  %v101 = vld [vmem:[%s0 + $0x270] sm:$0xff]
  %v102 = vld [vmem:[%s0 + $0x278] sm:$0xff]
  %v103 = vld [vmem:[%s0 + $0x280] sm:$0xff]
  %v104 = vld [vmem:[%s0 + $0x288] sm:$0xff]
  %v105 = vld [vmem:[%s0 + $0x290] sm:$0xff]
  %v106 = vld [vmem:[%s0 + $0x298] sm:$0xff]
  %v107 = vld [vmem:[%s0 + $0x2a0] sm:$0xff]
  %v108 = vld [vmem:[%s0 + $0x2a8] sm:$0xff]
  %v109 = vld [vmem:[%s0 + $0x2b0] sm:$0xff]
  %v110 = vld [vmem:[%s0 + $0x2b8] sm:$0xff]
  %v111 = vld [vmem:[%s0 + $0x2c0] sm:$0xff]
  %v112 = vld [vmem:[%s0 + $0x2c8] sm:$0xff]
  %v113 = vld [vmem:[%s0 + $0x2d0] sm:$0xff]
  %v114 = vld [vmem:[%s0 + $0x2d8] sm:$0xff]
  %v115 = vld [vmem:[%s0 + $0x2e0] sm:$0xff]
  %v116 = vld [vmem:[%s0 + $0x2e8] sm:$0xff]
  %v117 = vld [vmem:[%s0 + $0x2f0] sm:$0xff]
  %v118 = vld [vmem:[%s0 + $0x2f8] sm:$0xff]
  %v119 = vld [vmem:[%s0 + $0x300] sm:$0xff]
  %v120 = vld [vmem:[%s0 + $0x308] sm:$0xff]
  %v121 = vld [vmem:[%s0 + $0x310] sm:$0xff]
  %v122 = vld [vmem:[%s0 + $0x318] sm:$0xff]
  %v123 = vld [vmem:[%s0 + $0x320] sm:$0xff]
  %v124 = vld [vmem:[%s0 + $0x328] sm:$0xff]
  %v125 = vld [vmem:[%s0 + $0x330] sm:$0xff]
  %v126 = vld [vmem:[%s0 + $0x338] sm:$0xff]
  %v127 = vld [vmem:[%s0 + $0x340] sm:$0xff]
  %v128 = vld [vmem:[%s0 + $0x348] sm:$0xff]
  %v129 = vld [vmem:[%s0 + $0x350] sm:$0xff]
  %v130 = vld [vmem:[%s0 + $0x358] sm:$0xff]
  %v131 = vld [vmem:[%s0 + $0x360] sm:$0xff]
  %v132 = vld [vmem:[%s0 + $0x368] sm:$0xff]
  %v133 = vld [vmem:[%s0 + $0x370] sm:$0xff]
  %v134 = vld [vmem:[%s0 + $0x378] sm:$0xff]
  %v135 = vld [vmem:[%s0 + $0x380] sm:$0xff]
  %v136 = vld [vmem:[%s0 + $0x388] sm:$0xff]
  %v137 = vld [vmem:[%s0 + $0x390] sm:$0xff]
  %v138 = vld [vmem:[%s0 + $0x398] sm:$0xff]
  %v139 = vld [vmem:[%s0 + $0x3a0] sm:$0xff]
  %v140 = vld [vmem:[%s0 + $0x3a8] sm:$0xff]
  %v141 = vld [vmem:[%s0 + $0x3b0] sm:$0xff]
  %v142 = vld [vmem:[%s0 + $0x3b8] sm:$0xff]
  %v143 = vld [vmem:[%s0 + $0x3c0] sm:$0xff]
  %v144 = vld [vmem:[%s0 + $0x3c8] sm:$0xff]
  %v145 = vld [vmem:[%s0 + $0x3d0] sm:$0xff]
  %v146 = vld [vmem:[%s0 + $0x3d8] sm:$0xff]
  %v147 = vld [vmem:[%s0 + $0x3e0] sm:$0xff]
  %v148 = vld [vmem:[%s0 + $0x3e8] sm:$0xff]
  %v149 = vld [vmem:[%s0 + $0x3f0] sm:$0xff]
  %v150 = vld [vmem:[%s0 + $0x3f8] sm:$0xff]
  %v151 = vld [vmem:[%s0 + $0x400] sm:$0xff]
  %v152 = vld [vmem:[%s0 + $0x408] sm:$0xff]
  %v153 = vld [vmem:[%s0 + $0x410] sm:$0xff]
  %v154 = vld [vmem:[%s0 + $0x418] sm:$0xff]
  %v155 = vld [vmem:[%s0 + $0x420] sm:$0xff]
  %v156 = vld [vmem:[%s0 + $0x428] sm:$0xff]
  %v157 = vld [vmem:[%s0 + $0x430] sm:$0xff]
  %v158 = vld [vmem:[%s0 + $0x438] sm:$0xff]
  %v159 = vld [vmem:[%s0 + $0x440] sm:$0xff]
  %v160 = vld [vmem:[%s0 + $0x448] sm:$0xff]
  %v161 = vld [vmem:[%s0 + $0x450] sm:$0xff]
  %v162 = vld [vmem:[%s0 + $0x458] sm:$0xff]
  %v163 = vld [vmem:[%s0 + $0x460] sm:$0xff]
  %v164 = vld [vmem:[%s0 + $0x468] sm:$0xff]
  %v165 = vld [vmem:[%s0 + $0x470] sm:$0xff]
  %v166 = vld [vmem:[%s0 + $0x478] sm:$0xff]
  %v167 = vld [vmem:[%s0 + $0x480] sm:$0xff]
  %v168 = vld [vmem:[%s0 + $0x488] sm:$0xff]
  %v169 = vld [vmem:[%s0 + $0x490] sm:$0xff]
  %v170 = vld [vmem:[%s1] sm:$0xff]
  %v171 = vld [vmem:[%s1 + $0x8] sm:$0xff]
  %v172 = vld [vmem:[%s1 + $0x10] sm:$0xff]
  %v173 = vld [vmem:[%s1 + $0x18] sm:$0xff]
  %v174 = vld [vmem:[%s1 + $0x20] sm:$0xff]
  %v175 = vld [vmem:[%s1 + $0x28] sm:$0xff]
  %v176 = vld [vmem:[%s1 + $0x30] sm:$0xff]
  %v177 = vld [vmem:[%s1 + $0x38] sm:$0xff]
  %v178 = vld [vmem:[%s1 + $0x40] sm:$0xff]
  %v179 = vld [vmem:[%s1 + $0x48] sm:$0xff]
  %v180 = vld [vmem:[%s1 + $0x50] sm:$0xff]
  %v181 = vld [vmem:[%s1 + $0x58] sm:$0xff]
  %v182 = vld [vmem:[%s1 + $0x60] sm:$0xff]
  %v183 = vld [vmem:[%s1 + $0x68] sm:$0xff]
  %v184 = vld [vmem:[%s1 + $0x70] sm:$0xff]
  %v185 = vld [vmem:[%s1 + $0x78] sm:$0xff]
  %v186 = vld [vmem:[%s1 + $0x80] sm:$0xff]
  %v187 = vld [vmem:[%s1 + $0x88] sm:$0xff]
  %v188 = vld [vmem:[%s1 + $0x90] sm:$0xff]
  %v189 = vld [vmem:[%s1 + $0x98] sm:$0xff]
  %v190 = vld [vmem:[%s1 + $0xa0] sm:$0xff]
  %v191 = vld [vmem:[%s1 + $0xa8] sm:$0xff]
  %v192 = vld [vmem:[%s1 + $0xb0] sm:$0xff]
  %v193 = vld [vmem:[%s1 + $0xb8] sm:$0xff]
  %v194 = vld [vmem:[%s1 + $0xc0] sm:$0xff]
  %v195 = vld [vmem:[%s1 + $0xc8] sm:$0xff]
  %v196 = vld [vmem:[%s1 + $0xd0] sm:$0xff]
  %v197 = vld [vmem:[%s1 + $0xd8] sm:$0xff]
  %v198 = vld [vmem:[%s1 + $0xe0] sm:$0xff]
  %v199 = vld [vmem:[%s1 + $0xe8] sm:$0xff]
  %v200 = vld [vmem:[%s1 + $0xf0] sm:$0xff]
  %v201 = vld [vmem:[%s1 + $0xf8] sm:$0xff]
  %v202 = vld [vmem:[%s1 + $0x100] sm:$0xff]
  %v203 = vld [vmem:[%s1 + $0x108] sm:$0xff]
  %v204 = vld [vmem:[%s1 + $0x110] sm:$0xff]
  %v205 = vld [vmem:[%s1 + $0x118] sm:$0xff]
  %v206 = vld [vmem:[%s2] sm:$0x1]
  %v208 = vperm.slane %v206, 0
  %vm210 = vcmask 261120
  %v212 = vsel %vm210, %v25, 0
  %v215 = vsel %vm210, %v28, 0
  %v218 = vsel %vm210, %v31, 0
  %v221 = vsel %vm210, %v34, 0
  %v224 = vsel %vm210, %v37, 0
  %v227 = vsel %vm210, %v40, 0
  %v230 = vsel %vm210, %v43, 0
  %v233 = vsel %vm210, %v46, 0
  %v236 = vsel %vm210, %v49, 0
  %v239 = vsel %vm210, %v52, 0
  %v242 = vsel %vm210, %v55, 0
  %v245 = vsel %vm210, %v58, 0
  %v248 = vsel %vm210, %v61, 0
  %v251 = vsel %vm210, %v64, 0
  %v254 = vsel %vm210, %v67, 0
  %v257 = vsel %vm210, %v70, 0
  %v260 = vsel %vm210, %v73, 0
  %v263 = vsel %vm210, %v76, 0
  %v266 = vsel %vm210, %v79, 0
  %v269 = vsel %vm210, %v82, 0
  %v272 = vsel %vm210, %v85, 0
  %v275 = vsel %vm210, %v88, 0
  %v278 = vsel %vm210, %v91, 0
  %v281 = vsel %vm210, %v94, 0
  %v284 = vsel %vm210, %v97, 0
  %v287 = vsel %vm210, %v100, 0
  %v290 = vsel %vm210, %v103, 0
  %v293 = vsel %vm210, %v106, 0
  %v296 = vsel %vm210, %v109, 0
  %v299 = vsel %vm210, %v112, 0
  %v302 = vsel %vm210, %v115, 0
  %v305 = vsel %vm210, %v118, 0
  %v308 = vsel %vm210, %v121, 0
  %v311 = vsel %vm210, %v124, 0
  %v314 = vsel %vm210, %v127, 0
  %v317 = vsel %vm210, %v130, 0
  %v320 = vsel %vm210, %v133, 0
  %v323 = vsel %vm210, %v136, 0
  %v326 = vsel %vm210, %v139, 0
  %v329 = vsel %vm210, %v142, 0
  %v332 = vsel %vm210, %v145, 0
  %v335 = vsel %vm210, %v148, 0
  %v338 = vsel %vm210, %v151, 0
  %v341 = vsel %vm210, %v154, 0
  %v344 = vsel %vm210, %v157, 0
  %v347 = vsel %vm210, %v160, 0
  %v350 = vsel %vm210, %v163, 0
  %v353 = vsel %vm210, %v166, 0
  %v356 = vsel %vm210, %v169, 0
  %358 = vmatpush.msra.mxu0 %v185
  %359 = vmatpush.msra.mxu0 %v184
  %360 = vmatpush.msra.mxu0 %v183
  %361 = vmatpush.msra.mxu0 %v182
  %362 = vmatpush.msra.mxu0 %v181
  %363 = vmatpush.msra.mxu0 %v180
  %364 = vmatpush.msra.mxu0 %v179
  %365 = vmatpush.msra.mxu0 %v178
  %366 = vmatpush.msra.mxu0 %v177
  %367 = vmatpush.msra.mxu0 %v176
  %368 = vmatpush.msra.mxu0 %v175
  %369 = vmatpush.msra.mxu0 %v174
  %370 = vmatpush.msra.mxu0 %v173
  %371 = vmatpush.msra.mxu0 %v172
  %372 = vmatpush.msra.mxu0 %v171
  %373 = vmatpush.msra.mxu0 %v170
  %374 = vmatmul.f32.gmra.mxu0 %v23
  %v375 = vpop.f32.mrf.mxu0
  %v376 = vadd.f32 %v208, %v375
  %377 = vmatmul.f32.gmra.mxu0 %v26
  %v378 = vpop.f32.mrf.mxu0
  %v379 = vadd.f32 %v208, %v378
  %380 = vmatmul.f32.gmra.mxu0 %v29
  %v381 = vpop.f32.mrf.mxu0
  %v382 = vadd.f32 %v208, %v381
  %383 = vmatmul.f32.gmra.mxu0 %v32
  %v384 = vpop.f32.mrf.mxu0
  %v385 = vadd.f32 %v208, %v384
  %386 = vmatmul.f32.gmra.mxu0 %v35
  %v387 = vpop.f32.mrf.mxu0
  %v388 = vadd.f32 %v208, %v387
  %389 = vmatmul.f32.gmra.mxu0 %v38
  %v390 = vpop.f32.mrf.mxu0
  %v391 = vadd.f32 %v208, %v390
  %392 = vmatmul.f32.gmra.mxu0 %v41
  %v393 = vpop.f32.mrf.mxu0
  %v394 = vadd.f32 %v208, %v393
  %395 = vmatmul.f32.gmra.mxu0 %v44
  %v396 = vpop.f32.mrf.mxu0
  %v397 = vadd.f32 %v208, %v396
  %398 = vmatmul.f32.gmra.mxu0 %v47
  %v399 = vpop.f32.mrf.mxu0
  %v400 = vadd.f32 %v208, %v399
  %401 = vmatmul.f32.gmra.mxu0 %v50
  %v402 = vpop.f32.mrf.mxu0
  %v403 = vadd.f32 %v208, %v402
  %404 = vmatmul.f32.gmra.mxu0 %v53
  %v405 = vpop.f32.mrf.mxu0
  %v406 = vadd.f32 %v208, %v405
  %407 = vmatmul.f32.gmra.mxu0 %v56
  %v408 = vpop.f32.mrf.mxu0
  %v409 = vadd.f32 %v208, %v408
  %410 = vmatmul.f32.gmra.mxu0 %v59
  %v411 = vpop.f32.mrf.mxu0
  %v412 = vadd.f32 %v208, %v411
  %413 = vmatmul.f32.gmra.mxu0 %v62
  %v414 = vpop.f32.mrf.mxu0
  %v415 = vadd.f32 %v208, %v414
  %416 = vmatmul.f32.gmra.mxu0 %v65
  %v417 = vpop.f32.mrf.mxu0
  %v418 = vadd.f32 %v208, %v417
  %419 = vmatmul.f32.gmra.mxu0 %v68
  %v420 = vpop.f32.mrf.mxu0
  %v421 = vadd.f32 %v208, %v420
  %422 = vmatmul.f32.gmra.mxu0 %v71
  %v423 = vpop.f32.mrf.mxu0
  %v424 = vadd.f32 %v208, %v423
  %425 = vmatmul.f32.gmra.mxu0 %v74
  %v426 = vpop.f32.mrf.mxu0
  %v427 = vadd.f32 %v208, %v426
  %428 = vmatmul.f32.gmra.mxu0 %v77
  %v429 = vpop.f32.mrf.mxu0
  %v430 = vadd.f32 %v208, %v429
  %431 = vmatmul.f32.gmra.mxu0 %v80
  %v432 = vpop.f32.mrf.mxu0
  %v433 = vadd.f32 %v208, %v432
  %434 = vmatmul.f32.gmra.mxu0 %v83
  %v435 = vpop.f32.mrf.mxu0
  %v436 = vadd.f32 %v208, %v435
  %437 = vmatmul.f32.gmra.mxu0 %v86
  %v438 = vpop.f32.mrf.mxu0
  %v439 = vadd.f32 %v208, %v438
  %440 = vmatmul.f32.gmra.mxu0 %v89
  %v441 = vpop.f32.mrf.mxu0
  %v442 = vadd.f32 %v208, %v441
  %443 = vmatmul.f32.gmra.mxu0 %v92
  %v444 = vpop.f32.mrf.mxu0
  %v445 = vadd.f32 %v208, %v444
  %446 = vmatmul.f32.gmra.mxu0 %v95
  %v447 = vpop.f32.mrf.mxu0
  %v448 = vadd.f32 %v208, %v447
  %449 = vmatmul.f32.gmra.mxu0 %v98
  %v450 = vpop.f32.mrf.mxu0
  %v451 = vadd.f32 %v208, %v450
  %452 = vmatmul.f32.gmra.mxu0 %v101
  %v453 = vpop.f32.mrf.mxu0
  %v454 = vadd.f32 %v208, %v453
  %455 = vmatmul.f32.gmra.mxu0 %v104
  %v456 = vpop.f32.mrf.mxu0
  %v457 = vadd.f32 %v208, %v456
  %458 = vmatmul.f32.gmra.mxu0 %v107
  %v459 = vpop.f32.mrf.mxu0
  %v460 = vadd.f32 %v208, %v459
  %461 = vmatmul.f32.gmra.mxu0 %v110
  %v462 = vpop.f32.mrf.mxu0
  %v463 = vadd.f32 %v208, %v462
  %464 = vmatmul.f32.gmra.mxu0 %v113
  %v465 = vpop.f32.mrf.mxu0
  %v466 = vadd.f32 %v208, %v465
  %467 = vmatmul.f32.gmra.mxu0 %v116
  %v468 = vpop.f32.mrf.mxu0
  %v469 = vadd.f32 %v208, %v468
  %470 = vmatmul.f32.gmra.mxu0 %v119
  %v471 = vpop.f32.mrf.mxu0
  %v472 = vadd.f32 %v208, %v471
  %473 = vmatmul.f32.gmra.mxu0 %v122
  %v474 = vpop.f32.mrf.mxu0
  %v475 = vadd.f32 %v208, %v474
  %476 = vmatmul.f32.gmra.mxu0 %v125
  %v477 = vpop.f32.mrf.mxu0
  %v478 = vadd.f32 %v208, %v477
  %479 = vmatmul.f32.gmra.mxu0 %v128
  %v480 = vpop.f32.mrf.mxu0
  %v481 = vadd.f32 %v208, %v480
  %482 = vmatmul.f32.gmra.mxu0 %v131
  %v483 = vpop.f32.mrf.mxu0
  %v484 = vadd.f32 %v208, %v483
  %485 = vmatmul.f32.gmra.mxu0 %v134
  %v486 = vpop.f32.mrf.mxu0
  %v487 = vadd.f32 %v208, %v486
  %488 = vmatmul.f32.gmra.mxu0 %v137
  %v489 = vpop.f32.mrf.mxu0
  %v490 = vadd.f32 %v208, %v489
  %491 = vmatmul.f32.gmra.mxu0 %v140
  %v492 = vpop.f32.mrf.mxu0
  %v493 = vadd.f32 %v208, %v492
  %494 = vmatmul.f32.gmra.mxu0 %v143
  %v495 = vpop.f32.mrf.mxu0
  %v496 = vadd.f32 %v208, %v495
  %497 = vmatmul.f32.gmra.mxu0 %v146
  %v498 = vpop.f32.mrf.mxu0
  %v499 = vadd.f32 %v208, %v498
  %500 = vmatmul.f32.gmra.mxu0 %v149
  %v501 = vpop.f32.mrf.mxu0
  %v502 = vadd.f32 %v208, %v501
  %503 = vmatmul.f32.gmra.mxu0 %v152
  %v504 = vpop.f32.mrf.mxu0
  %v505 = vadd.f32 %v208, %v504
  %506 = vmatmul.f32.gmra.mxu0 %v155
  %v507 = vpop.f32.mrf.mxu0
  %v508 = vadd.f32 %v208, %v507
  %509 = vmatmul.f32.gmra.mxu0 %v158
  %v510 = vpop.f32.mrf.mxu0
  %v511 = vadd.f32 %v208, %v510
  %512 = vmatmul.f32.gmra.mxu0 %v161
  %v513 = vpop.f32.mrf.mxu0
  %v514 = vadd.f32 %v208, %v513
  %515 = vmatmul.f32.gmra.mxu0 %v164
  %v516 = vpop.f32.mrf.mxu0
  %v517 = vadd.f32 %v208, %v516
  %518 = vmatmul.f32.gmra.mxu0 %v167
  %v519 = vpop.f32.mrf.mxu0
  %v520 = vadd.f32 %v208, %v519
  %521 = vdwg.mxu0
  %522 = vmatpush.msra.mxu0 %v201
  %523 = vmatpush.msra.mxu0 %v200
  %524 = vmatpush.msra.mxu0 %v199
  %525 = vmatpush.msra.mxu0 %v198
  %526 = vmatpush.msra.mxu0 %v197
  %527 = vmatpush.msra.mxu0 %v196
  %528 = vmatpush.msra.mxu0 %v195
  %529 = vmatpush.msra.mxu0 %v194
  %530 = vmatpush.msra.mxu0 %v193
  %531 = vmatpush.msra.mxu0 %v192
  %532 = vmatpush.msra.mxu0 %v191
  %533 = vmatpush.msra.mxu0 %v190
  %534 = vmatpush.msra.mxu0 %v189
  %535 = vmatpush.msra.mxu0 %v188
  %536 = vmatpush.msra.mxu0 %v187
  %537 = vmatpush.msra.mxu0 %v186
  %538 = vmatmul.f32.gmra.mxu0 %v24
  %v539 = vpop.f32.mrf.mxu0
  %v540 = vadd.f32 %v376, %v539
  %541 = vmatmul.f32.gmra.mxu0 %v27
  %v542 = vpop.f32.mrf.mxu0
  %v543 = vadd.f32 %v379, %v542
  %544 = vmatmul.f32.gmra.mxu0 %v30
  %v545 = vpop.f32.mrf.mxu0
  %v546 = vadd.f32 %v382, %v545
  %547 = vmatmul.f32.gmra.mxu0 %v33
  %v548 = vpop.f32.mrf.mxu0
  %v549 = vadd.f32 %v385, %v548
  %550 = vmatmul.f32.gmra.mxu0 %v36
  %v551 = vpop.f32.mrf.mxu0
  %v552 = vadd.f32 %v388, %v551
  %553 = vmatmul.f32.gmra.mxu0 %v39
  %v554 = vpop.f32.mrf.mxu0
  %v555 = vadd.f32 %v391, %v554
  %556 = vmatmul.f32.gmra.mxu0 %v42
  %v557 = vpop.f32.mrf.mxu0
  %v558 = vadd.f32 %v394, %v557
  %559 = vmatmul.f32.gmra.mxu0 %v45
  %v560 = vpop.f32.mrf.mxu0
  %v561 = vadd.f32 %v397, %v560
  %562 = vmatmul.f32.gmra.mxu0 %v48
  %v563 = vpop.f32.mrf.mxu0
  %v564 = vadd.f32 %v400, %v563
  %565 = vmatmul.f32.gmra.mxu0 %v51
  %v566 = vpop.f32.mrf.mxu0
  %v567 = vadd.f32 %v403, %v566
  %568 = vmatmul.f32.gmra.mxu0 %v54
  %v569 = vpop.f32.mrf.mxu0
  %v570 = vadd.f32 %v406, %v569
  %571 = vmatmul.f32.gmra.mxu0 %v57
  %v572 = vpop.f32.mrf.mxu0
  %v573 = vadd.f32 %v409, %v572
  %574 = vmatmul.f32.gmra.mxu0 %v60
  %v575 = vpop.f32.mrf.mxu0
  %v576 = vadd.f32 %v412, %v575
  %577 = vmatmul.f32.gmra.mxu0 %v63
  %v578 = vpop.f32.mrf.mxu0
  %v579 = vadd.f32 %v415, %v578
  %580 = vmatmul.f32.gmra.mxu0 %v66
  %v581 = vpop.f32.mrf.mxu0
  %v582 = vadd.f32 %v418, %v581
  %583 = vmatmul.f32.gmra.mxu0 %v69
  %v584 = vpop.f32.mrf.mxu0
  %v585 = vadd.f32 %v421, %v584
  %586 = vmatmul.f32.gmra.mxu0 %v72
  %v587 = vpop.f32.mrf.mxu0
  %v588 = vadd.f32 %v424, %v587
  %589 = vmatmul.f32.gmra.mxu0 %v75
  %v590 = vpop.f32.mrf.mxu0
  %v591 = vadd.f32 %v427, %v590
  %592 = vmatmul.f32.gmra.mxu0 %v78
  %v593 = vpop.f32.mrf.mxu0
  %v594 = vadd.f32 %v430, %v593
  %595 = vmatmul.f32.gmra.mxu0 %v81
  %v596 = vpop.f32.mrf.mxu0
  %v597 = vadd.f32 %v433, %v596
  %598 = vmatmul.f32.gmra.mxu0 %v84
  %v599 = vpop.f32.mrf.mxu0
  %v600 = vadd.f32 %v436, %v599
  %601 = vmatmul.f32.gmra.mxu0 %v87
  %v602 = vpop.f32.mrf.mxu0
  %v603 = vadd.f32 %v439, %v602
  %604 = vmatmul.f32.gmra.mxu0 %v90
  %v605 = vpop.f32.mrf.mxu0
  %v606 = vadd.f32 %v442, %v605
  %607 = vmatmul.f32.gmra.mxu0 %v93
  %v608 = vpop.f32.mrf.mxu0
  %v609 = vadd.f32 %v445, %v608
  %610 = vmatmul.f32.gmra.mxu0 %v96
  %v611 = vpop.f32.mrf.mxu0
  %v612 = vadd.f32 %v448, %v611
  %613 = vmatmul.f32.gmra.mxu0 %v99
  %v614 = vpop.f32.mrf.mxu0
  %v615 = vadd.f32 %v451, %v614
  %616 = vmatmul.f32.gmra.mxu0 %v102
  %v617 = vpop.f32.mrf.mxu0
  %v618 = vadd.f32 %v454, %v617
  %619 = vmatmul.f32.gmra.mxu0 %v105
  %v620 = vpop.f32.mrf.mxu0
  %v621 = vadd.f32 %v457, %v620
  %622 = vmatmul.f32.gmra.mxu0 %v108
  %v623 = vpop.f32.mrf.mxu0
  %v624 = vadd.f32 %v460, %v623
  %625 = vmatmul.f32.gmra.mxu0 %v111
  %v626 = vpop.f32.mrf.mxu0
  %v627 = vadd.f32 %v463, %v626
  %628 = vmatmul.f32.gmra.mxu0 %v114
  %v629 = vpop.f32.mrf.mxu0
  %v630 = vadd.f32 %v466, %v629
  %631 = vmatmul.f32.gmra.mxu0 %v117
  %v632 = vpop.f32.mrf.mxu0
  %v633 = vadd.f32 %v469, %v632
  %634 = vmatmul.f32.gmra.mxu0 %v120
  %v635 = vpop.f32.mrf.mxu0
  %v636 = vadd.f32 %v472, %v635
  %637 = vmatmul.f32.gmra.mxu0 %v123
  %v638 = vpop.f32.mrf.mxu0
  %v639 = vadd.f32 %v475, %v638
  %640 = vmatmul.f32.gmra.mxu0 %v126
  %v641 = vpop.f32.mrf.mxu0
  %v642 = vadd.f32 %v478, %v641
  %643 = vmatmul.f32.gmra.mxu0 %v129
  %v644 = vpop.f32.mrf.mxu0
  %v645 = vadd.f32 %v481, %v644
  %646 = vmatmul.f32.gmra.mxu0 %v132
  %v647 = vpop.f32.mrf.mxu0
  %v648 = vadd.f32 %v484, %v647
  %649 = vmatmul.f32.gmra.mxu0 %v135
  %v650 = vpop.f32.mrf.mxu0
  %v651 = vadd.f32 %v487, %v650
  %652 = vmatmul.f32.gmra.mxu0 %v138
  %v653 = vpop.f32.mrf.mxu0
  %v654 = vadd.f32 %v490, %v653
  %655 = vmatmul.f32.gmra.mxu0 %v141
  %v656 = vpop.f32.mrf.mxu0
  %v657 = vadd.f32 %v493, %v656
  %658 = vmatmul.f32.gmra.mxu0 %v144
  %v659 = vpop.f32.mrf.mxu0
  %v660 = vadd.f32 %v496, %v659
  %661 = vmatmul.f32.gmra.mxu0 %v147
  %v662 = vpop.f32.mrf.mxu0
  %v663 = vadd.f32 %v499, %v662
  %664 = vmatmul.f32.gmra.mxu0 %v150
  %v665 = vpop.f32.mrf.mxu0
  %v666 = vadd.f32 %v502, %v665
  %667 = vmatmul.f32.gmra.mxu0 %v153
  %v668 = vpop.f32.mrf.mxu0
  %v669 = vadd.f32 %v505, %v668
  %670 = vmatmul.f32.gmra.mxu0 %v156
  %v671 = vpop.f32.mrf.mxu0
  %v672 = vadd.f32 %v508, %v671
  %673 = vmatmul.f32.gmra.mxu0 %v159
  %v674 = vpop.f32.mrf.mxu0
  %v675 = vadd.f32 %v511, %v674
  %676 = vmatmul.f32.gmra.mxu0 %v162
  %v677 = vpop.f32.mrf.mxu0
  %v678 = vadd.f32 %v514, %v677
  %679 = vmatmul.f32.gmra.mxu0 %v165
  %v680 = vpop.f32.mrf.mxu0
  %v681 = vadd.f32 %v517, %v680
  %682 = vmatmul.f32.gmra.mxu0 %v168
  %v683 = vpop.f32.mrf.mxu0
  %v684 = vadd.f32 %v520, %v683
  %685 = vdwg.mxu0
  %686 = vmatpush.msra.mxu0 0.0
  %687 = vmatpush.msra.mxu0 0.0
  %688 = vmatpush.msra.mxu0 0.0
  %689 = vmatpush.msra.mxu0 0.0
  %690 = vmatpush.msra.mxu0 0.0
  %691 = vmatpush.msra.mxu0 0.0
  %692 = vmatpush.msra.mxu0 0.0
  %693 = vmatpush.msra.mxu0 0.0
  %694 = vmatpush.msra.mxu0 0.0
  %695 = vmatpush.msra.mxu0 0.0
  %696 = vmatpush.msra.mxu0 0.0
  %697 = vmatpush.msra.mxu0 0.0
  %698 = vmatpush.msra.mxu0 %v205
  %699 = vmatpush.msra.mxu0 %v204
  %700 = vmatpush.msra.mxu0 %v203
  %701 = vmatpush.msra.mxu0 %v202
  %702 = vmatmul.f32.gmra.mxu0 %v212
  %v703 = vpop.f32.mrf.mxu0
  %v704 = vadd.f32 %v540, %v703
  %705 = vmatmul.f32.gmra.mxu0 %v215
  %v706 = vpop.f32.mrf.mxu0
  %v707 = vadd.f32 %v543, %v706
  %708 = vmatmul.f32.gmra.mxu0 %v218
  %v709 = vpop.f32.mrf.mxu0
  %v710 = vadd.f32 %v546, %v709
  %711 = vmatmul.f32.gmra.mxu0 %v221
  %v712 = vpop.f32.mrf.mxu0
  %v713 = vadd.f32 %v549, %v712
  %714 = vmatmul.f32.gmra.mxu0 %v224
  %v715 = vpop.f32.mrf.mxu0
  %v716 = vadd.f32 %v552, %v715
  %717 = vmatmul.f32.gmra.mxu0 %v227
  %v718 = vpop.f32.mrf.mxu0
  %v719 = vadd.f32 %v555, %v718
  %720 = vmatmul.f32.gmra.mxu0 %v230
  %v721 = vpop.f32.mrf.mxu0
  %v722 = vadd.f32 %v558, %v721
  %723 = vmatmul.f32.gmra.mxu0 %v233
  %v724 = vpop.f32.mrf.mxu0
  %v725 = vadd.f32 %v561, %v724
  %726 = vmatmul.f32.gmra.mxu0 %v236
  %v727 = vpop.f32.mrf.mxu0
  %v728 = vadd.f32 %v564, %v727
  %729 = vmatmul.f32.gmra.mxu0 %v239
  %v730 = vpop.f32.mrf.mxu0
  %v731 = vadd.f32 %v567, %v730
  %732 = vmatmul.f32.gmra.mxu0 %v242
  %v733 = vpop.f32.mrf.mxu0
  %v734 = vadd.f32 %v570, %v733
  %735 = vmatmul.f32.gmra.mxu0 %v245
  %v736 = vpop.f32.mrf.mxu0
  %v737 = vadd.f32 %v573, %v736
  %738 = vmatmul.f32.gmra.mxu0 %v248
  %v739 = vpop.f32.mrf.mxu0
  %v740 = vadd.f32 %v576, %v739
  %741 = vmatmul.f32.gmra.mxu0 %v251
  %v742 = vpop.f32.mrf.mxu0
  %v743 = vadd.f32 %v579, %v742
  %744 = vmatmul.f32.gmra.mxu0 %v254
  %v745 = vpop.f32.mrf.mxu0
  %v746 = vadd.f32 %v582, %v745
  %747 = vmatmul.f32.gmra.mxu0 %v257
  %v748 = vpop.f32.mrf.mxu0
  %v749 = vadd.f32 %v585, %v748
  %750 = vmatmul.f32.gmra.mxu0 %v260
  %v751 = vpop.f32.mrf.mxu0
  %v752 = vadd.f32 %v588, %v751
  %753 = vmatmul.f32.gmra.mxu0 %v263
  %v754 = vpop.f32.mrf.mxu0
  %v755 = vadd.f32 %v591, %v754
  %756 = vmatmul.f32.gmra.mxu0 %v266
  %v757 = vpop.f32.mrf.mxu0
  %v758 = vadd.f32 %v594, %v757
  %759 = vmatmul.f32.gmra.mxu0 %v269
  %v760 = vpop.f32.mrf.mxu0
  %v761 = vadd.f32 %v597, %v760
  %762 = vmatmul.f32.gmra.mxu0 %v272
  %v763 = vpop.f32.mrf.mxu0
  %v764 = vadd.f32 %v600, %v763
  %765 = vmatmul.f32.gmra.mxu0 %v275
  %v766 = vpop.f32.mrf.mxu0
  %v767 = vadd.f32 %v603, %v766
  %768 = vmatmul.f32.gmra.mxu0 %v278
  %v769 = vpop.f32.mrf.mxu0
  %v770 = vadd.f32 %v606, %v769
  %771 = vmatmul.f32.gmra.mxu0 %v281
  %v772 = vpop.f32.mrf.mxu0
  %v773 = vadd.f32 %v609, %v772
  %774 = vmatmul.f32.gmra.mxu0 %v284
  %v775 = vpop.f32.mrf.mxu0
  %v776 = vadd.f32 %v612, %v775
  %777 = vmatmul.f32.gmra.mxu0 %v287
  %v778 = vpop.f32.mrf.mxu0
  %v779 = vadd.f32 %v615, %v778
  %780 = vmatmul.f32.gmra.mxu0 %v290
  %v781 = vpop.f32.mrf.mxu0
  %v782 = vadd.f32 %v618, %v781
  %783 = vmatmul.f32.gmra.mxu0 %v293
  %v784 = vpop.f32.mrf.mxu0
  %v785 = vadd.f32 %v621, %v784
  %786 = vmatmul.f32.gmra.mxu0 %v296
  %v787 = vpop.f32.mrf.mxu0
  %v788 = vadd.f32 %v624, %v787
  %789 = vmatmul.f32.gmra.mxu0 %v299
  %v790 = vpop.f32.mrf.mxu0
  %v791 = vadd.f32 %v627, %v790
  %792 = vmatmul.f32.gmra.mxu0 %v302
  %v793 = vpop.f32.mrf.mxu0
  %v794 = vadd.f32 %v630, %v793
  %795 = vmatmul.f32.gmra.mxu0 %v305
  %v796 = vpop.f32.mrf.mxu0
  %v797 = vadd.f32 %v633, %v796
  %798 = vmatmul.f32.gmra.mxu0 %v308
  %v799 = vpop.f32.mrf.mxu0
  %v800 = vadd.f32 %v636, %v799
  %801 = vmatmul.f32.gmra.mxu0 %v311
  %v802 = vpop.f32.mrf.mxu0
  %v803 = vadd.f32 %v639, %v802
  %804 = vmatmul.f32.gmra.mxu0 %v314
  %v805 = vpop.f32.mrf.mxu0
  %v806 = vadd.f32 %v642, %v805
  %807 = vmatmul.f32.gmra.mxu0 %v317
  %v808 = vpop.f32.mrf.mxu0
  %v809 = vadd.f32 %v645, %v808
  %810 = vmatmul.f32.gmra.mxu0 %v320
  %v811 = vpop.f32.mrf.mxu0
  %v812 = vadd.f32 %v648, %v811
  %813 = vmatmul.f32.gmra.mxu0 %v323
  %v814 = vpop.f32.mrf.mxu0
  %v815 = vadd.f32 %v651, %v814
  %816 = vmatmul.f32.gmra.mxu0 %v326
  %v817 = vpop.f32.mrf.mxu0
  %v818 = vadd.f32 %v654, %v817
  %819 = vmatmul.f32.gmra.mxu0 %v329
  %v820 = vpop.f32.mrf.mxu0
  %v821 = vadd.f32 %v657, %v820
  %822 = vmatmul.f32.gmra.mxu0 %v332
  %v823 = vpop.f32.mrf.mxu0
  %v824 = vadd.f32 %v660, %v823
  %825 = vmatmul.f32.gmra.mxu0 %v335
  %v826 = vpop.f32.mrf.mxu0
  %v827 = vadd.f32 %v663, %v826
  %828 = vmatmul.f32.gmra.mxu0 %v338
  %v829 = vpop.f32.mrf.mxu0
  %v830 = vadd.f32 %v666, %v829
  %831 = vmatmul.f32.gmra.mxu0 %v341
  %v832 = vpop.f32.mrf.mxu0
  %v833 = vadd.f32 %v669, %v832
  %834 = vmatmul.f32.gmra.mxu0 %v344
  %v835 = vpop.f32.mrf.mxu0
  %v836 = vadd.f32 %v672, %v835
  %837 = vmatmul.f32.gmra.mxu0 %v347
  %v838 = vpop.f32.mrf.mxu0
  %v839 = vadd.f32 %v675, %v838
  %840 = vmatmul.f32.gmra.mxu0 %v350
  %v841 = vpop.f32.mrf.mxu0
  %v842 = vadd.f32 %v678, %v841
  %843 = vmatmul.f32.gmra.mxu0 %v353
  %v844 = vpop.f32.mrf.mxu0
  %v845 = vadd.f32 %v681, %v844
  %846 = vmatmul.f32.gmra.mxu0 %v356
  %v847 = vpop.f32.mrf.mxu0
  %v848 = vadd.f32 %v684, %v847
  %849 = vdwg.mxu0
  %vm850 = vcmask 523264
  %851 = vst.msk [vmem:[%s5] sm:$0xff] %vm850, %v704
  %852 = vst.msk [vmem:[%s5 + $0x8] sm:$0xff] %vm850, %v707
  %853 = vst.msk [vmem:[%s5 + $0x10] sm:$0xff] %vm850, %v710
  %854 = vst.msk [vmem:[%s5 + $0x18] sm:$0xff] %vm850, %v713
  %855 = vst.msk [vmem:[%s5 + $0x20] sm:$0xff] %vm850, %v716
  %856 = vst.msk [vmem:[%s5 + $0x28] sm:$0xff] %vm850, %v719
  %857 = vst.msk [vmem:[%s5 + $0x30] sm:$0xff] %vm850, %v722
  %858 = vst.msk [vmem:[%s5 + $0x38] sm:$0xff] %vm850, %v725
  %859 = vst.msk [vmem:[%s5 + $0x40] sm:$0xff] %vm850, %v728
  %860 = vst.msk [vmem:[%s5 + $0x48] sm:$0xff] %vm850, %v731
  %861 = vst.msk [vmem:[%s5 + $0x50] sm:$0xff] %vm850, %v734
  %862 = vst.msk [vmem:[%s5 + $0x58] sm:$0xff] %vm850, %v737
  %863 = vst.msk [vmem:[%s5 + $0x60] sm:$0xff] %vm850, %v740
  %864 = vst.msk [vmem:[%s5 + $0x68] sm:$0xff] %vm850, %v743
  %865 = vst.msk [vmem:[%s5 + $0x70] sm:$0xff] %vm850, %v746
  %866 = vst.msk [vmem:[%s5 + $0x78] sm:$0xff] %vm850, %v749
  %867 = vst.msk [vmem:[%s5 + $0x80] sm:$0xff] %vm850, %v752
  %868 = vst.msk [vmem:[%s5 + $0x88] sm:$0xff] %vm850, %v755
  %869 = vst.msk [vmem:[%s5 + $0x90] sm:$0xff] %vm850, %v758
  %870 = vst.msk [vmem:[%s5 + $0x98] sm:$0xff] %vm850, %v761
  %871 = vst.msk [vmem:[%s5 + $0xa0] sm:$0xff] %vm850, %v764
  %872 = vst.msk [vmem:[%s5 + $0xa8] sm:$0xff] %vm850, %v767
  %873 = vst.msk [vmem:[%s5 + $0xb0] sm:$0xff] %vm850, %v770
  %874 = vst.msk [vmem:[%s5 + $0xb8] sm:$0xff] %vm850, %v773
  %875 = vst.msk [vmem:[%s5 + $0xc0] sm:$0xff] %vm850, %v776
  %876 = vst.msk [vmem:[%s5 + $0xc8] sm:$0xff] %vm850, %v779
  %877 = vst.msk [vmem:[%s5 + $0xd0] sm:$0xff] %vm850, %v782
  %878 = vst.msk [vmem:[%s5 + $0xd8] sm:$0xff] %vm850, %v785
  %879 = vst.msk [vmem:[%s5 + $0xe0] sm:$0xff] %vm850, %v788
  %880 = vst.msk [vmem:[%s5 + $0xe8] sm:$0xff] %vm850, %v791
  %881 = vst.msk [vmem:[%s5 + $0xf0] sm:$0xff] %vm850, %v794
  %882 = vst.msk [vmem:[%s5 + $0xf8] sm:$0xff] %vm850, %v797
  %883 = vst.msk [vmem:[%s5 + $0x100] sm:$0xff] %vm850, %v800
  %884 = vst.msk [vmem:[%s5 + $0x108] sm:$0xff] %vm850, %v803
  %885 = vst.msk [vmem:[%s5 + $0x110] sm:$0xff] %vm850, %v806
  %886 = vst.msk [vmem:[%s5 + $0x118] sm:$0xff] %vm850, %v809
  %887 = vst.msk [vmem:[%s5 + $0x120] sm:$0xff] %vm850, %v812
  %888 = vst.msk [vmem:[%s5 + $0x128] sm:$0xff] %vm850, %v815
  %889 = vst.msk [vmem:[%s5 + $0x130] sm:$0xff] %vm850, %v818
  %890 = vst.msk [vmem:[%s5 + $0x138] sm:$0xff] %vm850, %v821
  %891 = vst.msk [vmem:[%s5 + $0x140] sm:$0xff] %vm850, %v824
  %892 = vst.msk [vmem:[%s5 + $0x148] sm:$0xff] %vm850, %v827
  %893 = vst.msk [vmem:[%s5 + $0x150] sm:$0xff] %vm850, %v830
  %894 = vst.msk [vmem:[%s5 + $0x158] sm:$0xff] %vm850, %v833
  %895 = vst.msk [vmem:[%s5 + $0x160] sm:$0xff] %vm850, %v836
  %896 = vst.msk [vmem:[%s5 + $0x168] sm:$0xff] %vm850, %v839
  %897 = vst.msk [vmem:[%s5 + $0x170] sm:$0xff] %vm850, %v842
  %898 = vst.msk [vmem:[%s5 + $0x178] sm:$0xff] %vm850, %v845
  %899 = vst.msk [vmem:[%s5 + $0x180] sm:$0xff] %vm850, %v848
  %v900 = vsel %vm850, %v704, 0.0
  %v901 = vsel %vm850, %v707, 0.0
  %v902 = vadd.f32 %v900, %v901
  %v903 = vsel %vm850, %v710, 0.0
  %v904 = vadd.f32 %v902, %v903
  %v905 = vsel %vm850, %v713, 0.0
  %v906 = vadd.f32 %v904, %v905
  %v907 = vsel %vm850, %v716, 0.0
  %v908 = vadd.f32 %v906, %v907
  %v909 = vsel %vm850, %v719, 0.0
  %v910 = vadd.f32 %v908, %v909
  %v911 = vsel %vm850, %v722, 0.0
  %v912 = vadd.f32 %v910, %v911
  %v913 = vsel %vm850, %v725, 0.0
  %v914 = vadd.f32 %v912, %v913
  %v915 = vsel %vm850, %v728, 0.0
  %v916 = vadd.f32 %v914, %v915
  %v917 = vsel %vm850, %v731, 0.0
  %v918 = vadd.f32 %v916, %v917
  %v919 = vsel %vm850, %v734, 0.0
  %v920 = vadd.f32 %v918, %v919
  %v921 = vsel %vm850, %v737, 0.0
  %v922 = vadd.f32 %v920, %v921
  %v923 = vsel %vm850, %v740, 0.0
  %v924 = vadd.f32 %v922, %v923
  %v925 = vsel %vm850, %v743, 0.0
  %v926 = vadd.f32 %v924, %v925
  %v927 = vsel %vm850, %v746, 0.0
  %v928 = vadd.f32 %v926, %v927
  %v929 = vsel %vm850, %v749, 0.0
  %v930 = vadd.f32 %v928, %v929
  %v931 = vsel %vm850, %v752, 0.0
  %v932 = vadd.f32 %v930, %v931
  %v933 = vsel %vm850, %v755, 0.0
  %v934 = vadd.f32 %v932, %v933
  %v935 = vsel %vm850, %v758, 0.0
  %v936 = vadd.f32 %v934, %v935
  %v937 = vsel %vm850, %v761, 0.0
  %v938 = vadd.f32 %v936, %v937
  %v939 = vsel %vm850, %v764, 0.0
  %v940 = vadd.f32 %v938, %v939
  %v941 = vsel %vm850, %v767, 0.0
  %v942 = vadd.f32 %v940, %v941
  %v943 = vsel %vm850, %v770, 0.0
  %v944 = vadd.f32 %v942, %v943
  %v945 = vsel %vm850, %v773, 0.0
  %v946 = vadd.f32 %v944, %v945
  %v947 = vsel %vm850, %v776, 0.0
  %v948 = vadd.f32 %v946, %v947
  %v949 = vsel %vm850, %v779, 0.0
  %v950 = vadd.f32 %v948, %v949
  %v951 = vsel %vm850, %v782, 0.0
  %v952 = vadd.f32 %v950, %v951
  %v953 = vsel %vm850, %v785, 0.0
  %v954 = vadd.f32 %v952, %v953
  %v955 = vsel %vm850, %v788, 0.0
  %v956 = vadd.f32 %v954, %v955
  %v957 = vsel %vm850, %v791, 0.0
  %v958 = vadd.f32 %v956, %v957
  %v959 = vsel %vm850, %v794, 0.0
  %v960 = vadd.f32 %v958, %v959
  %v961 = vsel %vm850, %v797, 0.0
  %v962 = vadd.f32 %v960, %v961
  %v963 = vsel %vm850, %v800, 0.0
  %v964 = vadd.f32 %v962, %v963
  %v965 = vsel %vm850, %v803, 0.0
  %v966 = vadd.f32 %v964, %v965
  %v967 = vsel %vm850, %v806, 0.0
  %v968 = vadd.f32 %v966, %v967
  %v969 = vsel %vm850, %v809, 0.0
  %v970 = vadd.f32 %v968, %v969
  %v971 = vsel %vm850, %v812, 0.0
  %v972 = vadd.f32 %v970, %v971
  %v973 = vsel %vm850, %v815, 0.0
  %v974 = vadd.f32 %v972, %v973
  %v975 = vsel %vm850, %v818, 0.0
  %v976 = vadd.f32 %v974, %v975
  %v977 = vsel %vm850, %v821, 0.0
  %v978 = vadd.f32 %v976, %v977
  %v979 = vsel %vm850, %v824, 0.0
  %v980 = vadd.f32 %v978, %v979
  %v981 = vsel %vm850, %v827, 0.0
  %v982 = vadd.f32 %v980, %v981
  %v983 = vsel %vm850, %v830, 0.0
  %v984 = vadd.f32 %v982, %v983
  %v985 = vsel %vm850, %v833, 0.0
  %v986 = vadd.f32 %v984, %v985
  %v987 = vsel %vm850, %v836, 0.0
  %v988 = vadd.f32 %v986, %v987
  %v989 = vsel %vm850, %v839, 0.0
  %v990 = vadd.f32 %v988, %v989
  %v991 = vsel %vm850, %v842, 0.0
  %v992 = vadd.f32 %v990, %v991
  %v993 = vsel %vm850, %v845, 0.0
  %v994 = vadd.f32 %v992, %v993
  %v995 = vsel %vm850, %v848, 0.0
  %v996 = vadd.f32 %v994, %v995
  %v997 = vrot.slane %v996, 4
  %v998 = vadd.f32 %v996, %v997
  %v999 = vrot.slane %v998, 2
  %v1000 = vadd.f32 %v998, %v999
  %v1001 = vrot.slane %v1000, 1
  %v1002 = vadd.f32 %v1000, %v1001
  %v1003 = vmul.f32 %v1002, 0.0025510204
  %v1004 = vsub.f32 %v704, %v1003
  %v1005 = vsub.f32 %v707, %v1003
  %v1006 = vsub.f32 %v710, %v1003
  %v1007 = vsub.f32 %v713, %v1003
  %v1008 = vsub.f32 %v716, %v1003
  %v1009 = vsub.f32 %v719, %v1003
  %v1010 = vsub.f32 %v722, %v1003
  %v1011 = vsub.f32 %v725, %v1003
  %v1012 = vsub.f32 %v728, %v1003
  %v1013 = vsub.f32 %v731, %v1003
  %v1014 = vsub.f32 %v734, %v1003
  %v1015 = vsub.f32 %v737, %v1003
  %v1016 = vsub.f32 %v740, %v1003
  %v1017 = vsub.f32 %v743, %v1003
  %v1018 = vsub.f32 %v746, %v1003
  %v1019 = vsub.f32 %v749, %v1003
  %v1020 = vsub.f32 %v752, %v1003
  %v1021 = vsub.f32 %v755, %v1003
  %v1022 = vsub.f32 %v758, %v1003
  %v1023 = vsub.f32 %v761, %v1003
  %v1024 = vsub.f32 %v764, %v1003
  %v1025 = vsub.f32 %v767, %v1003
  %v1026 = vsub.f32 %v770, %v1003
  %v1027 = vsub.f32 %v773, %v1003
  %v1028 = vsub.f32 %v776, %v1003
  %v1029 = vsub.f32 %v779, %v1003
  %v1030 = vsub.f32 %v782, %v1003
  %v1031 = vsub.f32 %v785, %v1003
  %v1032 = vsub.f32 %v788, %v1003
  %v1033 = vsub.f32 %v791, %v1003
  %v1034 = vsub.f32 %v794, %v1003
  %v1035 = vsub.f32 %v797, %v1003
  %v1036 = vsub.f32 %v800, %v1003
  %v1037 = vsub.f32 %v803, %v1003
  %v1038 = vsub.f32 %v806, %v1003
  %v1039 = vsub.f32 %v809, %v1003
  %v1040 = vsub.f32 %v812, %v1003
  %v1041 = vsub.f32 %v815, %v1003
  %v1042 = vsub.f32 %v818, %v1003
  %v1043 = vsub.f32 %v821, %v1003
  %v1044 = vsub.f32 %v824, %v1003
  %v1045 = vsub.f32 %v827, %v1003
  %v1046 = vsub.f32 %v830, %v1003
  %v1047 = vsub.f32 %v833, %v1003
  %v1048 = vsub.f32 %v836, %v1003
  %v1049 = vsub.f32 %v839, %v1003
  %v1050 = vsub.f32 %v842, %v1003
  %v1051 = vsub.f32 %v845, %v1003
  %v1052 = vsub.f32 %v848, %v1003
  %v1053 = vmul.f32 %v1004, %v1004
  %v1054 = vmul.f32 %v1005, %v1005
  %v1055 = vmul.f32 %v1006, %v1006
  %v1056 = vmul.f32 %v1007, %v1007
  %v1057 = vmul.f32 %v1008, %v1008
  %v1058 = vmul.f32 %v1009, %v1009
  %v1059 = vmul.f32 %v1010, %v1010
  %v1060 = vmul.f32 %v1011, %v1011
  %v1061 = vmul.f32 %v1012, %v1012
  %v1062 = vmul.f32 %v1013, %v1013
  %v1063 = vmul.f32 %v1014, %v1014
  %v1064 = vmul.f32 %v1015, %v1015
  %v1065 = vmul.f32 %v1016, %v1016
  %v1066 = vmul.f32 %v1017, %v1017
  %v1067 = vmul.f32 %v1018, %v1018
  %v1068 = vmul.f32 %v1019, %v1019
  %v1069 = vmul.f32 %v1020, %v1020
  %v1070 = vmul.f32 %v1021, %v1021
  %v1071 = vmul.f32 %v1022, %v1022
  %v1072 = vmul.f32 %v1023, %v1023
  %v1073 = vmul.f32 %v1024, %v1024
  %v1074 = vmul.f32 %v1025, %v1025
  %v1075 = vmul.f32 %v1026, %v1026
  %v1076 = vmul.f32 %v1027, %v1027
  %v1077 = vmul.f32 %v1028, %v1028
  %v1078 = vmul.f32 %v1029, %v1029
  %v1079 = vmul.f32 %v1030, %v1030
  %v1080 = vmul.f32 %v1031, %v1031
  %v1081 = vmul.f32 %v1032, %v1032
  %v1082 = vmul.f32 %v1033, %v1033
  %v1083 = vmul.f32 %v1034, %v1034
  %v1084 = vmul.f32 %v1035, %v1035
  %v1085 = vmul.f32 %v1036, %v1036
  %v1086 = vmul.f32 %v1037, %v1037
  %v1087 = vmul.f32 %v1038, %v1038
  %v1088 = vmul.f32 %v1039, %v1039
  %v1089 = vmul.f32 %v1040, %v1040
  %v1090 = vmul.f32 %v1041, %v1041
  %v1091 = vmul.f32 %v1042, %v1042
  %v1092 = vmul.f32 %v1043, %v1043
  %v1093 = vmul.f32 %v1044, %v1044
  %v1094 = vmul.f32 %v1045, %v1045
  %v1095 = vmul.f32 %v1046, %v1046
  %v1096 = vmul.f32 %v1047, %v1047
  %v1097 = vmul.f32 %v1048, %v1048
  %v1098 = vmul.f32 %v1049, %v1049
  %v1099 = vmul.f32 %v1050, %v1050
  %v1100 = vmul.f32 %v1051, %v1051
  %v1101 = vmul.f32 %v1052, %v1052
  %v1102 = vsel %vm850, %v1053, 0.0
  %v1103 = vsel %vm850, %v1054, 0.0
  %v1104 = vadd.f32 %v1102, %v1103
  %v1105 = vsel %vm850, %v1055, 0.0
  %v1106 = vadd.f32 %v1104, %v1105
  %v1107 = vsel %vm850, %v1056, 0.0
  %v1108 = vadd.f32 %v1106, %v1107
  %v1109 = vsel %vm850, %v1057, 0.0
  %v1110 = vadd.f32 %v1108, %v1109
  %v1111 = vsel %vm850, %v1058, 0.0
  %v1112 = vadd.f32 %v1110, %v1111
  %v1113 = vsel %vm850, %v1059, 0.0
  %v1114 = vadd.f32 %v1112, %v1113
  %v1115 = vsel %vm850, %v1060, 0.0
  %v1116 = vadd.f32 %v1114, %v1115
  %v1117 = vsel %vm850, %v1061, 0.0
  %v1118 = vadd.f32 %v1116, %v1117
  %v1119 = vsel %vm850, %v1062, 0.0
  %v1120 = vadd.f32 %v1118, %v1119
  %v1121 = vsel %vm850, %v1063, 0.0
  %v1122 = vadd.f32 %v1120, %v1121
  %v1123 = vsel %vm850, %v1064, 0.0
  %v1124 = vadd.f32 %v1122, %v1123
  %v1125 = vsel %vm850, %v1065, 0.0
  %v1126 = vadd.f32 %v1124, %v1125
  %v1127 = vsel %vm850, %v1066, 0.0
  %v1128 = vadd.f32 %v1126, %v1127
  %v1129 = vsel %vm850, %v1067, 0.0
  %v1130 = vadd.f32 %v1128, %v1129
  %v1131 = vsel %vm850, %v1068, 0.0
  %v1132 = vadd.f32 %v1130, %v1131
  %v1133 = vsel %vm850, %v1069, 0.0
  %v1134 = vadd.f32 %v1132, %v1133
  %v1135 = vsel %vm850, %v1070, 0.0
  %v1136 = vadd.f32 %v1134, %v1135
  %v1137 = vsel %vm850, %v1071, 0.0
  %v1138 = vadd.f32 %v1136, %v1137
  %v1139 = vsel %vm850, %v1072, 0.0
  %v1140 = vadd.f32 %v1138, %v1139
  %v1141 = vsel %vm850, %v1073, 0.0
  %v1142 = vadd.f32 %v1140, %v1141
  %v1143 = vsel %vm850, %v1074, 0.0
  %v1144 = vadd.f32 %v1142, %v1143
  %v1145 = vsel %vm850, %v1075, 0.0
  %v1146 = vadd.f32 %v1144, %v1145
  %v1147 = vsel %vm850, %v1076, 0.0
  %v1148 = vadd.f32 %v1146, %v1147
  %v1149 = vsel %vm850, %v1077, 0.0
  %v1150 = vadd.f32 %v1148, %v1149
  %v1151 = vsel %vm850, %v1078, 0.0
  %v1152 = vadd.f32 %v1150, %v1151
  %v1153 = vsel %vm850, %v1079, 0.0
  %v1154 = vadd.f32 %v1152, %v1153
  %v1155 = vsel %vm850, %v1080, 0.0
  %v1156 = vadd.f32 %v1154, %v1155
  %v1157 = vsel %vm850, %v1081, 0.0
  %v1158 = vadd.f32 %v1156, %v1157
  %v1159 = vsel %vm850, %v1082, 0.0
  %v1160 = vadd.f32 %v1158, %v1159
  %v1161 = vsel %vm850, %v1083, 0.0
  %v1162 = vadd.f32 %v1160, %v1161
  %v1163 = vsel %vm850, %v1084, 0.0
  %v1164 = vadd.f32 %v1162, %v1163
  %v1165 = vsel %vm850, %v1085, 0.0
  %v1166 = vadd.f32 %v1164, %v1165
  %v1167 = vsel %vm850, %v1086, 0.0
  %v1168 = vadd.f32 %v1166, %v1167
  %v1169 = vsel %vm850, %v1087, 0.0
  %v1170 = vadd.f32 %v1168, %v1169
  %v1171 = vsel %vm850, %v1088, 0.0
  %v1172 = vadd.f32 %v1170, %v1171
  %v1173 = vsel %vm850, %v1089, 0.0
  %v1174 = vadd.f32 %v1172, %v1173
  %v1175 = vsel %vm850, %v1090, 0.0
  %v1176 = vadd.f32 %v1174, %v1175
  %v1177 = vsel %vm850, %v1091, 0.0
  %v1178 = vadd.f32 %v1176, %v1177
  %v1179 = vsel %vm850, %v1092, 0.0
  %v1180 = vadd.f32 %v1178, %v1179
  %v1181 = vsel %vm850, %v1093, 0.0
  %v1182 = vadd.f32 %v1180, %v1181
  %v1183 = vsel %vm850, %v1094, 0.0
  %v1184 = vadd.f32 %v1182, %v1183
  %v1185 = vsel %vm850, %v1095, 0.0
  %v1186 = vadd.f32 %v1184, %v1185
  %v1187 = vsel %vm850, %v1096, 0.0
  %v1188 = vadd.f32 %v1186, %v1187
  %v1189 = vsel %vm850, %v1097, 0.0
  %v1190 = vadd.f32 %v1188, %v1189
  %v1191 = vsel %vm850, %v1098, 0.0
  %v1192 = vadd.f32 %v1190, %v1191
  %v1193 = vsel %vm850, %v1099, 0.0
  %v1194 = vadd.f32 %v1192, %v1193
  %v1195 = vsel %vm850, %v1100, 0.0
  %v1196 = vadd.f32 %v1194, %v1195
  %v1197 = vsel %vm850, %v1101, 0.0
  %v1198 = vadd.f32 %v1196, %v1197
  %v1199 = vrot.slane %v1198, 4
  %v1200 = vadd.f32 %v1198, %v1199
  %v1201 = vrot.slane %v1200, 2
  %v1202 = vadd.f32 %v1200, %v1201
  %v1203 = vrot.slane %v1202, 1
  %v1204 = vadd.f32 %v1202, %v1203
  %v1205 = vmul.f32 %v1204, 0.0025510204
  %v1206 = vld [vmem:[%s3] sm:$0x1]
  %v1207 = vadd.f32 %v1205, 1e-05
  %v1208 = vrsqrt.pop %v1207
  %v1209 = vmul.f32 %v1208, %v1207
  %v1210 = vmul.f32 %v1209, %v1208
  %v1211 = vmul.f32 0.5, %v1210
  %v1212 = vsub.f32 1.5, %v1211
  %v1213 = vmul.f32 %v1208, %v1212
  %vm1214 = vweird.f32 %v1207
  %vm1215 = vweird.f32 %v1208
  %vm1216 = vmor %vm1214, %vm1215
  %v1217 = vsel %vm1216, %v1208, %v1213
  %v1218 = vmul.f32 %v1206, %v1217
  %vm1219 = vcmask 516096
  %1220 = vst.msk [vmem:[%s6] sm:$0x1] %vm1219, %v1218
  %v1221 = vld [vmem:[%s4] sm:$0x1]
  %v1222 = vmul.f32 %v1003, %v1218
  %v1223 = vsub.f32 %v1221, %v1222
  %1224 = vst.msk [vmem:[%s7] sm:$0x1] %vm1219, %v1223
  // Predicated region
  $region22: #{qnetwork_forward.6} parent=0 // pred_check
    _
  $region23: #{qnetwork_forward.6} parent=0 // pred_check_branch
    %1226 = sbr.rel (0) target = $region25
  $region24: #{qnetwork_forward.6} parent=0 // pred_region
    _
  $region25: #{qnetwork_forward.6} parent=0 // pred_fallthru
    _
  // Predicated region
  $region26: #{qnetwork_forward.6} parent=0 // pred_check
    _
  $region27: #{qnetwork_forward.6} parent=0 // pred_check_branch
    %1228 = sbr.rel (0) target = $region29
  $region28: #{qnetwork_forward.6} parent=0 // pred_region
    _
  $region29: #{qnetwork_forward.6} parent=0 // pred_fallthru
    _
  // Predicated region
  $region30: #{qnetwork_forward.6} parent=0 // pred_check
    _
  $region31: #{qnetwork_forward.6} parent=0 // pred_check_branch
    %1230 = sbr.rel (0) target = $region33
  $region32: #{qnetwork_forward.6} parent=0 // pred_region
    _
  $region33: #{qnetwork_forward.6} parent=0 // pred_fallthru
    _
  // Predicated region
  $region34: #{qnetwork_forward.6} parent=0 // pred_check
    _
  $region35: #{qnetwork_forward.6} parent=0 // pred_check_branch
    %1232 = sbr.rel (0) target = $region37
  $region36: #{qnetwork_forward.6} parent=0 // pred_region
    _
  $region37: #{qnetwork_forward.6} parent=0 // pred_fallthru
    _
  // Predicated region
  $region38: #{qnetwork_forward.6} parent=0 // pred_check
    _
  $region39: #{qnetwork_forward.6} parent=0 // pred_check_branch
    %1234 = sbr.rel (0) target = $region41
  $region40: #{qnetwork_forward.6} parent=0 // pred_region
    _
  $region41: #{qnetwork_forward.6} parent=0 // pred_fallthru
    _
  // Predicated region
  $region42: #{qnetwork_forward.6} parent=0 // pred_check
    _
  $region43: #{qnetwork_forward.6} parent=0 // pred_check_branch
    %1236 = sbr.rel (0) target = $region45
  $region44: #{qnetwork_forward.6} parent=0 // pred_region
    _
  $region45: #{qnetwork_forward.6} parent=0 // pred_fallthru
    _

// kernel: qnetwork_forward.7
$region0: #{qnetwork_forward.7}
  #allocation0 [shape = 'u32[]', space=smem, size = 0x4, offset = 0x4, fixed_abs, tag = 'smem constant byte address 0x4 - core index']
  #allocation1 [shape = 'u32[72,128]{1,0:T(1,128)}', space=vmem, size = 0x9000, scoped, tag = 'internal scratch']
  %s0 = inlined_call_operand.vmem [shape: f32[2,3136], index: 0, kind: input, shape index: {}]
  %s1 = inlined_call_operand.vmem [shape: f32[2,3136], index: 1, kind: input, shape index: {}]
  %s2 = inlined_call_operand.vmem [shape: f32[2,3136], index: 2, kind: input, shape index: {}]
  %s3 = inlined_call_operand.vmem [shape: f32[2,3136], index: 3, kind: input, shape index: {}]
  %s4 = inlined_call_operand.vmem [shape: f32[1,3136], index: 4, kind: input, shape index: {}]
  %s5 = inlined_call_operand.vmem [shape: f32[1,3136], index: 5, kind: input, shape index: {}]
  %s6 = inlined_call_operand.vmem [shape: bf16[3136,512], index: 6, kind: input, shape index: {}]
  %s7 = inlined_call_operand.vmem [shape: f32[1,512], index: 7, kind: input, shape index: {}]
  %s8 = inlined_call_operand.vmem [shape: f32[512,2], index: 8, kind: input, shape index: {}]
  %s9 = inlined_call_operand.vmem [shape: f32[1,2], index: 9, kind: input, shape index: {}]
  %s10 = inlined_call_operand.hbm [shape: f32[2,2], index: 10, kind: output, shape index: {}]
  %s11 = sld [smem:[#allocation0]]
  $region50: #{qnetwork_forward.7} parent=0
    _
  %s13 = ssub.s32 1, %s11
  %s14 = scalar_select 0, %s13, %s11
  $region1: #{qnetwork_forward.7} parent=0
    #allocation2 [shape = 'u8[1024]{0}', space=vmem, size = 0x400, scoped, tag = 'output window, operand 0, single buffered']
    #allocation3 [shape = 's32[1]{0}', space=sflag, size = 0x4, scoped, tag = 'scoped memory for qnetwork_forward.7']
    %15 = vsyncpa [#allocation3], 0
    // Predicated region
    $region2: #{qnetwork_forward.7} parent=1 // pred_check
      _
    $region3: #{qnetwork_forward.7} parent=1 // pred_check_branch
      %17 = sbr.rel (0) target = $region5
    $region4: #{qnetwork_forward.7} parent=1 // pred_region
      _
    $region5: #{qnetwork_forward.7} parent=1 // pred_fallthru
      _
    // Predicated region
    $region6: #{qnetwork_forward.7} parent=1 // pred_check
      _
    $region7: #{qnetwork_forward.7} parent=1 // pred_check_branch
      %19 = sbr.rel (0) target = $region9
    $region8: #{qnetwork_forward.7} parent=1 // pred_region
      _
    $region9: #{qnetwork_forward.7} parent=1 // pred_fallthru
      _
    // Predicated region
    $region10: #{qnetwork_forward.7} parent=1 // pred_check
      _
    $region11: #{qnetwork_forward.7} parent=1 // pred_check_branch
      %21 = sbr.rel (0) target = $region13
    $region12: #{qnetwork_forward.7} parent=1 // pred_region
      _
    $region13: #{qnetwork_forward.7} parent=1 // pred_fallthru
      _
    // Predicated region
    $region14: #{qnetwork_forward.7} parent=1 // pred_check
      _
    $region15: #{qnetwork_forward.7} parent=1 // pred_check_branch
      %23 = sbr.rel (0) target = $region17
    $region16: #{qnetwork_forward.7} parent=1 // pred_region
      _
    $region17: #{qnetwork_forward.7} parent=1 // pred_fallthru
      _
    // Predicated region
    $region18: #{qnetwork_forward.7} parent=1 // pred_check
      _
    $region19: #{qnetwork_forward.7} parent=1 // pred_check_branch
      %25 = sbr.rel (0) target = $region21
    $region20: #{qnetwork_forward.7} parent=1 // pred_region
      _
    $region21: #{qnetwork_forward.7} parent=1 // pred_fallthru
      _
    // Predicated region
    $region22: #{qnetwork_forward.7} parent=1 // pred_check
      _
    $region23: #{qnetwork_forward.7} parent=1 // pred_check_branch
      %27 = sbr.rel (0) target = $region25
    $region24: #{qnetwork_forward.7} parent=1 // pred_region
      _
    $region25: #{qnetwork_forward.7} parent=1 // pred_fallthru
      _
    // Predicated region
    $region26: #{qnetwork_forward.7} parent=1 // pred_check
      _
    $region27: #{qnetwork_forward.7} parent=1 // pred_check_branch
      %29 = sbr.rel (0) target = $region29
    $region28: #{qnetwork_forward.7} parent=1 // pred_region
      _
    $region29: #{qnetwork_forward.7} parent=1 // pred_fallthru
      _
    // Predicated region
    $region30: #{qnetwork_forward.7} parent=1 // pred_check
      _
    $region31: #{qnetwork_forward.7} parent=1 // pred_check_branch
      %31 = sbr.rel (0) target = $region33
    $region32: #{qnetwork_forward.7} parent=1 // pred_region
      _
    $region33: #{qnetwork_forward.7} parent=1 // pred_fallthru
      _
    // Predicated region
    $region34: #{qnetwork_forward.7} parent=1 // pred_check
      _
    $region35: #{qnetwork_forward.7} parent=1 // pred_check_branch
      %33 = sbr.rel (0) target = $region37
    $region36: #{qnetwork_forward.7} parent=1 // pred_region
      _
    $region37: #{qnetwork_forward.7} parent=1 // pred_fallthru
      _
    // Predicated region
    $region38: #{qnetwork_forward.7} parent=1 // pred_check
      _
    $region39: #{qnetwork_forward.7} parent=1 // pred_check_branch
      %35 = sbr.rel (0) target = $region41
    $region40: #{qnetwork_forward.7} parent=1 // pred_region
      _
    $region41: #{qnetwork_forward.7} parent=1 // pred_fallthru
      _
    %v37 = vld [vmem:[%s4] sm:$0xff]
    %v38 = vld [vmem:[%s4 + $0x8] sm:$0xff]
    %v39 = vld [vmem:[%s4 + $0x10] sm:$0xff]
    %v40 = vld [vmem:[%s4 + $0x18] sm:$0x1]
    %v41 = vld [vmem:[%s5] sm:$0xff]
    %v42 = vld [vmem:[%s5 + $0x8] sm:$0xff]
    %v43 = vld [vmem:[%s5 + $0x10] sm:$0xff]
    %v44 = vld [vmem:[%s5 + $0x18] sm:$0x1]
    %v45 = vld [vmem:[%s0] sm:$0xff]
    %v46 = vld [vmem:[%s0 + $0x8] sm:$0xff]
    %v47 = vld [vmem:[%s0 + $0x10] sm:$0xff]
    %v48 = vld [vmem:[%s0 + $0x18] sm:$0xff]
    %v49 = vld [vmem:[%s0 + $0x20] sm:$0xff]
    %v50 = vld [vmem:[%s0 + $0x28] sm:$0xff]
    %v51 = vld [vmem:[%s0 + $0x30] sm:$0x3]
    %v56 = vperm.slane %v37, 0
    %v57 = vperm.slane %v37, 1
    %v58 = vperm.slane %v37, 2
    %v59 = vperm.slane %v37, 3
    %v60 = vperm.slane %v37, 4
    %v61 = vperm.slane %v37, 5
    %v62 = vperm.slane %v37, 6
    %v63 = vperm.slane %v37, 7
    %v64 = vperm.slane %v38, 0
    %v65 = vperm.slane %v38, 1
    %v66 = vperm.slane %v38, 2
    %v67 = vperm.slane %v38, 3
    %v68 = vperm.slane %v38, 4
    %v69 = vperm.slane %v38, 5
    %v70 = vperm.slane %v38, 6
    %v71 = vperm.slane %v38, 7
    %v72 = vperm.slane %v39, 0
    %v73 = vperm.slane %v39, 1
    %v74 = vperm.slane %v39, 2
    %v75 = vperm.slane %v39, 3
    %v76 = vperm.slane %v39, 4
    %v77 = vperm.slane %v39, 5
    %v78 = vperm.slane %v39, 6
    %v79 = vperm.slane %v39, 7
    %v80 = vperm.slane %v40, 0
    %v82 = vrot.slane %v57, 6
    %v83 = vrot.slane %v58, 4
    %v84 = vrot.slane %v59, 2
    %v85 = vrot.slane %v61, 6
    %v86 = vrot.slane %v62, 4
    %v87 = vrot.slane %v63, 2
    %v88 = vrot.slane %v65, 6
    %v89 = vrot.slane %v66, 4
    %v90 = vrot.slane %v67, 2
    %v91 = vrot.slane %v69, 6
    %v92 = vrot.slane %v70, 4
    %v93 = vrot.slane %v71, 2
    %v94 = vrot.slane %v73, 6
    %v95 = vrot.slane %v74, 4
    %v96 = vrot.slane %v75, 2
    %v97 = vrot.slane %v77, 6
    %v98 = vrot.slane %v78, 4
    %v99 = vrot.slane %v79, 2
    %vm100 = vcmask 1041408
    %v101 = vsel %vm100, %v56, %v82
    %vm102 = vcmask 1045508
    %v103 = vsel %vm102, %v83, %v84
    %vm104 = vcmask 1043456
    %v105 = vsel %vm104, %v101, %v103
    %v106 = vsel %vm100, %v60, %v85
    %v107 = vsel %vm102, %v86, %v87
    %v108 = vsel %vm104, %v106, %v107
    %v109 = vsel %vm100, %v64, %v88
    %v110 = vsel %vm102, %v89, %v90
    %v111 = vsel %vm104, %v109, %v110
    %v112 = vsel %vm100, %v68, %v91
    %v113 = vsel %vm102, %v92, %v93
    %v114 = vsel %vm104, %v112, %v113
    %v115 = vsel %vm100, %v72, %v94
    %v116 = vsel %vm102, %v95, %v96
    %v117 = vsel %vm104, %v115, %v116
    %v118 = vsel %vm100, %v76, %v97
    %v119 = vsel %vm102, %v98, %v99
    %v120 = vsel %vm104, %v118, %v119
    %v127 = vmul.f32 %v45, %v105
    %v128 = vmul.f32 %v46, %v108
    %v129 = vmul.f32 %v47, %v111
    %v130 = vmul.f32 %v48, %v114
    %v131 = vmul.f32 %v49, %v117
    %v132 = vmul.f32 %v50, %v120
    %v133 = vmul.f32 %v51, %v80
    %v138 = vperm.slane %v41, 0
    %v139 = vperm.slane %v41, 1
    %v140 = vperm.slane %v41, 2
    %v141 = vperm.slane %v41, 3
    %v142 = vperm.slane %v41, 4
    %v143 = vperm.slane %v41, 5
    %v144 = vperm.slane %v41, 6
    %v145 = vperm.slane %v41, 7
    %v146 = vperm.slane %v42, 0
    %v147 = vperm.slane %v42, 1
    %v148 = vperm.slane %v42, 2
    %v149 = vperm.slane %v42, 3
    %v150 = vperm.slane %v42, 4
    %v151 = vperm.slane %v42, 5
    %v152 = vperm.slane %v42, 6
    %v153 = vperm.slane %v42, 7
    %v154 = vperm.slane %v43, 0
    %v155 = vperm.slane %v43, 1
    %v156 = vperm.slane %v43, 2
    %v157 = vperm.slane %v43, 3
    %v158 = vperm.slane %v43, 4
    %v159 = vperm.slane %v43, 5
    %v160 = vperm.slane %v43, 6
    %v161 = vperm.slane %v43, 7
    %v162 = vperm.slane %v44, 0
    %v164 = vrot.slane %v139, 6
    %v165 = vrot.slane %v140, 4
    %v166 = vrot.slane %v141, 2
    %v167 = vrot.slane %v143, 6
    %v168 = vrot.slane %v144, 4
    %v169 = vrot.slane %v145, 2
    %v170 = vrot.slane %v147, 6
    %v171 = vrot.slane %v148, 4
    %v172 = vrot.slane %v149, 2
    %v173 = vrot.slane %v151, 6
    %v174 = vrot.slane %v152, 4
    %v175 = vrot.slane %v153, 2
    %v176 = vrot.slane %v155, 6
    %v177 = vrot.slane %v156, 4
    %v178 = vrot.slane %v157, 2
    %v179 = vrot.slane %v159, 6
    %v180 = vrot.slane %v160, 4
    %v181 = vrot.slane %v161, 2
    %v182 = vsel %vm100, %v138, %v164
    %v183 = vsel %vm102, %v165, %v166
    %v184 = vsel %vm104, %v182, %v183
    %v185 = vsel %vm100, %v142, %v167
    %v186 = vsel %vm102, %v168, %v169
    %v187 = vsel %vm104, %v185, %v186
    %v188 = vsel %vm100, %v146, %v170
    %v189 = vsel %vm102, %v171, %v172
    %v190 = vsel %vm104, %v188, %v189
    %v191 = vsel %vm100, %v150, %v173
    %v192 = vsel %vm102, %v174, %v175
    %v193 = vsel %vm104, %v191, %v192
    %v194 = vsel %vm100, %v154, %v176
    %v195 = vsel %vm102, %v177, %v178
    %v196 = vsel %vm104, %v194, %v195
    %v197 = vsel %vm100, %v158, %v179
    %v198 = vsel %vm102, %v180, %v181
    %v199 = vsel %vm104, %v197, %v198
    %v206 = vadd.f32 %v127, %v184
    %v207 = vadd.f32 %v128, %v187
    %v208 = vadd.f32 %v129, %v190
    %v209 = vadd.f32 %v130, %v193
    %v210 = vadd.f32 %v131, %v196
    %v211 = vadd.f32 %v132, %v199
    %v212 = vadd.f32 %v133, %v162
    %v213 = vld [vmem:[%s1] sm:$0xff]
    %v214 = vld [vmem:[%s1 + $0x8] sm:$0xff]
    %v215 = vld [vmem:[%s1 + $0x10] sm:$0xff]
    %v216 = vld [vmem:[%s1 + $0x18] sm:$0xff]
    %v217 = vld [vmem:[%s1 + $0x20] sm:$0xff]
    %v218 = vld [vmem:[%s1 + $0x28] sm:$0xff]
    %v219 = vld [vmem:[%s1 + $0x30] sm:$0x3]
    %v220 = vmul.f32 %v213, %v105
    %v221 = vmul.f32 %v214, %v108
    %v222 = vmul.f32 %v215, %v111
    %v223 = vmul.f32 %v216, %v114
    %v224 = vmul.f32 %v217, %v117
    %v225 = vmul.f32 %v218, %v120
    %v226 = vmul.f32 %v219, %v80
    %v227 = vadd.f32 %v220, %v184
    %v228 = vadd.f32 %v221, %v187
    %v229 = vadd.f32 %v222, %v190
    %v230 = vadd.f32 %v223, %v193
    %v231 = vadd.f32 %v224, %v196
    %v232 = vadd.f32 %v225, %v199
    %v233 = vadd.f32 %v226, %v162
    %v234 = vmax.f32 %v206, %v227
    %v235 = vmax.f32 %v207, %v228
    %v236 = vmax.f32 %v208, %v229
    %v237 = vmax.f32 %v209, %v230
    %v238 = vmax.f32 %v210, %v231
    %v239 = vmax.f32 %v211, %v232
    %v240 = vmax.f32 %v212, %v233
    %v241 = vld [vmem:[%s2] sm:$0xff]
    %v242 = vld [vmem:[%s2 + $0x8] sm:$0xff]
    %v243 = vld [vmem:[%s2 + $0x10] sm:$0xff]
    %v244 = vld [vmem:[%s2 + $0x18] sm:$0xff]
    %v245 = vld [vmem:[%s2 + $0x20] sm:$0xff]
    %v246 = vld [vmem:[%s2 + $0x28] sm:$0xff]
    %v247 = vld [vmem:[%s2 + $0x30] sm:$0x3]
    %v248 = vmul.f32 %v241, %v105
    %v249 = vmul.f32 %v242, %v108
    %v250 = vmul.f32 %v243, %v111
    %v251 = vmul.f32 %v244, %v114
    %v252 = vmul.f32 %v245, %v117
    %v253 = vmul.f32 %v246, %v120
    %v254 = vmul.f32 %v247, %v80
    %v255 = vadd.f32 %v248, %v184
    %v256 = vadd.f32 %v249, %v187
    %v257 = vadd.f32 %v250, %v190
    %v258 = vadd.f32 %v251, %v193
    %v259 = vadd.f32 %v252, %v196
    %v260 = vadd.f32 %v253, %v199
    %v261 = vadd.f32 %v254, %v162
    %v262 = vld [vmem:[%s3] sm:$0xff]
    %v263 = vld [vmem:[%s3 + $0x8] sm:$0xff]
    %v264 = vld [vmem:[%s3 + $0x10] sm:$0xff]
    %v265 = vld [vmem:[%s3 + $0x18] sm:$0xff]
    %v266 = vld [vmem:[%s3 + $0x20] sm:$0xff]
    %v267 = vld [vmem:[%s3 + $0x28] sm:$0xff]
    %v268 = vld [vmem:[%s3 + $0x30] sm:$0x3]
    %v269 = vmul.f32 %v262, %v105
    %v270 = vmul.f32 %v263, %v108
    %v271 = vmul.f32 %v264, %v111
    %v272 = vmul.f32 %v265, %v114
    %v273 = vmul.f32 %v266, %v117
    %v274 = vmul.f32 %v267, %v120
    %v275 = vmul.f32 %v268, %v80
    %v276 = vadd.f32 %v269, %v184
    %v277 = vadd.f32 %v270, %v187
    %v278 = vadd.f32 %v271, %v190
    %v279 = vadd.f32 %v272, %v193
    %v280 = vadd.f32 %v273, %v196
    %v281 = vadd.f32 %v274, %v199
    %v282 = vadd.f32 %v275, %v162
    %v283 = vmax.f32 %v255, %v276
    %v284 = vmax.f32 %v256, %v277
    %v285 = vmax.f32 %v257, %v278
    %v286 = vmax.f32 %v258, %v279
    %v287 = vmax.f32 %v259, %v280
    %v288 = vmax.f32 %v260, %v281
    %v289 = vmax.f32 %v261, %v282
    %v290 = vmax.f32 %v234, %v283
    %v291 = vmax.f32 %v235, %v284
    %v292 = vmax.f32 %v236, %v285
    %v293 = vmax.f32 %v237, %v286
    %v294 = vmax.f32 %v238, %v287
    %v295 = vmax.f32 %v239, %v288
    %v296 = vmax.f32 %v240, %v289
    %v297 = vmax.f32 %v290, 0.0
    %v298 = vmax.f32 %v291, 0.0
    %v299 = vmax.f32 %v292, 0.0
    %v300 = vmax.f32 %v293, 0.0
    %v301 = vmax.f32 %v294, 0.0
    %v302 = vmax.f32 %v295, 0.0
    %v303 = vmax.f32 %v296, 0.0
    %311 = vst [vmem:[#allocation1] ss:$4 sm:$0xff] %v297
    %s312 = scalar_lea.vmem [#allocation1], 32
    %313 = vst [vmem:[%s312] ss:$4 sm:$0xff] %v298
    %v314 = vld.sshfl [vmem:[#allocation1] sm:$0xff pattern:$0x73625140]
    %v315 = vld.sshfl [vmem:[#allocation1 + $0x8] sm:$0xff pattern:$0x73625140]
    %v316 = vld.sshfl [vmem:[#allocation1 + $0x10] sm:$0xff pattern:$0x73625140]
    %v317 = vld.sshfl [vmem:[#allocation1 + $0x18] sm:$0xff pattern:$0x73625140]
    %v318 = vld.sshfl [vmem:[#allocation1 + $0x20] sm:$0xff pattern:$0x73625140]
    %v319 = vld.sshfl [vmem:[#allocation1 + $0x28] sm:$0xff pattern:$0x73625140]
    %v320 = vld.sshfl [vmem:[#allocation1 + $0x30] sm:$0xff pattern:$0x73625140]
    %v321 = vld.sshfl [vmem:[#allocation1 + $0x38] sm:$0xff pattern:$0x73625140]
    %322 = vst [vmem:[#allocation1] ss:$4 sm:$0xff] %v299
    %323 = vst [vmem:[%s312] ss:$4 sm:$0xff] %v300
    %v324 = vld.sshfl [vmem:[#allocation1] sm:$0xff pattern:$0x73625140]
    %v325 = vld.sshfl [vmem:[#allocation1 + $0x8] sm:$0xff pattern:$0x73625140]
    %v326 = vld.sshfl [vmem:[#allocation1 + $0x10] sm:$0xff pattern:$0x73625140]
    %v327 = vld.sshfl [vmem:[#allocation1 + $0x18] sm:$0xff pattern:$0x73625140]
    %v328 = vld.sshfl [vmem:[#allocation1 + $0x20] sm:$0xff pattern:$0x73625140]
    %v329 = vld.sshfl [vmem:[#allocation1 + $0x28] sm:$0xff pattern:$0x73625140]
    %v330 = vld.sshfl [vmem:[#allocation1 + $0x30] sm:$0xff pattern:$0x73625140]
    %v331 = vld.sshfl [vmem:[#allocation1 + $0x38] sm:$0xff pattern:$0x73625140]
    %332 = vst [vmem:[#allocation1] ss:$4 sm:$0xff] %v301
    %333 = vst [vmem:[%s312] ss:$4 sm:$0xff] %v302
    %v334 = vld.sshfl [vmem:[#allocation1] sm:$0xff pattern:$0x73625140]
    %v335 = vld.sshfl [vmem:[#allocation1 + $0x8] sm:$0xff pattern:$0x73625140]
    %v336 = vld.sshfl [vmem:[#allocation1 + $0x10] sm:$0xff pattern:$0x73625140]
    %v337 = vld.sshfl [vmem:[#allocation1 + $0x18] sm:$0xff pattern:$0x73625140]
    %v338 = vld.sshfl [vmem:[#allocation1 + $0x20] sm:$0xff pattern:$0x73625140]
    %v339 = vld.sshfl [vmem:[#allocation1 + $0x28] sm:$0xff pattern:$0x73625140]
    %v340 = vld.sshfl [vmem:[#allocation1 + $0x30] sm:$0xff pattern:$0x73625140]
    %v341 = vld.sshfl [vmem:[#allocation1 + $0x38] sm:$0xff pattern:$0x73625140]
    %342 = vst [vmem:[#allocation1] ss:$4 sm:$0xff] %v303
    %v343 = vld.sshfl [vmem:[#allocation1] sm:$0xff pattern:$0x73625140]
    %v369 = vpack.c.bf16 %v314, %v314
    %v370 = vpack.c.bf16 %v315, %v315
    %v371 = vpack.c.bf16 %v316, %v316
    %v372 = vpack.c.bf16 %v317, %v317
    %v373 = vpack.c.bf16 %v318, %v318
    %v374 = vpack.c.bf16 %v319, %v319
    %v375 = vpack.c.bf16 %v320, %v320
    %v376 = vpack.c.bf16 %v321, %v321
    %v377 = vpack.c.bf16 %v324, %v324
    %v378 = vpack.c.bf16 %v325, %v325
    %v379 = vpack.c.bf16 %v326, %v326
    %v380 = vpack.c.bf16 %v327, %v327
    %v381 = vpack.c.bf16 %v328, %v328
    %v382 = vpack.c.bf16 %v329, %v329
    %v383 = vpack.c.bf16 %v330, %v330
    %v384 = vpack.c.bf16 %v331, %v331
    %v385 = vpack.c.bf16 %v334, %v334
    %v386 = vpack.c.bf16 %v335, %v335
    %v387 = vpack.c.bf16 %v336, %v336
    %v388 = vpack.c.bf16 %v337, %v337
    %v389 = vpack.c.bf16 %v338, %v338
    %v390 = vpack.c.bf16 %v339, %v339
    %v391 = vpack.c.bf16 %v340, %v340
    %v392 = vpack.c.bf16 %v341, %v341
    %v393 = vpack.c.bf16 %v343, %v343
    %v394 = vld [vmem:[%s6] sm:$0xff]
    %v395 = vld [vmem:[%s6 + $0x8] sm:$0xff]
    %v396 = vld [vmem:[%s6 + $0x10] sm:$0xff]
    %v397 = vld [vmem:[%s6 + $0x18] sm:$0xff]
    %v398 = vld [vmem:[%s6 + $0x20] sm:$0xff]
    %v399 = vld [vmem:[%s6 + $0x28] sm:$0xff]
    %v400 = vld [vmem:[%s6 + $0x30] sm:$0xff]
    %v401 = vld [vmem:[%s6 + $0x38] sm:$0xff]
    %v402 = vld [vmem:[%s6 + $0x40] sm:$0xff]
    %v403 = vld [vmem:[%s6 + $0x48] sm:$0xff]
    %v404 = vld [vmem:[%s6 + $0x50] sm:$0xff]
    %v405 = vld [vmem:[%s6 + $0x58] sm:$0xff]
    %v406 = vld [vmem:[%s6 + $0x60] sm:$0xff]
    %v407 = vld [vmem:[%s6 + $0x68] sm:$0xff]
    %v408 = vld [vmem:[%s6 + $0x70] sm:$0xff]
    %v409 = vld [vmem:[%s6 + $0x78] sm:$0xff]
    %v410 = vld [vmem:[%s6 + $0x80] sm:$0xff]
    %v411 = vld [vmem:[%s6 + $0x88] sm:$0xff]
    %v412 = vld [vmem:[%s6 + $0x90] sm:$0xff]
    %v413 = vld [vmem:[%s6 + $0x98] sm:$0xff]
    %v414 = vld [vmem:[%s6 + $0xa0] sm:$0xff]
    %v415 = vld [vmem:[%s6 + $0xa8] sm:$0xff]
    %v416 = vld [vmem:[%s6 + $0xb0] sm:$0xff]
    %v417 = vld [vmem:[%s6 + $0xb8] sm:$0xff]
    %v418 = vld [vmem:[%s6 + $0xc0] sm:$0xff]
    %v419 = vld [vmem:[%s6 + $0xc8] sm:$0xff]
    %v420 = vld [vmem:[%s6 + $0xd0] sm:$0xff]
    %v421 = vld [vmem:[%s6 + $0xd8] sm:$0xff]
    %v422 = vld [vmem:[%s6 + $0xe0] sm:$0xff]
    %v423 = vld [vmem:[%s6 + $0xe8] sm:$0xff]
    %v424 = vld [vmem:[%s6 + $0xf0] sm:$0xff]
    %v425 = vld [vmem:[%s6 + $0xf8] sm:$0xff]
    %v426 = vld [vmem:[%s6 + $0x100] sm:$0xff]
    %v427 = vld [vmem:[%s6 + $0x108] sm:$0xff]
    %v428 = vld [vmem:[%s6 + $0x110] sm:$0xff]
    %v429 = vld [vmem:[%s6 + $0x118] sm:$0xff]
    %v430 = vld [vmem:[%s6 + $0x120] sm:$0xff]
    %v431 = vld [vmem:[%s6 + $0x128] sm:$0xff]
    %v432 = vld [vmem:[%s6 + $0x130] sm:$0xff]
    %v433 = vld [vmem:[%s6 + $0x138] sm:$0xff]
    %v434 = vld [vmem:[%s6 + $0x140] sm:$0xff]
    %v435 = vld [vmem:[%s6 + $0x148] sm:$0xff]
    %v436 = vld [vmem:[%s6 + $0x150] sm:$0xff]
    %v437 = vld [vmem:[%s6 + $0x158] sm:$0xff]
    %v438 = vld [vmem:[%s6 + $0x160] sm:$0xff]
    %v439 = vld [vmem:[%s6 + $0x168] sm:$0xff]
    %v440 = vld [vmem:[%s6 + $0x170] sm:$0xff]
    %v441 = vld [vmem:[%s6 + $0x178] sm:$0xff]
    %v442 = vld [vmem:[%s6 + $0x180] sm:$0xff]
    %v443 = vld [vmem:[%s6 + $0x188] sm:$0xff]
    %v444 = vld [vmem:[%s6 + $0x190] sm:$0xff]
    %v445 = vld [vmem:[%s6 + $0x198] sm:$0xff]
    %v446 = vld [vmem:[%s6 + $0x1a0] sm:$0xff]
    %v447 = vld [vmem:[%s6 + $0x1a8] sm:$0xff]
    %v448 = vld [vmem:[%s6 + $0x1b0] sm:$0xff]
    %v449 = vld [vmem:[%s6 + $0x1b8] sm:$0xff]
    %v450 = vld [vmem:[%s6 + $0x1c0] sm:$0xff]
    %v451 = vld [vmem:[%s6 + $0x1c8] sm:$0xff]
    %v452 = vld [vmem:[%s6 + $0x1d0] sm:$0xff]
    %v453 = vld [vmem:[%s6 + $0x1d8] sm:$0xff]
    %v454 = vld [vmem:[%s6 + $0x1e0] sm:$0xff]
    %v455 = vld [vmem:[%s6 + $0x1e8] sm:$0xff]
    %v456 = vld [vmem:[%s6 + $0x1f0] sm:$0xff]
    %v457 = vld [vmem:[%s6 + $0x1f8] sm:$0xff]
    %v458 = vld [vmem:[%s6 + $0x200] sm:$0xff]
    %v459 = vld [vmem:[%s6 + $0x208] sm:$0xff]
    %v460 = vld [vmem:[%s6 + $0x210] sm:$0xff]
    %v461 = vld [vmem:[%s6 + $0x218] sm:$0xff]
    %v462 = vld [vmem:[%s6 + $0x220] sm:$0xff]
    %v463 = vld [vmem:[%s6 + $0x228] sm:$0xff]
    %v464 = vld [vmem:[%s6 + $0x230] sm:$0xff]
    %v465 = vld [vmem:[%s6 + $0x238] sm:$0xff]
    %v466 = vld [vmem:[%s6 + $0x240] sm:$0xff]
    %v467 = vld [vmem:[%s6 + $0x248] sm:$0xff]
    %v468 = vld [vmem:[%s6 + $0x250] sm:$0xff]
    %v469 = vld [vmem:[%s6 + $0x258] sm:$0xff]
    %v470 = vld [vmem:[%s6 + $0x260] sm:$0xff]
    %v471 = vld [vmem:[%s6 + $0x268] sm:$0xff]
    %v472 = vld [vmem:[%s6 + $0x270] sm:$0xff]
    %v473 = vld [vmem:[%s6 + $0x278] sm:$0xff]
    %v474 = vld [vmem:[%s6 + $0x280] sm:$0xff]
    %v475 = vld [vmem:[%s6 + $0x288] sm:$0xff]
    %v476 = vld [vmem:[%s6 + $0x290] sm:$0xff]
    %v477 = vld [vmem:[%s6 + $0x298] sm:$0xff]
    %v478 = vld [vmem:[%s6 + $0x2a0] sm:$0xff]
    %v479 = vld [vmem:[%s6 + $0x2a8] sm:$0xff]
    %v480 = vld [vmem:[%s6 + $0x2b0] sm:$0xff]
    %v481 = vld [vmem:[%s6 + $0x2b8] sm:$0xff]
    %v482 = vld [vmem:[%s6 + $0x2c0] sm:$0xff]
    %v483 = vld [vmem:[%s6 + $0x2c8] sm:$0xff]
    %v484 = vld [vmem:[%s6 + $0x2d0] sm:$0xff]
    %v485 = vld [vmem:[%s6 + $0x2d8] sm:$0xff]
    %v486 = vld [vmem:[%s6 + $0x2e0] sm:$0xff]
    %v487 = vld [vmem:[%s6 + $0x2e8] sm:$0xff]
    %v488 = vld [vmem:[%s6 + $0x2f0] sm:$0xff]
    %v489 = vld [vmem:[%s6 + $0x2f8] sm:$0xff]
    %v490 = vld [vmem:[%s6 + $0x300] sm:$0xff]
    %v491 = vld [vmem:[%s6 + $0x308] sm:$0xff]
    %v492 = vld [vmem:[%s6 + $0x310] sm:$0xff]
    %v493 = vld [vmem:[%s6 + $0x318] sm:$0xff]
    %v494 = vld [vmem:[%s6 + $0x320] sm:$0xff]
    %v495 = vld [vmem:[%s6 + $0x328] sm:$0xff]
    %v496 = vld [vmem:[%s6 + $0x330] sm:$0xff]
    %v497 = vld [vmem:[%s6 + $0x338] sm:$0xff]
    %v498 = vld [vmem:[%s6 + $0x340] sm:$0xff]
    %v499 = vld [vmem:[%s6 + $0x348] sm:$0xff]
    %v500 = vld [vmem:[%s6 + $0x350] sm:$0xff]
    %v501 = vld [vmem:[%s6 + $0x358] sm:$0xff]
    %v502 = vld [vmem:[%s6 + $0x360] sm:$0xff]
    %v503 = vld [vmem:[%s6 + $0x368] sm:$0xff]
    %v504 = vld [vmem:[%s6 + $0x370] sm:$0xff]
    %v505 = vld [vmem:[%s6 + $0x378] sm:$0xff]
    %v506 = vld [vmem:[%s6 + $0x380] sm:$0xff]
    %v507 = vld [vmem:[%s6 + $0x388] sm:$0xff]
    %v508 = vld [vmem:[%s6 + $0x390] sm:$0xff]
    %v509 = vld [vmem:[%s6 + $0x398] sm:$0xff]
    %v510 = vld [vmem:[%s6 + $0x3a0] sm:$0xff]
    %v511 = vld [vmem:[%s6 + $0x3a8] sm:$0xff]
    %v512 = vld [vmem:[%s6 + $0x3b0] sm:$0xff]
    %v513 = vld [vmem:[%s6 + $0x3b8] sm:$0xff]
    %v514 = vld [vmem:[%s6 + $0x3c0] sm:$0xff]
    %v515 = vld [vmem:[%s6 + $0x3c8] sm:$0xff]
    %v516 = vld [vmem:[%s6 + $0x3d0] sm:$0xff]
    %v517 = vld [vmem:[%s6 + $0x3d8] sm:$0xff]
    %v518 = vld [vmem:[%s6 + $0x3e0] sm:$0xff]
    %v519 = vld [vmem:[%s6 + $0x3e8] sm:$0xff]
    %v520 = vld [vmem:[%s6 + $0x3f0] sm:$0xff]
    %v521 = vld [vmem:[%s6 + $0x3f8] sm:$0xff]
    %v522 = vld [vmem:[%s6 + $0x400] sm:$0xff]
    %v523 = vld [vmem:[%s6 + $0x408] sm:$0xff]
    %v524 = vld [vmem:[%s6 + $0x410] sm:$0xff]
    %v525 = vld [vmem:[%s6 + $0x418] sm:$0xff]
    %v526 = vld [vmem:[%s6 + $0x420] sm:$0xff]
    %v527 = vld [vmem:[%s6 + $0x428] sm:$0xff]
    %v528 = vld [vmem:[%s6 + $0x430] sm:$0xff]
    %v529 = vld [vmem:[%s6 + $0x438] sm:$0xff]
    %v530 = vld [vmem:[%s6 + $0x440] sm:$0xff]
    %v531 = vld [vmem:[%s6 + $0x448] sm:$0xff]
    %v532 = vld [vmem:[%s6 + $0x450] sm:$0xff]
    %v533 = vld [vmem:[%s6 + $0x458] sm:$0xff]
    %v534 = vld [vmem:[%s6 + $0x460] sm:$0xff]
    %v535 = vld [vmem:[%s6 + $0x468] sm:$0xff]
    %v536 = vld [vmem:[%s6 + $0x470] sm:$0xff]
    %v537 = vld [vmem:[%s6 + $0x478] sm:$0xff]
    %v538 = vld [vmem:[%s6 + $0x480] sm:$0xff]
    %v539 = vld [vmem:[%s6 + $0x488] sm:$0xff]
    %v540 = vld [vmem:[%s6 + $0x490] sm:$0xff]
    %v541 = vld [vmem:[%s6 + $0x498] sm:$0xff]
    %v542 = vld [vmem:[%s6 + $0x4a0] sm:$0xff]
    %v543 = vld [vmem:[%s6 + $0x4a8] sm:$0xff]
    %v544 = vld [vmem:[%s6 + $0x4b0] sm:$0xff]
    %v545 = vld [vmem:[%s6 + $0x4b8] sm:$0xff]
    %v546 = vld [vmem:[%s6 + $0x4c0] sm:$0xff]
    %v547 = vld [vmem:[%s6 + $0x4c8] sm:$0xff]
    %v548 = vld [vmem:[%s6 + $0x4d0] sm:$0xff]
    %v549 = vld [vmem:[%s6 + $0x4d8] sm:$0xff]
    %v550 = vld [vmem:[%s6 + $0x4e0] sm:$0xff]
    %v551 = vld [vmem:[%s6 + $0x4e8] sm:$0xff]
    %v552 = vld [vmem:[%s6 + $0x4f0] sm:$0xff]
    %v553 = vld [vmem:[%s6 + $0x4f8] sm:$0xff]
    %v554 = vld [vmem:[%s6 + $0x500] sm:$0xff]
    %v555 = vld [vmem:[%s6 + $0x508] sm:$0xff]
    %v556 = vld [vmem:[%s6 + $0x510] sm:$0xff]
    %v557 = vld [vmem:[%s6 + $0x518] sm:$0xff]
    %v558 = vld [vmem:[%s6 + $0x520] sm:$0xff]
    %v559 = vld [vmem:[%s6 + $0x528] sm:$0xff]
    %v560 = vld [vmem:[%s6 + $0x530] sm:$0xff]
    %v561 = vld [vmem:[%s6 + $0x538] sm:$0xff]
    %v562 = vld [vmem:[%s6 + $0x540] sm:$0xff]
    %v563 = vld [vmem:[%s6 + $0x548] sm:$0xff]
    %v564 = vld [vmem:[%s6 + $0x550] sm:$0xff]
    %v565 = vld [vmem:[%s6 + $0x558] sm:$0xff]
    %v566 = vld [vmem:[%s6 + $0x560] sm:$0xff]
    %v567 = vld [vmem:[%s6 + $0x568] sm:$0xff]
    %v568 = vld [vmem:[%s6 + $0x570] sm:$0xff]
    %v569 = vld [vmem:[%s6 + $0x578] sm:$0xff]
    %v570 = vld [vmem:[%s6 + $0x580] sm:$0xff]
    %v571 = vld [vmem:[%s6 + $0x588] sm:$0xff]
    %v572 = vld [vmem:[%s6 + $0x590] sm:$0xff]
    %v573 = vld [vmem:[%s6 + $0x598] sm:$0xff]
    %v574 = vld [vmem:[%s6 + $0x5a0] sm:$0xff]
    %v575 = vld [vmem:[%s6 + $0x5a8] sm:$0xff]
    %v576 = vld [vmem:[%s6 + $0x5b0] sm:$0xff]
    %v577 = vld [vmem:[%s6 + $0x5b8] sm:$0xff]
    %v578 = vld [vmem:[%s6 + $0x5c0] sm:$0xff]
    %v579 = vld [vmem:[%s6 + $0x5c8] sm:$0xff]
    %v580 = vld [vmem:[%s6 + $0x5d0] sm:$0xff]
    %v581 = vld [vmem:[%s6 + $0x5d8] sm:$0xff]
    %v582 = vld [vmem:[%s6 + $0x5e0] sm:$0xff]
    %v583 = vld [vmem:[%s6 + $0x5e8] sm:$0xff]
    %v584 = vld [vmem:[%s6 + $0x5f0] sm:$0xff]
    %v585 = vld [vmem:[%s6 + $0x5f8] sm:$0xff]
    %v586 = vld [vmem:[%s6 + $0x600] sm:$0xff]
    %v587 = vld [vmem:[%s6 + $0x608] sm:$0xff]
    %v588 = vld [vmem:[%s6 + $0x610] sm:$0xff]
    %v589 = vld [vmem:[%s6 + $0x618] sm:$0xff]
    %v590 = vld [vmem:[%s6 + $0x620] sm:$0xff]
    %v591 = vld [vmem:[%s6 + $0x628] sm:$0xff]
    %v592 = vld [vmem:[%s6 + $0x630] sm:$0xff]
    %v593 = vld [vmem:[%s6 + $0x638] sm:$0xff]
    %v594 = vld [vmem:[%s6 + $0x640] sm:$0xff]
    %v595 = vld [vmem:[%s6 + $0x648] sm:$0xff]
    %v596 = vld [vmem:[%s6 + $0x650] sm:$0xff]
    %v597 = vld [vmem:[%s6 + $0x658] sm:$0xff]
    %v598 = vld [vmem:[%s6 + $0x660] sm:$0xff]
    %v599 = vld [vmem:[%s6 + $0x668] sm:$0xff]
    %v600 = vld [vmem:[%s6 + $0x670] sm:$0xff]
    %v601 = vld [vmem:[%s6 + $0x678] sm:$0xff]
    %v602 = vld [vmem:[%s6 + $0x680] sm:$0xff]
    %v603 = vld [vmem:[%s6 + $0x688] sm:$0xff]
    %v604 = vld [vmem:[%s6 + $0x690] sm:$0xff]
    %v605 = vld [vmem:[%s6 + $0x698] sm:$0xff]
    %v606 = vld [vmem:[%s6 + $0x6a0] sm:$0xff]
    %v607 = vld [vmem:[%s6 + $0x6a8] sm:$0xff]
    %v608 = vld [vmem:[%s6 + $0x6b0] sm:$0xff]
    %v609 = vld [vmem:[%s6 + $0x6b8] sm:$0xff]
    %v610 = vld [vmem:[%s6 + $0x6c0] sm:$0xff]
    %v611 = vld [vmem:[%s6 + $0x6c8] sm:$0xff]
    %v612 = vld [vmem:[%s6 + $0x6d0] sm:$0xff]
    %v613 = vld [vmem:[%s6 + $0x6d8] sm:$0xff]
    %v614 = vld [vmem:[%s6 + $0x6e0] sm:$0xff]
    %v615 = vld [vmem:[%s6 + $0x6e8] sm:$0xff]
    %v616 = vld [vmem:[%s6 + $0x6f0] sm:$0xff]
    %v617 = vld [vmem:[%s6 + $0x6f8] sm:$0xff]
    %v618 = vld [vmem:[%s6 + $0x700] sm:$0xff]
    %v619 = vld [vmem:[%s6 + $0x708] sm:$0xff]
    %v620 = vld [vmem:[%s6 + $0x710] sm:$0xff]
    %v621 = vld [vmem:[%s6 + $0x718] sm:$0xff]
    %v622 = vld [vmem:[%s6 + $0x720] sm:$0xff]
    %v623 = vld [vmem:[%s6 + $0x728] sm:$0xff]
    %v624 = vld [vmem:[%s6 + $0x730] sm:$0xff]
    %v625 = vld [vmem:[%s6 + $0x738] sm:$0xff]
    %v626 = vld [vmem:[%s6 + $0x740] sm:$0xff]
    %v627 = vld [vmem:[%s6 + $0x748] sm:$0xff]
    %v628 = vld [vmem:[%s6 + $0x750] sm:$0xff]
    %v629 = vld [vmem:[%s6 + $0x758] sm:$0xff]
    %v630 = vld [vmem:[%s6 + $0x760] sm:$0xff]
    %v631 = vld [vmem:[%s6 + $0x768] sm:$0xff]
    %v632 = vld [vmem:[%s6 + $0x770] sm:$0xff]
    %v633 = vld [vmem:[%s6 + $0x778] sm:$0xff]
    %v634 = vld [vmem:[%s6 + $0x780] sm:$0xff]
    %v635 = vld [vmem:[%s6 + $0x788] sm:$0xff]
    %v636 = vld [vmem:[%s6 + $0x790] sm:$0xff]
    %v637 = vld [vmem:[%s6 + $0x798] sm:$0xff]
    %v638 = vld [vmem:[%s6 + $0x7a0] sm:$0xff]
    %v639 = vld [vmem:[%s6 + $0x7a8] sm:$0xff]
    %v640 = vld [vmem:[%s6 + $0x7b0] sm:$0xff]
    %v641 = vld [vmem:[%s6 + $0x7b8] sm:$0xff]
    %v642 = vld [vmem:[%s6 + $0x7c0] sm:$0xff]
    %v643 = vld [vmem:[%s6 + $0x7c8] sm:$0xff]
    %v644 = vld [vmem:[%s6 + $0x7d0] sm:$0xff]
    %v645 = vld [vmem:[%s6 + $0x7d8] sm:$0xff]
    %v646 = vld [vmem:[%s6 + $0x7e0] sm:$0xff]
    %v647 = vld [vmem:[%s6 + $0x7e8] sm:$0xff]
    %v648 = vld [vmem:[%s6 + $0x7f0] sm:$0xff]
    %v649 = vld [vmem:[%s6 + $0x7f8] sm:$0xff]
    %v650 = vld [vmem:[%s6 + $0x800] sm:$0xff]
    %v651 = vld [vmem:[%s6 + $0x808] sm:$0xff]
    %v652 = vld [vmem:[%s6 + $0x810] sm:$0xff]
    %v653 = vld [vmem:[%s6 + $0x818] sm:$0xff]
    %v654 = vld [vmem:[%s6 + $0x820] sm:$0xff]
    %v655 = vld [vmem:[%s6 + $0x828] sm:$0xff]
    %v656 = vld [vmem:[%s6 + $0x830] sm:$0xff]
    %v657 = vld [vmem:[%s6 + $0x838] sm:$0xff]
    %v658 = vld [vmem:[%s6 + $0x840] sm:$0xff]
    %v659 = vld [vmem:[%s6 + $0x848] sm:$0xff]
    %v660 = vld [vmem:[%s6 + $0x850] sm:$0xff]
    %v661 = vld [vmem:[%s6 + $0x858] sm:$0xff]
    %v662 = vld [vmem:[%s6 + $0x860] sm:$0xff]
    %v663 = vld [vmem:[%s6 + $0x868] sm:$0xff]
    %v664 = vld [vmem:[%s6 + $0x870] sm:$0xff]
    %v665 = vld [vmem:[%s6 + $0x878] sm:$0xff]
    %v666 = vld [vmem:[%s6 + $0x880] sm:$0xff]
    %v667 = vld [vmem:[%s6 + $0x888] sm:$0xff]
    %v668 = vld [vmem:[%s6 + $0x890] sm:$0xff]
    %v669 = vld [vmem:[%s6 + $0x898] sm:$0xff]
    %v670 = vld [vmem:[%s6 + $0x8a0] sm:$0xff]
    %v671 = vld [vmem:[%s6 + $0x8a8] sm:$0xff]
    %v672 = vld [vmem:[%s6 + $0x8b0] sm:$0xff]
    %v673 = vld [vmem:[%s6 + $0x8b8] sm:$0xff]
    %v674 = vld [vmem:[%s6 + $0x8c0] sm:$0xff]
    %v675 = vld [vmem:[%s6 + $0x8c8] sm:$0xff]
    %v676 = vld [vmem:[%s6 + $0x8d0] sm:$0xff]
    %v677 = vld [vmem:[%s6 + $0x8d8] sm:$0xff]
    %v678 = vld [vmem:[%s6 + $0x8e0] sm:$0xff]
    %v679 = vld [vmem:[%s6 + $0x8e8] sm:$0xff]
    %v680 = vld [vmem:[%s6 + $0x8f0] sm:$0xff]
    %v681 = vld [vmem:[%s6 + $0x8f8] sm:$0xff]
    %v682 = vld [vmem:[%s6 + $0x900] sm:$0xff]
    %v683 = vld [vmem:[%s6 + $0x908] sm:$0xff]
    %v684 = vld [vmem:[%s6 + $0x910] sm:$0xff]
    %v685 = vld [vmem:[%s6 + $0x918] sm:$0xff]
    %v686 = vld [vmem:[%s6 + $0x920] sm:$0xff]
    %v687 = vld [vmem:[%s6 + $0x928] sm:$0xff]
    %v688 = vld [vmem:[%s6 + $0x930] sm:$0xff]
    %v689 = vld [vmem:[%s6 + $0x938] sm:$0xff]
    %v690 = vld [vmem:[%s6 + $0x940] sm:$0xff]
    %v691 = vld [vmem:[%s6 + $0x948] sm:$0xff]
    %v692 = vld [vmem:[%s6 + $0x950] sm:$0xff]
    %v693 = vld [vmem:[%s6 + $0x958] sm:$0xff]
    %v694 = vld [vmem:[%s6 + $0x960] sm:$0xff]
    %v695 = vld [vmem:[%s6 + $0x968] sm:$0xff]
    %v696 = vld [vmem:[%s6 + $0x970] sm:$0xff]
    %v697 = vld [vmem:[%s6 + $0x978] sm:$0xff]
    %v698 = vld [vmem:[%s6 + $0x980] sm:$0xff]
    %v699 = vld [vmem:[%s6 + $0x988] sm:$0xff]
    %v700 = vld [vmem:[%s6 + $0x990] sm:$0xff]
    %v701 = vld [vmem:[%s6 + $0x998] sm:$0xff]
    %v702 = vld [vmem:[%s6 + $0x9a0] sm:$0xff]
    %v703 = vld [vmem:[%s6 + $0x9a8] sm:$0xff]
    %v704 = vld [vmem:[%s6 + $0x9b0] sm:$0xff]
    %v705 = vld [vmem:[%s6 + $0x9b8] sm:$0xff]
    %v706 = vld [vmem:[%s6 + $0x9c0] sm:$0xff]
    %v707 = vld [vmem:[%s6 + $0x9c8] sm:$0xff]
    %v708 = vld [vmem:[%s6 + $0x9d0] sm:$0xff]
    %v709 = vld [vmem:[%s6 + $0x9d8] sm:$0xff]
    %v710 = vld [vmem:[%s6 + $0x9e0] sm:$0xff]
    %v711 = vld [vmem:[%s6 + $0x9e8] sm:$0xff]
    %v712 = vld [vmem:[%s6 + $0x9f0] sm:$0xff]
    %v713 = vld [vmem:[%s6 + $0x9f8] sm:$0xff]
    %v714 = vld [vmem:[%s6 + $0xa00] sm:$0xff]
    %v715 = vld [vmem:[%s6 + $0xa08] sm:$0xff]
    %v716 = vld [vmem:[%s6 + $0xa10] sm:$0xff]
    %v717 = vld [vmem:[%s6 + $0xa18] sm:$0xff]
    %v718 = vld [vmem:[%s6 + $0xa20] sm:$0xff]
    %v719 = vld [vmem:[%s6 + $0xa28] sm:$0xff]
    %v720 = vld [vmem:[%s6 + $0xa30] sm:$0xff]
    %v721 = vld [vmem:[%s6 + $0xa38] sm:$0xff]
    %v722 = vld [vmem:[%s6 + $0xa40] sm:$0xff]
    %v723 = vld [vmem:[%s6 + $0xa48] sm:$0xff]
    %v724 = vld [vmem:[%s6 + $0xa50] sm:$0xff]
    %v725 = vld [vmem:[%s6 + $0xa58] sm:$0xff]
    %v726 = vld [vmem:[%s6 + $0xa60] sm:$0xff]
    %v727 = vld [vmem:[%s6 + $0xa68] sm:$0xff]
    %v728 = vld [vmem:[%s6 + $0xa70] sm:$0xff]
    %v729 = vld [vmem:[%s6 + $0xa78] sm:$0xff]
    %v730 = vld [vmem:[%s6 + $0xa80] sm:$0xff]
    %v731 = vld [vmem:[%s6 + $0xa88] sm:$0xff]
    %v732 = vld [vmem:[%s6 + $0xa90] sm:$0xff]
    %v733 = vld [vmem:[%s6 + $0xa98] sm:$0xff]
    %v734 = vld [vmem:[%s6 + $0xaa0] sm:$0xff]
    %v735 = vld [vmem:[%s6 + $0xaa8] sm:$0xff]
    %v736 = vld [vmem:[%s6 + $0xab0] sm:$0xff]
    %v737 = vld [vmem:[%s6 + $0xab8] sm:$0xff]
    %v738 = vld [vmem:[%s6 + $0xac0] sm:$0xff]
    %v739 = vld [vmem:[%s6 + $0xac8] sm:$0xff]
    %v740 = vld [vmem:[%s6 + $0xad0] sm:$0xff]
    %v741 = vld [vmem:[%s6 + $0xad8] sm:$0xff]
    %v742 = vld [vmem:[%s6 + $0xae0] sm:$0xff]
    %v743 = vld [vmem:[%s6 + $0xae8] sm:$0xff]
    %v744 = vld [vmem:[%s6 + $0xaf0] sm:$0xff]
    %v745 = vld [vmem:[%s6 + $0xaf8] sm:$0xff]
    %v746 = vld [vmem:[%s6 + $0xb00] sm:$0xff]
    %v747 = vld [vmem:[%s6 + $0xb08] sm:$0xff]
    %v748 = vld [vmem:[%s6 + $0xb10] sm:$0xff]
    %v749 = vld [vmem:[%s6 + $0xb18] sm:$0xff]
    %v750 = vld [vmem:[%s6 + $0xb20] sm:$0xff]
    %v751 = vld [vmem:[%s6 + $0xb28] sm:$0xff]
    %v752 = vld [vmem:[%s6 + $0xb30] sm:$0xff]
    %v753 = vld [vmem:[%s6 + $0xb38] sm:$0xff]
    %v754 = vld [vmem:[%s6 + $0xb40] sm:$0xff]
    %v755 = vld [vmem:[%s6 + $0xb48] sm:$0xff]
    %v756 = vld [vmem:[%s6 + $0xb50] sm:$0xff]
    %v757 = vld [vmem:[%s6 + $0xb58] sm:$0xff]
    %v758 = vld [vmem:[%s6 + $0xb60] sm:$0xff]
    %v759 = vld [vmem:[%s6 + $0xb68] sm:$0xff]
    %v760 = vld [vmem:[%s6 + $0xb70] sm:$0xff]
    %v761 = vld [vmem:[%s6 + $0xb78] sm:$0xff]
    %v762 = vld [vmem:[%s6 + $0xb80] sm:$0xff]
    %v763 = vld [vmem:[%s6 + $0xb88] sm:$0xff]
    %v764 = vld [vmem:[%s6 + $0xb90] sm:$0xff]
    %v765 = vld [vmem:[%s6 + $0xb98] sm:$0xff]
    %v766 = vld [vmem:[%s6 + $0xba0] sm:$0xff]
    %v767 = vld [vmem:[%s6 + $0xba8] sm:$0xff]
    %v768 = vld [vmem:[%s6 + $0xbb0] sm:$0xff]
    %v769 = vld [vmem:[%s6 + $0xbb8] sm:$0xff]
    %v770 = vld [vmem:[%s6 + $0xbc0] sm:$0xff]
    %v771 = vld [vmem:[%s6 + $0xbc8] sm:$0xff]
    %v772 = vld [vmem:[%s6 + $0xbd0] sm:$0xff]
    %v773 = vld [vmem:[%s6 + $0xbd8] sm:$0xff]
    %v774 = vld [vmem:[%s6 + $0xbe0] sm:$0xff]
    %v775 = vld [vmem:[%s6 + $0xbe8] sm:$0xff]
    %v776 = vld [vmem:[%s6 + $0xbf0] sm:$0xff]
    %v777 = vld [vmem:[%s6 + $0xbf8] sm:$0xff]
    %v778 = vld [vmem:[%s6 + $0xc00] sm:$0xff]
    %v779 = vld [vmem:[%s6 + $0xc08] sm:$0xff]
    %v780 = vld [vmem:[%s6 + $0xc10] sm:$0xff]
    %v781 = vld [vmem:[%s6 + $0xc18] sm:$0xff]
    %v782 = vld [vmem:[%s6 + $0xc20] sm:$0xff]
    %v783 = vld [vmem:[%s6 + $0xc28] sm:$0xff]
    %v784 = vld [vmem:[%s6 + $0xc30] sm:$0xff]
    %v785 = vld [vmem:[%s6 + $0xc38] sm:$0xff]
    %v786 = vld [vmem:[%s6 + $0xc40] sm:$0xff]
    %v787 = vld [vmem:[%s6 + $0xc48] sm:$0xff]
    %v788 = vld [vmem:[%s6 + $0xc50] sm:$0xff]
    %v789 = vld [vmem:[%s6 + $0xc58] sm:$0xff]
    %v790 = vld [vmem:[%s6 + $0xc60] sm:$0xff]
    %v791 = vld [vmem:[%s6 + $0xc68] sm:$0xff]
    %v792 = vld [vmem:[%s6 + $0xc70] sm:$0xff]
    %v793 = vld [vmem:[%s6 + $0xc78] sm:$0xff]
    %v794 = vld [vmem:[%s6 + $0xc80] sm:$0xff]
    %v795 = vld [vmem:[%s6 + $0xc88] sm:$0xff]
    %v796 = vld [vmem:[%s6 + $0xc90] sm:$0xff]
    %v797 = vld [vmem:[%s6 + $0xc98] sm:$0xff]
    %v798 = vld [vmem:[%s6 + $0xca0] sm:$0xff]
    %v799 = vld [vmem:[%s6 + $0xca8] sm:$0xff]
    %v800 = vld [vmem:[%s6 + $0xcb0] sm:$0xff]
    %v801 = vld [vmem:[%s6 + $0xcb8] sm:$0xff]
    %v802 = vld [vmem:[%s6 + $0xcc0] sm:$0xff]
    %v803 = vld [vmem:[%s6 + $0xcc8] sm:$0xff]
    %v804 = vld [vmem:[%s6 + $0xcd0] sm:$0xff]
    %v805 = vld [vmem:[%s6 + $0xcd8] sm:$0xff]
    %v806 = vld [vmem:[%s6 + $0xce0] sm:$0xff]
    %v807 = vld [vmem:[%s6 + $0xce8] sm:$0xff]
    %v808 = vld [vmem:[%s6 + $0xcf0] sm:$0xff]
    %v809 = vld [vmem:[%s6 + $0xcf8] sm:$0xff]
    %v810 = vld [vmem:[%s6 + $0xd00] sm:$0xff]
    %v811 = vld [vmem:[%s6 + $0xd08] sm:$0xff]
    %v812 = vld [vmem:[%s6 + $0xd10] sm:$0xff]
    %v813 = vld [vmem:[%s6 + $0xd18] sm:$0xff]
    %v814 = vld [vmem:[%s6 + $0xd20] sm:$0xff]
    %v815 = vld [vmem:[%s6 + $0xd28] sm:$0xff]
    %v816 = vld [vmem:[%s6 + $0xd30] sm:$0xff]
    %v817 = vld [vmem:[%s6 + $0xd38] sm:$0xff]
    %v818 = vld [vmem:[%s6 + $0xd40] sm:$0xff]
    %v819 = vld [vmem:[%s6 + $0xd48] sm:$0xff]
    %v820 = vld [vmem:[%s6 + $0xd50] sm:$0xff]
    %v821 = vld [vmem:[%s6 + $0xd58] sm:$0xff]
    %v822 = vld [vmem:[%s6 + $0xd60] sm:$0xff]
    %v823 = vld [vmem:[%s6 + $0xd68] sm:$0xff]
    %v824 = vld [vmem:[%s6 + $0xd70] sm:$0xff]
    %v825 = vld [vmem:[%s6 + $0xd78] sm:$0xff]
    %v826 = vld [vmem:[%s6 + $0xd80] sm:$0xff]
    %v827 = vld [vmem:[%s6 + $0xd88] sm:$0xff]
    %v828 = vld [vmem:[%s6 + $0xd90] sm:$0xff]
    %v829 = vld [vmem:[%s6 + $0xd98] sm:$0xff]
    %v830 = vld [vmem:[%s6 + $0xda0] sm:$0xff]
    %v831 = vld [vmem:[%s6 + $0xda8] sm:$0xff]
    %v832 = vld [vmem:[%s6 + $0xdb0] sm:$0xff]
    %v833 = vld [vmem:[%s6 + $0xdb8] sm:$0xff]
    %v834 = vld [vmem:[%s6 + $0xdc0] sm:$0xff]
    %v835 = vld [vmem:[%s6 + $0xdc8] sm:$0xff]
    %v836 = vld [vmem:[%s6 + $0xdd0] sm:$0xff]
    %v837 = vld [vmem:[%s6 + $0xdd8] sm:$0xff]
    %v838 = vld [vmem:[%s6 + $0xde0] sm:$0xff]
    %v839 = vld [vmem:[%s6 + $0xde8] sm:$0xff]
    %v840 = vld [vmem:[%s6 + $0xdf0] sm:$0xff]
    %v841 = vld [vmem:[%s6 + $0xdf8] sm:$0xff]
    %v842 = vld [vmem:[%s6 + $0xe00] sm:$0xff]
    %v843 = vld [vmem:[%s6 + $0xe08] sm:$0xff]
    %v844 = vld [vmem:[%s6 + $0xe10] sm:$0xff]
    %v845 = vld [vmem:[%s6 + $0xe18] sm:$0xff]
    %v846 = vld [vmem:[%s6 + $0xe20] sm:$0xff]
    %v847 = vld [vmem:[%s6 + $0xe28] sm:$0xff]
    %v848 = vld [vmem:[%s6 + $0xe30] sm:$0xff]
    %v849 = vld [vmem:[%s6 + $0xe38] sm:$0xff]
    %v850 = vld [vmem:[%s6 + $0xe40] sm:$0xff]
    %v851 = vld [vmem:[%s6 + $0xe48] sm:$0xff]
    %v852 = vld [vmem:[%s6 + $0xe50] sm:$0xff]
    %v853 = vld [vmem:[%s6 + $0xe58] sm:$0xff]
    %v854 = vld [vmem:[%s6 + $0xe60] sm:$0xff]
    %v855 = vld [vmem:[%s6 + $0xe68] sm:$0xff]
    %v856 = vld [vmem:[%s6 + $0xe70] sm:$0xff]
    %v857 = vld [vmem:[%s6 + $0xe78] sm:$0xff]
    %v858 = vld [vmem:[%s6 + $0xe80] sm:$0xff]
    %v859 = vld [vmem:[%s6 + $0xe88] sm:$0xff]
    %v860 = vld [vmem:[%s6 + $0xe90] sm:$0xff]
    %v861 = vld [vmem:[%s6 + $0xe98] sm:$0xff]
    %v862 = vld [vmem:[%s6 + $0xea0] sm:$0xff]
    %v863 = vld [vmem:[%s6 + $0xea8] sm:$0xff]
    %v864 = vld [vmem:[%s6 + $0xeb0] sm:$0xff]
    %v865 = vld [vmem:[%s6 + $0xeb8] sm:$0xff]
    %v866 = vld [vmem:[%s6 + $0xec0] sm:$0xff]
    %v867 = vld [vmem:[%s6 + $0xec8] sm:$0xff]
    %v868 = vld [vmem:[%s6 + $0xed0] sm:$0xff]
    %v869 = vld [vmem:[%s6 + $0xed8] sm:$0xff]
    %v870 = vld [vmem:[%s6 + $0xee0] sm:$0xff]
    %v871 = vld [vmem:[%s6 + $0xee8] sm:$0xff]
    %v872 = vld [vmem:[%s6 + $0xef0] sm:$0xff]
    %v873 = vld [vmem:[%s6 + $0xef8] sm:$0xff]
    %v874 = vld [vmem:[%s6 + $0xf00] sm:$0xff]
    %v875 = vld [vmem:[%s6 + $0xf08] sm:$0xff]
    %v876 = vld [vmem:[%s6 + $0xf10] sm:$0xff]
    %v877 = vld [vmem:[%s6 + $0xf18] sm:$0xff]
    %v878 = vld [vmem:[%s6 + $0xf20] sm:$0xff]
    %v879 = vld [vmem:[%s6 + $0xf28] sm:$0xff]
    %v880 = vld [vmem:[%s6 + $0xf30] sm:$0xff]
    %v881 = vld [vmem:[%s6 + $0xf38] sm:$0xff]
    %v882 = vld [vmem:[%s6 + $0xf40] sm:$0xff]
    %v883 = vld [vmem:[%s6 + $0xf48] sm:$0xff]
    %v884 = vld [vmem:[%s6 + $0xf50] sm:$0xff]
    %v885 = vld [vmem:[%s6 + $0xf58] sm:$0xff]
    %v886 = vld [vmem:[%s6 + $0xf60] sm:$0xff]
    %v887 = vld [vmem:[%s6 + $0xf68] sm:$0xff]
    %v888 = vld [vmem:[%s6 + $0xf70] sm:$0xff]
    %v889 = vld [vmem:[%s6 + $0xf78] sm:$0xff]
    %v890 = vld [vmem:[%s6 + $0xf80] sm:$0xff]
    %v891 = vld [vmem:[%s6 + $0xf88] sm:$0xff]
    %v892 = vld [vmem:[%s6 + $0xf90] sm:$0xff]
    %v893 = vld [vmem:[%s6 + $0xf98] sm:$0xff]
    %v894 = vld [vmem:[%s6 + $0xfa0] sm:$0xff]
    %v895 = vld [vmem:[%s6 + $0xfa8] sm:$0xff]
    %v896 = vld [vmem:[%s6 + $0xfb0] sm:$0xff]
    %v897 = vld [vmem:[%s6 + $0xfb8] sm:$0xff]
    %v898 = vld [vmem:[%s6 + $0xfc0] sm:$0xff]
    %v899 = vld [vmem:[%s6 + $0xfc8] sm:$0xff]
    %v900 = vld [vmem:[%s6 + $0xfd0] sm:$0xff]
    %v901 = vld [vmem:[%s6 + $0xfd8] sm:$0xff]
    %v902 = vld [vmem:[%s6 + $0xfe0] sm:$0xff]
    %v903 = vld [vmem:[%s6 + $0xfe8] sm:$0xff]
    %v904 = vld [vmem:[%s6 + $0xff0] sm:$0xff]
    %v905 = vld [vmem:[%s6 + $0xff8] sm:$0xff]
    %v906 = vld [vmem:[%s6 + $0x1000] sm:$0xff]
    %v907 = vld [vmem:[%s6 + $0x1008] sm:$0xff]
    %v908 = vld [vmem:[%s6 + $0x1010] sm:$0xff]
    %v909 = vld [vmem:[%s6 + $0x1018] sm:$0xff]
    %v910 = vld [vmem:[%s6 + $0x1020] sm:$0xff]
    %v911 = vld [vmem:[%s6 + $0x1028] sm:$0xff]
    %v912 = vld [vmem:[%s6 + $0x1030] sm:$0xff]
    %v913 = vld [vmem:[%s6 + $0x1038] sm:$0xff]
    %v914 = vld [vmem:[%s6 + $0x1040] sm:$0xff]
    %v915 = vld [vmem:[%s6 + $0x1048] sm:$0xff]
    %v916 = vld [vmem:[%s6 + $0x1050] sm:$0xff]
    %v917 = vld [vmem:[%s6 + $0x1058] sm:$0xff]
    %v918 = vld [vmem:[%s6 + $0x1060] sm:$0xff]
    %v919 = vld [vmem:[%s6 + $0x1068] sm:$0xff]
    %v920 = vld [vmem:[%s6 + $0x1070] sm:$0xff]
    %v921 = vld [vmem:[%s6 + $0x1078] sm:$0xff]
    %v922 = vld [vmem:[%s6 + $0x1080] sm:$0xff]
    %v923 = vld [vmem:[%s6 + $0x1088] sm:$0xff]
    %v924 = vld [vmem:[%s6 + $0x1090] sm:$0xff]
    %v925 = vld [vmem:[%s6 + $0x1098] sm:$0xff]
    %v926 = vld [vmem:[%s6 + $0x10a0] sm:$0xff]
    %v927 = vld [vmem:[%s6 + $0x10a8] sm:$0xff]
    %v928 = vld [vmem:[%s6 + $0x10b0] sm:$0xff]
    %v929 = vld [vmem:[%s6 + $0x10b8] sm:$0xff]
    %v930 = vld [vmem:[%s6 + $0x10c0] sm:$0xff]
    %v931 = vld [vmem:[%s6 + $0x10c8] sm:$0xff]
    %v932 = vld [vmem:[%s6 + $0x10d0] sm:$0xff]
    %v933 = vld [vmem:[%s6 + $0x10d8] sm:$0xff]
    %v934 = vld [vmem:[%s6 + $0x10e0] sm:$0xff]
    %v935 = vld [vmem:[%s6 + $0x10e8] sm:$0xff]
    %v936 = vld [vmem:[%s6 + $0x10f0] sm:$0xff]
    %v937 = vld [vmem:[%s6 + $0x10f8] sm:$0xff]
    %v938 = vld [vmem:[%s6 + $0x1100] sm:$0xff]
    %v939 = vld [vmem:[%s6 + $0x1108] sm:$0xff]
    %v940 = vld [vmem:[%s6 + $0x1110] sm:$0xff]
    %v941 = vld [vmem:[%s6 + $0x1118] sm:$0xff]
    %v942 = vld [vmem:[%s6 + $0x1120] sm:$0xff]
    %v943 = vld [vmem:[%s6 + $0x1128] sm:$0xff]
    %v944 = vld [vmem:[%s6 + $0x1130] sm:$0xff]
    %v945 = vld [vmem:[%s6 + $0x1138] sm:$0xff]
    %v946 = vld [vmem:[%s6 + $0x1140] sm:$0xff]
    %v947 = vld [vmem:[%s6 + $0x1148] sm:$0xff]
    %v948 = vld [vmem:[%s6 + $0x1150] sm:$0xff]
    %v949 = vld [vmem:[%s6 + $0x1158] sm:$0xff]
    %v950 = vld [vmem:[%s6 + $0x1160] sm:$0xff]
    %v951 = vld [vmem:[%s6 + $0x1168] sm:$0xff]
    %v952 = vld [vmem:[%s6 + $0x1170] sm:$0xff]
    %v953 = vld [vmem:[%s6 + $0x1178] sm:$0xff]
    %v954 = vld [vmem:[%s6 + $0x1180] sm:$0xff]
    %v955 = vld [vmem:[%s6 + $0x1188] sm:$0xff]
    %v956 = vld [vmem:[%s6 + $0x1190] sm:$0xff]
    %v957 = vld [vmem:[%s6 + $0x1198] sm:$0xff]
    %v958 = vld [vmem:[%s6 + $0x11a0] sm:$0xff]
    %v959 = vld [vmem:[%s6 + $0x11a8] sm:$0xff]
    %v960 = vld [vmem:[%s6 + $0x11b0] sm:$0xff]
    %v961 = vld [vmem:[%s6 + $0x11b8] sm:$0xff]
    %v962 = vld [vmem:[%s6 + $0x11c0] sm:$0xff]
    %v963 = vld [vmem:[%s6 + $0x11c8] sm:$0xff]
    %v964 = vld [vmem:[%s6 + $0x11d0] sm:$0xff]
    %v965 = vld [vmem:[%s6 + $0x11d8] sm:$0xff]
    %v966 = vld [vmem:[%s6 + $0x11e0] sm:$0xff]
    %v967 = vld [vmem:[%s6 + $0x11e8] sm:$0xff]
    %v968 = vld [vmem:[%s6 + $0x11f0] sm:$0xff]
    %v969 = vld [vmem:[%s6 + $0x11f8] sm:$0xff]
    %v970 = vld [vmem:[%s6 + $0x1200] sm:$0xff]
    %v971 = vld [vmem:[%s6 + $0x1208] sm:$0xff]
    %v972 = vld [vmem:[%s6 + $0x1210] sm:$0xff]
    %v973 = vld [vmem:[%s6 + $0x1218] sm:$0xff]
    %v974 = vld [vmem:[%s6 + $0x1220] sm:$0xff]
    %v975 = vld [vmem:[%s6 + $0x1228] sm:$0xff]
    %v976 = vld [vmem:[%s6 + $0x1230] sm:$0xff]
    %v977 = vld [vmem:[%s6 + $0x1238] sm:$0xff]
    %v978 = vld [vmem:[%s6 + $0x1240] sm:$0xff]
    %v979 = vld [vmem:[%s6 + $0x1248] sm:$0xff]
    %v980 = vld [vmem:[%s6 + $0x1250] sm:$0xff]
    %v981 = vld [vmem:[%s6 + $0x1258] sm:$0xff]
    %v982 = vld [vmem:[%s6 + $0x1260] sm:$0xff]
    %v983 = vld [vmem:[%s6 + $0x1268] sm:$0xff]
    %v984 = vld [vmem:[%s6 + $0x1270] sm:$0xff]
    %v985 = vld [vmem:[%s6 + $0x1278] sm:$0xff]
    %v986 = vld [vmem:[%s6 + $0x1280] sm:$0xff]
    %v987 = vld [vmem:[%s6 + $0x1288] sm:$0xff]
    %v988 = vld [vmem:[%s6 + $0x1290] sm:$0xff]
    %v989 = vld [vmem:[%s6 + $0x1298] sm:$0xff]
    %v990 = vld [vmem:[%s6 + $0x12a0] sm:$0xff]
    %v991 = vld [vmem:[%s6 + $0x12a8] sm:$0xff]
    %v992 = vld [vmem:[%s6 + $0x12b0] sm:$0xff]
    %v993 = vld [vmem:[%s6 + $0x12b8] sm:$0xff]
    %v994 = vld [vmem:[%s6 + $0x12c0] sm:$0xff]
    %v995 = vld [vmem:[%s6 + $0x12c8] sm:$0xff]
    %v996 = vld [vmem:[%s6 + $0x12d0] sm:$0xff]
    %v997 = vld [vmem:[%s6 + $0x12d8] sm:$0xff]
    %v998 = vld [vmem:[%s6 + $0x12e0] sm:$0xff]
    %v999 = vld [vmem:[%s6 + $0x12e8] sm:$0xff]
    %v1000 = vld [vmem:[%s6 + $0x12f0] sm:$0xff]
    %v1001 = vld [vmem:[%s6 + $0x12f8] sm:$0xff]
    %v1002 = vld [vmem:[%s6 + $0x1300] sm:$0xff]
    %v1003 = vld [vmem:[%s6 + $0x1308] sm:$0xff]
    %v1004 = vld [vmem:[%s6 + $0x1310] sm:$0xff]
    %v1005 = vld [vmem:[%s6 + $0x1318] sm:$0xff]
    %v1006 = vld [vmem:[%s6 + $0x1320] sm:$0xff]
    %v1007 = vld [vmem:[%s6 + $0x1328] sm:$0xff]
    %v1008 = vld [vmem:[%s6 + $0x1330] sm:$0xff]
    %v1009 = vld [vmem:[%s6 + $0x1338] sm:$0xff]
    %v1010 = vld [vmem:[%s6 + $0x1340] sm:$0xff]
    %v1011 = vld [vmem:[%s6 + $0x1348] sm:$0xff]
    %v1012 = vld [vmem:[%s6 + $0x1350] sm:$0xff]
    %v1013 = vld [vmem:[%s6 + $0x1358] sm:$0xff]
    %v1014 = vld [vmem:[%s6 + $0x1360] sm:$0xff]
    %v1015 = vld [vmem:[%s6 + $0x1368] sm:$0xff]
    %v1016 = vld [vmem:[%s6 + $0x1370] sm:$0xff]
    %v1017 = vld [vmem:[%s6 + $0x1378] sm:$0xff]
    %v1018 = vld [vmem:[%s6 + $0x1380] sm:$0xff]
    %v1019 = vld [vmem:[%s6 + $0x1388] sm:$0xff]
    %v1020 = vld [vmem:[%s6 + $0x1390] sm:$0xff]
    %v1021 = vld [vmem:[%s6 + $0x1398] sm:$0xff]
    %v1022 = vld [vmem:[%s6 + $0x13a0] sm:$0xff]
    %v1023 = vld [vmem:[%s6 + $0x13a8] sm:$0xff]
    %v1024 = vld [vmem:[%s6 + $0x13b0] sm:$0xff]
    %v1025 = vld [vmem:[%s6 + $0x13b8] sm:$0xff]
    %v1026 = vld [vmem:[%s6 + $0x13c0] sm:$0xff]
    %v1027 = vld [vmem:[%s6 + $0x13c8] sm:$0xff]
    %v1028 = vld [vmem:[%s6 + $0x13d0] sm:$0xff]
    %v1029 = vld [vmem:[%s6 + $0x13d8] sm:$0xff]
    %v1030 = vld [vmem:[%s6 + $0x13e0] sm:$0xff]
    %v1031 = vld [vmem:[%s6 + $0x13e8] sm:$0xff]
    %v1032 = vld [vmem:[%s6 + $0x13f0] sm:$0xff]
    %v1033 = vld [vmem:[%s6 + $0x13f8] sm:$0xff]
    %v1034 = vld [vmem:[%s6 + $0x1400] sm:$0xff]
    %v1035 = vld [vmem:[%s6 + $0x1408] sm:$0xff]
    %v1036 = vld [vmem:[%s6 + $0x1410] sm:$0xff]
    %v1037 = vld [vmem:[%s6 + $0x1418] sm:$0xff]
    %v1038 = vld [vmem:[%s6 + $0x1420] sm:$0xff]
    %v1039 = vld [vmem:[%s6 + $0x1428] sm:$0xff]
    %v1040 = vld [vmem:[%s6 + $0x1430] sm:$0xff]
    %v1041 = vld [vmem:[%s6 + $0x1438] sm:$0xff]
    %v1042 = vld [vmem:[%s6 + $0x1440] sm:$0xff]
    %v1043 = vld [vmem:[%s6 + $0x1448] sm:$0xff]
    %v1044 = vld [vmem:[%s6 + $0x1450] sm:$0xff]
    %v1045 = vld [vmem:[%s6 + $0x1458] sm:$0xff]
    %v1046 = vld [vmem:[%s6 + $0x1460] sm:$0xff]
    %v1047 = vld [vmem:[%s6 + $0x1468] sm:$0xff]
    %v1048 = vld [vmem:[%s6 + $0x1470] sm:$0xff]
    %v1049 = vld [vmem:[%s6 + $0x1478] sm:$0xff]
    %v1050 = vld [vmem:[%s6 + $0x1480] sm:$0xff]
    %v1051 = vld [vmem:[%s6 + $0x1488] sm:$0xff]
    %v1052 = vld [vmem:[%s6 + $0x1490] sm:$0xff]
    %v1053 = vld [vmem:[%s6 + $0x1498] sm:$0xff]
    %v1054 = vld [vmem:[%s6 + $0x14a0] sm:$0xff]
    %v1055 = vld [vmem:[%s6 + $0x14a8] sm:$0xff]
    %v1056 = vld [vmem:[%s6 + $0x14b0] sm:$0xff]
    %v1057 = vld [vmem:[%s6 + $0x14b8] sm:$0xff]
    %v1058 = vld [vmem:[%s6 + $0x14c0] sm:$0xff]
    %v1059 = vld [vmem:[%s6 + $0x14c8] sm:$0xff]
    %v1060 = vld [vmem:[%s6 + $0x14d0] sm:$0xff]
    %v1061 = vld [vmem:[%s6 + $0x14d8] sm:$0xff]
    %v1062 = vld [vmem:[%s6 + $0x14e0] sm:$0xff]
    %v1063 = vld [vmem:[%s6 + $0x14e8] sm:$0xff]
    %v1064 = vld [vmem:[%s6 + $0x14f0] sm:$0xff]
    %v1065 = vld [vmem:[%s6 + $0x14f8] sm:$0xff]
    %v1066 = vld [vmem:[%s6 + $0x1500] sm:$0xff]
    %v1067 = vld [vmem:[%s6 + $0x1508] sm:$0xff]
    %v1068 = vld [vmem:[%s6 + $0x1510] sm:$0xff]
    %v1069 = vld [vmem:[%s6 + $0x1518] sm:$0xff]
    %v1070 = vld [vmem:[%s6 + $0x1520] sm:$0xff]
    %v1071 = vld [vmem:[%s6 + $0x1528] sm:$0xff]
    %v1072 = vld [vmem:[%s6 + $0x1530] sm:$0xff]
    %v1073 = vld [vmem:[%s6 + $0x1538] sm:$0xff]
    %v1074 = vld [vmem:[%s6 + $0x1540] sm:$0xff]
    %v1075 = vld [vmem:[%s6 + $0x1548] sm:$0xff]
    %v1076 = vld [vmem:[%s6 + $0x1550] sm:$0xff]
    %v1077 = vld [vmem:[%s6 + $0x1558] sm:$0xff]
    %v1078 = vld [vmem:[%s6 + $0x1560] sm:$0xff]
    %v1079 = vld [vmem:[%s6 + $0x1568] sm:$0xff]
    %v1080 = vld [vmem:[%s6 + $0x1570] sm:$0xff]
    %v1081 = vld [vmem:[%s6 + $0x1578] sm:$0xff]
    %v1082 = vld [vmem:[%s6 + $0x1580] sm:$0xff]
    %v1083 = vld [vmem:[%s6 + $0x1588] sm:$0xff]
    %v1084 = vld [vmem:[%s6 + $0x1590] sm:$0xff]
    %v1085 = vld [vmem:[%s6 + $0x1598] sm:$0xff]
    %v1086 = vld [vmem:[%s6 + $0x15a0] sm:$0xff]
    %v1087 = vld [vmem:[%s6 + $0x15a8] sm:$0xff]
    %v1088 = vld [vmem:[%s6 + $0x15b0] sm:$0xff]
    %v1089 = vld [vmem:[%s6 + $0x15b8] sm:$0xff]
    %v1090 = vld [vmem:[%s6 + $0x15c0] sm:$0xff]
    %v1091 = vld [vmem:[%s6 + $0x15c8] sm:$0xff]
    %v1092 = vld [vmem:[%s6 + $0x15d0] sm:$0xff]
    %v1093 = vld [vmem:[%s6 + $0x15d8] sm:$0xff]
    %v1094 = vld [vmem:[%s6 + $0x15e0] sm:$0xff]
    %v1095 = vld [vmem:[%s6 + $0x15e8] sm:$0xff]
    %v1096 = vld [vmem:[%s6 + $0x15f0] sm:$0xff]
    %v1097 = vld [vmem:[%s6 + $0x15f8] sm:$0xff]
    %v1098 = vld [vmem:[%s6 + $0x1600] sm:$0xff]
    %v1099 = vld [vmem:[%s6 + $0x1608] sm:$0xff]
    %v1100 = vld [vmem:[%s6 + $0x1610] sm:$0xff]
    %v1101 = vld [vmem:[%s6 + $0x1618] sm:$0xff]
    %v1102 = vld [vmem:[%s6 + $0x1620] sm:$0xff]
    %v1103 = vld [vmem:[%s6 + $0x1628] sm:$0xff]
    %v1104 = vld [vmem:[%s6 + $0x1630] sm:$0xff]
    %v1105 = vld [vmem:[%s6 + $0x1638] sm:$0xff]
    %v1106 = vld [vmem:[%s6 + $0x1640] sm:$0xff]
    %v1107 = vld [vmem:[%s6 + $0x1648] sm:$0xff]
    %v1108 = vld [vmem:[%s6 + $0x1650] sm:$0xff]
    %v1109 = vld [vmem:[%s6 + $0x1658] sm:$0xff]
    %v1110 = vld [vmem:[%s6 + $0x1660] sm:$0xff]
    %v1111 = vld [vmem:[%s6 + $0x1668] sm:$0xff]
    %v1112 = vld [vmem:[%s6 + $0x1670] sm:$0xff]
    %v1113 = vld [vmem:[%s6 + $0x1678] sm:$0xff]
    %v1114 = vld [vmem:[%s6 + $0x1680] sm:$0xff]
    %v1115 = vld [vmem:[%s6 + $0x1688] sm:$0xff]
    %v1116 = vld [vmem:[%s6 + $0x1690] sm:$0xff]
    %v1117 = vld [vmem:[%s6 + $0x1698] sm:$0xff]
    %v1118 = vld [vmem:[%s6 + $0x16a0] sm:$0xff]
    %v1119 = vld [vmem:[%s6 + $0x16a8] sm:$0xff]
    %v1120 = vld [vmem:[%s6 + $0x16b0] sm:$0xff]
    %v1121 = vld [vmem:[%s6 + $0x16b8] sm:$0xff]
    %v1122 = vld [vmem:[%s6 + $0x16c0] sm:$0xff]
    %v1123 = vld [vmem:[%s6 + $0x16c8] sm:$0xff]
    %v1124 = vld [vmem:[%s6 + $0x16d0] sm:$0xff]
    %v1125 = vld [vmem:[%s6 + $0x16d8] sm:$0xff]
    %v1126 = vld [vmem:[%s6 + $0x16e0] sm:$0xff]
    %v1127 = vld [vmem:[%s6 + $0x16e8] sm:$0xff]
    %v1128 = vld [vmem:[%s6 + $0x16f0] sm:$0xff]
    %v1129 = vld [vmem:[%s6 + $0x16f8] sm:$0xff]
    %v1130 = vld [vmem:[%s6 + $0x1700] sm:$0xff]
    %v1131 = vld [vmem:[%s6 + $0x1708] sm:$0xff]
    %v1132 = vld [vmem:[%s6 + $0x1710] sm:$0xff]
    %v1133 = vld [vmem:[%s6 + $0x1718] sm:$0xff]
    %v1134 = vld [vmem:[%s6 + $0x1720] sm:$0xff]
    %v1135 = vld [vmem:[%s6 + $0x1728] sm:$0xff]
    %v1136 = vld [vmem:[%s6 + $0x1730] sm:$0xff]
    %v1137 = vld [vmem:[%s6 + $0x1738] sm:$0xff]
    %v1138 = vld [vmem:[%s6 + $0x1740] sm:$0xff]
    %v1139 = vld [vmem:[%s6 + $0x1748] sm:$0xff]
    %v1140 = vld [vmem:[%s6 + $0x1750] sm:$0xff]
    %v1141 = vld [vmem:[%s6 + $0x1758] sm:$0xff]
    %v1142 = vld [vmem:[%s6 + $0x1760] sm:$0xff]
    %v1143 = vld [vmem:[%s6 + $0x1768] sm:$0xff]
    %v1144 = vld [vmem:[%s6 + $0x1770] sm:$0xff]
    %v1145 = vld [vmem:[%s6 + $0x1778] sm:$0xff]
    %v1146 = vld [vmem:[%s6 + $0x1780] sm:$0xff]
    %v1147 = vld [vmem:[%s6 + $0x1788] sm:$0xff]
    %v1148 = vld [vmem:[%s6 + $0x1790] sm:$0xff]
    %v1149 = vld [vmem:[%s6 + $0x1798] sm:$0xff]
    %v1150 = vld [vmem:[%s6 + $0x17a0] sm:$0xff]
    %v1151 = vld [vmem:[%s6 + $0x17a8] sm:$0xff]
    %v1152 = vld [vmem:[%s6 + $0x17b0] sm:$0xff]
    %v1153 = vld [vmem:[%s6 + $0x17b8] sm:$0xff]
    %v1154 = vld [vmem:[%s6 + $0x17c0] sm:$0xff]
    %v1155 = vld [vmem:[%s6 + $0x17c8] sm:$0xff]
    %v1156 = vld [vmem:[%s6 + $0x17d0] sm:$0xff]
    %v1157 = vld [vmem:[%s6 + $0x17d8] sm:$0xff]
    %v1158 = vld [vmem:[%s6 + $0x17e0] sm:$0xff]
    %v1159 = vld [vmem:[%s6 + $0x17e8] sm:$0xff]
    %v1160 = vld [vmem:[%s6 + $0x17f0] sm:$0xff]
    %v1161 = vld [vmem:[%s6 + $0x17f8] sm:$0xff]
    %v1162 = vld [vmem:[%s6 + $0x1800] sm:$0xff]
    %v1163 = vld [vmem:[%s6 + $0x1808] sm:$0xff]
    %v1164 = vld [vmem:[%s6 + $0x1810] sm:$0xff]
    %v1165 = vld [vmem:[%s6 + $0x1818] sm:$0xff]
    %v1166 = vld [vmem:[%s6 + $0x1820] sm:$0xff]
    %v1167 = vld [vmem:[%s6 + $0x1828] sm:$0xff]
    %v1168 = vld [vmem:[%s6 + $0x1830] sm:$0xff]
    %v1169 = vld [vmem:[%s6 + $0x1838] sm:$0xff]
    %v1170 = vld [vmem:[%s6 + $0x1840] sm:$0xff]
    %v1171 = vld [vmem:[%s6 + $0x1848] sm:$0xff]
    %v1172 = vld [vmem:[%s6 + $0x1850] sm:$0xff]
    %v1173 = vld [vmem:[%s6 + $0x1858] sm:$0xff]
    %v1174 = vld [vmem:[%s6 + $0x1860] sm:$0xff]
    %v1175 = vld [vmem:[%s6 + $0x1868] sm:$0xff]
    %v1176 = vld [vmem:[%s6 + $0x1870] sm:$0xff]
    %v1177 = vld [vmem:[%s6 + $0x1878] sm:$0xff]
    %v1178 = vld [vmem:[%s7] sm:$0xf]
    %v1180 = vperm.slane %v1178, 0
    %v1181 = vperm.slane %v1178, 1
    %v1182 = vperm.slane %v1178, 2
    %v1183 = vperm.slane %v1178, 3
    %v1972 = vunpack.c.l.b16 %v394
    %v1973 = vunpack.c.h.b16 %v394
    %v1974 = vunpack.c.l.b16 %v395
    %v1975 = vunpack.c.h.b16 %v395
    %v1976 = vunpack.c.l.b16 %v396
    %v1977 = vunpack.c.h.b16 %v396
    %v1978 = vunpack.c.l.b16 %v397
    %v1979 = vunpack.c.h.b16 %v397
    %v1980 = vunpack.c.l.b16 %v398
    %v1981 = vunpack.c.h.b16 %v398
    %v1982 = vunpack.c.l.b16 %v399
    %v1983 = vunpack.c.h.b16 %v399
    %v1984 = vunpack.c.l.b16 %v400
    %v1985 = vunpack.c.h.b16 %v400
    %v1986 = vunpack.c.l.b16 %v401
    %v1987 = vunpack.c.h.b16 %v401
    %v1988 = vunpack.c.l.b16 %v402
    %v1989 = vunpack.c.h.b16 %v402
    %v1990 = vunpack.c.l.b16 %v403
    %v1991 = vunpack.c.h.b16 %v403
    %v1992 = vunpack.c.l.b16 %v404
    %v1993 = vunpack.c.h.b16 %v404
    %v1994 = vunpack.c.l.b16 %v405
    %v1995 = vunpack.c.h.b16 %v405
    %v1996 = vunpack.c.l.b16 %v406
    %v1997 = vunpack.c.h.b16 %v406
    %v1998 = vunpack.c.l.b16 %v407
    %v1999 = vunpack.c.h.b16 %v407
    %v2000 = vunpack.c.l.b16 %v408
    %v2001 = vunpack.c.h.b16 %v408
    %v2002 = vunpack.c.l.b16 %v409
    %v2003 = vunpack.c.h.b16 %v409
    %v2004 = vunpack.c.l.b16 %v410
    %v2005 = vunpack.c.h.b16 %v410
    %v2006 = vunpack.c.l.b16 %v411
    %v2007 = vunpack.c.h.b16 %v411
    %v2008 = vunpack.c.l.b16 %v412
    %v2009 = vunpack.c.h.b16 %v412
    %v2010 = vunpack.c.l.b16 %v413
    %v2011 = vunpack.c.h.b16 %v413
    %v2012 = vunpack.c.l.b16 %v414
    %v2013 = vunpack.c.h.b16 %v414
    %v2014 = vunpack.c.l.b16 %v415
    %v2015 = vunpack.c.h.b16 %v415
    %v2016 = vunpack.c.l.b16 %v416
    %v2017 = vunpack.c.h.b16 %v416
    %v2018 = vunpack.c.l.b16 %v417
    %v2019 = vunpack.c.h.b16 %v417
    %v2020 = vunpack.c.l.b16 %v418
    %v2021 = vunpack.c.h.b16 %v418
    %v2022 = vunpack.c.l.b16 %v419
    %v2023 = vunpack.c.h.b16 %v419
    %v2024 = vunpack.c.l.b16 %v420
    %v2025 = vunpack.c.h.b16 %v420
    %v2026 = vunpack.c.l.b16 %v421
    %v2027 = vunpack.c.h.b16 %v421
    %v2028 = vunpack.c.l.b16 %v422
    %v2029 = vunpack.c.h.b16 %v422
    %v2030 = vunpack.c.l.b16 %v423
    %v2031 = vunpack.c.h.b16 %v423
    %v2032 = vunpack.c.l.b16 %v424
    %v2033 = vunpack.c.h.b16 %v424
    %v2034 = vunpack.c.l.b16 %v425
    %v2035 = vunpack.c.h.b16 %v425
    %v2036 = vunpack.c.l.b16 %v426
    %v2037 = vunpack.c.h.b16 %v426
    %v2038 = vunpack.c.l.b16 %v427
    %v2039 = vunpack.c.h.b16 %v427
    %v2040 = vunpack.c.l.b16 %v428
    %v2041 = vunpack.c.h.b16 %v428
    %v2042 = vunpack.c.l.b16 %v429
    %v2043 = vunpack.c.h.b16 %v429
    %v2044 = vunpack.c.l.b16 %v430
    %v2045 = vunpack.c.h.b16 %v430
    %v2046 = vunpack.c.l.b16 %v431
    %v2047 = vunpack.c.h.b16 %v431
    %v2048 = vunpack.c.l.b16 %v432
    %v2049 = vunpack.c.h.b16 %v432
    %v2050 = vunpack.c.l.b16 %v433
    %v2051 = vunpack.c.h.b16 %v433
    %v2052 = vunpack.c.l.b16 %v434
    %v2053 = vunpack.c.h.b16 %v434
    %v2054 = vunpack.c.l.b16 %v435
    %v2055 = vunpack.c.h.b16 %v435
    %v2056 = vunpack.c.l.b16 %v436
    %v2057 = vunpack.c.h.b16 %v436
    %v2058 = vunpack.c.l.b16 %v437
    %v2059 = vunpack.c.h.b16 %v437
    %v2060 = vunpack.c.l.b16 %v438
    %v2061 = vunpack.c.h.b16 %v438
    %v2062 = vunpack.c.l.b16 %v439
    %v2063 = vunpack.c.h.b16 %v439
    %v2064 = vunpack.c.l.b16 %v440
    %v2065 = vunpack.c.h.b16 %v440
    %v2066 = vunpack.c.l.b16 %v441
    %v2067 = vunpack.c.h.b16 %v441
    %v2068 = vunpack.c.l.b16 %v442
    %v2069 = vunpack.c.h.b16 %v442
    %v2070 = vunpack.c.l.b16 %v443
    %v2071 = vunpack.c.h.b16 %v443
    %v2072 = vunpack.c.l.b16 %v444
    %v2073 = vunpack.c.h.b16 %v444
    %v2074 = vunpack.c.l.b16 %v445
    %v2075 = vunpack.c.h.b16 %v445
    %v2076 = vunpack.c.l.b16 %v446
    %v2077 = vunpack.c.h.b16 %v446
    %v2078 = vunpack.c.l.b16 %v447
    %v2079 = vunpack.c.h.b16 %v447
    %v2080 = vunpack.c.l.b16 %v448
    %v2081 = vunpack.c.h.b16 %v448
    %v2082 = vunpack.c.l.b16 %v449
    %v2083 = vunpack.c.h.b16 %v449
    %v2084 = vunpack.c.l.b16 %v450
    %v2085 = vunpack.c.h.b16 %v450
    %v2086 = vunpack.c.l.b16 %v451
    %v2087 = vunpack.c.h.b16 %v451
    %v2088 = vunpack.c.l.b16 %v452
    %v2089 = vunpack.c.h.b16 %v452
    %v2090 = vunpack.c.l.b16 %v453
    %v2091 = vunpack.c.h.b16 %v453
    %v2092 = vunpack.c.l.b16 %v454
    %v2093 = vunpack.c.h.b16 %v454
    %v2094 = vunpack.c.l.b16 %v455
    %v2095 = vunpack.c.h.b16 %v455
    %v2096 = vunpack.c.l.b16 %v456
    %v2097 = vunpack.c.h.b16 %v456
    %v2098 = vunpack.c.l.b16 %v457
    %v2099 = vunpack.c.h.b16 %v457
    %v2100 = vunpack.c.l.b16 %v458
    %v2101 = vunpack.c.h.b16 %v458
    %v2102 = vunpack.c.l.b16 %v459
    %v2103 = vunpack.c.h.b16 %v459
    %v2104 = vunpack.c.l.b16 %v460
    %v2105 = vunpack.c.h.b16 %v460
    %v2106 = vunpack.c.l.b16 %v461
    %v2107 = vunpack.c.h.b16 %v461
    %v2108 = vunpack.c.l.b16 %v462
    %v2109 = vunpack.c.h.b16 %v462
    %v2110 = vunpack.c.l.b16 %v463
    %v2111 = vunpack.c.h.b16 %v463
    %v2112 = vunpack.c.l.b16 %v464
    %v2113 = vunpack.c.h.b16 %v464
    %v2114 = vunpack.c.l.b16 %v465
    %v2115 = vunpack.c.h.b16 %v465
    %v2116 = vunpack.c.l.b16 %v466
    %v2117 = vunpack.c.h.b16 %v466
    %v2118 = vunpack.c.l.b16 %v467
    %v2119 = vunpack.c.h.b16 %v467
    %v2120 = vunpack.c.l.b16 %v468
    %v2121 = vunpack.c.h.b16 %v468
    %v2122 = vunpack.c.l.b16 %v469
    %v2123 = vunpack.c.h.b16 %v469
    %v2124 = vunpack.c.l.b16 %v470
    %v2125 = vunpack.c.h.b16 %v470
    %v2126 = vunpack.c.l.b16 %v471
    %v2127 = vunpack.c.h.b16 %v471
    %v2128 = vunpack.c.l.b16 %v472
    %v2129 = vunpack.c.h.b16 %v472
    %v2130 = vunpack.c.l.b16 %v473
    %v2131 = vunpack.c.h.b16 %v473
    %v2132 = vunpack.c.l.b16 %v474
    %v2133 = vunpack.c.h.b16 %v474
    %v2134 = vunpack.c.l.b16 %v475
    %v2135 = vunpack.c.h.b16 %v475
    %v2136 = vunpack.c.l.b16 %v476
    %v2137 = vunpack.c.h.b16 %v476
    %v2138 = vunpack.c.l.b16 %v477
    %v2139 = vunpack.c.h.b16 %v477
    %v2140 = vunpack.c.l.b16 %v478
    %v2141 = vunpack.c.h.b16 %v478
    %v2142 = vunpack.c.l.b16 %v479
    %v2143 = vunpack.c.h.b16 %v479
    %v2144 = vunpack.c.l.b16 %v480
    %v2145 = vunpack.c.h.b16 %v480
    %v2146 = vunpack.c.l.b16 %v481
    %v2147 = vunpack.c.h.b16 %v481
    %v2148 = vunpack.c.l.b16 %v482
    %v2149 = vunpack.c.h.b16 %v482
    %v2150 = vunpack.c.l.b16 %v483
    %v2151 = vunpack.c.h.b16 %v483
    %v2152 = vunpack.c.l.b16 %v484
    %v2153 = vunpack.c.h.b16 %v484
    %v2154 = vunpack.c.l.b16 %v485
    %v2155 = vunpack.c.h.b16 %v485
    %v2156 = vunpack.c.l.b16 %v486
    %v2157 = vunpack.c.h.b16 %v486
    %v2158 = vunpack.c.l.b16 %v487
    %v2159 = vunpack.c.h.b16 %v487
    %v2160 = vunpack.c.l.b16 %v488
    %v2161 = vunpack.c.h.b16 %v488
    %v2162 = vunpack.c.l.b16 %v489
    %v2163 = vunpack.c.h.b16 %v489
    %v2164 = vunpack.c.l.b16 %v490
    %v2165 = vunpack.c.h.b16 %v490
    %v2166 = vunpack.c.l.b16 %v491
    %v2167 = vunpack.c.h.b16 %v491
    %v2168 = vunpack.c.l.b16 %v492
    %v2169 = vunpack.c.h.b16 %v492
    %v2170 = vunpack.c.l.b16 %v493
    %v2171 = vunpack.c.h.b16 %v493
    %v2172 = vunpack.c.l.b16 %v494
    %v2173 = vunpack.c.h.b16 %v494
    %v2174 = vunpack.c.l.b16 %v495
    %v2175 = vunpack.c.h.b16 %v495
    %v2176 = vunpack.c.l.b16 %v496
    %v2177 = vunpack.c.h.b16 %v496
    %v2178 = vunpack.c.l.b16 %v497
    %v2179 = vunpack.c.h.b16 %v497
    %v2180 = vunpack.c.l.b16 %v498
    %v2181 = vunpack.c.h.b16 %v498
    %v2182 = vunpack.c.l.b16 %v499
    %v2183 = vunpack.c.h.b16 %v499
    %v2184 = vunpack.c.l.b16 %v500
    %v2185 = vunpack.c.h.b16 %v500
    %v2186 = vunpack.c.l.b16 %v501
    %v2187 = vunpack.c.h.b16 %v501
    %v2188 = vunpack.c.l.b16 %v502
    %v2189 = vunpack.c.h.b16 %v502
    %v2190 = vunpack.c.l.b16 %v503
    %v2191 = vunpack.c.h.b16 %v503
    %v2192 = vunpack.c.l.b16 %v504
    %v2193 = vunpack.c.h.b16 %v504
    %v2194 = vunpack.c.l.b16 %v505
    %v2195 = vunpack.c.h.b16 %v505
    %v2196 = vunpack.c.l.b16 %v506
    %v2197 = vunpack.c.h.b16 %v506
    %v2198 = vunpack.c.l.b16 %v507
    %v2199 = vunpack.c.h.b16 %v507
    %v2200 = vunpack.c.l.b16 %v508
    %v2201 = vunpack.c.h.b16 %v508
    %v2202 = vunpack.c.l.b16 %v509
    %v2203 = vunpack.c.h.b16 %v509
    %v2204 = vunpack.c.l.b16 %v510
    %v2205 = vunpack.c.h.b16 %v510
    %v2206 = vunpack.c.l.b16 %v511
    %v2207 = vunpack.c.h.b16 %v511
    %v2208 = vunpack.c.l.b16 %v512
    %v2209 = vunpack.c.h.b16 %v512
    %v2210 = vunpack.c.l.b16 %v513
    %v2211 = vunpack.c.h.b16 %v513
    %v2212 = vunpack.c.l.b16 %v514
    %v2213 = vunpack.c.h.b16 %v514
    %v2214 = vunpack.c.l.b16 %v515
    %v2215 = vunpack.c.h.b16 %v515
    %v2216 = vunpack.c.l.b16 %v516
    %v2217 = vunpack.c.h.b16 %v516
    %v2218 = vunpack.c.l.b16 %v517
    %v2219 = vunpack.c.h.b16 %v517
    %v2220 = vunpack.c.l.b16 %v518
    %v2221 = vunpack.c.h.b16 %v518
    %v2222 = vunpack.c.l.b16 %v519
    %v2223 = vunpack.c.h.b16 %v519
    %v2224 = vunpack.c.l.b16 %v520
    %v2225 = vunpack.c.h.b16 %v520
    %v2226 = vunpack.c.l.b16 %v521
    %v2227 = vunpack.c.h.b16 %v521
    %v2228 = vunpack.c.l.b16 %v522
    %v2229 = vunpack.c.h.b16 %v522
    %v2230 = vunpack.c.l.b16 %v523
    %v2231 = vunpack.c.h.b16 %v523
    %v2232 = vunpack.c.l.b16 %v524
    %v2233 = vunpack.c.h.b16 %v524
    %v2234 = vunpack.c.l.b16 %v525
    %v2235 = vunpack.c.h.b16 %v525
    %v2236 = vunpack.c.l.b16 %v526
    %v2237 = vunpack.c.h.b16 %v526
    %v2238 = vunpack.c.l.b16 %v527
    %v2239 = vunpack.c.h.b16 %v527
    %v2240 = vunpack.c.l.b16 %v528
    %v2241 = vunpack.c.h.b16 %v528
    %v2242 = vunpack.c.l.b16 %v529
    %v2243 = vunpack.c.h.b16 %v529
    %v2244 = vunpack.c.l.b16 %v530
    %v2245 = vunpack.c.h.b16 %v530
    %v2246 = vunpack.c.l.b16 %v531
    %v2247 = vunpack.c.h.b16 %v531
    %v2248 = vunpack.c.l.b16 %v532
    %v2249 = vunpack.c.h.b16 %v532
    %v2250 = vunpack.c.l.b16 %v533
    %v2251 = vunpack.c.h.b16 %v533
    %v2252 = vunpack.c.l.b16 %v534
    %v2253 = vunpack.c.h.b16 %v534
    %v2254 = vunpack.c.l.b16 %v535
    %v2255 = vunpack.c.h.b16 %v535
    %v2256 = vunpack.c.l.b16 %v536
    %v2257 = vunpack.c.h.b16 %v536
    %v2258 = vunpack.c.l.b16 %v537
    %v2259 = vunpack.c.h.b16 %v537
    %v2260 = vunpack.c.l.b16 %v538
    %v2261 = vunpack.c.h.b16 %v538
    %v2262 = vunpack.c.l.b16 %v539
    %v2263 = vunpack.c.h.b16 %v539
    %v2264 = vunpack.c.l.b16 %v540
    %v2265 = vunpack.c.h.b16 %v540
    %v2266 = vunpack.c.l.b16 %v541
    %v2267 = vunpack.c.h.b16 %v541
    %v2268 = vunpack.c.l.b16 %v542
    %v2269 = vunpack.c.h.b16 %v542
    %v2270 = vunpack.c.l.b16 %v543
    %v2271 = vunpack.c.h.b16 %v543
    %v2272 = vunpack.c.l.b16 %v544
    %v2273 = vunpack.c.h.b16 %v544
    %v2274 = vunpack.c.l.b16 %v545
    %v2275 = vunpack.c.h.b16 %v545
    %v2276 = vunpack.c.l.b16 %v546
    %v2277 = vunpack.c.h.b16 %v546
    %v2278 = vunpack.c.l.b16 %v547
    %v2279 = vunpack.c.h.b16 %v547
    %v2280 = vunpack.c.l.b16 %v548
    %v2281 = vunpack.c.h.b16 %v548
    %v2282 = vunpack.c.l.b16 %v549
    %v2283 = vunpack.c.h.b16 %v549
    %v2284 = vunpack.c.l.b16 %v550
    %v2285 = vunpack.c.h.b16 %v550
    %v2286 = vunpack.c.l.b16 %v551
    %v2287 = vunpack.c.h.b16 %v551
    %v2288 = vunpack.c.l.b16 %v552
    %v2289 = vunpack.c.h.b16 %v552
    %v2290 = vunpack.c.l.b16 %v553
    %v2291 = vunpack.c.h.b16 %v553
    %v2292 = vunpack.c.l.b16 %v554
    %v2293 = vunpack.c.h.b16 %v554
    %v2294 = vunpack.c.l.b16 %v555
    %v2295 = vunpack.c.h.b16 %v555
    %v2296 = vunpack.c.l.b16 %v556
    %v2297 = vunpack.c.h.b16 %v556
    %v2298 = vunpack.c.l.b16 %v557
    %v2299 = vunpack.c.h.b16 %v557
    %v2300 = vunpack.c.l.b16 %v558
    %v2301 = vunpack.c.h.b16 %v558
    %v2302 = vunpack.c.l.b16 %v559
    %v2303 = vunpack.c.h.b16 %v559
    %v2304 = vunpack.c.l.b16 %v560
    %v2305 = vunpack.c.h.b16 %v560
    %v2306 = vunpack.c.l.b16 %v561
    %v2307 = vunpack.c.h.b16 %v561
    %v2308 = vunpack.c.l.b16 %v562
    %v2309 = vunpack.c.h.b16 %v562
    %v2310 = vunpack.c.l.b16 %v563
    %v2311 = vunpack.c.h.b16 %v563
    %v2312 = vunpack.c.l.b16 %v564
    %v2313 = vunpack.c.h.b16 %v564
    %v2314 = vunpack.c.l.b16 %v565
    %v2315 = vunpack.c.h.b16 %v565
    %v2316 = vunpack.c.l.b16 %v566
    %v2317 = vunpack.c.h.b16 %v566
    %v2318 = vunpack.c.l.b16 %v567
    %v2319 = vunpack.c.h.b16 %v567
    %v2320 = vunpack.c.l.b16 %v568
    %v2321 = vunpack.c.h.b16 %v568
    %v2322 = vunpack.c.l.b16 %v569
    %v2323 = vunpack.c.h.b16 %v569
    %v2324 = vunpack.c.l.b16 %v570
    %v2325 = vunpack.c.h.b16 %v570
    %v2326 = vunpack.c.l.b16 %v571
    %v2327 = vunpack.c.h.b16 %v571
    %v2328 = vunpack.c.l.b16 %v572
    %v2329 = vunpack.c.h.b16 %v572
    %v2330 = vunpack.c.l.b16 %v573
    %v2331 = vunpack.c.h.b16 %v573
    %v2332 = vunpack.c.l.b16 %v574
    %v2333 = vunpack.c.h.b16 %v574
    %v2334 = vunpack.c.l.b16 %v575
    %v2335 = vunpack.c.h.b16 %v575
    %v2336 = vunpack.c.l.b16 %v576
    %v2337 = vunpack.c.h.b16 %v576
    %v2338 = vunpack.c.l.b16 %v577
    %v2339 = vunpack.c.h.b16 %v577
    %v2340 = vunpack.c.l.b16 %v578
    %v2341 = vunpack.c.h.b16 %v578
    %v2342 = vunpack.c.l.b16 %v579
    %v2343 = vunpack.c.h.b16 %v579
    %v2344 = vunpack.c.l.b16 %v580
    %v2345 = vunpack.c.h.b16 %v580
    %v2346 = vunpack.c.l.b16 %v581
    %v2347 = vunpack.c.h.b16 %v581
    %v2348 = vunpack.c.l.b16 %v582
    %v2349 = vunpack.c.h.b16 %v582
    %v2350 = vunpack.c.l.b16 %v583
    %v2351 = vunpack.c.h.b16 %v583
    %v2352 = vunpack.c.l.b16 %v584
    %v2353 = vunpack.c.h.b16 %v584
    %v2354 = vunpack.c.l.b16 %v585
    %v2355 = vunpack.c.h.b16 %v585
    %v2356 = vunpack.c.l.b16 %v586
    %v2357 = vunpack.c.h.b16 %v586
    %v2358 = vunpack.c.l.b16 %v587
    %v2359 = vunpack.c.h.b16 %v587
    %v2360 = vunpack.c.l.b16 %v588
    %v2361 = vunpack.c.h.b16 %v588
    %v2362 = vunpack.c.l.b16 %v589
    %v2363 = vunpack.c.h.b16 %v589
    %v2364 = vunpack.c.l.b16 %v590
    %v2365 = vunpack.c.h.b16 %v590
    %v2366 = vunpack.c.l.b16 %v591
    %v2367 = vunpack.c.h.b16 %v591
    %v2368 = vunpack.c.l.b16 %v592
    %v2369 = vunpack.c.h.b16 %v592
    %v2370 = vunpack.c.l.b16 %v593
    %v2371 = vunpack.c.h.b16 %v593
    %v2372 = vunpack.c.l.b16 %v594
    %v2373 = vunpack.c.h.b16 %v594
    %v2374 = vunpack.c.l.b16 %v595
    %v2375 = vunpack.c.h.b16 %v595
    %v2376 = vunpack.c.l.b16 %v596
    %v2377 = vunpack.c.h.b16 %v596
    %v2378 = vunpack.c.l.b16 %v597
    %v2379 = vunpack.c.h.b16 %v597
    %v2380 = vunpack.c.l.b16 %v598
    %v2381 = vunpack.c.h.b16 %v598
    %v2382 = vunpack.c.l.b16 %v599
    %v2383 = vunpack.c.h.b16 %v599
    %v2384 = vunpack.c.l.b16 %v600
    %v2385 = vunpack.c.h.b16 %v600
    %v2386 = vunpack.c.l.b16 %v601
    %v2387 = vunpack.c.h.b16 %v601
    %v2388 = vunpack.c.l.b16 %v602
    %v2389 = vunpack.c.h.b16 %v602
    %v2390 = vunpack.c.l.b16 %v603
    %v2391 = vunpack.c.h.b16 %v603
    %v2392 = vunpack.c.l.b16 %v604
    %v2393 = vunpack.c.h.b16 %v604
    %v2394 = vunpack.c.l.b16 %v605
    %v2395 = vunpack.c.h.b16 %v605
    %v2396 = vunpack.c.l.b16 %v606
    %v2397 = vunpack.c.h.b16 %v606
    %v2398 = vunpack.c.l.b16 %v607
    %v2399 = vunpack.c.h.b16 %v607
    %v2400 = vunpack.c.l.b16 %v608
    %v2401 = vunpack.c.h.b16 %v608
    %v2402 = vunpack.c.l.b16 %v609
    %v2403 = vunpack.c.h.b16 %v609
    %v2404 = vunpack.c.l.b16 %v610
    %v2405 = vunpack.c.h.b16 %v610
    %v2406 = vunpack.c.l.b16 %v611
    %v2407 = vunpack.c.h.b16 %v611
    %v2408 = vunpack.c.l.b16 %v612
    %v2409 = vunpack.c.h.b16 %v612
    %v2410 = vunpack.c.l.b16 %v613
    %v2411 = vunpack.c.h.b16 %v613
    %v2412 = vunpack.c.l.b16 %v614
    %v2413 = vunpack.c.h.b16 %v614
    %v2414 = vunpack.c.l.b16 %v615
    %v2415 = vunpack.c.h.b16 %v615
    %v2416 = vunpack.c.l.b16 %v616
    %v2417 = vunpack.c.h.b16 %v616
    %v2418 = vunpack.c.l.b16 %v617
    %v2419 = vunpack.c.h.b16 %v617
    %v2420 = vunpack.c.l.b16 %v618
    %v2421 = vunpack.c.h.b16 %v618
    %v2422 = vunpack.c.l.b16 %v619
    %v2423 = vunpack.c.h.b16 %v619
    %v2424 = vunpack.c.l.b16 %v620
    %v2425 = vunpack.c.h.b16 %v620
    %v2426 = vunpack.c.l.b16 %v621
    %v2427 = vunpack.c.h.b16 %v621
    %v2428 = vunpack.c.l.b16 %v622
    %v2429 = vunpack.c.h.b16 %v622
    %v2430 = vunpack.c.l.b16 %v623
    %v2431 = vunpack.c.h.b16 %v623
    %v2432 = vunpack.c.l.b16 %v624
    %v2433 = vunpack.c.h.b16 %v624
    %v2434 = vunpack.c.l.b16 %v625
    %v2435 = vunpack.c.h.b16 %v625
    %v2436 = vunpack.c.l.b16 %v626
    %v2437 = vunpack.c.h.b16 %v626
    %v2438 = vunpack.c.l.b16 %v627
    %v2439 = vunpack.c.h.b16 %v627
    %v2440 = vunpack.c.l.b16 %v628
    %v2441 = vunpack.c.h.b16 %v628
    %v2442 = vunpack.c.l.b16 %v629
    %v2443 = vunpack.c.h.b16 %v629
    %v2444 = vunpack.c.l.b16 %v630
    %v2445 = vunpack.c.h.b16 %v630
    %v2446 = vunpack.c.l.b16 %v631
    %v2447 = vunpack.c.h.b16 %v631
    %v2448 = vunpack.c.l.b16 %v632
    %v2449 = vunpack.c.h.b16 %v632
    %v2450 = vunpack.c.l.b16 %v633
    %v2451 = vunpack.c.h.b16 %v633
    %v2452 = vunpack.c.l.b16 %v634
    %v2453 = vunpack.c.h.b16 %v634
    %v2454 = vunpack.c.l.b16 %v635
    %v2455 = vunpack.c.h.b16 %v635
    %v2456 = vunpack.c.l.b16 %v636
    %v2457 = vunpack.c.h.b16 %v636
    %v2458 = vunpack.c.l.b16 %v637
    %v2459 = vunpack.c.h.b16 %v637
    %v2460 = vunpack.c.l.b16 %v638
    %v2461 = vunpack.c.h.b16 %v638
    %v2462 = vunpack.c.l.b16 %v639
    %v2463 = vunpack.c.h.b16 %v639
    %v2464 = vunpack.c.l.b16 %v640
    %v2465 = vunpack.c.h.b16 %v640
    %v2466 = vunpack.c.l.b16 %v641
    %v2467 = vunpack.c.h.b16 %v641
    %v2468 = vunpack.c.l.b16 %v642
    %v2469 = vunpack.c.h.b16 %v642
    %v2470 = vunpack.c.l.b16 %v643
    %v2471 = vunpack.c.h.b16 %v643
    %v2472 = vunpack.c.l.b16 %v644
    %v2473 = vunpack.c.h.b16 %v644
    %v2474 = vunpack.c.l.b16 %v645
    %v2475 = vunpack.c.h.b16 %v645
    %v2476 = vunpack.c.l.b16 %v646
    %v2477 = vunpack.c.h.b16 %v646
    %v2478 = vunpack.c.l.b16 %v647
    %v2479 = vunpack.c.h.b16 %v647
    %v2480 = vunpack.c.l.b16 %v648
    %v2481 = vunpack.c.h.b16 %v648
    %v2482 = vunpack.c.l.b16 %v649
    %v2483 = vunpack.c.h.b16 %v649
    %v2484 = vunpack.c.l.b16 %v650
    %v2485 = vunpack.c.h.b16 %v650
    %v2486 = vunpack.c.l.b16 %v651
    %v2487 = vunpack.c.h.b16 %v651
    %v2488 = vunpack.c.l.b16 %v652
    %v2489 = vunpack.c.h.b16 %v652
    %v2490 = vunpack.c.l.b16 %v653
    %v2491 = vunpack.c.h.b16 %v653
    %v2492 = vunpack.c.l.b16 %v654
    %v2493 = vunpack.c.h.b16 %v654
    %v2494 = vunpack.c.l.b16 %v655
    %v2495 = vunpack.c.h.b16 %v655
    %v2496 = vunpack.c.l.b16 %v656
    %v2497 = vunpack.c.h.b16 %v656
    %v2498 = vunpack.c.l.b16 %v657
    %v2499 = vunpack.c.h.b16 %v657
    %v2500 = vunpack.c.l.b16 %v658
    %v2501 = vunpack.c.h.b16 %v658
    %v2502 = vunpack.c.l.b16 %v659
    %v2503 = vunpack.c.h.b16 %v659
    %v2504 = vunpack.c.l.b16 %v660
    %v2505 = vunpack.c.h.b16 %v660
    %v2506 = vunpack.c.l.b16 %v661
    %v2507 = vunpack.c.h.b16 %v661
    %v2508 = vunpack.c.l.b16 %v662
    %v2509 = vunpack.c.h.b16 %v662
    %v2510 = vunpack.c.l.b16 %v663
    %v2511 = vunpack.c.h.b16 %v663
    %v2512 = vunpack.c.l.b16 %v664
    %v2513 = vunpack.c.h.b16 %v664
    %v2514 = vunpack.c.l.b16 %v665
    %v2515 = vunpack.c.h.b16 %v665
    %v2516 = vunpack.c.l.b16 %v666
    %v2517 = vunpack.c.h.b16 %v666
    %v2518 = vunpack.c.l.b16 %v667
    %v2519 = vunpack.c.h.b16 %v667
    %v2520 = vunpack.c.l.b16 %v668
    %v2521 = vunpack.c.h.b16 %v668
    %v2522 = vunpack.c.l.b16 %v669
    %v2523 = vunpack.c.h.b16 %v669
    %v2524 = vunpack.c.l.b16 %v670
    %v2525 = vunpack.c.h.b16 %v670
    %v2526 = vunpack.c.l.b16 %v671
    %v2527 = vunpack.c.h.b16 %v671
    %v2528 = vunpack.c.l.b16 %v672
    %v2529 = vunpack.c.h.b16 %v672
    %v2530 = vunpack.c.l.b16 %v673
    %v2531 = vunpack.c.h.b16 %v673
    %v2532 = vunpack.c.l.b16 %v674
    %v2533 = vunpack.c.h.b16 %v674
    %v2534 = vunpack.c.l.b16 %v675
    %v2535 = vunpack.c.h.b16 %v675
    %v2536 = vunpack.c.l.b16 %v676
    %v2537 = vunpack.c.h.b16 %v676
    %v2538 = vunpack.c.l.b16 %v677
    %v2539 = vunpack.c.h.b16 %v677
    %v2540 = vunpack.c.l.b16 %v678
    %v2541 = vunpack.c.h.b16 %v678
    %v2542 = vunpack.c.l.b16 %v679
    %v2543 = vunpack.c.h.b16 %v679
    %v2544 = vunpack.c.l.b16 %v680
    %v2545 = vunpack.c.h.b16 %v680
    %v2546 = vunpack.c.l.b16 %v681
    %v2547 = vunpack.c.h.b16 %v681
    %v2548 = vunpack.c.l.b16 %v682
    %v2549 = vunpack.c.h.b16 %v682
    %v2550 = vunpack.c.l.b16 %v683
    %v2551 = vunpack.c.h.b16 %v683
    %v2552 = vunpack.c.l.b16 %v684
    %v2553 = vunpack.c.h.b16 %v684
    %v2554 = vunpack.c.l.b16 %v685
    %v2555 = vunpack.c.h.b16 %v685
    %v2556 = vunpack.c.l.b16 %v686
    %v2557 = vunpack.c.h.b16 %v686
    %v2558 = vunpack.c.l.b16 %v687
    %v2559 = vunpack.c.h.b16 %v687
    %v2560 = vunpack.c.l.b16 %v688
    %v2561 = vunpack.c.h.b16 %v688
    %v2562 = vunpack.c.l.b16 %v689
    %v2563 = vunpack.c.h.b16 %v689
    %v2564 = vunpack.c.l.b16 %v690
    %v2565 = vunpack.c.h.b16 %v690
    %v2566 = vunpack.c.l.b16 %v691
    %v2567 = vunpack.c.h.b16 %v691
    %v2568 = vunpack.c.l.b16 %v692
    %v2569 = vunpack.c.h.b16 %v692
    %v2570 = vunpack.c.l.b16 %v693
    %v2571 = vunpack.c.h.b16 %v693
    %v2572 = vunpack.c.l.b16 %v694
    %v2573 = vunpack.c.h.b16 %v694
    %v2574 = vunpack.c.l.b16 %v695
    %v2575 = vunpack.c.h.b16 %v695
    %v2576 = vunpack.c.l.b16 %v696
    %v2577 = vunpack.c.h.b16 %v696
    %v2578 = vunpack.c.l.b16 %v697
    %v2579 = vunpack.c.h.b16 %v697
    %v2580 = vunpack.c.l.b16 %v698
    %v2581 = vunpack.c.h.b16 %v698
    %v2582 = vunpack.c.l.b16 %v699
    %v2583 = vunpack.c.h.b16 %v699
    %v2584 = vunpack.c.l.b16 %v700
    %v2585 = vunpack.c.h.b16 %v700
    %v2586 = vunpack.c.l.b16 %v701
    %v2587 = vunpack.c.h.b16 %v701
    %v2588 = vunpack.c.l.b16 %v702
    %v2589 = vunpack.c.h.b16 %v702
    %v2590 = vunpack.c.l.b16 %v703
    %v2591 = vunpack.c.h.b16 %v703
    %v2592 = vunpack.c.l.b16 %v704
    %v2593 = vunpack.c.h.b16 %v704
    %v2594 = vunpack.c.l.b16 %v705
    %v2595 = vunpack.c.h.b16 %v705
    %v2596 = vunpack.c.l.b16 %v706
    %v2597 = vunpack.c.h.b16 %v706
    %v2598 = vunpack.c.l.b16 %v707
    %v2599 = vunpack.c.h.b16 %v707
    %v2600 = vunpack.c.l.b16 %v708
    %v2601 = vunpack.c.h.b16 %v708
    %v2602 = vunpack.c.l.b16 %v709
    %v2603 = vunpack.c.h.b16 %v709
    %v2604 = vunpack.c.l.b16 %v710
    %v2605 = vunpack.c.h.b16 %v710
    %v2606 = vunpack.c.l.b16 %v711
    %v2607 = vunpack.c.h.b16 %v711
    %v2608 = vunpack.c.l.b16 %v712
    %v2609 = vunpack.c.h.b16 %v712
    %v2610 = vunpack.c.l.b16 %v713
    %v2611 = vunpack.c.h.b16 %v713
    %v2612 = vunpack.c.l.b16 %v714
    %v2613 = vunpack.c.h.b16 %v714
    %v2614 = vunpack.c.l.b16 %v715
    %v2615 = vunpack.c.h.b16 %v715
    %v2616 = vunpack.c.l.b16 %v716
    %v2617 = vunpack.c.h.b16 %v716
    %v2618 = vunpack.c.l.b16 %v717
    %v2619 = vunpack.c.h.b16 %v717
    %v2620 = vunpack.c.l.b16 %v718
    %v2621 = vunpack.c.h.b16 %v718
    %v2622 = vunpack.c.l.b16 %v719
    %v2623 = vunpack.c.h.b16 %v719
    %v2624 = vunpack.c.l.b16 %v720
    %v2625 = vunpack.c.h.b16 %v720
    %v2626 = vunpack.c.l.b16 %v721
    %v2627 = vunpack.c.h.b16 %v721
    %v2628 = vunpack.c.l.b16 %v722
    %v2629 = vunpack.c.h.b16 %v722
    %v2630 = vunpack.c.l.b16 %v723
    %v2631 = vunpack.c.h.b16 %v723
    %v2632 = vunpack.c.l.b16 %v724
    %v2633 = vunpack.c.h.b16 %v724
    %v2634 = vunpack.c.l.b16 %v725
    %v2635 = vunpack.c.h.b16 %v725
    %v2636 = vunpack.c.l.b16 %v726
    %v2637 = vunpack.c.h.b16 %v726
    %v2638 = vunpack.c.l.b16 %v727
    %v2639 = vunpack.c.h.b16 %v727
    %v2640 = vunpack.c.l.b16 %v728
    %v2641 = vunpack.c.h.b16 %v728
    %v2642 = vunpack.c.l.b16 %v729
    %v2643 = vunpack.c.h.b16 %v729
    %v2644 = vunpack.c.l.b16 %v730
    %v2645 = vunpack.c.h.b16 %v730
    %v2646 = vunpack.c.l.b16 %v731
    %v2647 = vunpack.c.h.b16 %v731
    %v2648 = vunpack.c.l.b16 %v732
    %v2649 = vunpack.c.h.b16 %v732
    %v2650 = vunpack.c.l.b16 %v733
    %v2651 = vunpack.c.h.b16 %v733
    %v2652 = vunpack.c.l.b16 %v734
    %v2653 = vunpack.c.h.b16 %v734
    %v2654 = vunpack.c.l.b16 %v735
    %v2655 = vunpack.c.h.b16 %v735
    %v2656 = vunpack.c.l.b16 %v736
    %v2657 = vunpack.c.h.b16 %v736
    %v2658 = vunpack.c.l.b16 %v737
    %v2659 = vunpack.c.h.b16 %v737
    %v2660 = vunpack.c.l.b16 %v738
    %v2661 = vunpack.c.h.b16 %v738
    %v2662 = vunpack.c.l.b16 %v739
    %v2663 = vunpack.c.h.b16 %v739
    %v2664 = vunpack.c.l.b16 %v740
    %v2665 = vunpack.c.h.b16 %v740
    %v2666 = vunpack.c.l.b16 %v741
    %v2667 = vunpack.c.h.b16 %v741
    %v2668 = vunpack.c.l.b16 %v742
    %v2669 = vunpack.c.h.b16 %v742
    %v2670 = vunpack.c.l.b16 %v743
    %v2671 = vunpack.c.h.b16 %v743
    %v2672 = vunpack.c.l.b16 %v744
    %v2673 = vunpack.c.h.b16 %v744
    %v2674 = vunpack.c.l.b16 %v745
    %v2675 = vunpack.c.h.b16 %v745
    %v2676 = vunpack.c.l.b16 %v746
    %v2677 = vunpack.c.h.b16 %v746
    %v2678 = vunpack.c.l.b16 %v747
    %v2679 = vunpack.c.h.b16 %v747
    %v2680 = vunpack.c.l.b16 %v748
    %v2681 = vunpack.c.h.b16 %v748
    %v2682 = vunpack.c.l.b16 %v749
    %v2683 = vunpack.c.h.b16 %v749
    %v2684 = vunpack.c.l.b16 %v750
    %v2685 = vunpack.c.h.b16 %v750
    %v2686 = vunpack.c.l.b16 %v751
    %v2687 = vunpack.c.h.b16 %v751
    %v2688 = vunpack.c.l.b16 %v752
    %v2689 = vunpack.c.h.b16 %v752
    %v2690 = vunpack.c.l.b16 %v753
    %v2691 = vunpack.c.h.b16 %v753
    %v2692 = vunpack.c.l.b16 %v754
    %v2693 = vunpack.c.h.b16 %v754
    %v2694 = vunpack.c.l.b16 %v755
    %v2695 = vunpack.c.h.b16 %v755
    %v2696 = vunpack.c.l.b16 %v756
    %v2697 = vunpack.c.h.b16 %v756
    %v2698 = vunpack.c.l.b16 %v757
    %v2699 = vunpack.c.h.b16 %v757
    %v2700 = vunpack.c.l.b16 %v758
    %v2701 = vunpack.c.h.b16 %v758
    %v2702 = vunpack.c.l.b16 %v759
    %v2703 = vunpack.c.h.b16 %v759
    %v2704 = vunpack.c.l.b16 %v760
    %v2705 = vunpack.c.h.b16 %v760
    %v2706 = vunpack.c.l.b16 %v761
    %v2707 = vunpack.c.h.b16 %v761
    %v2708 = vunpack.c.l.b16 %v762
    %v2709 = vunpack.c.h.b16 %v762
    %v2710 = vunpack.c.l.b16 %v763
    %v2711 = vunpack.c.h.b16 %v763
    %v2712 = vunpack.c.l.b16 %v764
    %v2713 = vunpack.c.h.b16 %v764
    %v2714 = vunpack.c.l.b16 %v765
    %v2715 = vunpack.c.h.b16 %v765
    %v2716 = vunpack.c.l.b16 %v766
    %v2717 = vunpack.c.h.b16 %v766
    %v2718 = vunpack.c.l.b16 %v767
    %v2719 = vunpack.c.h.b16 %v767
    %v2720 = vunpack.c.l.b16 %v768
    %v2721 = vunpack.c.h.b16 %v768
    %v2722 = vunpack.c.l.b16 %v769
    %v2723 = vunpack.c.h.b16 %v769
    %v2724 = vunpack.c.l.b16 %v770
    %v2725 = vunpack.c.h.b16 %v770
    %v2726 = vunpack.c.l.b16 %v771
    %v2727 = vunpack.c.h.b16 %v771
    %v2728 = vunpack.c.l.b16 %v772
    %v2729 = vunpack.c.h.b16 %v772
    %v2730 = vunpack.c.l.b16 %v773
    %v2731 = vunpack.c.h.b16 %v773
    %v2732 = vunpack.c.l.b16 %v774
    %v2733 = vunpack.c.h.b16 %v774
    %v2734 = vunpack.c.l.b16 %v775
    %v2735 = vunpack.c.h.b16 %v775
    %v2736 = vunpack.c.l.b16 %v776
    %v2737 = vunpack.c.h.b16 %v776
    %v2738 = vunpack.c.l.b16 %v777
    %v2739 = vunpack.c.h.b16 %v777
    %v2740 = vunpack.c.l.b16 %v778
    %v2741 = vunpack.c.h.b16 %v778
    %v2742 = vunpack.c.l.b16 %v779
    %v2743 = vunpack.c.h.b16 %v779
    %v2744 = vunpack.c.l.b16 %v780
    %v2745 = vunpack.c.h.b16 %v780
    %v2746 = vunpack.c.l.b16 %v781
    %v2747 = vunpack.c.h.b16 %v781
    %v2748 = vunpack.c.l.b16 %v782
    %v2749 = vunpack.c.h.b16 %v782
    %v2750 = vunpack.c.l.b16 %v783
    %v2751 = vunpack.c.h.b16 %v783
    %v2752 = vunpack.c.l.b16 %v784
    %v2753 = vunpack.c.h.b16 %v784
    %v2754 = vunpack.c.l.b16 %v785
    %v2755 = vunpack.c.h.b16 %v785
    %v2756 = vunpack.c.l.b16 %v786
    %v2757 = vunpack.c.h.b16 %v786
    %v2758 = vunpack.c.l.b16 %v787
    %v2759 = vunpack.c.h.b16 %v787
    %v2760 = vunpack.c.l.b16 %v788
    %v2761 = vunpack.c.h.b16 %v788
    %v2762 = vunpack.c.l.b16 %v789
    %v2763 = vunpack.c.h.b16 %v789
    %v2764 = vunpack.c.l.b16 %v790
    %v2765 = vunpack.c.h.b16 %v790
    %v2766 = vunpack.c.l.b16 %v791
    %v2767 = vunpack.c.h.b16 %v791
    %v2768 = vunpack.c.l.b16 %v792
    %v2769 = vunpack.c.h.b16 %v792
    %v2770 = vunpack.c.l.b16 %v793
    %v2771 = vunpack.c.h.b16 %v793
    %v2772 = vunpack.c.l.b16 %v794
    %v2773 = vunpack.c.h.b16 %v794
    %v2774 = vunpack.c.l.b16 %v795
    %v2775 = vunpack.c.h.b16 %v795
    %v2776 = vunpack.c.l.b16 %v796
    %v2777 = vunpack.c.h.b16 %v796
    %v2778 = vunpack.c.l.b16 %v797
    %v2779 = vunpack.c.h.b16 %v797
    %v2780 = vunpack.c.l.b16 %v798
    %v2781 = vunpack.c.h.b16 %v798
    %v2782 = vunpack.c.l.b16 %v799
    %v2783 = vunpack.c.h.b16 %v799
    %v2784 = vunpack.c.l.b16 %v800
    %v2785 = vunpack.c.h.b16 %v800
    %v2786 = vunpack.c.l.b16 %v801
    %v2787 = vunpack.c.h.b16 %v801
    %v2788 = vunpack.c.l.b16 %v802
    %v2789 = vunpack.c.h.b16 %v802
    %v2790 = vunpack.c.l.b16 %v803
    %v2791 = vunpack.c.h.b16 %v803
    %v2792 = vunpack.c.l.b16 %v804
    %v2793 = vunpack.c.h.b16 %v804
    %v2794 = vunpack.c.l.b16 %v805
    %v2795 = vunpack.c.h.b16 %v805
    %v2796 = vunpack.c.l.b16 %v806
    %v2797 = vunpack.c.h.b16 %v806
    %v2798 = vunpack.c.l.b16 %v807
    %v2799 = vunpack.c.h.b16 %v807
    %v2800 = vunpack.c.l.b16 %v808
    %v2801 = vunpack.c.h.b16 %v808
    %v2802 = vunpack.c.l.b16 %v809
    %v2803 = vunpack.c.h.b16 %v809
    %v2804 = vunpack.c.l.b16 %v810
    %v2805 = vunpack.c.h.b16 %v810
    %v2806 = vunpack.c.l.b16 %v811
    %v2807 = vunpack.c.h.b16 %v811
    %v2808 = vunpack.c.l.b16 %v812
    %v2809 = vunpack.c.h.b16 %v812
    %v2810 = vunpack.c.l.b16 %v813
    %v2811 = vunpack.c.h.b16 %v813
    %v2812 = vunpack.c.l.b16 %v814
    %v2813 = vunpack.c.h.b16 %v814
    %v2814 = vunpack.c.l.b16 %v815
    %v2815 = vunpack.c.h.b16 %v815
    %v2816 = vunpack.c.l.b16 %v816
    %v2817 = vunpack.c.h.b16 %v816
    %v2818 = vunpack.c.l.b16 %v817
    %v2819 = vunpack.c.h.b16 %v817
    %v2820 = vunpack.c.l.b16 %v818
    %v2821 = vunpack.c.h.b16 %v818
    %v2822 = vunpack.c.l.b16 %v819
    %v2823 = vunpack.c.h.b16 %v819
    %v2824 = vunpack.c.l.b16 %v820
    %v2825 = vunpack.c.h.b16 %v820
    %v2826 = vunpack.c.l.b16 %v821
    %v2827 = vunpack.c.h.b16 %v821
    %v2828 = vunpack.c.l.b16 %v822
    %v2829 = vunpack.c.h.b16 %v822
    %v2830 = vunpack.c.l.b16 %v823
    %v2831 = vunpack.c.h.b16 %v823
    %v2832 = vunpack.c.l.b16 %v824
    %v2833 = vunpack.c.h.b16 %v824
    %v2834 = vunpack.c.l.b16 %v825
    %v2835 = vunpack.c.h.b16 %v825
    %v2836 = vunpack.c.l.b16 %v826
    %v2837 = vunpack.c.h.b16 %v826
    %v2838 = vunpack.c.l.b16 %v827
    %v2839 = vunpack.c.h.b16 %v827
    %v2840 = vunpack.c.l.b16 %v828
    %v2841 = vunpack.c.h.b16 %v828
    %v2842 = vunpack.c.l.b16 %v829
    %v2843 = vunpack.c.h.b16 %v829
    %v2844 = vunpack.c.l.b16 %v830
    %v2845 = vunpack.c.h.b16 %v830
    %v2846 = vunpack.c.l.b16 %v831
    %v2847 = vunpack.c.h.b16 %v831
    %v2848 = vunpack.c.l.b16 %v832
    %v2849 = vunpack.c.h.b16 %v832
    %v2850 = vunpack.c.l.b16 %v833
    %v2851 = vunpack.c.h.b16 %v833
    %v2852 = vunpack.c.l.b16 %v834
    %v2853 = vunpack.c.h.b16 %v834
    %v2854 = vunpack.c.l.b16 %v835
    %v2855 = vunpack.c.h.b16 %v835
    %v2856 = vunpack.c.l.b16 %v836
    %v2857 = vunpack.c.h.b16 %v836
    %v2858 = vunpack.c.l.b16 %v837
    %v2859 = vunpack.c.h.b16 %v837
    %v2860 = vunpack.c.l.b16 %v838
    %v2861 = vunpack.c.h.b16 %v838
    %v2862 = vunpack.c.l.b16 %v839
    %v2863 = vunpack.c.h.b16 %v839
    %v2864 = vunpack.c.l.b16 %v840
    %v2865 = vunpack.c.h.b16 %v840
    %v2866 = vunpack.c.l.b16 %v841
    %v2867 = vunpack.c.h.b16 %v841
    %v2868 = vunpack.c.l.b16 %v842
    %v2869 = vunpack.c.h.b16 %v842
    %v2870 = vunpack.c.l.b16 %v843
    %v2871 = vunpack.c.h.b16 %v843
    %v2872 = vunpack.c.l.b16 %v844
    %v2873 = vunpack.c.h.b16 %v844
    %v2874 = vunpack.c.l.b16 %v845
    %v2875 = vunpack.c.h.b16 %v845
    %v2876 = vunpack.c.l.b16 %v846
    %v2877 = vunpack.c.h.b16 %v846
    %v2878 = vunpack.c.l.b16 %v847
    %v2879 = vunpack.c.h.b16 %v847
    %v2880 = vunpack.c.l.b16 %v848
    %v2881 = vunpack.c.h.b16 %v848
    %v2882 = vunpack.c.l.b16 %v849
    %v2883 = vunpack.c.h.b16 %v849
    %v2884 = vunpack.c.l.b16 %v850
    %v2885 = vunpack.c.h.b16 %v850
    %v2886 = vunpack.c.l.b16 %v851
    %v2887 = vunpack.c.h.b16 %v851
    %v2888 = vunpack.c.l.b16 %v852
    %v2889 = vunpack.c.h.b16 %v852
    %v2890 = vunpack.c.l.b16 %v853
    %v2891 = vunpack.c.h.b16 %v853
    %v2892 = vunpack.c.l.b16 %v854
    %v2893 = vunpack.c.h.b16 %v854
    %v2894 = vunpack.c.l.b16 %v855
    %v2895 = vunpack.c.h.b16 %v855
    %v2896 = vunpack.c.l.b16 %v856
    %v2897 = vunpack.c.h.b16 %v856
    %v2898 = vunpack.c.l.b16 %v857
    %v2899 = vunpack.c.h.b16 %v857
    %v2900 = vunpack.c.l.b16 %v858
    %v2901 = vunpack.c.h.b16 %v858
    %v2902 = vunpack.c.l.b16 %v859
    %v2903 = vunpack.c.h.b16 %v859
    %v2904 = vunpack.c.l.b16 %v860
    %v2905 = vunpack.c.h.b16 %v860
    %v2906 = vunpack.c.l.b16 %v861
    %v2907 = vunpack.c.h.b16 %v861
    %v2908 = vunpack.c.l.b16 %v862
    %v2909 = vunpack.c.h.b16 %v862
    %v2910 = vunpack.c.l.b16 %v863
    %v2911 = vunpack.c.h.b16 %v863
    %v2912 = vunpack.c.l.b16 %v864
    %v2913 = vunpack.c.h.b16 %v864
    %v2914 = vunpack.c.l.b16 %v865
    %v2915 = vunpack.c.h.b16 %v865
    %v2916 = vunpack.c.l.b16 %v866
    %v2917 = vunpack.c.h.b16 %v866
    %v2918 = vunpack.c.l.b16 %v867
    %v2919 = vunpack.c.h.b16 %v867
    %v2920 = vunpack.c.l.b16 %v868
    %v2921 = vunpack.c.h.b16 %v868
    %v2922 = vunpack.c.l.b16 %v869
    %v2923 = vunpack.c.h.b16 %v869
    %v2924 = vunpack.c.l.b16 %v870
    %v2925 = vunpack.c.h.b16 %v870
    %v2926 = vunpack.c.l.b16 %v871
    %v2927 = vunpack.c.h.b16 %v871
    %v2928 = vunpack.c.l.b16 %v872
    %v2929 = vunpack.c.h.b16 %v872
    %v2930 = vunpack.c.l.b16 %v873
    %v2931 = vunpack.c.h.b16 %v873
    %v2932 = vunpack.c.l.b16 %v874
    %v2933 = vunpack.c.h.b16 %v874
    %v2934 = vunpack.c.l.b16 %v875
    %v2935 = vunpack.c.h.b16 %v875
    %v2936 = vunpack.c.l.b16 %v876
    %v2937 = vunpack.c.h.b16 %v876
    %v2938 = vunpack.c.l.b16 %v877
    %v2939 = vunpack.c.h.b16 %v877
    %v2940 = vunpack.c.l.b16 %v878
    %v2941 = vunpack.c.h.b16 %v878
    %v2942 = vunpack.c.l.b16 %v879
    %v2943 = vunpack.c.h.b16 %v879
    %v2944 = vunpack.c.l.b16 %v880
    %v2945 = vunpack.c.h.b16 %v880
    %v2946 = vunpack.c.l.b16 %v881
    %v2947 = vunpack.c.h.b16 %v881
    %v2948 = vunpack.c.l.b16 %v882
    %v2949 = vunpack.c.h.b16 %v882
    %v2950 = vunpack.c.l.b16 %v883
    %v2951 = vunpack.c.h.b16 %v883
    %v2952 = vunpack.c.l.b16 %v884
    %v2953 = vunpack.c.h.b16 %v884
    %v2954 = vunpack.c.l.b16 %v885
    %v2955 = vunpack.c.h.b16 %v885
    %v2956 = vunpack.c.l.b16 %v886
    %v2957 = vunpack.c.h.b16 %v886
    %v2958 = vunpack.c.l.b16 %v887
    %v2959 = vunpack.c.h.b16 %v887
    %v2960 = vunpack.c.l.b16 %v888
    %v2961 = vunpack.c.h.b16 %v888
    %v2962 = vunpack.c.l.b16 %v889
    %v2963 = vunpack.c.h.b16 %v889
    %v2964 = vunpack.c.l.b16 %v890
    %v2965 = vunpack.c.h.b16 %v890
    %v2966 = vunpack.c.l.b16 %v891
    %v2967 = vunpack.c.h.b16 %v891
    %v2968 = vunpack.c.l.b16 %v892
    %v2969 = vunpack.c.h.b16 %v892
    %v2970 = vunpack.c.l.b16 %v893
    %v2971 = vunpack.c.h.b16 %v893
    %v2972 = vunpack.c.l.b16 %v894
    %v2973 = vunpack.c.h.b16 %v894
    %v2974 = vunpack.c.l.b16 %v895
    %v2975 = vunpack.c.h.b16 %v895
    %v2976 = vunpack.c.l.b16 %v896
    %v2977 = vunpack.c.h.b16 %v896
    %v2978 = vunpack.c.l.b16 %v897
    %v2979 = vunpack.c.h.b16 %v897
    %v2980 = vunpack.c.l.b16 %v898
    %v2981 = vunpack.c.h.b16 %v898
    %v2982 = vunpack.c.l.b16 %v899
    %v2983 = vunpack.c.h.b16 %v899
    %v2984 = vunpack.c.l.b16 %v900
    %v2985 = vunpack.c.h.b16 %v900
    %v2986 = vunpack.c.l.b16 %v901
    %v2987 = vunpack.c.h.b16 %v901
    %v2988 = vunpack.c.l.b16 %v902
    %v2989 = vunpack.c.h.b16 %v902
    %v2990 = vunpack.c.l.b16 %v903
    %v2991 = vunpack.c.h.b16 %v903
    %v2992 = vunpack.c.l.b16 %v904
    %v2993 = vunpack.c.h.b16 %v904
    %v2994 = vunpack.c.l.b16 %v905
    %v2995 = vunpack.c.h.b16 %v905
    %v2996 = vunpack.c.l.b16 %v906
    %v2997 = vunpack.c.h.b16 %v906
    %v2998 = vunpack.c.l.b16 %v907
    %v2999 = vunpack.c.h.b16 %v907
    %v3000 = vunpack.c.l.b16 %v908
    %v3001 = vunpack.c.h.b16 %v908
    %v3002 = vunpack.c.l.b16 %v909
    %v3003 = vunpack.c.h.b16 %v909
    %v3004 = vunpack.c.l.b16 %v910
    %v3005 = vunpack.c.h.b16 %v910
    %v3006 = vunpack.c.l.b16 %v911
    %v3007 = vunpack.c.h.b16 %v911
    %v3008 = vunpack.c.l.b16 %v912
    %v3009 = vunpack.c.h.b16 %v912
    %v3010 = vunpack.c.l.b16 %v913
    %v3011 = vunpack.c.h.b16 %v913
    %v3012 = vunpack.c.l.b16 %v914
    %v3013 = vunpack.c.h.b16 %v914
    %v3014 = vunpack.c.l.b16 %v915
    %v3015 = vunpack.c.h.b16 %v915
    %v3016 = vunpack.c.l.b16 %v916
    %v3017 = vunpack.c.h.b16 %v916
    %v3018 = vunpack.c.l.b16 %v917
    %v3019 = vunpack.c.h.b16 %v917
    %v3020 = vunpack.c.l.b16 %v918
    %v3021 = vunpack.c.h.b16 %v918
    %v3022 = vunpack.c.l.b16 %v919
    %v3023 = vunpack.c.h.b16 %v919
    %v3024 = vunpack.c.l.b16 %v920
    %v3025 = vunpack.c.h.b16 %v920
    %v3026 = vunpack.c.l.b16 %v921
    %v3027 = vunpack.c.h.b16 %v921
    %v3028 = vunpack.c.l.b16 %v922
    %v3029 = vunpack.c.h.b16 %v922
    %v3030 = vunpack.c.l.b16 %v923
    %v3031 = vunpack.c.h.b16 %v923
    %v3032 = vunpack.c.l.b16 %v924
    %v3033 = vunpack.c.h.b16 %v924
    %v3034 = vunpack.c.l.b16 %v925
    %v3035 = vunpack.c.h.b16 %v925
    %v3036 = vunpack.c.l.b16 %v926
    %v3037 = vunpack.c.h.b16 %v926
    %v3038 = vunpack.c.l.b16 %v927
    %v3039 = vunpack.c.h.b16 %v927
    %v3040 = vunpack.c.l.b16 %v928
    %v3041 = vunpack.c.h.b16 %v928
    %v3042 = vunpack.c.l.b16 %v929
    %v3043 = vunpack.c.h.b16 %v929
    %v3044 = vunpack.c.l.b16 %v930
    %v3045 = vunpack.c.h.b16 %v930
    %v3046 = vunpack.c.l.b16 %v931
    %v3047 = vunpack.c.h.b16 %v931
    %v3048 = vunpack.c.l.b16 %v932
    %v3049 = vunpack.c.h.b16 %v932
    %v3050 = vunpack.c.l.b16 %v933
    %v3051 = vunpack.c.h.b16 %v933
    %v3052 = vunpack.c.l.b16 %v934
    %v3053 = vunpack.c.h.b16 %v934
    %v3054 = vunpack.c.l.b16 %v935
    %v3055 = vunpack.c.h.b16 %v935
    %v3056 = vunpack.c.l.b16 %v936
    %v3057 = vunpack.c.h.b16 %v936
    %v3058 = vunpack.c.l.b16 %v937
    %v3059 = vunpack.c.h.b16 %v937
    %v3060 = vunpack.c.l.b16 %v938
    %v3061 = vunpack.c.h.b16 %v938
    %v3062 = vunpack.c.l.b16 %v939
    %v3063 = vunpack.c.h.b16 %v939
    %v3064 = vunpack.c.l.b16 %v940
    %v3065 = vunpack.c.h.b16 %v940
    %v3066 = vunpack.c.l.b16 %v941
    %v3067 = vunpack.c.h.b16 %v941
    %v3068 = vunpack.c.l.b16 %v942
    %v3069 = vunpack.c.h.b16 %v942
    %v3070 = vunpack.c.l.b16 %v943
    %v3071 = vunpack.c.h.b16 %v943
    %v3072 = vunpack.c.l.b16 %v944
    %v3073 = vunpack.c.h.b16 %v944
    %v3074 = vunpack.c.l.b16 %v945
    %v3075 = vunpack.c.h.b16 %v945
    %v3076 = vunpack.c.l.b16 %v946
    %v3077 = vunpack.c.h.b16 %v946
    %v3078 = vunpack.c.l.b16 %v947
    %v3079 = vunpack.c.h.b16 %v947
    %v3080 = vunpack.c.l.b16 %v948
    %v3081 = vunpack.c.h.b16 %v948
    %v3082 = vunpack.c.l.b16 %v949
    %v3083 = vunpack.c.h.b16 %v949
    %v3084 = vunpack.c.l.b16 %v950
    %v3085 = vunpack.c.h.b16 %v950
    %v3086 = vunpack.c.l.b16 %v951
    %v3087 = vunpack.c.h.b16 %v951
    %v3088 = vunpack.c.l.b16 %v952
    %v3089 = vunpack.c.h.b16 %v952
    %v3090 = vunpack.c.l.b16 %v953
    %v3091 = vunpack.c.h.b16 %v953
    %v3092 = vunpack.c.l.b16 %v954
    %v3093 = vunpack.c.h.b16 %v954
    %v3094 = vunpack.c.l.b16 %v955
    %v3095 = vunpack.c.h.b16 %v955
    %v3096 = vunpack.c.l.b16 %v956
    %v3097 = vunpack.c.h.b16 %v956
    %v3098 = vunpack.c.l.b16 %v957
    %v3099 = vunpack.c.h.b16 %v957
    %v3100 = vunpack.c.l.b16 %v958
    %v3101 = vunpack.c.h.b16 %v958
    %v3102 = vunpack.c.l.b16 %v959
    %v3103 = vunpack.c.h.b16 %v959
    %v3104 = vunpack.c.l.b16 %v960
    %v3105 = vunpack.c.h.b16 %v960
    %v3106 = vunpack.c.l.b16 %v961
    %v3107 = vunpack.c.h.b16 %v961
    %v3108 = vunpack.c.l.b16 %v962
    %v3109 = vunpack.c.h.b16 %v962
    %v3110 = vunpack.c.l.b16 %v963
    %v3111 = vunpack.c.h.b16 %v963
    %v3112 = vunpack.c.l.b16 %v964
    %v3113 = vunpack.c.h.b16 %v964
    %v3114 = vunpack.c.l.b16 %v965
    %v3115 = vunpack.c.h.b16 %v965
    %v3116 = vunpack.c.l.b16 %v966
    %v3117 = vunpack.c.h.b16 %v966
    %v3118 = vunpack.c.l.b16 %v967
    %v3119 = vunpack.c.h.b16 %v967
    %v3120 = vunpack.c.l.b16 %v968
    %v3121 = vunpack.c.h.b16 %v968
    %v3122 = vunpack.c.l.b16 %v969
    %v3123 = vunpack.c.h.b16 %v969
    %v3124 = vunpack.c.l.b16 %v970
    %v3125 = vunpack.c.h.b16 %v970
    %v3126 = vunpack.c.l.b16 %v971
    %v3127 = vunpack.c.h.b16 %v971
    %v3128 = vunpack.c.l.b16 %v972
    %v3129 = vunpack.c.h.b16 %v972
    %v3130 = vunpack.c.l.b16 %v973
    %v3131 = vunpack.c.h.b16 %v973
    %v3132 = vunpack.c.l.b16 %v974
    %v3133 = vunpack.c.h.b16 %v974
    %v3134 = vunpack.c.l.b16 %v975
    %v3135 = vunpack.c.h.b16 %v975
    %v3136 = vunpack.c.l.b16 %v976
    %v3137 = vunpack.c.h.b16 %v976
    %v3138 = vunpack.c.l.b16 %v977
    %v3139 = vunpack.c.h.b16 %v977
    %v3140 = vunpack.c.l.b16 %v978
    %v3141 = vunpack.c.h.b16 %v978
    %v3142 = vunpack.c.l.b16 %v979
    %v3143 = vunpack.c.h.b16 %v979
    %v3144 = vunpack.c.l.b16 %v980
    %v3145 = vunpack.c.h.b16 %v980
    %v3146 = vunpack.c.l.b16 %v981
    %v3147 = vunpack.c.h.b16 %v981
    %v3148 = vunpack.c.l.b16 %v982
    %v3149 = vunpack.c.h.b16 %v982
    %v3150 = vunpack.c.l.b16 %v983
    %v3151 = vunpack.c.h.b16 %v983
    %v3152 = vunpack.c.l.b16 %v984
    %v3153 = vunpack.c.h.b16 %v984
    %v3154 = vunpack.c.l.b16 %v985
    %v3155 = vunpack.c.h.b16 %v985
    %v3156 = vunpack.c.l.b16 %v986
    %v3157 = vunpack.c.h.b16 %v986
    %v3158 = vunpack.c.l.b16 %v987
    %v3159 = vunpack.c.h.b16 %v987
    %v3160 = vunpack.c.l.b16 %v988
    %v3161 = vunpack.c.h.b16 %v988
    %v3162 = vunpack.c.l.b16 %v989
    %v3163 = vunpack.c.h.b16 %v989
    %v3164 = vunpack.c.l.b16 %v990
    %v3165 = vunpack.c.h.b16 %v990
    %v3166 = vunpack.c.l.b16 %v991
    %v3167 = vunpack.c.h.b16 %v991
    %v3168 = vunpack.c.l.b16 %v992
    %v3169 = vunpack.c.h.b16 %v992
    %v3170 = vunpack.c.l.b16 %v993
    %v3171 = vunpack.c.h.b16 %v993
    %v3172 = vunpack.c.l.b16 %v994
    %v3173 = vunpack.c.h.b16 %v994
    %v3174 = vunpack.c.l.b16 %v995
    %v3175 = vunpack.c.h.b16 %v995
    %v3176 = vunpack.c.l.b16 %v996
    %v3177 = vunpack.c.h.b16 %v996
    %v3178 = vunpack.c.l.b16 %v997
    %v3179 = vunpack.c.h.b16 %v997
    %v3180 = vunpack.c.l.b16 %v998
    %v3181 = vunpack.c.h.b16 %v998
    %v3182 = vunpack.c.l.b16 %v999
    %v3183 = vunpack.c.h.b16 %v999
    %v3184 = vunpack.c.l.b16 %v1000
    %v3185 = vunpack.c.h.b16 %v1000
    %v3186 = vunpack.c.l.b16 %v1001
    %v3187 = vunpack.c.h.b16 %v1001
    %v3188 = vunpack.c.l.b16 %v1002
    %v3189 = vunpack.c.h.b16 %v1002
    %v3190 = vunpack.c.l.b16 %v1003
    %v3191 = vunpack.c.h.b16 %v1003
    %v3192 = vunpack.c.l.b16 %v1004
    %v3193 = vunpack.c.h.b16 %v1004
    %v3194 = vunpack.c.l.b16 %v1005
    %v3195 = vunpack.c.h.b16 %v1005
    %v3196 = vunpack.c.l.b16 %v1006
    %v3197 = vunpack.c.h.b16 %v1006
    %v3198 = vunpack.c.l.b16 %v1007
    %v3199 = vunpack.c.h.b16 %v1007
    %v3200 = vunpack.c.l.b16 %v1008
    %v3201 = vunpack.c.h.b16 %v1008
    %v3202 = vunpack.c.l.b16 %v1009
    %v3203 = vunpack.c.h.b16 %v1009
    %v3204 = vunpack.c.l.b16 %v1010
    %v3205 = vunpack.c.h.b16 %v1010
    %v3206 = vunpack.c.l.b16 %v1011
    %v3207 = vunpack.c.h.b16 %v1011
    %v3208 = vunpack.c.l.b16 %v1012
    %v3209 = vunpack.c.h.b16 %v1012
    %v3210 = vunpack.c.l.b16 %v1013
    %v3211 = vunpack.c.h.b16 %v1013
    %v3212 = vunpack.c.l.b16 %v1014
    %v3213 = vunpack.c.h.b16 %v1014
    %v3214 = vunpack.c.l.b16 %v1015
    %v3215 = vunpack.c.h.b16 %v1015
    %v3216 = vunpack.c.l.b16 %v1016
    %v3217 = vunpack.c.h.b16 %v1016
    %v3218 = vunpack.c.l.b16 %v1017
    %v3219 = vunpack.c.h.b16 %v1017
    %v3220 = vunpack.c.l.b16 %v1018
    %v3221 = vunpack.c.h.b16 %v1018
    %v3222 = vunpack.c.l.b16 %v1019
    %v3223 = vunpack.c.h.b16 %v1019
    %v3224 = vunpack.c.l.b16 %v1020
    %v3225 = vunpack.c.h.b16 %v1020
    %v3226 = vunpack.c.l.b16 %v1021
    %v3227 = vunpack.c.h.b16 %v1021
    %v3228 = vunpack.c.l.b16 %v1022
    %v3229 = vunpack.c.h.b16 %v1022
    %v3230 = vunpack.c.l.b16 %v1023
    %v3231 = vunpack.c.h.b16 %v1023
    %v3232 = vunpack.c.l.b16 %v1024
    %v3233 = vunpack.c.h.b16 %v1024
    %v3234 = vunpack.c.l.b16 %v1025
    %v3235 = vunpack.c.h.b16 %v1025
    %v3236 = vunpack.c.l.b16 %v1026
    %v3237 = vunpack.c.h.b16 %v1026
    %v3238 = vunpack.c.l.b16 %v1027
    %v3239 = vunpack.c.h.b16 %v1027
    %v3240 = vunpack.c.l.b16 %v1028
    %v3241 = vunpack.c.h.b16 %v1028
    %v3242 = vunpack.c.l.b16 %v1029
    %v3243 = vunpack.c.h.b16 %v1029
    %v3244 = vunpack.c.l.b16 %v1030
    %v3245 = vunpack.c.h.b16 %v1030
    %v3246 = vunpack.c.l.b16 %v1031
    %v3247 = vunpack.c.h.b16 %v1031
    %v3248 = vunpack.c.l.b16 %v1032
    %v3249 = vunpack.c.h.b16 %v1032
    %v3250 = vunpack.c.l.b16 %v1033
    %v3251 = vunpack.c.h.b16 %v1033
    %v3252 = vunpack.c.l.b16 %v1034
    %v3253 = vunpack.c.h.b16 %v1034
    %v3254 = vunpack.c.l.b16 %v1035
    %v3255 = vunpack.c.h.b16 %v1035
    %v3256 = vunpack.c.l.b16 %v1036
    %v3257 = vunpack.c.h.b16 %v1036
    %v3258 = vunpack.c.l.b16 %v1037
    %v3259 = vunpack.c.h.b16 %v1037
    %v3260 = vunpack.c.l.b16 %v1038
    %v3261 = vunpack.c.h.b16 %v1038
    %v3262 = vunpack.c.l.b16 %v1039
    %v3263 = vunpack.c.h.b16 %v1039
    %v3264 = vunpack.c.l.b16 %v1040
    %v3265 = vunpack.c.h.b16 %v1040
    %v3266 = vunpack.c.l.b16 %v1041
    %v3267 = vunpack.c.h.b16 %v1041
    %v3268 = vunpack.c.l.b16 %v1042
    %v3269 = vunpack.c.h.b16 %v1042
    %v3270 = vunpack.c.l.b16 %v1043
    %v3271 = vunpack.c.h.b16 %v1043
    %v3272 = vunpack.c.l.b16 %v1044
    %v3273 = vunpack.c.h.b16 %v1044
    %v3274 = vunpack.c.l.b16 %v1045
    %v3275 = vunpack.c.h.b16 %v1045
    %v3276 = vunpack.c.l.b16 %v1046
    %v3277 = vunpack.c.h.b16 %v1046
    %v3278 = vunpack.c.l.b16 %v1047
    %v3279 = vunpack.c.h.b16 %v1047
    %v3280 = vunpack.c.l.b16 %v1048
    %v3281 = vunpack.c.h.b16 %v1048
    %v3282 = vunpack.c.l.b16 %v1049
    %v3283 = vunpack.c.h.b16 %v1049
    %v3284 = vunpack.c.l.b16 %v1050
    %v3285 = vunpack.c.h.b16 %v1050
    %v3286 = vunpack.c.l.b16 %v1051
    %v3287 = vunpack.c.h.b16 %v1051
    %v3288 = vunpack.c.l.b16 %v1052
    %v3289 = vunpack.c.h.b16 %v1052
    %v3290 = vunpack.c.l.b16 %v1053
    %v3291 = vunpack.c.h.b16 %v1053
    %v3292 = vunpack.c.l.b16 %v1054
    %v3293 = vunpack.c.h.b16 %v1054
    %v3294 = vunpack.c.l.b16 %v1055
    %v3295 = vunpack.c.h.b16 %v1055
    %v3296 = vunpack.c.l.b16 %v1056
    %v3297 = vunpack.c.h.b16 %v1056
    %v3298 = vunpack.c.l.b16 %v1057
    %v3299 = vunpack.c.h.b16 %v1057
    %v3300 = vunpack.c.l.b16 %v1058
    %v3301 = vunpack.c.h.b16 %v1058
    %v3302 = vunpack.c.l.b16 %v1059
    %v3303 = vunpack.c.h.b16 %v1059
    %v3304 = vunpack.c.l.b16 %v1060
    %v3305 = vunpack.c.h.b16 %v1060
    %v3306 = vunpack.c.l.b16 %v1061
    %v3307 = vunpack.c.h.b16 %v1061
    %v3308 = vunpack.c.l.b16 %v1062
    %v3309 = vunpack.c.h.b16 %v1062
    %v3310 = vunpack.c.l.b16 %v1063
    %v3311 = vunpack.c.h.b16 %v1063
    %v3312 = vunpack.c.l.b16 %v1064
    %v3313 = vunpack.c.h.b16 %v1064
    %v3314 = vunpack.c.l.b16 %v1065
    %v3315 = vunpack.c.h.b16 %v1065
    %v3316 = vunpack.c.l.b16 %v1066
    %v3317 = vunpack.c.h.b16 %v1066
    %v3318 = vunpack.c.l.b16 %v1067
    %v3319 = vunpack.c.h.b16 %v1067
    %v3320 = vunpack.c.l.b16 %v1068
    %v3321 = vunpack.c.h.b16 %v1068
    %v3322 = vunpack.c.l.b16 %v1069
    %v3323 = vunpack.c.h.b16 %v1069
    %v3324 = vunpack.c.l.b16 %v1070
    %v3325 = vunpack.c.h.b16 %v1070
    %v3326 = vunpack.c.l.b16 %v1071
    %v3327 = vunpack.c.h.b16 %v1071
    %v3328 = vunpack.c.l.b16 %v1072
    %v3329 = vunpack.c.h.b16 %v1072
    %v3330 = vunpack.c.l.b16 %v1073
    %v3331 = vunpack.c.h.b16 %v1073
    %v3332 = vunpack.c.l.b16 %v1074
    %v3333 = vunpack.c.h.b16 %v1074
    %v3334 = vunpack.c.l.b16 %v1075
    %v3335 = vunpack.c.h.b16 %v1075
    %v3336 = vunpack.c.l.b16 %v1076
    %v3337 = vunpack.c.h.b16 %v1076
    %v3338 = vunpack.c.l.b16 %v1077
    %v3339 = vunpack.c.h.b16 %v1077
    %v3340 = vunpack.c.l.b16 %v1078
    %v3341 = vunpack.c.h.b16 %v1078
    %v3342 = vunpack.c.l.b16 %v1079
    %v3343 = vunpack.c.h.b16 %v1079
    %v3344 = vunpack.c.l.b16 %v1080
    %v3345 = vunpack.c.h.b16 %v1080
    %v3346 = vunpack.c.l.b16 %v1081
    %v3347 = vunpack.c.h.b16 %v1081
    %v3348 = vunpack.c.l.b16 %v1082
    %v3349 = vunpack.c.h.b16 %v1082
    %v3350 = vunpack.c.l.b16 %v1083
    %v3351 = vunpack.c.h.b16 %v1083
    %v3352 = vunpack.c.l.b16 %v1084
    %v3353 = vunpack.c.h.b16 %v1084
    %v3354 = vunpack.c.l.b16 %v1085
    %v3355 = vunpack.c.h.b16 %v1085
    %v3356 = vunpack.c.l.b16 %v1086
    %v3357 = vunpack.c.h.b16 %v1086
    %v3358 = vunpack.c.l.b16 %v1087
    %v3359 = vunpack.c.h.b16 %v1087
    %v3360 = vunpack.c.l.b16 %v1088
    %v3361 = vunpack.c.h.b16 %v1088
    %v3362 = vunpack.c.l.b16 %v1089
    %v3363 = vunpack.c.h.b16 %v1089
    %v3364 = vunpack.c.l.b16 %v1090
    %v3365 = vunpack.c.h.b16 %v1090
    %v3366 = vunpack.c.l.b16 %v1091
    %v3367 = vunpack.c.h.b16 %v1091
    %v3368 = vunpack.c.l.b16 %v1092
    %v3369 = vunpack.c.h.b16 %v1092
    %v3370 = vunpack.c.l.b16 %v1093
    %v3371 = vunpack.c.h.b16 %v1093
    %v3372 = vunpack.c.l.b16 %v1094
    %v3373 = vunpack.c.h.b16 %v1094
    %v3374 = vunpack.c.l.b16 %v1095
    %v3375 = vunpack.c.h.b16 %v1095
    %v3376 = vunpack.c.l.b16 %v1096
    %v3377 = vunpack.c.h.b16 %v1096
    %v3378 = vunpack.c.l.b16 %v1097
    %v3379 = vunpack.c.h.b16 %v1097
    %v3380 = vunpack.c.l.b16 %v1098
    %v3381 = vunpack.c.h.b16 %v1098
    %v3382 = vunpack.c.l.b16 %v1099
    %v3383 = vunpack.c.h.b16 %v1099
    %v3384 = vunpack.c.l.b16 %v1100
    %v3385 = vunpack.c.h.b16 %v1100
    %v3386 = vunpack.c.l.b16 %v1101
    %v3387 = vunpack.c.h.b16 %v1101
    %v3388 = vunpack.c.l.b16 %v1102
    %v3389 = vunpack.c.h.b16 %v1102
    %v3390 = vunpack.c.l.b16 %v1103
    %v3391 = vunpack.c.h.b16 %v1103
    %v3392 = vunpack.c.l.b16 %v1104
    %v3393 = vunpack.c.h.b16 %v1104
    %v3394 = vunpack.c.l.b16 %v1105
    %v3395 = vunpack.c.h.b16 %v1105
    %v3396 = vunpack.c.l.b16 %v1106
    %v3397 = vunpack.c.h.b16 %v1106
    %v3398 = vunpack.c.l.b16 %v1107
    %v3399 = vunpack.c.h.b16 %v1107
    %v3400 = vunpack.c.l.b16 %v1108
    %v3401 = vunpack.c.h.b16 %v1108
    %v3402 = vunpack.c.l.b16 %v1109
    %v3403 = vunpack.c.h.b16 %v1109
    %v3404 = vunpack.c.l.b16 %v1110
    %v3405 = vunpack.c.h.b16 %v1110
    %v3406 = vunpack.c.l.b16 %v1111
    %v3407 = vunpack.c.h.b16 %v1111
    %v3408 = vunpack.c.l.b16 %v1112
    %v3409 = vunpack.c.h.b16 %v1112
    %v3410 = vunpack.c.l.b16 %v1113
    %v3411 = vunpack.c.h.b16 %v1113
    %v3412 = vunpack.c.l.b16 %v1114
    %v3413 = vunpack.c.h.b16 %v1114
    %v3414 = vunpack.c.l.b16 %v1115
    %v3415 = vunpack.c.h.b16 %v1115
    %v3416 = vunpack.c.l.b16 %v1116
    %v3417 = vunpack.c.h.b16 %v1116
    %v3418 = vunpack.c.l.b16 %v1117
    %v3419 = vunpack.c.h.b16 %v1117
    %v3420 = vunpack.c.l.b16 %v1118
    %v3421 = vunpack.c.h.b16 %v1118
    %v3422 = vunpack.c.l.b16 %v1119
    %v3423 = vunpack.c.h.b16 %v1119
    %v3424 = vunpack.c.l.b16 %v1120
    %v3425 = vunpack.c.h.b16 %v1120
    %v3426 = vunpack.c.l.b16 %v1121
    %v3427 = vunpack.c.h.b16 %v1121
    %v3428 = vunpack.c.l.b16 %v1122
    %v3429 = vunpack.c.h.b16 %v1122
    %v3430 = vunpack.c.l.b16 %v1123
    %v3431 = vunpack.c.h.b16 %v1123
    %v3432 = vunpack.c.l.b16 %v1124
    %v3433 = vunpack.c.h.b16 %v1124
    %v3434 = vunpack.c.l.b16 %v1125
    %v3435 = vunpack.c.h.b16 %v1125
    %v3436 = vunpack.c.l.b16 %v1126
    %v3437 = vunpack.c.h.b16 %v1126
    %v3438 = vunpack.c.l.b16 %v1127
    %v3439 = vunpack.c.h.b16 %v1127
    %v3440 = vunpack.c.l.b16 %v1128
    %v3441 = vunpack.c.h.b16 %v1128
    %v3442 = vunpack.c.l.b16 %v1129
    %v3443 = vunpack.c.h.b16 %v1129
    %v3444 = vunpack.c.l.b16 %v1130
    %v3445 = vunpack.c.h.b16 %v1130
    %v3446 = vunpack.c.l.b16 %v1131
    %v3447 = vunpack.c.h.b16 %v1131
    %v3448 = vunpack.c.l.b16 %v1132
    %v3449 = vunpack.c.h.b16 %v1132
    %v3450 = vunpack.c.l.b16 %v1133
    %v3451 = vunpack.c.h.b16 %v1133
    %v3452 = vunpack.c.l.b16 %v1134
    %v3453 = vunpack.c.h.b16 %v1134
    %v3454 = vunpack.c.l.b16 %v1135
    %v3455 = vunpack.c.h.b16 %v1135
    %v3456 = vunpack.c.l.b16 %v1136
    %v3457 = vunpack.c.h.b16 %v1136
    %v3458 = vunpack.c.l.b16 %v1137
    %v3459 = vunpack.c.h.b16 %v1137
    %v3460 = vunpack.c.l.b16 %v1138
    %v3461 = vunpack.c.h.b16 %v1138
    %v3462 = vunpack.c.l.b16 %v1139
    %v3463 = vunpack.c.h.b16 %v1139
    %v3464 = vunpack.c.l.b16 %v1140
    %v3465 = vunpack.c.h.b16 %v1140
    %v3466 = vunpack.c.l.b16 %v1141
    %v3467 = vunpack.c.h.b16 %v1141
    %v3468 = vunpack.c.l.b16 %v1142
    %v3469 = vunpack.c.h.b16 %v1142
    %v3470 = vunpack.c.l.b16 %v1143
    %v3471 = vunpack.c.h.b16 %v1143
    %v3472 = vunpack.c.l.b16 %v1144
    %v3473 = vunpack.c.h.b16 %v1144
    %v3474 = vunpack.c.l.b16 %v1145
    %v3475 = vunpack.c.h.b16 %v1145
    %v3476 = vunpack.c.l.b16 %v1146
    %v3477 = vunpack.c.h.b16 %v1146
    %v3478 = vunpack.c.l.b16 %v1147
    %v3479 = vunpack.c.h.b16 %v1147
    %v3480 = vunpack.c.l.b16 %v1148
    %v3481 = vunpack.c.h.b16 %v1148
    %v3482 = vunpack.c.l.b16 %v1149
    %v3483 = vunpack.c.h.b16 %v1149
    %v3484 = vunpack.c.l.b16 %v1150
    %v3485 = vunpack.c.h.b16 %v1150
    %v3486 = vunpack.c.l.b16 %v1151
    %v3487 = vunpack.c.h.b16 %v1151
    %v3488 = vunpack.c.l.b16 %v1152
    %v3489 = vunpack.c.h.b16 %v1152
    %v3490 = vunpack.c.l.b16 %v1153
    %v3491 = vunpack.c.h.b16 %v1153
    %v3492 = vunpack.c.l.b16 %v1154
    %v3493 = vunpack.c.h.b16 %v1154
    %v3494 = vunpack.c.l.b16 %v1155
    %v3495 = vunpack.c.h.b16 %v1155
    %v3496 = vunpack.c.l.b16 %v1156
    %v3497 = vunpack.c.h.b16 %v1156
    %v3498 = vunpack.c.l.b16 %v1157
    %v3499 = vunpack.c.h.b16 %v1157
    %v3500 = vunpack.c.l.b16 %v1158
    %v3501 = vunpack.c.h.b16 %v1158
    %v3502 = vunpack.c.l.b16 %v1159
    %v3503 = vunpack.c.h.b16 %v1159
    %v3504 = vunpack.c.l.b16 %v1160
    %v3505 = vunpack.c.h.b16 %v1160
    %v3506 = vunpack.c.l.b16 %v1161
    %v3507 = vunpack.c.h.b16 %v1161
    %v3508 = vunpack.c.l.b16 %v1162
    %v3509 = vunpack.c.h.b16 %v1162
    %v3510 = vunpack.c.l.b16 %v1163
    %v3511 = vunpack.c.h.b16 %v1163
    %v3512 = vunpack.c.l.b16 %v1164
    %v3513 = vunpack.c.h.b16 %v1164
    %v3514 = vunpack.c.l.b16 %v1165
    %v3515 = vunpack.c.h.b16 %v1165
    %v3516 = vunpack.c.l.b16 %v1166
    %v3517 = vunpack.c.h.b16 %v1166
    %v3518 = vunpack.c.l.b16 %v1167
    %v3519 = vunpack.c.h.b16 %v1167
    %v3520 = vunpack.c.l.b16 %v1168
    %v3521 = vunpack.c.h.b16 %v1168
    %v3522 = vunpack.c.l.b16 %v1169
    %v3523 = vunpack.c.h.b16 %v1169
    %v3524 = vunpack.c.l.b16 %v1170
    %v3525 = vunpack.c.h.b16 %v1170
    %v3526 = vunpack.c.l.b16 %v1171
    %v3527 = vunpack.c.h.b16 %v1171
    %v3528 = vunpack.c.l.b16 %v1172
    %v3529 = vunpack.c.h.b16 %v1172
    %v3530 = vunpack.c.l.b16 %v1173
    %v3531 = vunpack.c.h.b16 %v1173
    %v3532 = vunpack.c.l.b16 %v1174
    %v3533 = vunpack.c.h.b16 %v1174
    %v3534 = vunpack.c.l.b16 %v1175
    %v3535 = vunpack.c.h.b16 %v1175
    %v3536 = vunpack.c.l.b16 %v1176
    %v3537 = vunpack.c.h.b16 %v1176
    %v3538 = vunpack.c.l.b16 %v1177
    %v3539 = vunpack.c.h.b16 %v1177
    %v3540 = vpack.c.b16 %v1976, %v1972
    %v3541 = vpack.c.b16 %v1977, %v1973
    %v3542 = vpack.c.b16 %v1978, %v1974
    %v3543 = vpack.c.b16 %v1979, %v1975
    %v3544 = vpack.c.b16 %v1984, %v1980
    %v3545 = vpack.c.b16 %v1985, %v1981
    %v3546 = vpack.c.b16 %v1986, %v1982
    %v3547 = vpack.c.b16 %v1987, %v1983
    %v3548 = vpack.c.b16 %v1992, %v1988
    %v3549 = vpack.c.b16 %v1993, %v1989
    %v3550 = vpack.c.b16 %v1994, %v1990
    %v3551 = vpack.c.b16 %v1995, %v1991
    %v3552 = vpack.c.b16 %v2000, %v1996
    %v3553 = vpack.c.b16 %v2001, %v1997
    %v3554 = vpack.c.b16 %v2002, %v1998
    %v3555 = vpack.c.b16 %v2003, %v1999
    %v3556 = vpack.c.b16 %v2008, %v2004
    %v3557 = vpack.c.b16 %v2009, %v2005
    %v3558 = vpack.c.b16 %v2010, %v2006
    %v3559 = vpack.c.b16 %v2011, %v2007
    %v3560 = vpack.c.b16 %v2016, %v2012
    %v3561 = vpack.c.b16 %v2017, %v2013
    %v3562 = vpack.c.b16 %v2018, %v2014
    %v3563 = vpack.c.b16 %v2019, %v2015
    %v3564 = vpack.c.b16 %v2024, %v2020
    %v3565 = vpack.c.b16 %v2025, %v2021
    %v3566 = vpack.c.b16 %v2026, %v2022
    %v3567 = vpack.c.b16 %v2027, %v2023
    %v3568 = vpack.c.b16 %v2032, %v2028
    %v3569 = vpack.c.b16 %v2033, %v2029
    %v3570 = vpack.c.b16 %v2034, %v2030
    %v3571 = vpack.c.b16 %v2035, %v2031
    %v3572 = vpack.c.b16 %v2040, %v2036
    %v3573 = vpack.c.b16 %v2041, %v2037
    %v3574 = vpack.c.b16 %v2042, %v2038
    %v3575 = vpack.c.b16 %v2043, %v2039
    %v3576 = vpack.c.b16 %v2048, %v2044
    %v3577 = vpack.c.b16 %v2049, %v2045
    %v3578 = vpack.c.b16 %v2050, %v2046
    %v3579 = vpack.c.b16 %v2051, %v2047
    %v3580 = vpack.c.b16 %v2056, %v2052
    %v3581 = vpack.c.b16 %v2057, %v2053
    %v3582 = vpack.c.b16 %v2058, %v2054
    %v3583 = vpack.c.b16 %v2059, %v2055
    %v3584 = vpack.c.b16 %v2064, %v2060
    %v3585 = vpack.c.b16 %v2065, %v2061
    %v3586 = vpack.c.b16 %v2066, %v2062
    %v3587 = vpack.c.b16 %v2067, %v2063
    %v3588 = vpack.c.b16 %v2072, %v2068
    %v3589 = vpack.c.b16 %v2073, %v2069
    %v3590 = vpack.c.b16 %v2074, %v2070
    %v3591 = vpack.c.b16 %v2075, %v2071
    %v3592 = vpack.c.b16 %v2080, %v2076
    %v3593 = vpack.c.b16 %v2081, %v2077
    %v3594 = vpack.c.b16 %v2082, %v2078
    %v3595 = vpack.c.b16 %v2083, %v2079
    %v3596 = vpack.c.b16 %v2088, %v2084
    %v3597 = vpack.c.b16 %v2089, %v2085
    %v3598 = vpack.c.b16 %v2090, %v2086
    %v3599 = vpack.c.b16 %v2091, %v2087
    %v3600 = vpack.c.b16 %v2096, %v2092
    %v3601 = vpack.c.b16 %v2097, %v2093
    %v3602 = vpack.c.b16 %v2098, %v2094
    %v3603 = vpack.c.b16 %v2099, %v2095
    %v3604 = vpack.c.b16 %v2104, %v2100
    %v3605 = vpack.c.b16 %v2105, %v2101
    %v3606 = vpack.c.b16 %v2106, %v2102
    %v3607 = vpack.c.b16 %v2107, %v2103
    %v3608 = vpack.c.b16 %v2112, %v2108
    %v3609 = vpack.c.b16 %v2113, %v2109
    %v3610 = vpack.c.b16 %v2114, %v2110
    %v3611 = vpack.c.b16 %v2115, %v2111
    %v3612 = vpack.c.b16 %v2120, %v2116
    %v3613 = vpack.c.b16 %v2121, %v2117
    %v3614 = vpack.c.b16 %v2122, %v2118
    %v3615 = vpack.c.b16 %v2123, %v2119
    %v3616 = vpack.c.b16 %v2128, %v2124
    %v3617 = vpack.c.b16 %v2129, %v2125
    %v3618 = vpack.c.b16 %v2130, %v2126
    %v3619 = vpack.c.b16 %v2131, %v2127
    %v3620 = vpack.c.b16 %v2136, %v2132
    %v3621 = vpack.c.b16 %v2137, %v2133
    %v3622 = vpack.c.b16 %v2138, %v2134
    %v3623 = vpack.c.b16 %v2139, %v2135
    %v3624 = vpack.c.b16 %v2144, %v2140
    %v3625 = vpack.c.b16 %v2145, %v2141
    %v3626 = vpack.c.b16 %v2146, %v2142
    %v3627 = vpack.c.b16 %v2147, %v2143
    %v3628 = vpack.c.b16 %v2152, %v2148
    %v3629 = vpack.c.b16 %v2153, %v2149
    %v3630 = vpack.c.b16 %v2154, %v2150
    %v3631 = vpack.c.b16 %v2155, %v2151
    %v3632 = vpack.c.b16 %v2160, %v2156
    %v3633 = vpack.c.b16 %v2161, %v2157
    %v3634 = vpack.c.b16 %v2162, %v2158
    %v3635 = vpack.c.b16 %v2163, %v2159
    %v3636 = vpack.c.b16 %v2168, %v2164
    %v3637 = vpack.c.b16 %v2169, %v2165
    %v3638 = vpack.c.b16 %v2170, %v2166
    %v3639 = vpack.c.b16 %v2171, %v2167
    %v3640 = vpack.c.b16 %v2176, %v2172
    %v3641 = vpack.c.b16 %v2177, %v2173
    %v3642 = vpack.c.b16 %v2178, %v2174
    %v3643 = vpack.c.b16 %v2179, %v2175
    %v3644 = vpack.c.b16 %v2184, %v2180
    %v3645 = vpack.c.b16 %v2185, %v2181
    %v3646 = vpack.c.b16 %v2186, %v2182
    %v3647 = vpack.c.b16 %v2187, %v2183
    %v3648 = vpack.c.b16 %v2192, %v2188
    %v3649 = vpack.c.b16 %v2193, %v2189
    %v3650 = vpack.c.b16 %v2194, %v2190
    %v3651 = vpack.c.b16 %v2195, %v2191
    %v3652 = vpack.c.b16 %v2200, %v2196
    %v3653 = vpack.c.b16 %v2201, %v2197
    %v3654 = vpack.c.b16 %v2202, %v2198
    %v3655 = vpack.c.b16 %v2203, %v2199
    %v3656 = vpack.c.b16 %v2208, %v2204
    %v3657 = vpack.c.b16 %v2209, %v2205
    %v3658 = vpack.c.b16 %v2210, %v2206
    %v3659 = vpack.c.b16 %v2211, %v2207
    %v3660 = vpack.c.b16 %v2216, %v2212
    %v3661 = vpack.c.b16 %v2217, %v2213
    %v3662 = vpack.c.b16 %v2218, %v2214
    %v3663 = vpack.c.b16 %v2219, %v2215
    %v3664 = vpack.c.b16 %v2224, %v2220
    %v3665 = vpack.c.b16 %v2225, %v2221
    %v3666 = vpack.c.b16 %v2226, %v2222
    %v3667 = vpack.c.b16 %v2227, %v2223
    %v3668 = vpack.c.b16 %v2232, %v2228
    %v3669 = vpack.c.b16 %v2233, %v2229
    %v3670 = vpack.c.b16 %v2234, %v2230
    %v3671 = vpack.c.b16 %v2235, %v2231
    %v3672 = vpack.c.b16 %v2240, %v2236
    %v3673 = vpack.c.b16 %v2241, %v2237
    %v3674 = vpack.c.b16 %v2242, %v2238
    %v3675 = vpack.c.b16 %v2243, %v2239
    %v3676 = vpack.c.b16 %v2248, %v2244
    %v3677 = vpack.c.b16 %v2249, %v2245
    %v3678 = vpack.c.b16 %v2250, %v2246
    %v3679 = vpack.c.b16 %v2251, %v2247
    %v3680 = vpack.c.b16 %v2256, %v2252
    %v3681 = vpack.c.b16 %v2257, %v2253
    %v3682 = vpack.c.b16 %v2258, %v2254
    %v3683 = vpack.c.b16 %v2259, %v2255
    %v3684 = vpack.c.b16 %v2264, %v2260
    %v3685 = vpack.c.b16 %v2265, %v2261
    %v3686 = vpack.c.b16 %v2266, %v2262
    %v3687 = vpack.c.b16 %v2267, %v2263
    %v3688 = vpack.c.b16 %v2272, %v2268
    %v3689 = vpack.c.b16 %v2273, %v2269
    %v3690 = vpack.c.b16 %v2274, %v2270
    %v3691 = vpack.c.b16 %v2275, %v2271
    %v3692 = vpack.c.b16 %v2280, %v2276
    %v3693 = vpack.c.b16 %v2281, %v2277
    %v3694 = vpack.c.b16 %v2282, %v2278
    %v3695 = vpack.c.b16 %v2283, %v2279
    %v3696 = vpack.c.b16 %v2288, %v2284
    %v3697 = vpack.c.b16 %v2289, %v2285
    %v3698 = vpack.c.b16 %v2290, %v2286
    %v3699 = vpack.c.b16 %v2291, %v2287
    %v3700 = vpack.c.b16 %v2296, %v2292
    %v3701 = vpack.c.b16 %v2297, %v2293
    %v3702 = vpack.c.b16 %v2298, %v2294
    %v3703 = vpack.c.b16 %v2299, %v2295
    %v3704 = vpack.c.b16 %v2304, %v2300
    %v3705 = vpack.c.b16 %v2305, %v2301
    %v3706 = vpack.c.b16 %v2306, %v2302
    %v3707 = vpack.c.b16 %v2307, %v2303
    %v3708 = vpack.c.b16 %v2312, %v2308
    %v3709 = vpack.c.b16 %v2313, %v2309
    %v3710 = vpack.c.b16 %v2314, %v2310
    %v3711 = vpack.c.b16 %v2315, %v2311
    %v3712 = vpack.c.b16 %v2320, %v2316
    %v3713 = vpack.c.b16 %v2321, %v2317
    %v3714 = vpack.c.b16 %v2322, %v2318
    %v3715 = vpack.c.b16 %v2323, %v2319
    %v3716 = vpack.c.b16 %v2328, %v2324
    %v3717 = vpack.c.b16 %v2329, %v2325
    %v3718 = vpack.c.b16 %v2330, %v2326
    %v3719 = vpack.c.b16 %v2331, %v2327
    %v3720 = vpack.c.b16 %v2336, %v2332
    %v3721 = vpack.c.b16 %v2337, %v2333
    %v3722 = vpack.c.b16 %v2338, %v2334
    %v3723 = vpack.c.b16 %v2339, %v2335
    %v3724 = vpack.c.b16 %v2344, %v2340
    %v3725 = vpack.c.b16 %v2345, %v2341
    %v3726 = vpack.c.b16 %v2346, %v2342
    %v3727 = vpack.c.b16 %v2347, %v2343
    %v3728 = vpack.c.b16 %v2352, %v2348
    %v3729 = vpack.c.b16 %v2353, %v2349
    %v3730 = vpack.c.b16 %v2354, %v2350
    %v3731 = vpack.c.b16 %v2355, %v2351
    %v3732 = vpack.c.b16 %v2360, %v2356
    %v3733 = vpack.c.b16 %v2361, %v2357
    %v3734 = vpack.c.b16 %v2362, %v2358
    %v3735 = vpack.c.b16 %v2363, %v2359
    %v3736 = vpack.c.b16 %v2368, %v2364
    %v3737 = vpack.c.b16 %v2369, %v2365
    %v3738 = vpack.c.b16 %v2370, %v2366
    %v3739 = vpack.c.b16 %v2371, %v2367
    %v3740 = vpack.c.b16 %v2376, %v2372
    %v3741 = vpack.c.b16 %v2377, %v2373
    %v3742 = vpack.c.b16 %v2378, %v2374
    %v3743 = vpack.c.b16 %v2379, %v2375
    %v3744 = vpack.c.b16 %v2384, %v2380
    %v3745 = vpack.c.b16 %v2385, %v2381
    %v3746 = vpack.c.b16 %v2386, %v2382
    %v3747 = vpack.c.b16 %v2387, %v2383
    %v3748 = vpack.c.b16 %v2392, %v2388
    %v3749 = vpack.c.b16 %v2393, %v2389
    %v3750 = vpack.c.b16 %v2394, %v2390
    %v3751 = vpack.c.b16 %v2395, %v2391
    %v3752 = vpack.c.b16 %v2400, %v2396
    %v3753 = vpack.c.b16 %v2401, %v2397
    %v3754 = vpack.c.b16 %v2402, %v2398
    %v3755 = vpack.c.b16 %v2403, %v2399
    %v3756 = vpack.c.b16 %v2408, %v2404
    %v3757 = vpack.c.b16 %v2409, %v2405
    %v3758 = vpack.c.b16 %v2410, %v2406
    %v3759 = vpack.c.b16 %v2411, %v2407
    %v3760 = vpack.c.b16 %v2416, %v2412
    %v3761 = vpack.c.b16 %v2417, %v2413
    %v3762 = vpack.c.b16 %v2418, %v2414
    %v3763 = vpack.c.b16 %v2419, %v2415
    %v3764 = vpack.c.b16 %v2424, %v2420
    %v3765 = vpack.c.b16 %v2425, %v2421
    %v3766 = vpack.c.b16 %v2426, %v2422
    %v3767 = vpack.c.b16 %v2427, %v2423
    %v3768 = vpack.c.b16 %v2432, %v2428
    %v3769 = vpack.c.b16 %v2433, %v2429
    %v3770 = vpack.c.b16 %v2434, %v2430
    %v3771 = vpack.c.b16 %v2435, %v2431
    %v3772 = vpack.c.b16 %v2440, %v2436
    %v3773 = vpack.c.b16 %v2441, %v2437
    %v3774 = vpack.c.b16 %v2442, %v2438
    %v3775 = vpack.c.b16 %v2443, %v2439
    %v3776 = vpack.c.b16 %v2448, %v2444
    %v3777 = vpack.c.b16 %v2449, %v2445
    %v3778 = vpack.c.b16 %v2450, %v2446
    %v3779 = vpack.c.b16 %v2451, %v2447
    %v3780 = vpack.c.b16 %v2456, %v2452
    %v3781 = vpack.c.b16 %v2457, %v2453
    %v3782 = vpack.c.b16 %v2458, %v2454
    %v3783 = vpack.c.b16 %v2459, %v2455
    %v3784 = vpack.c.b16 %v2464, %v2460
    %v3785 = vpack.c.b16 %v2465, %v2461
    %v3786 = vpack.c.b16 %v2466, %v2462
    %v3787 = vpack.c.b16 %v2467, %v2463
    %v3788 = vpack.c.b16 %v2472, %v2468
    %v3789 = vpack.c.b16 %v2473, %v2469
    %v3790 = vpack.c.b16 %v2474, %v2470
    %v3791 = vpack.c.b16 %v2475, %v2471
    %v3792 = vpack.c.b16 %v2480, %v2476
    %v3793 = vpack.c.b16 %v2481, %v2477
    %v3794 = vpack.c.b16 %v2482, %v2478
    %v3795 = vpack.c.b16 %v2483, %v2479
    %v3796 = vpack.c.b16 %v2488, %v2484
    %v3797 = vpack.c.b16 %v2489, %v2485
    %v3798 = vpack.c.b16 %v2490, %v2486
    %v3799 = vpack.c.b16 %v2491, %v2487
    %v3800 = vpack.c.b16 %v2496, %v2492
    %v3801 = vpack.c.b16 %v2497, %v2493
    %v3802 = vpack.c.b16 %v2498, %v2494
    %v3803 = vpack.c.b16 %v2499, %v2495
    %v3804 = vpack.c.b16 %v2504, %v2500
    %v3805 = vpack.c.b16 %v2505, %v2501
    %v3806 = vpack.c.b16 %v2506, %v2502
    %v3807 = vpack.c.b16 %v2507, %v2503
    %v3808 = vpack.c.b16 %v2512, %v2508
    %v3809 = vpack.c.b16 %v2513, %v2509
    %v3810 = vpack.c.b16 %v2514, %v2510
    %v3811 = vpack.c.b16 %v2515, %v2511
    %v3812 = vpack.c.b16 %v2520, %v2516
    %v3813 = vpack.c.b16 %v2521, %v2517
    %v3814 = vpack.c.b16 %v2522, %v2518
    %v3815 = vpack.c.b16 %v2523, %v2519
    %v3816 = vpack.c.b16 %v2528, %v2524
    %v3817 = vpack.c.b16 %v2529, %v2525
    %v3818 = vpack.c.b16 %v2530, %v2526
    %v3819 = vpack.c.b16 %v2531, %v2527
    %v3820 = vpack.c.b16 %v2536, %v2532
    %v3821 = vpack.c.b16 %v2537, %v2533
    %v3822 = vpack.c.b16 %v2538, %v2534
    %v3823 = vpack.c.b16 %v2539, %v2535
    %v3824 = vpack.c.b16 %v2544, %v2540
    %v3825 = vpack.c.b16 %v2545, %v2541
    %v3826 = vpack.c.b16 %v2546, %v2542
    %v3827 = vpack.c.b16 %v2547, %v2543
    %v3828 = vpack.c.b16 %v2552, %v2548
    %v3829 = vpack.c.b16 %v2553, %v2549
    %v3830 = vpack.c.b16 %v2554, %v2550
    %v3831 = vpack.c.b16 %v2555, %v2551
    %v3832 = vpack.c.b16 %v2560, %v2556
    %v3833 = vpack.c.b16 %v2561, %v2557
    %v3834 = vpack.c.b16 %v2562, %v2558
    %v3835 = vpack.c.b16 %v2563, %v2559
    %v3836 = vpack.c.b16 %v2568, %v2564
    %v3837 = vpack.c.b16 %v2569, %v2565
    %v3838 = vpack.c.b16 %v2570, %v2566
    %v3839 = vpack.c.b16 %v2571, %v2567
    %v3840 = vpack.c.b16 %v2576, %v2572
    %v3841 = vpack.c.b16 %v2577, %v2573
    %v3842 = vpack.c.b16 %v2578, %v2574
    %v3843 = vpack.c.b16 %v2579, %v2575
    %v3844 = vpack.c.b16 %v2584, %v2580
    %v3845 = vpack.c.b16 %v2585, %v2581
    %v3846 = vpack.c.b16 %v2586, %v2582
    %v3847 = vpack.c.b16 %v2587, %v2583
    %v3848 = vpack.c.b16 %v2592, %v2588
    %v3849 = vpack.c.b16 %v2593, %v2589
    %v3850 = vpack.c.b16 %v2594, %v2590
    %v3851 = vpack.c.b16 %v2595, %v2591
    %v3852 = vpack.c.b16 %v2600, %v2596
    %v3853 = vpack.c.b16 %v2601, %v2597
    %v3854 = vpack.c.b16 %v2602, %v2598
    %v3855 = vpack.c.b16 %v2603, %v2599
    %v3856 = vpack.c.b16 %v2608, %v2604
    %v3857 = vpack.c.b16 %v2609, %v2605
    %v3858 = vpack.c.b16 %v2610, %v2606
    %v3859 = vpack.c.b16 %v2611, %v2607
    %v3860 = vpack.c.b16 %v2616, %v2612
    %v3861 = vpack.c.b16 %v2617, %v2613
    %v3862 = vpack.c.b16 %v2618, %v2614
    %v3863 = vpack.c.b16 %v2619, %v2615
    %v3864 = vpack.c.b16 %v2624, %v2620
    %v3865 = vpack.c.b16 %v2625, %v2621
    %v3866 = vpack.c.b16 %v2626, %v2622
    %v3867 = vpack.c.b16 %v2627, %v2623
    %v3868 = vpack.c.b16 %v2632, %v2628
    %v3869 = vpack.c.b16 %v2633, %v2629
    %v3870 = vpack.c.b16 %v2634, %v2630
    %v3871 = vpack.c.b16 %v2635, %v2631
    %v3872 = vpack.c.b16 %v2640, %v2636
    %v3873 = vpack.c.b16 %v2641, %v2637
    %v3874 = vpack.c.b16 %v2642, %v2638
    %v3875 = vpack.c.b16 %v2643, %v2639
    %v3876 = vpack.c.b16 %v2648, %v2644
    %v3877 = vpack.c.b16 %v2649, %v2645
    %v3878 = vpack.c.b16 %v2650, %v2646
    %v3879 = vpack.c.b16 %v2651, %v2647
    %v3880 = vpack.c.b16 %v2656, %v2652
    %v3881 = vpack.c.b16 %v2657, %v2653
    %v3882 = vpack.c.b16 %v2658, %v2654
    %v3883 = vpack.c.b16 %v2659, %v2655
    %v3884 = vpack.c.b16 %v2664, %v2660
    %v3885 = vpack.c.b16 %v2665, %v2661
    %v3886 = vpack.c.b16 %v2666, %v2662
    %v3887 = vpack.c.b16 %v2667, %v2663
    %v3888 = vpack.c.b16 %v2672, %v2668
    %v3889 = vpack.c.b16 %v2673, %v2669
    %v3890 = vpack.c.b16 %v2674, %v2670
    %v3891 = vpack.c.b16 %v2675, %v2671
    %v3892 = vpack.c.b16 %v2680, %v2676
    %v3893 = vpack.c.b16 %v2681, %v2677
    %v3894 = vpack.c.b16 %v2682, %v2678
    %v3895 = vpack.c.b16 %v2683, %v2679
    %v3896 = vpack.c.b16 %v2688, %v2684
    %v3897 = vpack.c.b16 %v2689, %v2685
    %v3898 = vpack.c.b16 %v2690, %v2686
    %v3899 = vpack.c.b16 %v2691, %v2687
    %v3900 = vpack.c.b16 %v2696, %v2692
    %v3901 = vpack.c.b16 %v2697, %v2693
    %v3902 = vpack.c.b16 %v2698, %v2694
    %v3903 = vpack.c.b16 %v2699, %v2695
    %v3904 = vpack.c.b16 %v2704, %v2700
    %v3905 = vpack.c.b16 %v2705, %v2701
    %v3906 = vpack.c.b16 %v2706, %v2702
    %v3907 = vpack.c.b16 %v2707, %v2703
    %v3908 = vpack.c.b16 %v2712, %v2708
    %v3909 = vpack.c.b16 %v2713, %v2709
    %v3910 = vpack.c.b16 %v2714, %v2710
    %v3911 = vpack.c.b16 %v2715, %v2711
    %v3912 = vpack.c.b16 %v2720, %v2716
    %v3913 = vpack.c.b16 %v2721, %v2717
    %v3914 = vpack.c.b16 %v2722, %v2718
    %v3915 = vpack.c.b16 %v2723, %v2719
    %v3916 = vpack.c.b16 %v2728, %v2724
    %v3917 = vpack.c.b16 %v2729, %v2725
    %v3918 = vpack.c.b16 %v2730, %v2726
    %v3919 = vpack.c.b16 %v2731, %v2727
    %v3920 = vpack.c.b16 %v2736, %v2732
    %v3921 = vpack.c.b16 %v2737, %v2733
    %v3922 = vpack.c.b16 %v2738, %v2734
    %v3923 = vpack.c.b16 %v2739, %v2735
    %v3924 = vpack.c.b16 %v2744, %v2740
    %v3925 = vpack.c.b16 %v2745, %v2741
    %v3926 = vpack.c.b16 %v2746, %v2742
    %v3927 = vpack.c.b16 %v2747, %v2743
    %v3928 = vpack.c.b16 %v2752, %v2748
    %v3929 = vpack.c.b16 %v2753, %v2749
    %v3930 = vpack.c.b16 %v2754, %v2750
    %v3931 = vpack.c.b16 %v2755, %v2751
    %v3932 = vpack.c.b16 %v2760, %v2756
    %v3933 = vpack.c.b16 %v2761, %v2757
    %v3934 = vpack.c.b16 %v2762, %v2758
    %v3935 = vpack.c.b16 %v2763, %v2759
    %v3936 = vpack.c.b16 %v2768, %v2764
    %v3937 = vpack.c.b16 %v2769, %v2765
    %v3938 = vpack.c.b16 %v2770, %v2766
    %v3939 = vpack.c.b16 %v2771, %v2767
    %v3940 = vpack.c.b16 %v2776, %v2772
    %v3941 = vpack.c.b16 %v2777, %v2773
    %v3942 = vpack.c.b16 %v2778, %v2774
    %v3943 = vpack.c.b16 %v2779, %v2775
    %v3944 = vpack.c.b16 %v2784, %v2780
    %v3945 = vpack.c.b16 %v2785, %v2781
    %v3946 = vpack.c.b16 %v2786, %v2782
    %v3947 = vpack.c.b16 %v2787, %v2783
    %v3948 = vpack.c.b16 %v2792, %v2788
    %v3949 = vpack.c.b16 %v2793, %v2789
    %v3950 = vpack.c.b16 %v2794, %v2790
    %v3951 = vpack.c.b16 %v2795, %v2791
    %v3952 = vpack.c.b16 %v2800, %v2796
    %v3953 = vpack.c.b16 %v2801, %v2797
    %v3954 = vpack.c.b16 %v2802, %v2798
    %v3955 = vpack.c.b16 %v2803, %v2799
    %v3956 = vpack.c.b16 %v2808, %v2804
    %v3957 = vpack.c.b16 %v2809, %v2805
    %v3958 = vpack.c.b16 %v2810, %v2806
    %v3959 = vpack.c.b16 %v2811, %v2807
    %v3960 = vpack.c.b16 %v2816, %v2812
    %v3961 = vpack.c.b16 %v2817, %v2813
    %v3962 = vpack.c.b16 %v2818, %v2814
    %v3963 = vpack.c.b16 %v2819, %v2815
    %v3964 = vpack.c.b16 %v2824, %v2820
    %v3965 = vpack.c.b16 %v2825, %v2821
    %v3966 = vpack.c.b16 %v2826, %v2822
    %v3967 = vpack.c.b16 %v2827, %v2823
    %v3968 = vpack.c.b16 %v2832, %v2828
    %v3969 = vpack.c.b16 %v2833, %v2829
    %v3970 = vpack.c.b16 %v2834, %v2830
    %v3971 = vpack.c.b16 %v2835, %v2831
    %v3972 = vpack.c.b16 %v2840, %v2836
    %v3973 = vpack.c.b16 %v2841, %v2837
    %v3974 = vpack.c.b16 %v2842, %v2838
    %v3975 = vpack.c.b16 %v2843, %v2839
    %v3976 = vpack.c.b16 %v2848, %v2844
    %v3977 = vpack.c.b16 %v2849, %v2845
    %v3978 = vpack.c.b16 %v2850, %v2846
    %v3979 = vpack.c.b16 %v2851, %v2847
    %v3980 = vpack.c.b16 %v2856, %v2852
    %v3981 = vpack.c.b16 %v2857, %v2853
    %v3982 = vpack.c.b16 %v2858, %v2854
    %v3983 = vpack.c.b16 %v2859, %v2855
    %v3984 = vpack.c.b16 %v2864, %v2860
    %v3985 = vpack.c.b16 %v2865, %v2861
    %v3986 = vpack.c.b16 %v2866, %v2862
    %v3987 = vpack.c.b16 %v2867, %v2863
    %v3988 = vpack.c.b16 %v2872, %v2868
    %v3989 = vpack.c.b16 %v2873, %v2869
    %v3990 = vpack.c.b16 %v2874, %v2870
    %v3991 = vpack.c.b16 %v2875, %v2871
    %v3992 = vpack.c.b16 %v2880, %v2876
    %v3993 = vpack.c.b16 %v2881, %v2877
    %v3994 = vpack.c.b16 %v2882, %v2878
    %v3995 = vpack.c.b16 %v2883, %v2879
    %v3996 = vpack.c.b16 %v2888, %v2884
    %v3997 = vpack.c.b16 %v2889, %v2885
    %v3998 = vpack.c.b16 %v2890, %v2886
    %v3999 = vpack.c.b16 %v2891, %v2887
    %v4000 = vpack.c.b16 %v2896, %v2892
    %v4001 = vpack.c.b16 %v2897, %v2893
    %v4002 = vpack.c.b16 %v2898, %v2894
    %v4003 = vpack.c.b16 %v2899, %v2895
    %v4004 = vpack.c.b16 %v2904, %v2900
    %v4005 = vpack.c.b16 %v2905, %v2901
    %v4006 = vpack.c.b16 %v2906, %v2902
    %v4007 = vpack.c.b16 %v2907, %v2903
    %v4008 = vpack.c.b16 %v2912, %v2908
    %v4009 = vpack.c.b16 %v2913, %v2909
    %v4010 = vpack.c.b16 %v2914, %v2910
    %v4011 = vpack.c.b16 %v2915, %v2911
    %v4012 = vpack.c.b16 %v2920, %v2916
    %v4013 = vpack.c.b16 %v2921, %v2917
    %v4014 = vpack.c.b16 %v2922, %v2918
    %v4015 = vpack.c.b16 %v2923, %v2919
    %v4016 = vpack.c.b16 %v2928, %v2924
    %v4017 = vpack.c.b16 %v2929, %v2925
    %v4018 = vpack.c.b16 %v2930, %v2926
    %v4019 = vpack.c.b16 %v2931, %v2927
    %v4020 = vpack.c.b16 %v2936, %v2932
    %v4021 = vpack.c.b16 %v2937, %v2933
    %v4022 = vpack.c.b16 %v2938, %v2934
    %v4023 = vpack.c.b16 %v2939, %v2935
    %v4024 = vpack.c.b16 %v2944, %v2940
    %v4025 = vpack.c.b16 %v2945, %v2941
    %v4026 = vpack.c.b16 %v2946, %v2942
    %v4027 = vpack.c.b16 %v2947, %v2943
    %v4028 = vpack.c.b16 %v2952, %v2948
    %v4029 = vpack.c.b16 %v2953, %v2949
    %v4030 = vpack.c.b16 %v2954, %v2950
    %v4031 = vpack.c.b16 %v2955, %v2951
    %v4032 = vpack.c.b16 %v2960, %v2956
    %v4033 = vpack.c.b16 %v2961, %v2957
    %v4034 = vpack.c.b16 %v2962, %v2958
    %v4035 = vpack.c.b16 %v2963, %v2959
    %v4036 = vpack.c.b16 %v2968, %v2964
    %v4037 = vpack.c.b16 %v2969, %v2965
    %v4038 = vpack.c.b16 %v2970, %v2966
    %v4039 = vpack.c.b16 %v2971, %v2967
    %v4040 = vpack.c.b16 %v2976, %v2972
    %v4041 = vpack.c.b16 %v2977, %v2973
    %v4042 = vpack.c.b16 %v2978, %v2974
    %v4043 = vpack.c.b16 %v2979, %v2975
    %v4044 = vpack.c.b16 %v2984, %v2980
    %v4045 = vpack.c.b16 %v2985, %v2981
    %v4046 = vpack.c.b16 %v2986, %v2982
    %v4047 = vpack.c.b16 %v2987, %v2983
    %v4048 = vpack.c.b16 %v2992, %v2988
    %v4049 = vpack.c.b16 %v2993, %v2989
    %v4050 = vpack.c.b16 %v2994, %v2990
    %v4051 = vpack.c.b16 %v2995, %v2991
    %v4052 = vpack.c.b16 %v3000, %v2996
    %v4053 = vpack.c.b16 %v3001, %v2997
    %v4054 = vpack.c.b16 %v3002, %v2998
    %v4055 = vpack.c.b16 %v3003, %v2999
    %v4056 = vpack.c.b16 %v3008, %v3004
    %v4057 = vpack.c.b16 %v3009, %v3005
    %v4058 = vpack.c.b16 %v3010, %v3006
    %v4059 = vpack.c.b16 %v3011, %v3007
    %v4060 = vpack.c.b16 %v3016, %v3012
    %v4061 = vpack.c.b16 %v3017, %v3013
    %v4062 = vpack.c.b16 %v3018, %v3014
    %v4063 = vpack.c.b16 %v3019, %v3015
    %v4064 = vpack.c.b16 %v3024, %v3020
    %v4065 = vpack.c.b16 %v3025, %v3021
    %v4066 = vpack.c.b16 %v3026, %v3022
    %v4067 = vpack.c.b16 %v3027, %v3023
    %v4068 = vpack.c.b16 %v3032, %v3028
    %v4069 = vpack.c.b16 %v3033, %v3029
    %v4070 = vpack.c.b16 %v3034, %v3030
    %v4071 = vpack.c.b16 %v3035, %v3031
    %v4072 = vpack.c.b16 %v3040, %v3036
    %v4073 = vpack.c.b16 %v3041, %v3037
    %v4074 = vpack.c.b16 %v3042, %v3038
    %v4075 = vpack.c.b16 %v3043, %v3039
    %v4076 = vpack.c.b16 %v3048, %v3044
    %v4077 = vpack.c.b16 %v3049, %v3045
    %v4078 = vpack.c.b16 %v3050, %v3046
    %v4079 = vpack.c.b16 %v3051, %v3047
    %v4080 = vpack.c.b16 %v3056, %v3052
    %v4081 = vpack.c.b16 %v3057, %v3053
    %v4082 = vpack.c.b16 %v3058, %v3054
    %v4083 = vpack.c.b16 %v3059, %v3055
    %v4084 = vpack.c.b16 %v3064, %v3060
    %v4085 = vpack.c.b16 %v3065, %v3061
    %v4086 = vpack.c.b16 %v3066, %v3062
    %v4087 = vpack.c.b16 %v3067, %v3063
    %v4088 = vpack.c.b16 %v3072, %v3068
    %v4089 = vpack.c.b16 %v3073, %v3069
    %v4090 = vpack.c.b16 %v3074, %v3070
    %v4091 = vpack.c.b16 %v3075, %v3071
    %v4092 = vpack.c.b16 %v3080, %v3076
    %v4093 = vpack.c.b16 %v3081, %v3077
    %v4094 = vpack.c.b16 %v3082, %v3078
    %v4095 = vpack.c.b16 %v3083, %v3079
    %v4096 = vpack.c.b16 %v3088, %v3084
    %v4097 = vpack.c.b16 %v3089, %v3085
    %v4098 = vpack.c.b16 %v3090, %v3086
    %v4099 = vpack.c.b16 %v3091, %v3087
    %v4100 = vpack.c.b16 %v3096, %v3092
    %v4101 = vpack.c.b16 %v3097, %v3093
    %v4102 = vpack.c.b16 %v3098, %v3094
    %v4103 = vpack.c.b16 %v3099, %v3095
    %v4104 = vpack.c.b16 %v3104, %v3100
    %v4105 = vpack.c.b16 %v3105, %v3101
    %v4106 = vpack.c.b16 %v3106, %v3102
    %v4107 = vpack.c.b16 %v3107, %v3103
    %v4108 = vpack.c.b16 %v3112, %v3108
    %v4109 = vpack.c.b16 %v3113, %v3109
    %v4110 = vpack.c.b16 %v3114, %v3110
    %v4111 = vpack.c.b16 %v3115, %v3111
    %v4112 = vpack.c.b16 %v3120, %v3116
    %v4113 = vpack.c.b16 %v3121, %v3117
    %v4114 = vpack.c.b16 %v3122, %v3118
    %v4115 = vpack.c.b16 %v3123, %v3119
    %v4116 = vpack.c.b16 %v3128, %v3124
    %v4117 = vpack.c.b16 %v3129, %v3125
    %v4118 = vpack.c.b16 %v3130, %v3126
    %v4119 = vpack.c.b16 %v3131, %v3127
    %v4120 = vpack.c.b16 %v3136, %v3132
    %v4121 = vpack.c.b16 %v3137, %v3133
    %v4122 = vpack.c.b16 %v3138, %v3134
    %v4123 = vpack.c.b16 %v3139, %v3135
    %v4124 = vpack.c.b16 %v3144, %v3140
    %v4125 = vpack.c.b16 %v3145, %v3141
    %v4126 = vpack.c.b16 %v3146, %v3142
    %v4127 = vpack.c.b16 %v3147, %v3143
    %v4128 = vpack.c.b16 %v3152, %v3148
    %v4129 = vpack.c.b16 %v3153, %v3149
    %v4130 = vpack.c.b16 %v3154, %v3150
    %v4131 = vpack.c.b16 %v3155, %v3151
    %v4132 = vpack.c.b16 %v3160, %v3156
    %v4133 = vpack.c.b16 %v3161, %v3157
    %v4134 = vpack.c.b16 %v3162, %v3158
    %v4135 = vpack.c.b16 %v3163, %v3159
    %v4136 = vpack.c.b16 %v3168, %v3164
    %v4137 = vpack.c.b16 %v3169, %v3165
    %v4138 = vpack.c.b16 %v3170, %v3166
    %v4139 = vpack.c.b16 %v3171, %v3167
    %v4140 = vpack.c.b16 %v3176, %v3172
    %v4141 = vpack.c.b16 %v3177, %v3173
    %v4142 = vpack.c.b16 %v3178, %v3174
    %v4143 = vpack.c.b16 %v3179, %v3175
    %v4144 = vpack.c.b16 %v3184, %v3180
    %v4145 = vpack.c.b16 %v3185, %v3181
    %v4146 = vpack.c.b16 %v3186, %v3182
    %v4147 = vpack.c.b16 %v3187, %v3183
    %v4148 = vpack.c.b16 %v3192, %v3188
    %v4149 = vpack.c.b16 %v3193, %v3189
    %v4150 = vpack.c.b16 %v3194, %v3190
    %v4151 = vpack.c.b16 %v3195, %v3191
    %v4152 = vpack.c.b16 %v3200, %v3196
    %v4153 = vpack.c.b16 %v3201, %v3197
    %v4154 = vpack.c.b16 %v3202, %v3198
    %v4155 = vpack.c.b16 %v3203, %v3199
    %v4156 = vpack.c.b16 %v3208, %v3204
    %v4157 = vpack.c.b16 %v3209, %v3205
    %v4158 = vpack.c.b16 %v3210, %v3206
    %v4159 = vpack.c.b16 %v3211, %v3207
    %v4160 = vpack.c.b16 %v3216, %v3212
    %v4161 = vpack.c.b16 %v3217, %v3213
    %v4162 = vpack.c.b16 %v3218, %v3214
    %v4163 = vpack.c.b16 %v3219, %v3215
    %v4164 = vpack.c.b16 %v3224, %v3220
    %v4165 = vpack.c.b16 %v3225, %v3221
    %v4166 = vpack.c.b16 %v3226, %v3222
    %v4167 = vpack.c.b16 %v3227, %v3223
    %v4168 = vpack.c.b16 %v3232, %v3228
    %v4169 = vpack.c.b16 %v3233, %v3229
    %v4170 = vpack.c.b16 %v3234, %v3230
    %v4171 = vpack.c.b16 %v3235, %v3231
    %v4172 = vpack.c.b16 %v3240, %v3236
    %v4173 = vpack.c.b16 %v3241, %v3237
    %v4174 = vpack.c.b16 %v3242, %v3238
    %v4175 = vpack.c.b16 %v3243, %v3239
    %v4176 = vpack.c.b16 %v3248, %v3244
    %v4177 = vpack.c.b16 %v3249, %v3245
    %v4178 = vpack.c.b16 %v3250, %v3246
    %v4179 = vpack.c.b16 %v3251, %v3247
    %v4180 = vpack.c.b16 %v3256, %v3252
    %v4181 = vpack.c.b16 %v3257, %v3253
    %v4182 = vpack.c.b16 %v3258, %v3254
    %v4183 = vpack.c.b16 %v3259, %v3255
    %v4184 = vpack.c.b16 %v3264, %v3260
    %v4185 = vpack.c.b16 %v3265, %v3261
    %v4186 = vpack.c.b16 %v3266, %v3262
    %v4187 = vpack.c.b16 %v3267, %v3263
    %v4188 = vpack.c.b16 %v3272, %v3268
    %v4189 = vpack.c.b16 %v3273, %v3269
    %v4190 = vpack.c.b16 %v3274, %v3270
    %v4191 = vpack.c.b16 %v3275, %v3271
    %v4192 = vpack.c.b16 %v3280, %v3276
    %v4193 = vpack.c.b16 %v3281, %v3277
    %v4194 = vpack.c.b16 %v3282, %v3278
    %v4195 = vpack.c.b16 %v3283, %v3279
    %v4196 = vpack.c.b16 %v3288, %v3284
    %v4197 = vpack.c.b16 %v3289, %v3285
    %v4198 = vpack.c.b16 %v3290, %v3286
    %v4199 = vpack.c.b16 %v3291, %v3287
    %v4200 = vpack.c.b16 %v3296, %v3292
    %v4201 = vpack.c.b16 %v3297, %v3293
    %v4202 = vpack.c.b16 %v3298, %v3294
    %v4203 = vpack.c.b16 %v3299, %v3295
    %v4204 = vpack.c.b16 %v3304, %v3300
    %v4205 = vpack.c.b16 %v3305, %v3301
    %v4206 = vpack.c.b16 %v3306, %v3302
    %v4207 = vpack.c.b16 %v3307, %v3303
    %v4208 = vpack.c.b16 %v3312, %v3308
    %v4209 = vpack.c.b16 %v3313, %v3309
    %v4210 = vpack.c.b16 %v3314, %v3310
    %v4211 = vpack.c.b16 %v3315, %v3311
    %v4212 = vpack.c.b16 %v3320, %v3316
    %v4213 = vpack.c.b16 %v3321, %v3317
    %v4214 = vpack.c.b16 %v3322, %v3318
    %v4215 = vpack.c.b16 %v3323, %v3319
    %v4216 = vpack.c.b16 %v3328, %v3324
    %v4217 = vpack.c.b16 %v3329, %v3325
    %v4218 = vpack.c.b16 %v3330, %v3326
    %v4219 = vpack.c.b16 %v3331, %v3327
    %v4220 = vpack.c.b16 %v3336, %v3332
    %v4221 = vpack.c.b16 %v3337, %v3333
    %v4222 = vpack.c.b16 %v3338, %v3334
    %v4223 = vpack.c.b16 %v3339, %v3335
    %v4224 = vpack.c.b16 %v3344, %v3340
    %v4225 = vpack.c.b16 %v3345, %v3341
    %v4226 = vpack.c.b16 %v3346, %v3342
    %v4227 = vpack.c.b16 %v3347, %v3343
    %v4228 = vpack.c.b16 %v3352, %v3348
    %v4229 = vpack.c.b16 %v3353, %v3349
    %v4230 = vpack.c.b16 %v3354, %v3350
    %v4231 = vpack.c.b16 %v3355, %v3351
    %v4232 = vpack.c.b16 %v3360, %v3356
    %v4233 = vpack.c.b16 %v3361, %v3357
    %v4234 = vpack.c.b16 %v3362, %v3358
    %v4235 = vpack.c.b16 %v3363, %v3359
    %v4236 = vpack.c.b16 %v3368, %v3364
    %v4237 = vpack.c.b16 %v3369, %v3365
    %v4238 = vpack.c.b16 %v3370, %v3366
    %v4239 = vpack.c.b16 %v3371, %v3367
    %v4240 = vpack.c.b16 %v3376, %v3372
    %v4241 = vpack.c.b16 %v3377, %v3373
    %v4242 = vpack.c.b16 %v3378, %v3374
    %v4243 = vpack.c.b16 %v3379, %v3375
    %v4244 = vpack.c.b16 %v3384, %v3380
    %v4245 = vpack.c.b16 %v3385, %v3381
    %v4246 = vpack.c.b16 %v3386, %v3382
    %v4247 = vpack.c.b16 %v3387, %v3383
    %v4248 = vpack.c.b16 %v3392, %v3388
    %v4249 = vpack.c.b16 %v3393, %v3389
    %v4250 = vpack.c.b16 %v3394, %v3390
    %v4251 = vpack.c.b16 %v3395, %v3391
    %v4252 = vpack.c.b16 %v3400, %v3396
    %v4253 = vpack.c.b16 %v3401, %v3397
    %v4254 = vpack.c.b16 %v3402, %v3398
    %v4255 = vpack.c.b16 %v3403, %v3399
    %v4256 = vpack.c.b16 %v3408, %v3404
    %v4257 = vpack.c.b16 %v3409, %v3405
    %v4258 = vpack.c.b16 %v3410, %v3406
    %v4259 = vpack.c.b16 %v3411, %v3407
    %v4260 = vpack.c.b16 %v3416, %v3412
    %v4261 = vpack.c.b16 %v3417, %v3413
    %v4262 = vpack.c.b16 %v3418, %v3414
    %v4263 = vpack.c.b16 %v3419, %v3415
    %v4264 = vpack.c.b16 %v3424, %v3420
    %v4265 = vpack.c.b16 %v3425, %v3421
    %v4266 = vpack.c.b16 %v3426, %v3422
    %v4267 = vpack.c.b16 %v3427, %v3423
    %v4268 = vpack.c.b16 %v3432, %v3428
    %v4269 = vpack.c.b16 %v3433, %v3429
    %v4270 = vpack.c.b16 %v3434, %v3430
    %v4271 = vpack.c.b16 %v3435, %v3431
    %v4272 = vpack.c.b16 %v3440, %v3436
    %v4273 = vpack.c.b16 %v3441, %v3437
    %v4274 = vpack.c.b16 %v3442, %v3438
    %v4275 = vpack.c.b16 %v3443, %v3439
    %v4276 = vpack.c.b16 %v3448, %v3444
    %v4277 = vpack.c.b16 %v3449, %v3445
    %v4278 = vpack.c.b16 %v3450, %v3446
    %v4279 = vpack.c.b16 %v3451, %v3447
    %v4280 = vpack.c.b16 %v3456, %v3452
    %v4281 = vpack.c.b16 %v3457, %v3453
    %v4282 = vpack.c.b16 %v3458, %v3454
    %v4283 = vpack.c.b16 %v3459, %v3455
    %v4284 = vpack.c.b16 %v3464, %v3460
    %v4285 = vpack.c.b16 %v3465, %v3461
    %v4286 = vpack.c.b16 %v3466, %v3462
    %v4287 = vpack.c.b16 %v3467, %v3463
    %v4288 = vpack.c.b16 %v3472, %v3468
    %v4289 = vpack.c.b16 %v3473, %v3469
    %v4290 = vpack.c.b16 %v3474, %v3470
    %v4291 = vpack.c.b16 %v3475, %v3471
    %v4292 = vpack.c.b16 %v3480, %v3476
    %v4293 = vpack.c.b16 %v3481, %v3477
    %v4294 = vpack.c.b16 %v3482, %v3478
    %v4295 = vpack.c.b16 %v3483, %v3479
    %v4296 = vpack.c.b16 %v3488, %v3484
    %v4297 = vpack.c.b16 %v3489, %v3485
    %v4298 = vpack.c.b16 %v3490, %v3486
    %v4299 = vpack.c.b16 %v3491, %v3487
    %v4300 = vpack.c.b16 %v3496, %v3492
    %v4301 = vpack.c.b16 %v3497, %v3493
    %v4302 = vpack.c.b16 %v3498, %v3494
    %v4303 = vpack.c.b16 %v3499, %v3495
    %v4304 = vpack.c.b16 %v3504, %v3500
    %v4305 = vpack.c.b16 %v3505, %v3501
    %v4306 = vpack.c.b16 %v3506, %v3502
    %v4307 = vpack.c.b16 %v3507, %v3503
    %v4308 = vpack.c.b16 %v3512, %v3508
    %v4309 = vpack.c.b16 %v3513, %v3509
    %v4310 = vpack.c.b16 %v3514, %v3510
    %v4311 = vpack.c.b16 %v3515, %v3511
    %v4312 = vpack.c.b16 %v3520, %v3516
    %v4313 = vpack.c.b16 %v3521, %v3517
    %v4314 = vpack.c.b16 %v3522, %v3518
    %v4315 = vpack.c.b16 %v3523, %v3519
    %v4316 = vpack.c.b16 %v3528, %v3524
    %v4317 = vpack.c.b16 %v3529, %v3525
    %v4318 = vpack.c.b16 %v3530, %v3526
    %v4319 = vpack.c.b16 %v3531, %v3527
    %v4320 = vpack.c.b16 %v3536, %v3532
    %v4321 = vpack.c.b16 %v3537, %v3533
    %v4322 = vpack.c.b16 %v3538, %v3534
    %v4323 = vpack.c.b16 %v3539, %v3535
    %vm5108 = vcmask 523264
    %v5110 = vsel %vm5108, %v393, 0
    %5112 = vmatpush.bf16.msra.mxu0 %v3568
    %5113 = vmatpush.bf16.msra.mxu0 %v3564
    %5114 = vmatpush.bf16.msra.mxu0 %v3560
    %5115 = vmatpush.bf16.msra.mxu0 %v3556
    %5116 = vmatpush.bf16.msra.mxu0 %v3552
    %5117 = vmatpush.bf16.msra.mxu0 %v3548
    %5118 = vmatpush.bf16.msra.mxu0 %v3544
    %5119 = vmatpush.bf16.msra.mxu0 %v3540
    %5120 = vmatmul.bf16.gmra.mxu0 %v369
    %v5121 = vpop.f32.mrf.mxu0
    %v5122 = vadd.f32 %v1180, %v5121
    %v5123 = vpop.f32.mrf.mxu0
    %5124 = vdwg.mxu0
    %5125 = vmatpush.bf16.msra.mxu0 %v3600
    %5126 = vmatpush.bf16.msra.mxu0 %v3596
    %5127 = vmatpush.bf16.msra.mxu0 %v3592
    %5128 = vmatpush.bf16.msra.mxu0 %v3588
    %5129 = vmatpush.bf16.msra.mxu0 %v3584
    %5130 = vmatpush.bf16.msra.mxu0 %v3580
    %5131 = vmatpush.bf16.msra.mxu0 %v3576
    %5132 = vmatpush.bf16.msra.mxu0 %v3572
    %5133 = vmatmul.bf16.gmra.mxu0 %v370
    %v5134 = vpop.f32.mrf.mxu0
    %v5135 = vadd.f32 %v5122, %v5134
    %v5136 = vpop.f32.mrf.mxu0
    %5137 = vdwg.mxu0
    %5138 = vmatpush.bf16.msra.mxu0 %v3632
    %5139 = vmatpush.bf16.msra.mxu0 %v3628
    %5140 = vmatpush.bf16.msra.mxu0 %v3624
    %5141 = vmatpush.bf16.msra.mxu0 %v3620
    %5142 = vmatpush.bf16.msra.mxu0 %v3616
    %5143 = vmatpush.bf16.msra.mxu0 %v3612
    %5144 = vmatpush.bf16.msra.mxu0 %v3608
    %5145 = vmatpush.bf16.msra.mxu0 %v3604
    %5146 = vmatmul.bf16.gmra.mxu0 %v371
    %v5147 = vpop.f32.mrf.mxu0
    %v5148 = vadd.f32 %v5135, %v5147
    %v5149 = vpop.f32.mrf.mxu0
    %5150 = vdwg.mxu0
    %5151 = vmatpush.bf16.msra.mxu0 %v3664
    %5152 = vmatpush.bf16.msra.mxu0 %v3660
    %5153 = vmatpush.bf16.msra.mxu0 %v3656
    %5154 = vmatpush.bf16.msra.mxu0 %v3652
    %5155 = vmatpush.bf16.msra.mxu0 %v3648
    %5156 = vmatpush.bf16.msra.mxu0 %v3644
    %5157 = vmatpush.bf16.msra.mxu0 %v3640
    %5158 = vmatpush.bf16.msra.mxu0 %v3636
    %5159 = vmatmul.bf16.gmra.mxu0 %v372
    %v5160 = vpop.f32.mrf.mxu0
    %v5161 = vadd.f32 %v5148, %v5160
    %v5162 = vpop.f32.mrf.mxu0
    %5163 = vdwg.mxu0
    %5164 = vmatpush.bf16.msra.mxu0 %v3696
    %5165 = vmatpush.bf16.msra.mxu0 %v3692
    %5166 = vmatpush.bf16.msra.mxu0 %v3688
    %5167 = vmatpush.bf16.msra.mxu0 %v3684
    %5168 = vmatpush.bf16.msra.mxu0 %v3680
    %5169 = vmatpush.bf16.msra.mxu0 %v3676
    %5170 = vmatpush.bf16.msra.mxu0 %v3672
    %5171 = vmatpush.bf16.msra.mxu0 %v3668
    %5172 = vmatmul.bf16.gmra.mxu0 %v373
    %v5173 = vpop.f32.mrf.mxu0
    %v5174 = vadd.f32 %v5161, %v5173
    %v5175 = vpop.f32.mrf.mxu0
    %5176 = vdwg.mxu0
    %5177 = vmatpush.bf16.msra.mxu0 %v3728
    %5178 = vmatpush.bf16.msra.mxu0 %v3724
    %5179 = vmatpush.bf16.msra.mxu0 %v3720
    %5180 = vmatpush.bf16.msra.mxu0 %v3716
    %5181 = vmatpush.bf16.msra.mxu0 %v3712
    %5182 = vmatpush.bf16.msra.mxu0 %v3708
    %5183 = vmatpush.bf16.msra.mxu0 %v3704
    %5184 = vmatpush.bf16.msra.mxu0 %v3700
    %5185 = vmatmul.bf16.gmra.mxu0 %v374
    %v5186 = vpop.f32.mrf.mxu0
    %v5187 = vadd.f32 %v5174, %v5186
    %v5188 = vpop.f32.mrf.mxu0
    %5189 = vdwg.mxu0
    %5190 = vmatpush.bf16.msra.mxu0 %v3760
    %5191 = vmatpush.bf16.msra.mxu0 %v3756
    %5192 = vmatpush.bf16.msra.mxu0 %v3752
    %5193 = vmatpush.bf16.msra.mxu0 %v3748
    %5194 = vmatpush.bf16.msra.mxu0 %v3744
    %5195 = vmatpush.bf16.msra.mxu0 %v3740
    %5196 = vmatpush.bf16.msra.mxu0 %v3736
    %5197 = vmatpush.bf16.msra.mxu0 %v3732
    %5198 = vmatmul.bf16.gmra.mxu0 %v375
    %v5199 = vpop.f32.mrf.mxu0
    %v5200 = vadd.f32 %v5187, %v5199
    %v5201 = vpop.f32.mrf.mxu0
    %5202 = vdwg.mxu0
    %5203 = vmatpush.bf16.msra.mxu0 %v3792
    %5204 = vmatpush.bf16.msra.mxu0 %v3788
    %5205 = vmatpush.bf16.msra.mxu0 %v3784
    %5206 = vmatpush.bf16.msra.mxu0 %v3780
    %5207 = vmatpush.bf16.msra.mxu0 %v3776
    %5208 = vmatpush.bf16.msra.mxu0 %v3772
    %5209 = vmatpush.bf16.msra.mxu0 %v3768
    %5210 = vmatpush.bf16.msra.mxu0 %v3764
    %5211 = vmatmul.bf16.gmra.mxu0 %v376
    %v5212 = vpop.f32.mrf.mxu0
    %v5213 = vadd.f32 %v5200, %v5212
    %v5214 = vpop.f32.mrf.mxu0
    %5215 = vdwg.mxu0
    %5216 = vmatpush.bf16.msra.mxu0 %v3824
    %5217 = vmatpush.bf16.msra.mxu0 %v3820
    %5218 = vmatpush.bf16.msra.mxu0 %v3816
    %5219 = vmatpush.bf16.msra.mxu0 %v3812
    %5220 = vmatpush.bf16.msra.mxu0 %v3808
    %5221 = vmatpush.bf16.msra.mxu0 %v3804
    %5222 = vmatpush.bf16.msra.mxu0 %v3800
    %5223 = vmatpush.bf16.msra.mxu0 %v3796
    %5224 = vmatmul.bf16.gmra.mxu0 %v377
    %v5225 = vpop.f32.mrf.mxu0
    %v5226 = vadd.f32 %v5213, %v5225
    %v5227 = vpop.f32.mrf.mxu0
    %5228 = vdwg.mxu0
    %5229 = vmatpush.bf16.msra.mxu0 %v3856
    %5230 = vmatpush.bf16.msra.mxu0 %v3852
    %5231 = vmatpush.bf16.msra.mxu0 %v3848
    %5232 = vmatpush.bf16.msra.mxu0 %v3844
    %5233 = vmatpush.bf16.msra.mxu0 %v3840
    %5234 = vmatpush.bf16.msra.mxu0 %v3836
    %5235 = vmatpush.bf16.msra.mxu0 %v3832
    %5236 = vmatpush.bf16.msra.mxu0 %v3828
    %5237 = vmatmul.bf16.gmra.mxu0 %v378
    %v5238 = vpop.f32.mrf.mxu0
    %v5239 = vadd.f32 %v5226, %v5238
    %v5240 = vpop.f32.mrf.mxu0
    %5241 = vdwg.mxu0
    %5242 = vmatpush.bf16.msra.mxu0 %v3888
    %5243 = vmatpush.bf16.msra.mxu0 %v3884
    %5244 = vmatpush.bf16.msra.mxu0 %v3880
    %5245 = vmatpush.bf16.msra.mxu0 %v3876
    %5246 = vmatpush.bf16.msra.mxu0 %v3872
    %5247 = vmatpush.bf16.msra.mxu0 %v3868
    %5248 = vmatpush.bf16.msra.mxu0 %v3864
    %5249 = vmatpush.bf16.msra.mxu0 %v3860
    %5250 = vmatmul.bf16.gmra.mxu0 %v379
    %v5251 = vpop.f32.mrf.mxu0
    %v5252 = vadd.f32 %v5239, %v5251
    %v5253 = vpop.f32.mrf.mxu0
    %5254 = vdwg.mxu0
    %5255 = vmatpush.bf16.msra.mxu0 %v3920
    %5256 = vmatpush.bf16.msra.mxu0 %v3916
    %5257 = vmatpush.bf16.msra.mxu0 %v3912
    %5258 = vmatpush.bf16.msra.mxu0 %v3908
    %5259 = vmatpush.bf16.msra.mxu0 %v3904
    %5260 = vmatpush.bf16.msra.mxu0 %v3900
    %5261 = vmatpush.bf16.msra.mxu0 %v3896
    %5262 = vmatpush.bf16.msra.mxu0 %v3892
    %5263 = vmatmul.bf16.gmra.mxu0 %v380
    %v5264 = vpop.f32.mrf.mxu0
    %v5265 = vadd.f32 %v5252, %v5264
    %v5266 = vpop.f32.mrf.mxu0
    %5267 = vdwg.mxu0
    %5268 = vmatpush.bf16.msra.mxu0 %v3952
    %5269 = vmatpush.bf16.msra.mxu0 %v3948
    %5270 = vmatpush.bf16.msra.mxu0 %v3944
    %5271 = vmatpush.bf16.msra.mxu0 %v3940
    %5272 = vmatpush.bf16.msra.mxu0 %v3936
    %5273 = vmatpush.bf16.msra.mxu0 %v3932
    %5274 = vmatpush.bf16.msra.mxu0 %v3928
    %5275 = vmatpush.bf16.msra.mxu0 %v3924
    %5276 = vmatmul.bf16.gmra.mxu0 %v381
    %v5277 = vpop.f32.mrf.mxu0
    %v5278 = vadd.f32 %v5265, %v5277
    %v5279 = vpop.f32.mrf.mxu0
    %5280 = vdwg.mxu0
    %5281 = vmatpush.bf16.msra.mxu0 %v3984
    %5282 = vmatpush.bf16.msra.mxu0 %v3980
    %5283 = vmatpush.bf16.msra.mxu0 %v3976
    %5284 = vmatpush.bf16.msra.mxu0 %v3972
    %5285 = vmatpush.bf16.msra.mxu0 %v3968
    %5286 = vmatpush.bf16.msra.mxu0 %v3964
    %5287 = vmatpush.bf16.msra.mxu0 %v3960
    %5288 = vmatpush.bf16.msra.mxu0 %v3956
    %5289 = vmatmul.bf16.gmra.mxu0 %v382
    %v5290 = vpop.f32.mrf.mxu0
    %v5291 = vadd.f32 %v5278, %v5290
    %v5292 = vpop.f32.mrf.mxu0
    %5293 = vdwg.mxu0
    %5294 = vmatpush.bf16.msra.mxu0 %v4016
    %5295 = vmatpush.bf16.msra.mxu0 %v4012
    %5296 = vmatpush.bf16.msra.mxu0 %v4008
    %5297 = vmatpush.bf16.msra.mxu0 %v4004
    %5298 = vmatpush.bf16.msra.mxu0 %v4000
    %5299 = vmatpush.bf16.msra.mxu0 %v3996
    %5300 = vmatpush.bf16.msra.mxu0 %v3992
    %5301 = vmatpush.bf16.msra.mxu0 %v3988
    %5302 = vmatmul.bf16.gmra.mxu0 %v383
    %v5303 = vpop.f32.mrf.mxu0
    %v5304 = vadd.f32 %v5291, %v5303
    %v5305 = vpop.f32.mrf.mxu0
    %5306 = vdwg.mxu0
    %5307 = vmatpush.bf16.msra.mxu0 %v4048
    %5308 = vmatpush.bf16.msra.mxu0 %v4044
    %5309 = vmatpush.bf16.msra.mxu0 %v4040
    %5310 = vmatpush.bf16.msra.mxu0 %v4036
    %5311 = vmatpush.bf16.msra.mxu0 %v4032
    %5312 = vmatpush.bf16.msra.mxu0 %v4028
    %5313 = vmatpush.bf16.msra.mxu0 %v4024
    %5314 = vmatpush.bf16.msra.mxu0 %v4020
    %5315 = vmatmul.bf16.gmra.mxu0 %v384
    %v5316 = vpop.f32.mrf.mxu0
    %v5317 = vadd.f32 %v5304, %v5316
    %v5318 = vpop.f32.mrf.mxu0
    %5319 = vdwg.mxu0
    %5320 = vmatpush.bf16.msra.mxu0 %v4080
    %5321 = vmatpush.bf16.msra.mxu0 %v4076
    %5322 = vmatpush.bf16.msra.mxu0 %v4072
    %5323 = vmatpush.bf16.msra.mxu0 %v4068
    %5324 = vmatpush.bf16.msra.mxu0 %v4064
    %5325 = vmatpush.bf16.msra.mxu0 %v4060
    %5326 = vmatpush.bf16.msra.mxu0 %v4056
    %5327 = vmatpush.bf16.msra.mxu0 %v4052
    %5328 = vmatmul.bf16.gmra.mxu0 %v385
    %v5329 = vpop.f32.mrf.mxu0
    %v5330 = vadd.f32 %v5317, %v5329
    %v5331 = vpop.f32.mrf.mxu0
    %5332 = vdwg.mxu0
    %5333 = vmatpush.bf16.msra.mxu0 %v4112
    %5334 = vmatpush.bf16.msra.mxu0 %v4108
    %5335 = vmatpush.bf16.msra.mxu0 %v4104
    %5336 = vmatpush.bf16.msra.mxu0 %v4100
    %5337 = vmatpush.bf16.msra.mxu0 %v4096
    %5338 = vmatpush.bf16.msra.mxu0 %v4092
    %5339 = vmatpush.bf16.msra.mxu0 %v4088
    %5340 = vmatpush.bf16.msra.mxu0 %v4084
    %5341 = vmatmul.bf16.gmra.mxu0 %v386
    %v5342 = vpop.f32.mrf.mxu0
    %v5343 = vadd.f32 %v5330, %v5342
    %v5344 = vpop.f32.mrf.mxu0
    %5345 = vdwg.mxu0
    %5346 = vmatpush.bf16.msra.mxu0 %v4144
    %5347 = vmatpush.bf16.msra.mxu0 %v4140
    %5348 = vmatpush.bf16.msra.mxu0 %v4136
    %5349 = vmatpush.bf16.msra.mxu0 %v4132
    %5350 = vmatpush.bf16.msra.mxu0 %v4128
    %5351 = vmatpush.bf16.msra.mxu0 %v4124
    %5352 = vmatpush.bf16.msra.mxu0 %v4120
    %5353 = vmatpush.bf16.msra.mxu0 %v4116
    %5354 = vmatmul.bf16.gmra.mxu0 %v387
    %v5355 = vpop.f32.mrf.mxu0
    %v5356 = vadd.f32 %v5343, %v5355
    %v5357 = vpop.f32.mrf.mxu0
    %5358 = vdwg.mxu0
    %5359 = vmatpush.bf16.msra.mxu0 %v4176
    %5360 = vmatpush.bf16.msra.mxu0 %v4172
    %5361 = vmatpush.bf16.msra.mxu0 %v4168
    %5362 = vmatpush.bf16.msra.mxu0 %v4164
    %5363 = vmatpush.bf16.msra.mxu0 %v4160
    %5364 = vmatpush.bf16.msra.mxu0 %v4156
    %5365 = vmatpush.bf16.msra.mxu0 %v4152
    %5366 = vmatpush.bf16.msra.mxu0 %v4148
    %5367 = vmatmul.bf16.gmra.mxu0 %v388
    %v5368 = vpop.f32.mrf.mxu0
    %v5369 = vadd.f32 %v5356, %v5368
    %v5370 = vpop.f32.mrf.mxu0
    %5371 = vdwg.mxu0
    %5372 = vmatpush.bf16.msra.mxu0 %v4208
    %5373 = vmatpush.bf16.msra.mxu0 %v4204
    %5374 = vmatpush.bf16.msra.mxu0 %v4200
    %5375 = vmatpush.bf16.msra.mxu0 %v4196
    %5376 = vmatpush.bf16.msra.mxu0 %v4192
    %5377 = vmatpush.bf16.msra.mxu0 %v4188
    %5378 = vmatpush.bf16.msra.mxu0 %v4184
    %5379 = vmatpush.bf16.msra.mxu0 %v4180
    %5380 = vmatmul.bf16.gmra.mxu0 %v389
    %v5381 = vpop.f32.mrf.mxu0
    %v5382 = vadd.f32 %v5369, %v5381
    %v5383 = vpop.f32.mrf.mxu0
    %5384 = vdwg.mxu0
    %5385 = vmatpush.bf16.msra.mxu0 %v4240
    %5386 = vmatpush.bf16.msra.mxu0 %v4236
    %5387 = vmatpush.bf16.msra.mxu0 %v4232
    %5388 = vmatpush.bf16.msra.mxu0 %v4228
    %5389 = vmatpush.bf16.msra.mxu0 %v4224
    %5390 = vmatpush.bf16.msra.mxu0 %v4220
    %5391 = vmatpush.bf16.msra.mxu0 %v4216
    %5392 = vmatpush.bf16.msra.mxu0 %v4212
    %5393 = vmatmul.bf16.gmra.mxu0 %v390
    %v5394 = vpop.f32.mrf.mxu0
    %v5395 = vadd.f32 %v5382, %v5394
    %v5396 = vpop.f32.mrf.mxu0
    %5397 = vdwg.mxu0
    %5398 = vmatpush.bf16.msra.mxu0 %v4272
    %5399 = vmatpush.bf16.msra.mxu0 %v4268
    %5400 = vmatpush.bf16.msra.mxu0 %v4264
    %5401 = vmatpush.bf16.msra.mxu0 %v4260
    %5402 = vmatpush.bf16.msra.mxu0 %v4256
    %5403 = vmatpush.bf16.msra.mxu0 %v4252
    %5404 = vmatpush.bf16.msra.mxu0 %v4248
    %5405 = vmatpush.bf16.msra.mxu0 %v4244
    %5406 = vmatmul.bf16.gmra.mxu0 %v391
    %v5407 = vpop.f32.mrf.mxu0
    %v5408 = vadd.f32 %v5395, %v5407
    %v5409 = vpop.f32.mrf.mxu0
    %5410 = vdwg.mxu0
    %5411 = vmatpush.bf16.msra.mxu0 %v4304
    %5412 = vmatpush.bf16.msra.mxu0 %v4300
    %5413 = vmatpush.bf16.msra.mxu0 %v4296
    %5414 = vmatpush.bf16.msra.mxu0 %v4292
    %5415 = vmatpush.bf16.msra.mxu0 %v4288
    %5416 = vmatpush.bf16.msra.mxu0 %v4284
    %5417 = vmatpush.bf16.msra.mxu0 %v4280
    %5418 = vmatpush.bf16.msra.mxu0 %v4276
    %5419 = vmatmul.bf16.gmra.mxu0 %v392
    %v5420 = vpop.f32.mrf.mxu0
    %v5421 = vadd.f32 %v5408, %v5420
    %v5422 = vpop.f32.mrf.mxu0
    %5423 = vdwg.mxu0
    %5424 = vmatpush.bf16.msra.mxu0 0
    %5425 = vmatpush.bf16.msra.mxu0 0
    %5426 = vmatpush.bf16.msra.mxu0 0
    %5427 = vmatpush.bf16.msra.mxu0 0
    %5428 = vmatpush.bf16.msra.mxu0 %v4320
    %5429 = vmatpush.bf16.msra.mxu0 %v4316
    %5430 = vmatpush.bf16.msra.mxu0 %v4312
    %5431 = vmatpush.bf16.msra.mxu0 %v4308
    %5432 = vmatmul.bf16.gmra.mxu0 %v5110
    %v5433 = vpop.f32.mrf.mxu0
    %v5434 = vadd.f32 %v5421, %v5433
    %v5435 = vpop.f32.mrf.mxu0
    %5436 = vdwg.mxu0
    %5437 = vmatpush.bf16.msra.mxu0 %v3569
    %5438 = vmatpush.bf16.msra.mxu0 %v3565
    %5439 = vmatpush.bf16.msra.mxu0 %v3561
    %5440 = vmatpush.bf16.msra.mxu0 %v3557
    %5441 = vmatpush.bf16.msra.mxu0 %v3553
    %5442 = vmatpush.bf16.msra.mxu0 %v3549
    %5443 = vmatpush.bf16.msra.mxu0 %v3545
    %5444 = vmatpush.bf16.msra.mxu0 %v3541
    %5445 = vmatmul.bf16.gmra.mxu0 %v369
    %v5446 = vpop.f32.mrf.mxu0
    %v5447 = vadd.f32 %v1181, %v5446
    %v5448 = vpop.f32.mrf.mxu0
    %5449 = vdwg.mxu0
    %5450 = vmatpush.bf16.msra.mxu0 %v3601
    %5451 = vmatpush.bf16.msra.mxu0 %v3597
    %5452 = vmatpush.bf16.msra.mxu0 %v3593
    %5453 = vmatpush.bf16.msra.mxu0 %v3589
    %5454 = vmatpush.bf16.msra.mxu0 %v3585
    %5455 = vmatpush.bf16.msra.mxu0 %v3581
    %5456 = vmatpush.bf16.msra.mxu0 %v3577
    %5457 = vmatpush.bf16.msra.mxu0 %v3573
    %5458 = vmatmul.bf16.gmra.mxu0 %v370
    %v5459 = vpop.f32.mrf.mxu0
    %v5460 = vadd.f32 %v5447, %v5459
    %v5461 = vpop.f32.mrf.mxu0
    %5462 = vdwg.mxu0
    %5463 = vmatpush.bf16.msra.mxu0 %v3633
    %5464 = vmatpush.bf16.msra.mxu0 %v3629
    %5465 = vmatpush.bf16.msra.mxu0 %v3625
    %5466 = vmatpush.bf16.msra.mxu0 %v3621
    %5467 = vmatpush.bf16.msra.mxu0 %v3617
    %5468 = vmatpush.bf16.msra.mxu0 %v3613
    %5469 = vmatpush.bf16.msra.mxu0 %v3609
    %5470 = vmatpush.bf16.msra.mxu0 %v3605
    %5471 = vmatmul.bf16.gmra.mxu0 %v371
    %v5472 = vpop.f32.mrf.mxu0
    %v5473 = vadd.f32 %v5460, %v5472
    %v5474 = vpop.f32.mrf.mxu0
    %5475 = vdwg.mxu0
    %5476 = vmatpush.bf16.msra.mxu0 %v3665
    %5477 = vmatpush.bf16.msra.mxu0 %v3661
    %5478 = vmatpush.bf16.msra.mxu0 %v3657
    %5479 = vmatpush.bf16.msra.mxu0 %v3653
    %5480 = vmatpush.bf16.msra.mxu0 %v3649
    %5481 = vmatpush.bf16.msra.mxu0 %v3645
    %5482 = vmatpush.bf16.msra.mxu0 %v3641
    %5483 = vmatpush.bf16.msra.mxu0 %v3637
    %5484 = vmatmul.bf16.gmra.mxu0 %v372
    %v5485 = vpop.f32.mrf.mxu0
    %v5486 = vadd.f32 %v5473, %v5485
    %v5487 = vpop.f32.mrf.mxu0
    %5488 = vdwg.mxu0
    %5489 = vmatpush.bf16.msra.mxu0 %v3697
    %5490 = vmatpush.bf16.msra.mxu0 %v3693
    %5491 = vmatpush.bf16.msra.mxu0 %v3689
    %5492 = vmatpush.bf16.msra.mxu0 %v3685
    %5493 = vmatpush.bf16.msra.mxu0 %v3681
    %5494 = vmatpush.bf16.msra.mxu0 %v3677
    %5495 = vmatpush.bf16.msra.mxu0 %v3673
    %5496 = vmatpush.bf16.msra.mxu0 %v3669
    %5497 = vmatmul.bf16.gmra.mxu0 %v373
    %v5498 = vpop.f32.mrf.mxu0
    %v5499 = vadd.f32 %v5486, %v5498
    %v5500 = vpop.f32.mrf.mxu0
    %5501 = vdwg.mxu0
    %5502 = vmatpush.bf16.msra.mxu0 %v3729
    %5503 = vmatpush.bf16.msra.mxu0 %v3725
    %5504 = vmatpush.bf16.msra.mxu0 %v3721
    %5505 = vmatpush.bf16.msra.mxu0 %v3717
    %5506 = vmatpush.bf16.msra.mxu0 %v3713
    %5507 = vmatpush.bf16.msra.mxu0 %v3709
    %5508 = vmatpush.bf16.msra.mxu0 %v3705
    %5509 = vmatpush.bf16.msra.mxu0 %v3701
    %5510 = vmatmul.bf16.gmra.mxu0 %v374
    %v5511 = vpop.f32.mrf.mxu0
    %v5512 = vadd.f32 %v5499, %v5511
    %v5513 = vpop.f32.mrf.mxu0
    %5514 = vdwg.mxu0
    %5515 = vmatpush.bf16.msra.mxu0 %v3761
    %5516 = vmatpush.bf16.msra.mxu0 %v3757
    %5517 = vmatpush.bf16.msra.mxu0 %v3753
    %5518 = vmatpush.bf16.msra.mxu0 %v3749
    %5519 = vmatpush.bf16.msra.mxu0 %v3745
    %5520 = vmatpush.bf16.msra.mxu0 %v3741
    %5521 = vmatpush.bf16.msra.mxu0 %v3737
    %5522 = vmatpush.bf16.msra.mxu0 %v3733
    %5523 = vmatmul.bf16.gmra.mxu0 %v375
    %v5524 = vpop.f32.mrf.mxu0
    %v5525 = vadd.f32 %v5512, %v5524
    %v5526 = vpop.f32.mrf.mxu0
    %5527 = vdwg.mxu0
    %5528 = vmatpush.bf16.msra.mxu0 %v3793
    %5529 = vmatpush.bf16.msra.mxu0 %v3789
    %5530 = vmatpush.bf16.msra.mxu0 %v3785
    %5531 = vmatpush.bf16.msra.mxu0 %v3781
    %5532 = vmatpush.bf16.msra.mxu0 %v3777
    %5533 = vmatpush.bf16.msra.mxu0 %v3773
    %5534 = vmatpush.bf16.msra.mxu0 %v3769
    %5535 = vmatpush.bf16.msra.mxu0 %v3765
    %5536 = vmatmul.bf16.gmra.mxu0 %v376
    %v5537 = vpop.f32.mrf.mxu0
    %v5538 = vadd.f32 %v5525, %v5537
    %v5539 = vpop.f32.mrf.mxu0
    %5540 = vdwg.mxu0
    %5541 = vmatpush.bf16.msra.mxu0 %v3825
    %5542 = vmatpush.bf16.msra.mxu0 %v3821
    %5543 = vmatpush.bf16.msra.mxu0 %v3817
    %5544 = vmatpush.bf16.msra.mxu0 %v3813
    %5545 = vmatpush.bf16.msra.mxu0 %v3809
    %5546 = vmatpush.bf16.msra.mxu0 %v3805
    %5547 = vmatpush.bf16.msra.mxu0 %v3801
    %5548 = vmatpush.bf16.msra.mxu0 %v3797
    %5549 = vmatmul.bf16.gmra.mxu0 %v377
    %v5550 = vpop.f32.mrf.mxu0
    %v5551 = vadd.f32 %v5538, %v5550
    %v5552 = vpop.f32.mrf.mxu0
    %5553 = vdwg.mxu0
    %5554 = vmatpush.bf16.msra.mxu0 %v3857
    %5555 = vmatpush.bf16.msra.mxu0 %v3853
    %5556 = vmatpush.bf16.msra.mxu0 %v3849
    %5557 = vmatpush.bf16.msra.mxu0 %v3845
    %5558 = vmatpush.bf16.msra.mxu0 %v3841
    %5559 = vmatpush.bf16.msra.mxu0 %v3837
    %5560 = vmatpush.bf16.msra.mxu0 %v3833
    %5561 = vmatpush.bf16.msra.mxu0 %v3829
    %5562 = vmatmul.bf16.gmra.mxu0 %v378
    %v5563 = vpop.f32.mrf.mxu0
    %v5564 = vadd.f32 %v5551, %v5563
    %v5565 = vpop.f32.mrf.mxu0
    %5566 = vdwg.mxu0
    %5567 = vmatpush.bf16.msra.mxu0 %v3889
    %5568 = vmatpush.bf16.msra.mxu0 %v3885
    %5569 = vmatpush.bf16.msra.mxu0 %v3881
    %5570 = vmatpush.bf16.msra.mxu0 %v3877
    %5571 = vmatpush.bf16.msra.mxu0 %v3873
    %5572 = vmatpush.bf16.msra.mxu0 %v3869
    %5573 = vmatpush.bf16.msra.mxu0 %v3865
    %5574 = vmatpush.bf16.msra.mxu0 %v3861
    %5575 = vmatmul.bf16.gmra.mxu0 %v379
    %v5576 = vpop.f32.mrf.mxu0
    %v5577 = vadd.f32 %v5564, %v5576
    %v5578 = vpop.f32.mrf.mxu0
    %5579 = vdwg.mxu0
    %5580 = vmatpush.bf16.msra.mxu0 %v3921
    %5581 = vmatpush.bf16.msra.mxu0 %v3917
    %5582 = vmatpush.bf16.msra.mxu0 %v3913
    %5583 = vmatpush.bf16.msra.mxu0 %v3909
    %5584 = vmatpush.bf16.msra.mxu0 %v3905
    %5585 = vmatpush.bf16.msra.mxu0 %v3901
    %5586 = vmatpush.bf16.msra.mxu0 %v3897
    %5587 = vmatpush.bf16.msra.mxu0 %v3893
    %5588 = vmatmul.bf16.gmra.mxu0 %v380
    %v5589 = vpop.f32.mrf.mxu0
    %v5590 = vadd.f32 %v5577, %v5589
    %v5591 = vpop.f32.mrf.mxu0
    %5592 = vdwg.mxu0
    %5593 = vmatpush.bf16.msra.mxu0 %v3953
    %5594 = vmatpush.bf16.msra.mxu0 %v3949
    %5595 = vmatpush.bf16.msra.mxu0 %v3945
    %5596 = vmatpush.bf16.msra.mxu0 %v3941
    %5597 = vmatpush.bf16.msra.mxu0 %v3937
    %5598 = vmatpush.bf16.msra.mxu0 %v3933
    %5599 = vmatpush.bf16.msra.mxu0 %v3929
    %5600 = vmatpush.bf16.msra.mxu0 %v3925
    %5601 = vmatmul.bf16.gmra.mxu0 %v381
    %v5602 = vpop.f32.mrf.mxu0
    %v5603 = vadd.f32 %v5590, %v5602
    %v5604 = vpop.f32.mrf.mxu0
    %5605 = vdwg.mxu0
    %5606 = vmatpush.bf16.msra.mxu0 %v3985
    %5607 = vmatpush.bf16.msra.mxu0 %v3981
    %5608 = vmatpush.bf16.msra.mxu0 %v3977
    %5609 = vmatpush.bf16.msra.mxu0 %v3973
    %5610 = vmatpush.bf16.msra.mxu0 %v3969
    %5611 = vmatpush.bf16.msra.mxu0 %v3965
    %5612 = vmatpush.bf16.msra.mxu0 %v3961
    %5613 = vmatpush.bf16.msra.mxu0 %v3957
    %5614 = vmatmul.bf16.gmra.mxu0 %v382
    %v5615 = vpop.f32.mrf.mxu0
    %v5616 = vadd.f32 %v5603, %v5615
    %v5617 = vpop.f32.mrf.mxu0
    %5618 = vdwg.mxu0
    %5619 = vmatpush.bf16.msra.mxu0 %v4017
    %5620 = vmatpush.bf16.msra.mxu0 %v4013
    %5621 = vmatpush.bf16.msra.mxu0 %v4009
    %5622 = vmatpush.bf16.msra.mxu0 %v4005
    %5623 = vmatpush.bf16.msra.mxu0 %v4001
    %5624 = vmatpush.bf16.msra.mxu0 %v3997
    %5625 = vmatpush.bf16.msra.mxu0 %v3993
    %5626 = vmatpush.bf16.msra.mxu0 %v3989
    %5627 = vmatmul.bf16.gmra.mxu0 %v383
    %v5628 = vpop.f32.mrf.mxu0
    %v5629 = vadd.f32 %v5616, %v5628
    %v5630 = vpop.f32.mrf.mxu0
    %5631 = vdwg.mxu0
    %5632 = vmatpush.bf16.msra.mxu0 %v4049
    %5633 = vmatpush.bf16.msra.mxu0 %v4045
    %5634 = vmatpush.bf16.msra.mxu0 %v4041
    %5635 = vmatpush.bf16.msra.mxu0 %v4037
    %5636 = vmatpush.bf16.msra.mxu0 %v4033
    %5637 = vmatpush.bf16.msra.mxu0 %v4029
    %5638 = vmatpush.bf16.msra.mxu0 %v4025
    %5639 = vmatpush.bf16.msra.mxu0 %v4021
    %5640 = vmatmul.bf16.gmra.mxu0 %v384
    %v5641 = vpop.f32.mrf.mxu0
    %v5642 = vadd.f32 %v5629, %v5641
    %v5643 = vpop.f32.mrf.mxu0
    %5644 = vdwg.mxu0
    %5645 = vmatpush.bf16.msra.mxu0 %v4081
    %5646 = vmatpush.bf16.msra.mxu0 %v4077
    %5647 = vmatpush.bf16.msra.mxu0 %v4073
    %5648 = vmatpush.bf16.msra.mxu0 %v4069
    %5649 = vmatpush.bf16.msra.mxu0 %v4065
    %5650 = vmatpush.bf16.msra.mxu0 %v4061
    %5651 = vmatpush.bf16.msra.mxu0 %v4057
    %5652 = vmatpush.bf16.msra.mxu0 %v4053
    %5653 = vmatmul.bf16.gmra.mxu0 %v385
    %v5654 = vpop.f32.mrf.mxu0
    %v5655 = vadd.f32 %v5642, %v5654
    %v5656 = vpop.f32.mrf.mxu0
    %5657 = vdwg.mxu0
    %5658 = vmatpush.bf16.msra.mxu0 %v4113
    %5659 = vmatpush.bf16.msra.mxu0 %v4109
    %5660 = vmatpush.bf16.msra.mxu0 %v4105
    %5661 = vmatpush.bf16.msra.mxu0 %v4101
    %5662 = vmatpush.bf16.msra.mxu0 %v4097
    %5663 = vmatpush.bf16.msra.mxu0 %v4093
    %5664 = vmatpush.bf16.msra.mxu0 %v4089
    %5665 = vmatpush.bf16.msra.mxu0 %v4085
    %5666 = vmatmul.bf16.gmra.mxu0 %v386
    %v5667 = vpop.f32.mrf.mxu0
    %v5668 = vadd.f32 %v5655, %v5667
    %v5669 = vpop.f32.mrf.mxu0
    %5670 = vdwg.mxu0
    %5671 = vmatpush.bf16.msra.mxu0 %v4145
    %5672 = vmatpush.bf16.msra.mxu0 %v4141
    %5673 = vmatpush.bf16.msra.mxu0 %v4137
    %5674 = vmatpush.bf16.msra.mxu0 %v4133
    %5675 = vmatpush.bf16.msra.mxu0 %v4129
    %5676 = vmatpush.bf16.msra.mxu0 %v4125
    %5677 = vmatpush.bf16.msra.mxu0 %v4121
    %5678 = vmatpush.bf16.msra.mxu0 %v4117
    %5679 = vmatmul.bf16.gmra.mxu0 %v387
    %v5680 = vpop.f32.mrf.mxu0
    %v5681 = vadd.f32 %v5668, %v5680
    %v5682 = vpop.f32.mrf.mxu0
    %5683 = vdwg.mxu0
    %5684 = vmatpush.bf16.msra.mxu0 %v4177
    %5685 = vmatpush.bf16.msra.mxu0 %v4173
    %5686 = vmatpush.bf16.msra.mxu0 %v4169
    %5687 = vmatpush.bf16.msra.mxu0 %v4165
    %5688 = vmatpush.bf16.msra.mxu0 %v4161
    %5689 = vmatpush.bf16.msra.mxu0 %v4157
    %5690 = vmatpush.bf16.msra.mxu0 %v4153
    %5691 = vmatpush.bf16.msra.mxu0 %v4149
    %5692 = vmatmul.bf16.gmra.mxu0 %v388
    %v5693 = vpop.f32.mrf.mxu0
    %v5694 = vadd.f32 %v5681, %v5693
    %v5695 = vpop.f32.mrf.mxu0
    %5696 = vdwg.mxu0
    %5697 = vmatpush.bf16.msra.mxu0 %v4209
    %5698 = vmatpush.bf16.msra.mxu0 %v4205
    %5699 = vmatpush.bf16.msra.mxu0 %v4201
    %5700 = vmatpush.bf16.msra.mxu0 %v4197
    %5701 = vmatpush.bf16.msra.mxu0 %v4193
    %5702 = vmatpush.bf16.msra.mxu0 %v4189
    %5703 = vmatpush.bf16.msra.mxu0 %v4185
    %5704 = vmatpush.bf16.msra.mxu0 %v4181
    %5705 = vmatmul.bf16.gmra.mxu0 %v389
    %v5706 = vpop.f32.mrf.mxu0
    %v5707 = vadd.f32 %v5694, %v5706
    %v5708 = vpop.f32.mrf.mxu0
    %5709 = vdwg.mxu0
    %5710 = vmatpush.bf16.msra.mxu0 %v4241
    %5711 = vmatpush.bf16.msra.mxu0 %v4237
    %5712 = vmatpush.bf16.msra.mxu0 %v4233
    %5713 = vmatpush.bf16.msra.mxu0 %v4229
    %5714 = vmatpush.bf16.msra.mxu0 %v4225
    %5715 = vmatpush.bf16.msra.mxu0 %v4221
    %5716 = vmatpush.bf16.msra.mxu0 %v4217
    %5717 = vmatpush.bf16.msra.mxu0 %v4213
    %5718 = vmatmul.bf16.gmra.mxu0 %v390
    %v5719 = vpop.f32.mrf.mxu0
    %v5720 = vadd.f32 %v5707, %v5719
    %v5721 = vpop.f32.mrf.mxu0
    %5722 = vdwg.mxu0
    %5723 = vmatpush.bf16.msra.mxu0 %v4273
    %5724 = vmatpush.bf16.msra.mxu0 %v4269
    %5725 = vmatpush.bf16.msra.mxu0 %v4265
    %5726 = vmatpush.bf16.msra.mxu0 %v4261
    %5727 = vmatpush.bf16.msra.mxu0 %v4257
    %5728 = vmatpush.bf16.msra.mxu0 %v4253
    %5729 = vmatpush.bf16.msra.mxu0 %v4249
    %5730 = vmatpush.bf16.msra.mxu0 %v4245
    %5731 = vmatmul.bf16.gmra.mxu0 %v391
    %v5732 = vpop.f32.mrf.mxu0
    %v5733 = vadd.f32 %v5720, %v5732
    %v5734 = vpop.f32.mrf.mxu0
    %5735 = vdwg.mxu0
    %5736 = vmatpush.bf16.msra.mxu0 %v4305
    %5737 = vmatpush.bf16.msra.mxu0 %v4301
    %5738 = vmatpush.bf16.msra.mxu0 %v4297
    %5739 = vmatpush.bf16.msra.mxu0 %v4293
    %5740 = vmatpush.bf16.msra.mxu0 %v4289
    %5741 = vmatpush.bf16.msra.mxu0 %v4285
    %5742 = vmatpush.bf16.msra.mxu0 %v4281
    %5743 = vmatpush.bf16.msra.mxu0 %v4277
    %5744 = vmatmul.bf16.gmra.mxu0 %v392
    %v5745 = vpop.f32.mrf.mxu0
    %v5746 = vadd.f32 %v5733, %v5745
    %v5747 = vpop.f32.mrf.mxu0
    %5748 = vdwg.mxu0
    %5749 = vmatpush.bf16.msra.mxu0 0
    %5750 = vmatpush.bf16.msra.mxu0 0
    %5751 = vmatpush.bf16.msra.mxu0 0
    %5752 = vmatpush.bf16.msra.mxu0 0
    %5753 = vmatpush.bf16.msra.mxu0 %v4321
    %5754 = vmatpush.bf16.msra.mxu0 %v4317
    %5755 = vmatpush.bf16.msra.mxu0 %v4313
    %5756 = vmatpush.bf16.msra.mxu0 %v4309
    %5757 = vmatmul.bf16.gmra.mxu0 %v5110
    %v5758 = vpop.f32.mrf.mxu0
    %v5759 = vadd.f32 %v5746, %v5758
    %v5760 = vpop.f32.mrf.mxu0
    %5761 = vdwg.mxu0
    %5762 = vmatpush.bf16.msra.mxu0 %v3570
    %5763 = vmatpush.bf16.msra.mxu0 %v3566
    %5764 = vmatpush.bf16.msra.mxu0 %v3562
    %5765 = vmatpush.bf16.msra.mxu0 %v3558
    %5766 = vmatpush.bf16.msra.mxu0 %v3554
    %5767 = vmatpush.bf16.msra.mxu0 %v3550
    %5768 = vmatpush.bf16.msra.mxu0 %v3546
    %5769 = vmatpush.bf16.msra.mxu0 %v3542
    %5770 = vmatmul.bf16.gmra.mxu0 %v369
    %v5771 = vpop.f32.mrf.mxu0
    %v5772 = vadd.f32 %v1182, %v5771
    %v5773 = vpop.f32.mrf.mxu0
    %5774 = vdwg.mxu0
    %5775 = vmatpush.bf16.msra.mxu0 %v3602
    %5776 = vmatpush.bf16.msra.mxu0 %v3598
    %5777 = vmatpush.bf16.msra.mxu0 %v3594
    %5778 = vmatpush.bf16.msra.mxu0 %v3590
    %5779 = vmatpush.bf16.msra.mxu0 %v3586
    %5780 = vmatpush.bf16.msra.mxu0 %v3582
    %5781 = vmatpush.bf16.msra.mxu0 %v3578
    %5782 = vmatpush.bf16.msra.mxu0 %v3574
    %5783 = vmatmul.bf16.gmra.mxu0 %v370
    %v5784 = vpop.f32.mrf.mxu0
    %v5785 = vadd.f32 %v5772, %v5784
    %v5786 = vpop.f32.mrf.mxu0
    %5787 = vdwg.mxu0
    %5788 = vmatpush.bf16.msra.mxu0 %v3634
    %5789 = vmatpush.bf16.msra.mxu0 %v3630
    %5790 = vmatpush.bf16.msra.mxu0 %v3626
    %5791 = vmatpush.bf16.msra.mxu0 %v3622
    %5792 = vmatpush.bf16.msra.mxu0 %v3618
    %5793 = vmatpush.bf16.msra.mxu0 %v3614
    %5794 = vmatpush.bf16.msra.mxu0 %v3610
    %5795 = vmatpush.bf16.msra.mxu0 %v3606
    %5796 = vmatmul.bf16.gmra.mxu0 %v371
    %v5797 = vpop.f32.mrf.mxu0
    %v5798 = vadd.f32 %v5785, %v5797
    %v5799 = vpop.f32.mrf.mxu0
    %5800 = vdwg.mxu0
    %5801 = vmatpush.bf16.msra.mxu0 %v3666
    %5802 = vmatpush.bf16.msra.mxu0 %v3662
    %5803 = vmatpush.bf16.msra.mxu0 %v3658
    %5804 = vmatpush.bf16.msra.mxu0 %v3654
    %5805 = vmatpush.bf16.msra.mxu0 %v3650
    %5806 = vmatpush.bf16.msra.mxu0 %v3646
    %5807 = vmatpush.bf16.msra.mxu0 %v3642
    %5808 = vmatpush.bf16.msra.mxu0 %v3638
    %5809 = vmatmul.bf16.gmra.mxu0 %v372
    %v5810 = vpop.f32.mrf.mxu0
    %v5811 = vadd.f32 %v5798, %v5810
    %v5812 = vpop.f32.mrf.mxu0
    %5813 = vdwg.mxu0
    %5814 = vmatpush.bf16.msra.mxu0 %v3698
    %5815 = vmatpush.bf16.msra.mxu0 %v3694
    %5816 = vmatpush.bf16.msra.mxu0 %v3690
    %5817 = vmatpush.bf16.msra.mxu0 %v3686
    %5818 = vmatpush.bf16.msra.mxu0 %v3682
    %5819 = vmatpush.bf16.msra.mxu0 %v3678
    %5820 = vmatpush.bf16.msra.mxu0 %v3674
    %5821 = vmatpush.bf16.msra.mxu0 %v3670
    %5822 = vmatmul.bf16.gmra.mxu0 %v373
    %v5823 = vpop.f32.mrf.mxu0
    %v5824 = vadd.f32 %v5811, %v5823
    %v5825 = vpop.f32.mrf.mxu0
    %5826 = vdwg.mxu0
    %5827 = vmatpush.bf16.msra.mxu0 %v3730
    %5828 = vmatpush.bf16.msra.mxu0 %v3726
    %5829 = vmatpush.bf16.msra.mxu0 %v3722
    %5830 = vmatpush.bf16.msra.mxu0 %v3718
    %5831 = vmatpush.bf16.msra.mxu0 %v3714
    %5832 = vmatpush.bf16.msra.mxu0 %v3710
    %5833 = vmatpush.bf16.msra.mxu0 %v3706
    %5834 = vmatpush.bf16.msra.mxu0 %v3702
    %5835 = vmatmul.bf16.gmra.mxu0 %v374
    %v5836 = vpop.f32.mrf.mxu0
    %v5837 = vadd.f32 %v5824, %v5836
    %v5838 = vpop.f32.mrf.mxu0
    %5839 = vdwg.mxu0
    %5840 = vmatpush.bf16.msra.mxu0 %v3762
    %5841 = vmatpush.bf16.msra.mxu0 %v3758
    %5842 = vmatpush.bf16.msra.mxu0 %v3754
    %5843 = vmatpush.bf16.msra.mxu0 %v3750
    %5844 = vmatpush.bf16.msra.mxu0 %v3746
    %5845 = vmatpush.bf16.msra.mxu0 %v3742
    %5846 = vmatpush.bf16.msra.mxu0 %v3738
    %5847 = vmatpush.bf16.msra.mxu0 %v3734
    %5848 = vmatmul.bf16.gmra.mxu0 %v375
    %v5849 = vpop.f32.mrf.mxu0
    %v5850 = vadd.f32 %v5837, %v5849
    %v5851 = vpop.f32.mrf.mxu0
    %5852 = vdwg.mxu0
    %5853 = vmatpush.bf16.msra.mxu0 %v3794
    %5854 = vmatpush.bf16.msra.mxu0 %v3790
    %5855 = vmatpush.bf16.msra.mxu0 %v3786
    %5856 = vmatpush.bf16.msra.mxu0 %v3782
    %5857 = vmatpush.bf16.msra.mxu0 %v3778
    %5858 = vmatpush.bf16.msra.mxu0 %v3774
    %5859 = vmatpush.bf16.msra.mxu0 %v3770
    %5860 = vmatpush.bf16.msra.mxu0 %v3766
    %5861 = vmatmul.bf16.gmra.mxu0 %v376
    %v5862 = vpop.f32.mrf.mxu0
    %v5863 = vadd.f32 %v5850, %v5862
    %v5864 = vpop.f32.mrf.mxu0
    %5865 = vdwg.mxu0
    %5866 = vmatpush.bf16.msra.mxu0 %v3826
    %5867 = vmatpush.bf16.msra.mxu0 %v3822
    %5868 = vmatpush.bf16.msra.mxu0 %v3818
    %5869 = vmatpush.bf16.msra.mxu0 %v3814
    %5870 = vmatpush.bf16.msra.mxu0 %v3810
    %5871 = vmatpush.bf16.msra.mxu0 %v3806
    %5872 = vmatpush.bf16.msra.mxu0 %v3802
    %5873 = vmatpush.bf16.msra.mxu0 %v3798
    %5874 = vmatmul.bf16.gmra.mxu0 %v377
    %v5875 = vpop.f32.mrf.mxu0
    %v5876 = vadd.f32 %v5863, %v5875
    %v5877 = vpop.f32.mrf.mxu0
    %5878 = vdwg.mxu0
    %5879 = vmatpush.bf16.msra.mxu0 %v3858
    %5880 = vmatpush.bf16.msra.mxu0 %v3854
    %5881 = vmatpush.bf16.msra.mxu0 %v3850
    %5882 = vmatpush.bf16.msra.mxu0 %v3846
    %5883 = vmatpush.bf16.msra.mxu0 %v3842
    %5884 = vmatpush.bf16.msra.mxu0 %v3838
    %5885 = vmatpush.bf16.msra.mxu0 %v3834
    %5886 = vmatpush.bf16.msra.mxu0 %v3830
    %5887 = vmatmul.bf16.gmra.mxu0 %v378
    %v5888 = vpop.f32.mrf.mxu0
    %v5889 = vadd.f32 %v5876, %v5888
    %v5890 = vpop.f32.mrf.mxu0
    %5891 = vdwg.mxu0
    %5892 = vmatpush.bf16.msra.mxu0 %v3890
    %5893 = vmatpush.bf16.msra.mxu0 %v3886
    %5894 = vmatpush.bf16.msra.mxu0 %v3882
    %5895 = vmatpush.bf16.msra.mxu0 %v3878
    %5896 = vmatpush.bf16.msra.mxu0 %v3874
    %5897 = vmatpush.bf16.msra.mxu0 %v3870
    %5898 = vmatpush.bf16.msra.mxu0 %v3866
    %5899 = vmatpush.bf16.msra.mxu0 %v3862
    %5900 = vmatmul.bf16.gmra.mxu0 %v379
    %v5901 = vpop.f32.mrf.mxu0
    %v5902 = vadd.f32 %v5889, %v5901
    %v5903 = vpop.f32.mrf.mxu0
    %5904 = vdwg.mxu0
    %5905 = vmatpush.bf16.msra.mxu0 %v3922
    %5906 = vmatpush.bf16.msra.mxu0 %v3918
    %5907 = vmatpush.bf16.msra.mxu0 %v3914
    %5908 = vmatpush.bf16.msra.mxu0 %v3910
    %5909 = vmatpush.bf16.msra.mxu0 %v3906
    %5910 = vmatpush.bf16.msra.mxu0 %v3902
    %5911 = vmatpush.bf16.msra.mxu0 %v3898
    %5912 = vmatpush.bf16.msra.mxu0 %v3894
    %5913 = vmatmul.bf16.gmra.mxu0 %v380
    %v5914 = vpop.f32.mrf.mxu0
    %v5915 = vadd.f32 %v5902, %v5914
    %v5916 = vpop.f32.mrf.mxu0
    %5917 = vdwg.mxu0
    %5918 = vmatpush.bf16.msra.mxu0 %v3954
    %5919 = vmatpush.bf16.msra.mxu0 %v3950
    %5920 = vmatpush.bf16.msra.mxu0 %v3946
    %5921 = vmatpush.bf16.msra.mxu0 %v3942
    %5922 = vmatpush.bf16.msra.mxu0 %v3938
    %5923 = vmatpush.bf16.msra.mxu0 %v3934
    %5924 = vmatpush.bf16.msra.mxu0 %v3930
    %5925 = vmatpush.bf16.msra.mxu0 %v3926
    %5926 = vmatmul.bf16.gmra.mxu0 %v381
    %v5927 = vpop.f32.mrf.mxu0
    %v5928 = vadd.f32 %v5915, %v5927
    %v5929 = vpop.f32.mrf.mxu0
    %5930 = vdwg.mxu0
    %5931 = vmatpush.bf16.msra.mxu0 %v3986
    %5932 = vmatpush.bf16.msra.mxu0 %v3982
    %5933 = vmatpush.bf16.msra.mxu0 %v3978
    %5934 = vmatpush.bf16.msra.mxu0 %v3974
    %5935 = vmatpush.bf16.msra.mxu0 %v3970
    %5936 = vmatpush.bf16.msra.mxu0 %v3966
    %5937 = vmatpush.bf16.msra.mxu0 %v3962
    %5938 = vmatpush.bf16.msra.mxu0 %v3958
    %5939 = vmatmul.bf16.gmra.mxu0 %v382
    %v5940 = vpop.f32.mrf.mxu0
    %v5941 = vadd.f32 %v5928, %v5940
    %v5942 = vpop.f32.mrf.mxu0
    %5943 = vdwg.mxu0
    %5944 = vmatpush.bf16.msra.mxu0 %v4018
    %5945 = vmatpush.bf16.msra.mxu0 %v4014
    %5946 = vmatpush.bf16.msra.mxu0 %v4010
    %5947 = vmatpush.bf16.msra.mxu0 %v4006
    %5948 = vmatpush.bf16.msra.mxu0 %v4002
    %5949 = vmatpush.bf16.msra.mxu0 %v3998
    %5950 = vmatpush.bf16.msra.mxu0 %v3994
    %5951 = vmatpush.bf16.msra.mxu0 %v3990
    %5952 = vmatmul.bf16.gmra.mxu0 %v383
    %v5953 = vpop.f32.mrf.mxu0
    %v5954 = vadd.f32 %v5941, %v5953
    %v5955 = vpop.f32.mrf.mxu0
    %5956 = vdwg.mxu0
    %5957 = vmatpush.bf16.msra.mxu0 %v4050
    %5958 = vmatpush.bf16.msra.mxu0 %v4046
    %5959 = vmatpush.bf16.msra.mxu0 %v4042
    %5960 = vmatpush.bf16.msra.mxu0 %v4038
    %5961 = vmatpush.bf16.msra.mxu0 %v4034
    %5962 = vmatpush.bf16.msra.mxu0 %v4030
    %5963 = vmatpush.bf16.msra.mxu0 %v4026
    %5964 = vmatpush.bf16.msra.mxu0 %v4022
    %5965 = vmatmul.bf16.gmra.mxu0 %v384
    %v5966 = vpop.f32.mrf.mxu0
    %v5967 = vadd.f32 %v5954, %v5966
    %v5968 = vpop.f32.mrf.mxu0
    %5969 = vdwg.mxu0
    %5970 = vmatpush.bf16.msra.mxu0 %v4082
    %5971 = vmatpush.bf16.msra.mxu0 %v4078
    %5972 = vmatpush.bf16.msra.mxu0 %v4074
    %5973 = vmatpush.bf16.msra.mxu0 %v4070
    %5974 = vmatpush.bf16.msra.mxu0 %v4066
    %5975 = vmatpush.bf16.msra.mxu0 %v4062
    %5976 = vmatpush.bf16.msra.mxu0 %v4058
    %5977 = vmatpush.bf16.msra.mxu0 %v4054
    %5978 = vmatmul.bf16.gmra.mxu0 %v385
    %v5979 = vpop.f32.mrf.mxu0
    %v5980 = vadd.f32 %v5967, %v5979
    %v5981 = vpop.f32.mrf.mxu0
    %5982 = vdwg.mxu0
    %5983 = vmatpush.bf16.msra.mxu0 %v4114
    %5984 = vmatpush.bf16.msra.mxu0 %v4110
    %5985 = vmatpush.bf16.msra.mxu0 %v4106
    %5986 = vmatpush.bf16.msra.mxu0 %v4102
    %5987 = vmatpush.bf16.msra.mxu0 %v4098
    %5988 = vmatpush.bf16.msra.mxu0 %v4094
    %5989 = vmatpush.bf16.msra.mxu0 %v4090
    %5990 = vmatpush.bf16.msra.mxu0 %v4086
    %5991 = vmatmul.bf16.gmra.mxu0 %v386
    %v5992 = vpop.f32.mrf.mxu0
    %v5993 = vadd.f32 %v5980, %v5992
    %v5994 = vpop.f32.mrf.mxu0
    %5995 = vdwg.mxu0
    %5996 = vmatpush.bf16.msra.mxu0 %v4146
    %5997 = vmatpush.bf16.msra.mxu0 %v4142
    %5998 = vmatpush.bf16.msra.mxu0 %v4138
    %5999 = vmatpush.bf16.msra.mxu0 %v4134
    %6000 = vmatpush.bf16.msra.mxu0 %v4130
    %6001 = vmatpush.bf16.msra.mxu0 %v4126
    %6002 = vmatpush.bf16.msra.mxu0 %v4122
    %6003 = vmatpush.bf16.msra.mxu0 %v4118
    %6004 = vmatmul.bf16.gmra.mxu0 %v387
    %v6005 = vpop.f32.mrf.mxu0
    %v6006 = vadd.f32 %v5993, %v6005
    %v6007 = vpop.f32.mrf.mxu0
    %6008 = vdwg.mxu0
    %6009 = vmatpush.bf16.msra.mxu0 %v4178
    %6010 = vmatpush.bf16.msra.mxu0 %v4174
    %6011 = vmatpush.bf16.msra.mxu0 %v4170
    %6012 = vmatpush.bf16.msra.mxu0 %v4166
    %6013 = vmatpush.bf16.msra.mxu0 %v4162
    %6014 = vmatpush.bf16.msra.mxu0 %v4158
    %6015 = vmatpush.bf16.msra.mxu0 %v4154
    %6016 = vmatpush.bf16.msra.mxu0 %v4150
    %6017 = vmatmul.bf16.gmra.mxu0 %v388
    %v6018 = vpop.f32.mrf.mxu0
    %v6019 = vadd.f32 %v6006, %v6018
    %v6020 = vpop.f32.mrf.mxu0
    %6021 = vdwg.mxu0
    %6022 = vmatpush.bf16.msra.mxu0 %v4210
    %6023 = vmatpush.bf16.msra.mxu0 %v4206
    %6024 = vmatpush.bf16.msra.mxu0 %v4202
    %6025 = vmatpush.bf16.msra.mxu0 %v4198
    %6026 = vmatpush.bf16.msra.mxu0 %v4194
    %6027 = vmatpush.bf16.msra.mxu0 %v4190
    %6028 = vmatpush.bf16.msra.mxu0 %v4186
    %6029 = vmatpush.bf16.msra.mxu0 %v4182
    %6030 = vmatmul.bf16.gmra.mxu0 %v389
    %v6031 = vpop.f32.mrf.mxu0
    %v6032 = vadd.f32 %v6019, %v6031
    %v6033 = vpop.f32.mrf.mxu0
    %6034 = vdwg.mxu0
    %6035 = vmatpush.bf16.msra.mxu0 %v4242
    %6036 = vmatpush.bf16.msra.mxu0 %v4238
    %6037 = vmatpush.bf16.msra.mxu0 %v4234
    %6038 = vmatpush.bf16.msra.mxu0 %v4230
    %6039 = vmatpush.bf16.msra.mxu0 %v4226
    %6040 = vmatpush.bf16.msra.mxu0 %v4222
    %6041 = vmatpush.bf16.msra.mxu0 %v4218
    %6042 = vmatpush.bf16.msra.mxu0 %v4214
    %6043 = vmatmul.bf16.gmra.mxu0 %v390
    %v6044 = vpop.f32.mrf.mxu0
    %v6045 = vadd.f32 %v6032, %v6044
    %v6046 = vpop.f32.mrf.mxu0
    %6047 = vdwg.mxu0
    %6048 = vmatpush.bf16.msra.mxu0 %v4274
    %6049 = vmatpush.bf16.msra.mxu0 %v4270
    %6050 = vmatpush.bf16.msra.mxu0 %v4266
    %6051 = vmatpush.bf16.msra.mxu0 %v4262
    %6052 = vmatpush.bf16.msra.mxu0 %v4258
    %6053 = vmatpush.bf16.msra.mxu0 %v4254
    %6054 = vmatpush.bf16.msra.mxu0 %v4250
    %6055 = vmatpush.bf16.msra.mxu0 %v4246
    %6056 = vmatmul.bf16.gmra.mxu0 %v391
    %v6057 = vpop.f32.mrf.mxu0
    %v6058 = vadd.f32 %v6045, %v6057
    %v6059 = vpop.f32.mrf.mxu0
    %6060 = vdwg.mxu0
    %6061 = vmatpush.bf16.msra.mxu0 %v4306
    %6062 = vmatpush.bf16.msra.mxu0 %v4302
    %6063 = vmatpush.bf16.msra.mxu0 %v4298
    %6064 = vmatpush.bf16.msra.mxu0 %v4294
    %6065 = vmatpush.bf16.msra.mxu0 %v4290
    %6066 = vmatpush.bf16.msra.mxu0 %v4286
    %6067 = vmatpush.bf16.msra.mxu0 %v4282
    %6068 = vmatpush.bf16.msra.mxu0 %v4278
    %6069 = vmatmul.bf16.gmra.mxu0 %v392
    %v6070 = vpop.f32.mrf.mxu0
    %v6071 = vadd.f32 %v6058, %v6070
    %v6072 = vpop.f32.mrf.mxu0
    %6073 = vdwg.mxu0
    %6074 = vmatpush.bf16.msra.mxu0 0
    %6075 = vmatpush.bf16.msra.mxu0 0
    %6076 = vmatpush.bf16.msra.mxu0 0
    %6077 = vmatpush.bf16.msra.mxu0 0
    %6078 = vmatpush.bf16.msra.mxu0 %v4322
    %6079 = vmatpush.bf16.msra.mxu0 %v4318
    %6080 = vmatpush.bf16.msra.mxu0 %v4314
    %6081 = vmatpush.bf16.msra.mxu0 %v4310
    %6082 = vmatmul.bf16.gmra.mxu0 %v5110
    %v6083 = vpop.f32.mrf.mxu0
    %v6084 = vadd.f32 %v6071, %v6083
    %v6085 = vpop.f32.mrf.mxu0
    %6086 = vdwg.mxu0
    %6087 = vmatpush.bf16.msra.mxu0 %v3571
    %6088 = vmatpush.bf16.msra.mxu0 %v3567
    %6089 = vmatpush.bf16.msra.mxu0 %v3563
    %6090 = vmatpush.bf16.msra.mxu0 %v3559
    %6091 = vmatpush.bf16.msra.mxu0 %v3555
    %6092 = vmatpush.bf16.msra.mxu0 %v3551
    %6093 = vmatpush.bf16.msra.mxu0 %v3547
    %6094 = vmatpush.bf16.msra.mxu0 %v3543
    %6095 = vmatmul.bf16.gmra.mxu0 %v369
    %v6096 = vpop.f32.mrf.mxu0
    %v6097 = vadd.f32 %v1183, %v6096
    %v6098 = vpop.f32.mrf.mxu0
    %6099 = vdwg.mxu0
    %6100 = vmatpush.bf16.msra.mxu0 %v3603
    %6101 = vmatpush.bf16.msra.mxu0 %v3599
    %6102 = vmatpush.bf16.msra.mxu0 %v3595
    %6103 = vmatpush.bf16.msra.mxu0 %v3591
    %6104 = vmatpush.bf16.msra.mxu0 %v3587
    %6105 = vmatpush.bf16.msra.mxu0 %v3583
    %6106 = vmatpush.bf16.msra.mxu0 %v3579
    %6107 = vmatpush.bf16.msra.mxu0 %v3575
    %6108 = vmatmul.bf16.gmra.mxu0 %v370
    %v6109 = vpop.f32.mrf.mxu0
    %v6110 = vadd.f32 %v6097, %v6109
    %v6111 = vpop.f32.mrf.mxu0
    %6112 = vdwg.mxu0
    %6113 = vmatpush.bf16.msra.mxu0 %v3635
    %6114 = vmatpush.bf16.msra.mxu0 %v3631
    %6115 = vmatpush.bf16.msra.mxu0 %v3627
    %6116 = vmatpush.bf16.msra.mxu0 %v3623
    %6117 = vmatpush.bf16.msra.mxu0 %v3619
    %6118 = vmatpush.bf16.msra.mxu0 %v3615
    %6119 = vmatpush.bf16.msra.mxu0 %v3611
    %6120 = vmatpush.bf16.msra.mxu0 %v3607
    %6121 = vmatmul.bf16.gmra.mxu0 %v371
    %v6122 = vpop.f32.mrf.mxu0
    %v6123 = vadd.f32 %v6110, %v6122
    %v6124 = vpop.f32.mrf.mxu0
    %6125 = vdwg.mxu0
    %6126 = vmatpush.bf16.msra.mxu0 %v3667
    %6127 = vmatpush.bf16.msra.mxu0 %v3663
    %6128 = vmatpush.bf16.msra.mxu0 %v3659
    %6129 = vmatpush.bf16.msra.mxu0 %v3655
    %6130 = vmatpush.bf16.msra.mxu0 %v3651
    %6131 = vmatpush.bf16.msra.mxu0 %v3647
    %6132 = vmatpush.bf16.msra.mxu0 %v3643
    %6133 = vmatpush.bf16.msra.mxu0 %v3639
    %6134 = vmatmul.bf16.gmra.mxu0 %v372
    %v6135 = vpop.f32.mrf.mxu0
    %v6136 = vadd.f32 %v6123, %v6135
    %v6137 = vpop.f32.mrf.mxu0
    %6138 = vdwg.mxu0
    %6139 = vmatpush.bf16.msra.mxu0 %v3699
    %6140 = vmatpush.bf16.msra.mxu0 %v3695
    %6141 = vmatpush.bf16.msra.mxu0 %v3691
    %6142 = vmatpush.bf16.msra.mxu0 %v3687
    %6143 = vmatpush.bf16.msra.mxu0 %v3683
    %6144 = vmatpush.bf16.msra.mxu0 %v3679
    %6145 = vmatpush.bf16.msra.mxu0 %v3675
    %6146 = vmatpush.bf16.msra.mxu0 %v3671
    %6147 = vmatmul.bf16.gmra.mxu0 %v373
    %v6148 = vpop.f32.mrf.mxu0
    %v6149 = vadd.f32 %v6136, %v6148
    %v6150 = vpop.f32.mrf.mxu0
    %6151 = vdwg.mxu0
    %6152 = vmatpush.bf16.msra.mxu0 %v3731
    %6153 = vmatpush.bf16.msra.mxu0 %v3727
    %6154 = vmatpush.bf16.msra.mxu0 %v3723
    %6155 = vmatpush.bf16.msra.mxu0 %v3719
    %6156 = vmatpush.bf16.msra.mxu0 %v3715
    %6157 = vmatpush.bf16.msra.mxu0 %v3711
    %6158 = vmatpush.bf16.msra.mxu0 %v3707
    %6159 = vmatpush.bf16.msra.mxu0 %v3703
    %6160 = vmatmul.bf16.gmra.mxu0 %v374
    %v6161 = vpop.f32.mrf.mxu0
    %v6162 = vadd.f32 %v6149, %v6161
    %v6163 = vpop.f32.mrf.mxu0
    %6164 = vdwg.mxu0
    %6165 = vmatpush.bf16.msra.mxu0 %v3763
    %6166 = vmatpush.bf16.msra.mxu0 %v3759
    %6167 = vmatpush.bf16.msra.mxu0 %v3755
    %6168 = vmatpush.bf16.msra.mxu0 %v3751
    %6169 = vmatpush.bf16.msra.mxu0 %v3747
    %6170 = vmatpush.bf16.msra.mxu0 %v3743
    %6171 = vmatpush.bf16.msra.mxu0 %v3739
    %6172 = vmatpush.bf16.msra.mxu0 %v3735
    %6173 = vmatmul.bf16.gmra.mxu0 %v375
    %v6174 = vpop.f32.mrf.mxu0
    %v6175 = vadd.f32 %v6162, %v6174
    %v6176 = vpop.f32.mrf.mxu0
    %6177 = vdwg.mxu0
    %6178 = vmatpush.bf16.msra.mxu0 %v3795
    %6179 = vmatpush.bf16.msra.mxu0 %v3791
    %6180 = vmatpush.bf16.msra.mxu0 %v3787
    %6181 = vmatpush.bf16.msra.mxu0 %v3783
    %6182 = vmatpush.bf16.msra.mxu0 %v3779
    %6183 = vmatpush.bf16.msra.mxu0 %v3775
    %6184 = vmatpush.bf16.msra.mxu0 %v3771
    %6185 = vmatpush.bf16.msra.mxu0 %v3767
    %6186 = vmatmul.bf16.gmra.mxu0 %v376
    %v6187 = vpop.f32.mrf.mxu0
    %v6188 = vadd.f32 %v6175, %v6187
    %v6189 = vpop.f32.mrf.mxu0
    %6190 = vdwg.mxu0
    %6191 = vmatpush.bf16.msra.mxu0 %v3827
    %6192 = vmatpush.bf16.msra.mxu0 %v3823
    %6193 = vmatpush.bf16.msra.mxu0 %v3819
    %6194 = vmatpush.bf16.msra.mxu0 %v3815
    %6195 = vmatpush.bf16.msra.mxu0 %v3811
    %6196 = vmatpush.bf16.msra.mxu0 %v3807
    %6197 = vmatpush.bf16.msra.mxu0 %v3803
    %6198 = vmatpush.bf16.msra.mxu0 %v3799
    %6199 = vmatmul.bf16.gmra.mxu0 %v377
    %v6200 = vpop.f32.mrf.mxu0
    %v6201 = vadd.f32 %v6188, %v6200
    %v6202 = vpop.f32.mrf.mxu0
    %6203 = vdwg.mxu0
    %6204 = vmatpush.bf16.msra.mxu0 %v3859
    %6205 = vmatpush.bf16.msra.mxu0 %v3855
    %6206 = vmatpush.bf16.msra.mxu0 %v3851
    %6207 = vmatpush.bf16.msra.mxu0 %v3847
    %6208 = vmatpush.bf16.msra.mxu0 %v3843
    %6209 = vmatpush.bf16.msra.mxu0 %v3839
    %6210 = vmatpush.bf16.msra.mxu0 %v3835
    %6211 = vmatpush.bf16.msra.mxu0 %v3831
    %6212 = vmatmul.bf16.gmra.mxu0 %v378
    %v6213 = vpop.f32.mrf.mxu0
    %v6214 = vadd.f32 %v6201, %v6213
    %v6215 = vpop.f32.mrf.mxu0
    %6216 = vdwg.mxu0
    %6217 = vmatpush.bf16.msra.mxu0 %v3891
    %6218 = vmatpush.bf16.msra.mxu0 %v3887
    %6219 = vmatpush.bf16.msra.mxu0 %v3883
    %6220 = vmatpush.bf16.msra.mxu0 %v3879
    %6221 = vmatpush.bf16.msra.mxu0 %v3875
    %6222 = vmatpush.bf16.msra.mxu0 %v3871
    %6223 = vmatpush.bf16.msra.mxu0 %v3867
    %6224 = vmatpush.bf16.msra.mxu0 %v3863
    %6225 = vmatmul.bf16.gmra.mxu0 %v379
    %v6226 = vpop.f32.mrf.mxu0
    %v6227 = vadd.f32 %v6214, %v6226
    %v6228 = vpop.f32.mrf.mxu0
    %6229 = vdwg.mxu0
    %6230 = vmatpush.bf16.msra.mxu0 %v3923
    %6231 = vmatpush.bf16.msra.mxu0 %v3919
    %6232 = vmatpush.bf16.msra.mxu0 %v3915
    %6233 = vmatpush.bf16.msra.mxu0 %v3911
    %6234 = vmatpush.bf16.msra.mxu0 %v3907
    %6235 = vmatpush.bf16.msra.mxu0 %v3903
    %6236 = vmatpush.bf16.msra.mxu0 %v3899
    %6237 = vmatpush.bf16.msra.mxu0 %v3895
    %6238 = vmatmul.bf16.gmra.mxu0 %v380
    %v6239 = vpop.f32.mrf.mxu0
    %v6240 = vadd.f32 %v6227, %v6239
    %v6241 = vpop.f32.mrf.mxu0
    %6242 = vdwg.mxu0
    %6243 = vmatpush.bf16.msra.mxu0 %v3955
    %6244 = vmatpush.bf16.msra.mxu0 %v3951
    %6245 = vmatpush.bf16.msra.mxu0 %v3947
    %6246 = vmatpush.bf16.msra.mxu0 %v3943
    %6247 = vmatpush.bf16.msra.mxu0 %v3939
    %6248 = vmatpush.bf16.msra.mxu0 %v3935
    %6249 = vmatpush.bf16.msra.mxu0 %v3931
    %6250 = vmatpush.bf16.msra.mxu0 %v3927
    %6251 = vmatmul.bf16.gmra.mxu0 %v381
    %v6252 = vpop.f32.mrf.mxu0
    %v6253 = vadd.f32 %v6240, %v6252
    %v6254 = vpop.f32.mrf.mxu0
    %6255 = vdwg.mxu0
    %6256 = vmatpush.bf16.msra.mxu0 %v3987
    %6257 = vmatpush.bf16.msra.mxu0 %v3983
    %6258 = vmatpush.bf16.msra.mxu0 %v3979
    %6259 = vmatpush.bf16.msra.mxu0 %v3975
    %6260 = vmatpush.bf16.msra.mxu0 %v3971
    %6261 = vmatpush.bf16.msra.mxu0 %v3967
    %6262 = vmatpush.bf16.msra.mxu0 %v3963
    %6263 = vmatpush.bf16.msra.mxu0 %v3959
    %6264 = vmatmul.bf16.gmra.mxu0 %v382
    %v6265 = vpop.f32.mrf.mxu0
    %v6266 = vadd.f32 %v6253, %v6265
    %v6267 = vpop.f32.mrf.mxu0
    %6268 = vdwg.mxu0
    %6269 = vmatpush.bf16.msra.mxu0 %v4019
    %6270 = vmatpush.bf16.msra.mxu0 %v4015
    %6271 = vmatpush.bf16.msra.mxu0 %v4011
    %6272 = vmatpush.bf16.msra.mxu0 %v4007
    %6273 = vmatpush.bf16.msra.mxu0 %v4003
    %6274 = vmatpush.bf16.msra.mxu0 %v3999
    %6275 = vmatpush.bf16.msra.mxu0 %v3995
    %6276 = vmatpush.bf16.msra.mxu0 %v3991
    %6277 = vmatmul.bf16.gmra.mxu0 %v383
    %v6278 = vpop.f32.mrf.mxu0
    %v6279 = vadd.f32 %v6266, %v6278
    %v6280 = vpop.f32.mrf.mxu0
    %6281 = vdwg.mxu0
    %6282 = vmatpush.bf16.msra.mxu0 %v4051
    %6283 = vmatpush.bf16.msra.mxu0 %v4047
    %6284 = vmatpush.bf16.msra.mxu0 %v4043
    %6285 = vmatpush.bf16.msra.mxu0 %v4039
    %6286 = vmatpush.bf16.msra.mxu0 %v4035
    %6287 = vmatpush.bf16.msra.mxu0 %v4031
    %6288 = vmatpush.bf16.msra.mxu0 %v4027
    %6289 = vmatpush.bf16.msra.mxu0 %v4023
    %6290 = vmatmul.bf16.gmra.mxu0 %v384
    %v6291 = vpop.f32.mrf.mxu0
    %v6292 = vadd.f32 %v6279, %v6291
    %v6293 = vpop.f32.mrf.mxu0
    %6294 = vdwg.mxu0
    %6295 = vmatpush.bf16.msra.mxu0 %v4083
    %6296 = vmatpush.bf16.msra.mxu0 %v4079
    %6297 = vmatpush.bf16.msra.mxu0 %v4075
    %6298 = vmatpush.bf16.msra.mxu0 %v4071
    %6299 = vmatpush.bf16.msra.mxu0 %v4067
    %6300 = vmatpush.bf16.msra.mxu0 %v4063
    %6301 = vmatpush.bf16.msra.mxu0 %v4059
    %6302 = vmatpush.bf16.msra.mxu0 %v4055
    %6303 = vmatmul.bf16.gmra.mxu0 %v385
    %v6304 = vpop.f32.mrf.mxu0
    %v6305 = vadd.f32 %v6292, %v6304
    %v6306 = vpop.f32.mrf.mxu0
    %6307 = vdwg.mxu0
    %6308 = vmatpush.bf16.msra.mxu0 %v4115
    %6309 = vmatpush.bf16.msra.mxu0 %v4111
    %6310 = vmatpush.bf16.msra.mxu0 %v4107
    %6311 = vmatpush.bf16.msra.mxu0 %v4103
    %6312 = vmatpush.bf16.msra.mxu0 %v4099
    %6313 = vmatpush.bf16.msra.mxu0 %v4095
    %6314 = vmatpush.bf16.msra.mxu0 %v4091
    %6315 = vmatpush.bf16.msra.mxu0 %v4087
    %6316 = vmatmul.bf16.gmra.mxu0 %v386
    %v6317 = vpop.f32.mrf.mxu0
    %v6318 = vadd.f32 %v6305, %v6317
    %v6319 = vpop.f32.mrf.mxu0
    %6320 = vdwg.mxu0
    %6321 = vmatpush.bf16.msra.mxu0 %v4147
    %6322 = vmatpush.bf16.msra.mxu0 %v4143
    %6323 = vmatpush.bf16.msra.mxu0 %v4139
    %6324 = vmatpush.bf16.msra.mxu0 %v4135
    %6325 = vmatpush.bf16.msra.mxu0 %v4131
    %6326 = vmatpush.bf16.msra.mxu0 %v4127
    %6327 = vmatpush.bf16.msra.mxu0 %v4123
    %6328 = vmatpush.bf16.msra.mxu0 %v4119
    %6329 = vmatmul.bf16.gmra.mxu0 %v387
    %v6330 = vpop.f32.mrf.mxu0
    %v6331 = vadd.f32 %v6318, %v6330
    %v6332 = vpop.f32.mrf.mxu0
    %6333 = vdwg.mxu0
    %6334 = vmatpush.bf16.msra.mxu0 %v4179
    %6335 = vmatpush.bf16.msra.mxu0 %v4175
    %6336 = vmatpush.bf16.msra.mxu0 %v4171
    %6337 = vmatpush.bf16.msra.mxu0 %v4167
    %6338 = vmatpush.bf16.msra.mxu0 %v4163
    %6339 = vmatpush.bf16.msra.mxu0 %v4159
    %6340 = vmatpush.bf16.msra.mxu0 %v4155
    %6341 = vmatpush.bf16.msra.mxu0 %v4151
    %6342 = vmatmul.bf16.gmra.mxu0 %v388
    %v6343 = vpop.f32.mrf.mxu0
    %v6344 = vadd.f32 %v6331, %v6343
    %v6345 = vpop.f32.mrf.mxu0
    %6346 = vdwg.mxu0
    %6347 = vmatpush.bf16.msra.mxu0 %v4211
    %6348 = vmatpush.bf16.msra.mxu0 %v4207
    %6349 = vmatpush.bf16.msra.mxu0 %v4203
    %6350 = vmatpush.bf16.msra.mxu0 %v4199
    %6351 = vmatpush.bf16.msra.mxu0 %v4195
    %6352 = vmatpush.bf16.msra.mxu0 %v4191
    %6353 = vmatpush.bf16.msra.mxu0 %v4187
    %6354 = vmatpush.bf16.msra.mxu0 %v4183
    %6355 = vmatmul.bf16.gmra.mxu0 %v389
    %v6356 = vpop.f32.mrf.mxu0
    %v6357 = vadd.f32 %v6344, %v6356
    %v6358 = vpop.f32.mrf.mxu0
    %6359 = vdwg.mxu0
    %6360 = vmatpush.bf16.msra.mxu0 %v4243
    %6361 = vmatpush.bf16.msra.mxu0 %v4239
    %6362 = vmatpush.bf16.msra.mxu0 %v4235
    %6363 = vmatpush.bf16.msra.mxu0 %v4231
    %6364 = vmatpush.bf16.msra.mxu0 %v4227
    %6365 = vmatpush.bf16.msra.mxu0 %v4223
    %6366 = vmatpush.bf16.msra.mxu0 %v4219
    %6367 = vmatpush.bf16.msra.mxu0 %v4215
    %6368 = vmatmul.bf16.gmra.mxu0 %v390
    %v6369 = vpop.f32.mrf.mxu0
    %v6370 = vadd.f32 %v6357, %v6369
    %v6371 = vpop.f32.mrf.mxu0
    %6372 = vdwg.mxu0
    %6373 = vmatpush.bf16.msra.mxu0 %v4275
    %6374 = vmatpush.bf16.msra.mxu0 %v4271
    %6375 = vmatpush.bf16.msra.mxu0 %v4267
    %6376 = vmatpush.bf16.msra.mxu0 %v4263
    %6377 = vmatpush.bf16.msra.mxu0 %v4259
    %6378 = vmatpush.bf16.msra.mxu0 %v4255
    %6379 = vmatpush.bf16.msra.mxu0 %v4251
    %6380 = vmatpush.bf16.msra.mxu0 %v4247
    %6381 = vmatmul.bf16.gmra.mxu0 %v391
    %v6382 = vpop.f32.mrf.mxu0
    %v6383 = vadd.f32 %v6370, %v6382
    %v6384 = vpop.f32.mrf.mxu0
    %6385 = vdwg.mxu0
    %6386 = vmatpush.bf16.msra.mxu0 %v4307
    %6387 = vmatpush.bf16.msra.mxu0 %v4303
    %6388 = vmatpush.bf16.msra.mxu0 %v4299
    %6389 = vmatpush.bf16.msra.mxu0 %v4295
    %6390 = vmatpush.bf16.msra.mxu0 %v4291
    %6391 = vmatpush.bf16.msra.mxu0 %v4287
    %6392 = vmatpush.bf16.msra.mxu0 %v4283
    %6393 = vmatpush.bf16.msra.mxu0 %v4279
    %6394 = vmatmul.bf16.gmra.mxu0 %v392
    %v6395 = vpop.f32.mrf.mxu0
    %v6396 = vadd.f32 %v6383, %v6395
    %v6397 = vpop.f32.mrf.mxu0
    %6398 = vdwg.mxu0
    %6399 = vmatpush.bf16.msra.mxu0 0
    %6400 = vmatpush.bf16.msra.mxu0 0
    %6401 = vmatpush.bf16.msra.mxu0 0
    %6402 = vmatpush.bf16.msra.mxu0 0
    %6403 = vmatpush.bf16.msra.mxu0 %v4323
    %6404 = vmatpush.bf16.msra.mxu0 %v4319
    %6405 = vmatpush.bf16.msra.mxu0 %v4315
    %6406 = vmatpush.bf16.msra.mxu0 %v4311
    %6407 = vmatmul.bf16.gmra.mxu0 %v5110
    %v6408 = vpop.f32.mrf.mxu0
    %v6409 = vadd.f32 %v6396, %v6408
    %v6410 = vpop.f32.mrf.mxu0
    %6411 = vdwg.mxu0
    %v6412 = vmax.f32 %v5434, 0.0
    %v6413 = vmax.f32 %v5759, 0.0
    %v6414 = vmax.f32 %v6084, 0.0
    %v6415 = vmax.f32 %v6409, 0.0
    %v6416 = vld [vmem:[%s8] sm:$0xff]
    %v6417 = vld [vmem:[%s8 + $0x8] sm:$0xff]
    %v6418 = vld [vmem:[%s8 + $0x10] sm:$0xff]
    %v6419 = vld [vmem:[%s8 + $0x18] sm:$0xff]
    %v6420 = vld [vmem:[%s8 + $0x20] sm:$0xff]
    %v6421 = vld [vmem:[%s8 + $0x28] sm:$0xff]
    %v6422 = vld [vmem:[%s8 + $0x30] sm:$0xff]
    %v6423 = vld [vmem:[%s8 + $0x38] sm:$0xff]
    %v6424 = vld [vmem:[%s8 + $0x40] sm:$0xff]
    %v6425 = vld [vmem:[%s8 + $0x48] sm:$0xff]
    %v6426 = vld [vmem:[%s8 + $0x50] sm:$0xff]
    %v6427 = vld [vmem:[%s8 + $0x58] sm:$0xff]
    %v6428 = vld [vmem:[%s8 + $0x60] sm:$0xff]
    %v6429 = vld [vmem:[%s8 + $0x68] sm:$0xff]
    %v6430 = vld [vmem:[%s8 + $0x70] sm:$0xff]
    %v6431 = vld [vmem:[%s8 + $0x78] sm:$0xff]
    %v6432 = vld [vmem:[%s8 + $0x80] sm:$0xff]
    %v6433 = vld [vmem:[%s8 + $0x88] sm:$0xff]
    %v6434 = vld [vmem:[%s8 + $0x90] sm:$0xff]
    %v6435 = vld [vmem:[%s8 + $0x98] sm:$0xff]
    %v6436 = vld [vmem:[%s8 + $0xa0] sm:$0xff]
    %v6437 = vld [vmem:[%s8 + $0xa8] sm:$0xff]
    %v6438 = vld [vmem:[%s8 + $0xb0] sm:$0xff]
    %v6439 = vld [vmem:[%s8 + $0xb8] sm:$0xff]
    %v6440 = vld [vmem:[%s8 + $0xc0] sm:$0xff]
    %v6441 = vld [vmem:[%s8 + $0xc8] sm:$0xff]
    %v6442 = vld [vmem:[%s8 + $0xd0] sm:$0xff]
    %v6443 = vld [vmem:[%s8 + $0xd8] sm:$0xff]
    %v6444 = vld [vmem:[%s8 + $0xe0] sm:$0xff]
    %v6445 = vld [vmem:[%s8 + $0xe8] sm:$0xff]
    %v6446 = vld [vmem:[%s8 + $0xf0] sm:$0xff]
    %v6447 = vld [vmem:[%s8 + $0xf8] sm:$0xff]
    %v6448 = vld [vmem:[%s8 + $0x100] sm:$0xff]
    %v6449 = vld [vmem:[%s8 + $0x108] sm:$0xff]
    %v6450 = vld [vmem:[%s8 + $0x110] sm:$0xff]
    %v6451 = vld [vmem:[%s8 + $0x118] sm:$0xff]
    %v6452 = vld [vmem:[%s8 + $0x120] sm:$0xff]
    %v6453 = vld [vmem:[%s8 + $0x128] sm:$0xff]
    %v6454 = vld [vmem:[%s8 + $0x130] sm:$0xff]
    %v6455 = vld [vmem:[%s8 + $0x138] sm:$0xff]
    %v6456 = vld [vmem:[%s8 + $0x140] sm:$0xff]
    %v6457 = vld [vmem:[%s8 + $0x148] sm:$0xff]
    %v6458 = vld [vmem:[%s8 + $0x150] sm:$0xff]
    %v6459 = vld [vmem:[%s8 + $0x158] sm:$0xff]
    %v6460 = vld [vmem:[%s8 + $0x160] sm:$0xff]
    %v6461 = vld [vmem:[%s8 + $0x168] sm:$0xff]
    %v6462 = vld [vmem:[%s8 + $0x170] sm:$0xff]
    %v6463 = vld [vmem:[%s8 + $0x178] sm:$0xff]
    %v6464 = vld [vmem:[%s8 + $0x180] sm:$0xff]
    %v6465 = vld [vmem:[%s8 + $0x188] sm:$0xff]
    %v6466 = vld [vmem:[%s8 + $0x190] sm:$0xff]
    %v6467 = vld [vmem:[%s8 + $0x198] sm:$0xff]
    %v6468 = vld [vmem:[%s8 + $0x1a0] sm:$0xff]
    %v6469 = vld [vmem:[%s8 + $0x1a8] sm:$0xff]
    %v6470 = vld [vmem:[%s8 + $0x1b0] sm:$0xff]
    %v6471 = vld [vmem:[%s8 + $0x1b8] sm:$0xff]
    %v6472 = vld [vmem:[%s8 + $0x1c0] sm:$0xff]
    %v6473 = vld [vmem:[%s8 + $0x1c8] sm:$0xff]
    %v6474 = vld [vmem:[%s8 + $0x1d0] sm:$0xff]
    %v6475 = vld [vmem:[%s8 + $0x1d8] sm:$0xff]
    %v6476 = vld [vmem:[%s8 + $0x1e0] sm:$0xff]
    %v6477 = vld [vmem:[%s8 + $0x1e8] sm:$0xff]
    %v6478 = vld [vmem:[%s8 + $0x1f0] sm:$0xff]
    %v6479 = vld [vmem:[%s8 + $0x1f8] sm:$0xff]
    %v6480 = vld [vmem:[%s9] sm:$0x1]
    %v6482 = vperm.slane %v6480, 0
    %6484 = vmatpush.msra.mxu0 %v6431
    %6485 = vmatpush.msra.mxu0 %v6430
    %6486 = vmatpush.msra.mxu0 %v6429
    %6487 = vmatpush.msra.mxu0 %v6428
    %6488 = vmatpush.msra.mxu0 %v6427
    %6489 = vmatpush.msra.mxu0 %v6426
    %6490 = vmatpush.msra.mxu0 %v6425
    %6491 = vmatpush.msra.mxu0 %v6424
    %6492 = vmatpush.msra.mxu0 %v6423
    %6493 = vmatpush.msra.mxu0 %v6422
    %6494 = vmatpush.msra.mxu0 %v6421
    %6495 = vmatpush.msra.mxu0 %v6420
    %6496 = vmatpush.msra.mxu0 %v6419
    %6497 = vmatpush.msra.mxu0 %v6418
    %6498 = vmatpush.msra.mxu0 %v6417
    %6499 = vmatpush.msra.mxu0 %v6416
    %6500 = vmatmul.f32.gmra.mxu0 %v6412
    %v6501 = vpop.f32.mrf.mxu0
    %v6502 = vadd.f32 %v6482, %v6501
    %6503 = vdwg.mxu0
    %6504 = vmatpush.msra.mxu0 %v6447
    %6505 = vmatpush.msra.mxu0 %v6446
    %6506 = vmatpush.msra.mxu0 %v6445
    %6507 = vmatpush.msra.mxu0 %v6444
    %6508 = vmatpush.msra.mxu0 %v6443
    %6509 = vmatpush.msra.mxu0 %v6442
    %6510 = vmatpush.msra.mxu0 %v6441
    %6511 = vmatpush.msra.mxu0 %v6440
    %6512 = vmatpush.msra.mxu0 %v6439
    %6513 = vmatpush.msra.mxu0 %v6438
    %6514 = vmatpush.msra.mxu0 %v6437
    %6515 = vmatpush.msra.mxu0 %v6436
    %6516 = vmatpush.msra.mxu0 %v6435
    %6517 = vmatpush.msra.mxu0 %v6434
    %6518 = vmatpush.msra.mxu0 %v6433
    %6519 = vmatpush.msra.mxu0 %v6432
    %6520 = vmatmul.f32.gmra.mxu0 %v6413
    %v6521 = vpop.f32.mrf.mxu0
    %v6522 = vadd.f32 %v6502, %v6521
    %6523 = vdwg.mxu0
    %6524 = vmatpush.msra.mxu0 %v6463
    %6525 = vmatpush.msra.mxu0 %v6462
    %6526 = vmatpush.msra.mxu0 %v6461
    %6527 = vmatpush.msra.mxu0 %v6460
    %6528 = vmatpush.msra.mxu0 %v6459
    %6529 = vmatpush.msra.mxu0 %v6458
    %6530 = vmatpush.msra.mxu0 %v6457
    %6531 = vmatpush.msra.mxu0 %v6456
    %6532 = vmatpush.msra.mxu0 %v6455
    %6533 = vmatpush.msra.mxu0 %v6454
    %6534 = vmatpush.msra.mxu0 %v6453
    %6535 = vmatpush.msra.mxu0 %v6452
    %6536 = vmatpush.msra.mxu0 %v6451
    %6537 = vmatpush.msra.mxu0 %v6450
    %6538 = vmatpush.msra.mxu0 %v6449
    %6539 = vmatpush.msra.mxu0 %v6448
    %6540 = vmatmul.f32.gmra.mxu0 %v6414
    %v6541 = vpop.f32.mrf.mxu0
    %v6542 = vadd.f32 %v6522, %v6541
    %6543 = vdwg.mxu0
    %6544 = vmatpush.msra.mxu0 %v6479
    %6545 = vmatpush.msra.mxu0 %v6478
    %6546 = vmatpush.msra.mxu0 %v6477
    %6547 = vmatpush.msra.mxu0 %v6476
    %6548 = vmatpush.msra.mxu0 %v6475
    %6549 = vmatpush.msra.mxu0 %v6474
    %6550 = vmatpush.msra.mxu0 %v6473
    %6551 = vmatpush.msra.mxu0 %v6472
    %6552 = vmatpush.msra.mxu0 %v6471
    %6553 = vmatpush.msra.mxu0 %v6470
    %6554 = vmatpush.msra.mxu0 %v6469
    %6555 = vmatpush.msra.mxu0 %v6468
    %6556 = vmatpush.msra.mxu0 %v6467
    %6557 = vmatpush.msra.mxu0 %v6466
    %6558 = vmatpush.msra.mxu0 %v6465
    %6559 = vmatpush.msra.mxu0 %v6464
    %6560 = vmatmul.f32.gmra.mxu0 %v6415
    %v6561 = vpop.f32.mrf.mxu0
    %v6562 = vadd.f32 %v6542, %v6561
    %6563 = vdwg.mxu0
    %v6564 = vmul.f32 %v6562, 0.5
    %v6565 = vtanh.pop %v6564
    %v6566 = vadd.f32 %v6565, 1.0
    %v6567 = vmul.f32 %v6566, 0.5
    %vm6568 = vcmask 9216
    %6569 = vst.msk [vmem:[#allocation2] sm:$0x3] %vm6568, %v6567
    // Predicated region
    $region42: #{qnetwork_forward.7} parent=1 // pred_check
      _
    $region43: #{qnetwork_forward.7} parent=1 // pred_check_branch
      %6571 = sbr.rel (0) target = $region45
    $region44: #{qnetwork_forward.7} parent=1 // pred_region
      %6573 = vsyncadd [#allocation3], 0
      %s6575 = sshll.u32 [#allocation2], 4
      %s6576 = int_to_ptr.vmem [resolvable:$true] %s6575
      %s6577 = sshll.u32 %s10, 4
      %s6578 = int_to_ptr.hbm [resolvable:$true] %s6577
      %6580 = dma.vmem_to_hbm [thread:$0]  %s6576, 32, %s6578, [#allocation3]
    $region45: #{qnetwork_forward.7} parent=1 // pred_fallthru
      _
    // Predicated region
    $region46: #{qnetwork_forward.7} parent=1 // pred_check
      _
    $region47: #{qnetwork_forward.7} parent=1 // pred_check_branch
      %6582 = sbr.rel (0) target = $region49
    $region48: #{qnetwork_forward.7} parent=1 // pred_region
      %6584 = dma.done [#allocation3], 32
    $region49: #{qnetwork_forward.7} parent=1 // pred_fallthru
      _
    %6585 = vsyncpa [#allocation3], 1

</llo_original>
